<compile_context>
chip_gen: v7x
topology: tpu7x:2x2x1
jax: 0.10.0
libtpu: 0.0.40
codegen_flags: <defaults>
</compile_context>

<pallas_src>
import functools

import jax
import jax.numpy as jnp
from jax import lax
from jax.experimental import pallas as pl
from jax.experimental.pallas import tpu as pltpu

RS_PER_DS = 1.0           # solar radii per distance unit
N_COARSE = 32             # stratified samples per ray
N_HIER = 32               # hierarchical samples per ray
NEAR, FAR = 0.1, 2.0
HIDDEN = 64               # NeRF MLP hidden width
MLP_TILE = 1024           # rows per grid step in the MLP kernel
MLP_OUT_PAD = 128         # lane-dense MLP output width (2 real channels)
RAY_TILE = 256            # rays per grid step in the volume-rendering kernel
VMEM_LIMIT = 32 * 1024 * 1024   # explicit scoped-VMEM cap (safe on v5e/v6e/v7x)


def _round_tile(n, cap):
    """Largest multiple of 8 that is <= min(cap, n) (and >= 8)."""
    t = min(cap, max(8, n))
    return max(8, (t // 8) * 8)


# --------------------------------------------------------------------------
# Pallas kernel 1: NeRF MLP  (4 -> HIDDEN -> HIDDEN -> MLP_OUT_PAD)
# --------------------------------------------------------------------------
def _mlp_kernel(x_ref, w1_ref, b1_ref, w2_ref, b2_ref, w3_ref, b3_ref, o_ref):
    # bf16 MXU operands, f32 accumulation; bias add + ReLU in f32.
    x = x_ref[...].astype(jnp.bfloat16)
    h = jnp.dot(x, w1_ref[...], preferred_element_type=jnp.float32) + b1_ref[...]
    h = jnp.maximum(h, 0.0).astype(jnp.bfloat16)
    h = jnp.dot(h, w2_ref[...], preferred_element_type=jnp.float32) + b2_ref[...]
    h = jnp.maximum(h, 0.0).astype(jnp.bfloat16)
    o_ref[...] = (jnp.dot(h, w3_ref[...], preferred_element_type=jnp.float32)
                  + b3_ref[...])


def mlp_forward(params, x_flat):
    """x_flat: (N, 4) float32 -> raw (N, 2) = (emission_density, absorption_density)."""
    n, d_in = x_flat.shape
    h = params["w1"].shape[1]
    d_out = params["w3"].shape[1]

    tile = _round_tile(n, MLP_TILE)
    n_pad = pl.cdiv(n, tile) * tile
    # Avoid the pad + extra HBM copy when N is already a multiple of the tile.
    x_p = x_flat if n_pad == n else jnp.pad(x_flat, ((0, n_pad - n), (0, 0)))

    # bf16 weights (halves weight bytes, bf16-native MXU); biases stay f32.
    w1 = params["w1"].astype(jnp.bfloat16)
    w2 = params["w2"].astype(jnp.bfloat16)
    b1 = params["b1"].astype(jnp.float32)
    b2 = params["b2"].astype(jnp.float32)
    # Lane-dense output: zero-pad the last layer to MLP_OUT_PAD columns.
    w3 = jnp.zeros((h, MLP_OUT_PAD), jnp.float32).at[:, :d_out].set(params["w3"])
    w3 = w3.astype(jnp.bfloat16)
    b3 = jnp.zeros((1, MLP_OUT_PAD), jnp.float32).at[:, :d_out].set(params["b3"])

    out = pl.pallas_call(
        _mlp_kernel,
        out_shape=jax.ShapeDtypeStruct((n_pad, MLP_OUT_PAD), jnp.float32),
        grid=(n_pad // tile,),
        in_specs=[
            pl.BlockSpec((tile, d_in), lambda i: (i, 0)),
            pl.BlockSpec((d_in, h), lambda i: (0, 0)),
            pl.BlockSpec((1, h), lambda i: (0, 0)),
            pl.BlockSpec((h, h), lambda i: (0, 0)),
            pl.BlockSpec((1, h), lambda i: (0, 0)),
            pl.BlockSpec((h, MLP_OUT_PAD), lambda i: (0, 0)),
            pl.BlockSpec((1, MLP_OUT_PAD), lambda i: (0, 0)),
        ],
        out_specs=pl.BlockSpec((tile, MLP_OUT_PAD), lambda i: (i, 0)),
        compiler_params=pltpu.CompilerParams(
            dimension_semantics=("parallel",),
            vmem_limit_bytes=VMEM_LIMIT),
    )(x_p, w1, b1, w2, b2, w3, b3)
    return out[:n, :d_out]


# --------------------------------------------------------------------------
# Pallas kernel 2: raw -> outputs (volume rendering + extra maps)
# --------------------------------------------------------------------------
def _raw2outputs_kernel(mask_ref, em_ref, sig_ref, dists_ref, dist_ref,
                        img_ref, w_ref, trans_ref, hmap_ref, amap_ref, reg_ref,
                        *, reg_threshold):
    em = jnp.maximum(em_ref[...], 0.0)          # emission per sample, (TR, S)
    sig = jnp.maximum(sig_ref[...], 0.0)        # absorption density,  (TR, S)
    dists = dists_ref[...]                      # ray-segment lengths, (TR, S)

    trans = jnp.exp(-sig * dists)               # per-sample transmission (0, 1]
    alpha = 1.0 - trans
    log_t = jnp.log(trans + 1e-10)

    # Exclusive cumulative sum (log-space cumulative product) over the sample
    # axis via one MXU matmul with the precomputed strictly-upper-triangular
    # mask: dot(log_t, M)[r, i] = sum_{j<i} log_t[r, j].  Kept in f32.
    excl_cumsum = jnp.dot(log_t, mask_ref[...], preferred_element_type=jnp.float32)
    transmittance = jnp.exp(excl_cumsum)

    w = alpha * transmittance                   # rendering weights, (TR, S)
    d = dist_ref[...]                           # ||query_point|| per sample, (TR, S)

    w_ref[...] = w
    trans_ref[...] = trans
    img_ref[...] = jnp.sum(w * em, axis=-1, keepdims=True)      # image (TR, 1)
    hmap_ref[...] = jnp.sum(w * d, axis=-1, keepdims=True)      # height map (TR, 1)
    amap_ref[...] = alpha                                       # absorption map (TR, S)
    reg_ref[...] = jnp.maximum(d - reg_threshold, 0.0) * alpha  # regularization


def raw2outputs(raw, z_vals, rays_d, query_points, rs_per_ds, ray_tile=RAY_TILE):
    """raw: (R, S, 2), z_vals: (R, S), rays_d: (R, 3), query_points: (R, S, 3)."""
    r, s = z_vals.shape
    em = raw[..., 0]
    sig = raw[..., 1]
    dists = jnp.concatenate(
        [z_vals[..., 1:] - z_vals[..., :-1], jnp.full_like(z_vals[..., :1], 1e10)],
        axis=-1)
    dists = dists * jnp.linalg.norm(rays_d, axis=-1, keepdims=True)
    dist = jnp.sqrt(jnp.sum(query_points ** 2, axis=-1))   # ||p|| per sample, (R, S)

    # Strictly-upper-triangular mask for the exclusive cumsum, built once here
    # (hoisted out of the kernel body) and broadcast to every grid step.
    row = lax.broadcasted_iota(jnp.int32, (s, s), 0)
    col = lax.broadcasted_iota(jnp.int32, (s, s), 1)
    mask = (row < col).astype(jnp.float32)

    tr = _round_tile(r, ray_tile)
    r_pad = pl.cdiv(r, tr) * tr
    if r_pad != r:
        pad = ((0, r_pad - r), (0, 0))
        em = jnp.pad(em, pad)
        sig = jnp.pad(sig, pad)
        dists = jnp.pad(dists, pad)
        dist = jnp.pad(dist, pad)

    kern = functools.partial(_raw2outputs_kernel, reg_threshold=1.2 / rs_per_ds)
    ray_spec = pl.BlockSpec((tr, s), lambda i: (i, 0))
    col_spec = pl.BlockSpec((tr, 1), lambda i: (i, 0))

    image, weights, trans, hmap, amap, reg = pl.pallas_call(
        kern,
        out_shape=(
            jax.ShapeDtypeStruct((r_pad, 1), jnp.float32),  # image
            jax.ShapeDtypeStruct((r_pad, s), jnp.float32),  # weights
            jax.ShapeDtypeStruct((r_pad, s), jnp.float32),  # regularizing_quantity
            jax.ShapeDtypeStruct((r_pad, 1), jnp.float32),  # height map
            jax.ShapeDtypeStruct((r_pad, s), jnp.float32),  # absorption map
            jax.ShapeDtypeStruct((r_pad, s), jnp.float32),  # regularization (2d)
        ),
        grid=(r_pad // tr,),
        in_specs=[pl.BlockSpec((s, s), lambda i: (0, 0)),   # triangular mask
                  ray_spec, ray_spec, ray_spec, ray_spec],
        out_specs=(col_spec, ray_spec, ray_spec, col_spec, ray_spec, ray_spec),
        compiler_params=pltpu.CompilerParams(
            dimension_semantics=("parallel",),
            vmem_limit_bytes=VMEM_LIMIT),
    )(mask, em, sig, dists, dist)

    return {
        "image": image[:r],                              # (R, 1)
        "weights": weights[:r],                          # (R, S)
        "regularizing_quantity": trans[:r, :, None],     # (R, S, 1)
        "height_map": hmap[:r, 0],                       # (R,)
        "absorption_map": amap[:r],                      # (R, S)
        "regularization": reg[:r, :, None],              # (R, S, 1)
    }


# --------------------------------------------------------------------------
# Samplers (plain JAX glue)
# --------------------------------------------------------------------------
def stratified_sampler(rays_o, rays_d, key, n_samples=N_COARSE,
                       near=NEAR, far=FAR, perturb=True):
    r = rays_o.shape[0]
    t = jnp.linspace(0.0, 1.0, n_samples, dtype=jnp.float32)
    z = near * (1.0 - t) + far * t
    z = jnp.broadcast_to(z, (r, n_samples))
    if perturb:
        mids = 0.5 * (z[..., 1:] + z[..., :-1])
        upper = jnp.concatenate([mids, z[..., -1:]], axis=-1)
        lower = jnp.concatenate([z[..., :1], mids], axis=-1)
        u = jax.random.uniform(key, z.shape, dtype=jnp.float32)
        z = lower + (upper - lower) * u
    pts = rays_o[:, None, :] + rays_d[:, None, :] * z[..., None]
    return {"points": pts, "z_vals": z}


def _sample_pdf(bins, weights, n_samples, key):
    pdf = (weights + 1e-5) / jnp.sum(weights + 1e-5, axis=-1, keepdims=True)
    cdf = jnp.cumsum(pdf, axis=-1)
    cdf = jnp.concatenate([jnp.zeros_like(cdf[..., :1]), cdf], axis=-1)  # (R, B)
    u = jax.random.uniform(key, (bins.shape[0], n_samples), dtype=jnp.float32)
    inds = jax.vmap(lambda c, uu: jnp.searchsorted(c, uu, side="right"))(cdf, u)
    below = jnp.clip(inds - 1, 0, cdf.shape[-1] - 1)
    above = jnp.clip(inds, 0, cdf.shape[-1] - 1)
    cdf_g0 = jnp.take_along_axis(cdf, below, axis=-1)
    cdf_g1 = jnp.take_along_axis(cdf, above, axis=-1)
    bins_g0 = jnp.take_along_axis(bins, jnp.clip(below, 0, bins.shape[-1] - 1), axis=-1)
    bins_g1 = jnp.take_along_axis(bins, jnp.clip(above, 0, bins.shape[-1] - 1), axis=-1)
    denom = cdf_g1 - cdf_g0
    denom = jnp.where(denom < 1e-5, 1.0, denom)
    tt = (u - cdf_g0) / denom
    return bins_g0 + tt * (bins_g1 - bins_g0)


def hierarchical_sampler(rays_o, rays_d, z_vals, weights, key, n_samples=N_HIER):
    z_mid = 0.5 * (z_vals[..., 1:] + z_vals[..., :-1])
    new_z = _sample_pdf(z_mid, weights[..., 1:-1], n_samples, key)
    new_z = lax.stop_gradient(new_z)
    z_comb = jnp.sort(jnp.concatenate([z_vals, new_z], axis=-1), axis=-1)
    pts = rays_o[:, None, :] + rays_d[:, None, :] * z_comb[..., None]
    return {"points": pts, "z_vals": z_comb, "new_z_samples": new_z}


# --------------------------------------------------------------------------
# SuNeRFRendering forward
# --------------------------------------------------------------------------
def _render(model_params, query_points_time, rays_d, rays_o, z_vals, query_points):
    shp = query_points_time.shape[:-1]
    flat = query_points_time.reshape(-1, 4)
    raw = mlp_forward(model_params, flat)
    raw = raw.reshape(*shp, raw.shape[-1])
    return raw2outputs(raw, z_vals, rays_d, query_points, RS_PER_DS)


def sunerf_forward(coarse_params, fine_params, rays_o, rays_d, times, key):
    k_strat, k_hier = jax.random.split(key)

    # coarse (stratified) pass
    samp = stratified_sampler(rays_o, rays_d, k_strat)
    qp, z_vals = samp["points"], samp["z_vals"]
    exp_t = jnp.repeat(times[:, None], qp.shape[1], axis=1)         # (R, S, 1)
    qpt = jnp.concatenate([qp, exp_t], axis=-1)                     # (R, S, 4)
    coarse = _render(coarse_params, qpt, rays_d, rays_o, z_vals, qp)

    outputs = {"z_vals_stratified": z_vals, "coarse_image": coarse["image"]}

    # fine (hierarchical) pass
    hier = hierarchical_sampler(rays_o, rays_d, z_vals, coarse["weights"], k_hier)
    qp, z_comb, z_h = hier["points"], hier["z_vals"], hier["new_z_samples"]
    exp_t = jnp.repeat(times[:, None], qp.shape[1], axis=1)
    qpt = jnp.concatenate([qp, exp_t], axis=-1)
    fine = _render(fine_params, qpt, rays_d, rays_o, z_comb, qp)

    outputs["z_vals_hierarchical"] = z_h
    outputs["fine_image"] = fine["image"]
    outputs["image"] = fine["image"]
    outputs["height_map"] = fine["height_map"]
    outputs["absorption_map"] = fine["absorption_map"]
    outputs["regularization"] = fine["regularization"]
    return outputs


# --------------------------------------------------------------------------
# Deterministic parameter init
# --------------------------------------------------------------------------
def init_mlp(key, d_in=4, d_hidden=HIDDEN, d_out=2):
    k1, k2, k3 = jax.random.split(key, 3)

    def lin(k, fan_in, fan_out):
        return (jax.random.normal(k, (fan_in, fan_out), jnp.float32)
                / jnp.sqrt(jnp.float32(fan_in)))

    return {
        "w1": lin(k1, d_in, d_hidden), "b1": jnp.zeros((1, d_hidden), jnp.float32),
        "w2": lin(k2, d_hidden, d_hidden), "b2": jnp.zeros((1, d_hidden), jnp.float32),
        "w3": lin(k3, d_hidden, d_out), "b3": jnp.zeros((1, d_out), jnp.float32),
    }


if __name__ == "__main__":
    key = jax.random.PRNGKey(0)
    kp1, kp2, kr1, kr2, kt, kfwd = jax.random.split(key, 6)

    R = 64
    rays_o = jax.random.normal(kr1, (R, 3), jnp.float32) * 0.1
    d = jax.random.normal(kr2, (R, 3), jnp.float32)
    rays_d = d / jnp.linalg.norm(d, axis=-1, keepdims=True)
    times = jax.random.uniform(kt, (R, 1), jnp.float32)

    coarse_params = init_mlp(kp1)
    fine_params = init_mlp(kp2)

    out = jax.jit(sunerf_forward)(coarse_params, fine_params, rays_o, rays_d, times, kfwd)
    out = jax.block_until_ready(out)

    sc = N_COARSE + N_HIER
    assert out["z_vals_stratified"].shape == (R, N_COARSE)
    assert out["coarse_image"].shape == (R, 1)
    assert out["z_vals_hierarchical"].shape == (R, N_HIER)
    assert out["fine_image"].shape == (R, 1)
    assert out["image"].shape == (R, 1)
    assert out["height_map"].shape == (R,)
    assert out["absorption_map"].shape == (R, sc)
    assert out["regularization"].shape == (R, sc, 1)
    assert all(bool(jnp.all(jnp.isfinite(v))) for v in jax.tree_util.tree_leaves(out))

    print("KERNEL_OK")
</pallas_src>

<mosaic_0001>
module attributes {stable_mosaic.version = 11 : i64} {
  func.func private @main(%arg0: i32) attributes {dimension_semantics = [#tpu.dimension_semantics<core_parallel>], iteration_bounds = array<i64: 2>, tpu.core_type = #tpu.core_type<sc_scalar_subcore>, window_params = []} {
    return
  }
}

module attributes {stable_mosaic.version = 11 : i64} {
  func.func private @main(%arg0: i32) attributes {dimension_semantics = [#tpu.dimension_semantics<core_parallel>], iteration_bounds = array<i64: 2>, tpu.core_type = #tpu.core_type<sc_scalar_subcore>, window_params = []} {
    return
  }
}

module attributes {stable_mosaic.version = 11 : i64} {
  func.func @_mlp_kernel(%arg0: i32, %arg1: memref<1024x4xf32, #tpu.memory_space<vmem>>, %arg2: memref<4x64xbf16, #tpu.memory_space<vmem>>, %arg3: memref<1x64xf32, #tpu.memory_space<vmem>>, %arg4: memref<64x64xbf16, #tpu.memory_space<vmem>>, %arg5: memref<1x64xf32, #tpu.memory_space<vmem>>, %arg6: memref<64x128xbf16, #tpu.memory_space<vmem>>, %arg7: memref<1x128xf32, #tpu.memory_space<vmem>>, %arg8: memref<1024x128xf32, #tpu.memory_space<vmem>>) attributes {dimension_semantics = [#tpu.dimension_semantics<parallel>], iteration_bounds = array<i64: 2>, scalar_prefetch = 0 : i64, scratch_operands = 0 : i64, tpu.core_type = #tpu.core_type<tc>, window_params = [{transform_indices = @transform_0, window_bounds = array<i64: 1024, 4>}, {pipeline_mode = #tpu.pipeline_mode<synchronous>, transform_indices = @transform_1, window_bounds = array<i64: 4, 64>}, {pipeline_mode = #tpu.pipeline_mode<synchronous>, transform_indices = @transform_2, window_bounds = array<i64: 1, 64>}, {pipeline_mode = #tpu.pipeline_mode<synchronous>, transform_indices = @transform_3, window_bounds = array<i64: 64, 64>}, {pipeline_mode = #tpu.pipeline_mode<synchronous>, transform_indices = @transform_4, window_bounds = array<i64: 1, 64>}, {pipeline_mode = #tpu.pipeline_mode<synchronous>, transform_indices = @transform_5, window_bounds = array<i64: 64, 128>}, {pipeline_mode = #tpu.pipeline_mode<synchronous>, transform_indices = @transform_6, window_bounds = array<i64: 1, 128>}, {transform_indices = @transform_7, window_bounds = array<i64: 1024, 128>}]} {
    %c0 = arith.constant 0 : index
    %c0_0 = arith.constant 0 : index
    %0 = vector.load %arg1[%c0, %c0_0] : memref<1024x4xf32, #tpu.memory_space<vmem>>, vector<1024x4xf32>
    %1 = arith.truncf %0 : vector<1024x4xf32> to vector<1024x4xbf16>
    %c0_1 = arith.constant 0 : index
    %c0_2 = arith.constant 0 : index
    %2 = vector.load %arg2[%c0_1, %c0_2] : memref<4x64xbf16, #tpu.memory_space<vmem>>, vector<4x64xbf16>
    %cst = arith.constant dense<0.000000e+00> : vector<1024x64xf32>
    %3 = tpu.matmul %1, %2, %cst {dimension_numbers = #tpu.dot_dimension_numbers<[1], [0], [0], [1], [0, 0, 1, 1], [], []>} : vector<1024x4xbf16>, vector<4x64xbf16>, vector<1024x64xf32> -> vector<1024x64xf32>
    %c0_3 = arith.constant 0 : index
    %c0_4 = arith.constant 0 : index
    %4 = vector.load %arg3[%c0_3, %c0_4] : memref<1x64xf32, #tpu.memory_space<vmem>>, vector<1x64xf32>
    %5 = vector.broadcast %4 : vector<1x64xf32> to vector<1024x64xf32>
    %6 = arith.addf %3, %5 : vector<1024x64xf32>
    %cst_5 = arith.constant 0.000000e+00 : f32
    %7 = vector.broadcast %cst_5 : f32 to vector<1024x64xf32>
    %8 = arith.maximumf %6, %7 : vector<1024x64xf32>
    %9 = arith.truncf %8 : vector<1024x64xf32> to vector<1024x64xbf16>
    %c0_6 = arith.constant 0 : index
    %c0_7 = arith.constant 0 : index
    %10 = vector.load %arg4[%c0_6, %c0_7] : memref<64x64xbf16, #tpu.memory_space<vmem>>, vector<64x64xbf16>
    %cst_8 = arith.constant dense<0.000000e+00> : vector<1024x64xf32>
    %11 = tpu.matmul %9, %10, %cst_8 {dimension_numbers = #tpu.dot_dimension_numbers<[1], [0], [0], [1], [0, 0, 1, 1], [], []>} : vector<1024x64xbf16>, vector<64x64xbf16>, vector<1024x64xf32> -> vector<1024x64xf32>
    %c0_9 = arith.constant 0 : index
    %c0_10 = arith.constant 0 : index
    %12 = vector.load %arg5[%c0_9, %c0_10] : memref<1x64xf32, #tpu.memory_space<vmem>>, vector<1x64xf32>
    %13 = vector.broadcast %12 : vector<1x64xf32> to vector<1024x64xf32>
    %14 = arith.addf %11, %13 : vector<1024x64xf32>
    %cst_11 = arith.constant 0.000000e+00 : f32
    %15 = vector.broadcast %cst_11 : f32 to vector<1024x64xf32>
    %16 = arith.maximumf %14, %15 : vector<1024x64xf32>
    %17 = arith.truncf %16 : vector<1024x64xf32> to vector<1024x64xbf16>
    %c0_12 = arith.constant 0 : index
    %c0_13 = arith.constant 0 : index
    %18 = vector.load %arg6[%c0_12, %c0_13] : memref<64x128xbf16, #tpu.memory_space<vmem>>, vector<64x128xbf16>
    %cst_14 = arith.constant dense<0.000000e+00> : vector<1024x128xf32>
    %19 = tpu.matmul %17, %18, %cst_14 {dimension_numbers = #tpu.dot_dimension_numbers<[1], [0], [0], [1], [0, 0, 1, 1], [], []>} : vector<1024x64xbf16>, vector<64x128xbf16>, vector<1024x128xf32> -> vector<1024x128xf32>
    %c0_15 = arith.constant 0 : index
    %c0_16 = arith.constant 0 : index
    %20 = vector.load %arg7[%c0_15, %c0_16] : memref<1x128xf32, #tpu.memory_space<vmem>>, vector<1x128xf32>
    %21 = vector.broadcast %20 : vector<1x128xf32> to vector<1024x128xf32>
    %22 = arith.addf %19, %21 : vector<1024x128xf32>
    %c0_17 = arith.constant 0 : index
    %c0_18 = arith.constant 0 : index
    %23 = vector.load %arg8[%c0_17, %c0_18] : memref<1024x128xf32, #tpu.memory_space<vmem>>, vector<1024x128xf32>
    tpu.vector_store %arg8[%c0_17, %c0_18], %22 {strides = array<i32>} : memref<1024x128xf32, #tpu.memory_space<vmem>>, vector<1024x128xf32>,
    return
  }
  func.func @transform_0(%arg0: i32) -> (i32, i32) {
    %c0_i32 = arith.constant 0 : i32
    %c0_i32_0 = arith.constant 0 : i32
    return %arg0, %c0_i32 : i32, i32
  }
  func.func @transform_1(%arg0: i32) -> (i32, i32) {
    %c0_i32 = arith.constant 0 : i32
    %c0_i32_0 = arith.constant 0 : i32
    %c0_i32_1 = arith.constant 0 : i32
    return %c0_i32, %c0_i32_0 : i32, i32
  }
  func.func @transform_2(%arg0: i32) -> (i32, i32) {
    %c0_i32 = arith.constant 0 : i32
    %c0_i32_0 = arith.constant 0 : i32
    %c0_i32_1 = arith.constant 0 : i32
    return %c0_i32, %c0_i32_0 : i32, i32
  }
  func.func @transform_3(%arg0: i32) -> (i32, i32) {
    %c0_i32 = arith.constant 0 : i32
    %c0_i32_0 = arith.constant 0 : i32
    %c0_i32_1 = arith.constant 0 : i32
    return %c0_i32, %c0_i32_0 : i32, i32
  }
  func.func @transform_4(%arg0: i32) -> (i32, i32) {
    %c0_i32 = arith.constant 0 : i32
    %c0_i32_0 = arith.constant 0 : i32
    %c0_i32_1 = arith.constant 0 : i32
    return %c0_i32, %c0_i32_0 : i32, i32
  }
  func.func @transform_5(%arg0: i32) -> (i32, i32) {
    %c0_i32 = arith.constant 0 : i32
    %c0_i32_0 = arith.constant 0 : i32
    %c0_i32_1 = arith.constant 0 : i32
    return %c0_i32, %c0_i32_0 : i32, i32
  }
  func.func @transform_6(%arg0: i32) -> (i32, i32) {
    %c0_i32 = arith.constant 0 : i32
    %c0_i32_0 = arith.constant 0 : i32
    %c0_i32_1 = arith.constant 0 : i32
    return %c0_i32, %c0_i32_0 : i32, i32
  }
  func.func @transform_7(%arg0: i32) -> (i32, i32) {
    %c0_i32 = arith.constant 0 : i32
    %c0_i32_0 = arith.constant 0 : i32
    return %arg0, %c0_i32 : i32, i32
  }
}

module attributes {stable_mosaic.version = 11 : i64} {
  func.func @_raw2outputs_kernel(%arg0: i32, %arg1: memref<32x32xf32, #tpu.memory_space<vmem>>, %arg2: memref<64x32xf32, #tpu.memory_space<vmem>>, %arg3: memref<64x32xf32, #tpu.memory_space<vmem>>, %arg4: memref<64x32xf32, #tpu.memory_space<vmem>>, %arg5: memref<64x32xf32, #tpu.memory_space<vmem>>, %arg6: memref<64x1xf32, #tpu.memory_space<vmem>>, %arg7: memref<64x32xf32, #tpu.memory_space<vmem>>, %arg8: memref<64x32xf32, #tpu.memory_space<vmem>>, %arg9: memref<64x1xf32, #tpu.memory_space<vmem>>, %arg10: memref<64x32xf32, #tpu.memory_space<vmem>>, %arg11: memref<64x32xf32, #tpu.memory_space<vmem>>) attributes {dimension_semantics = [#tpu.dimension_semantics<parallel>], iteration_bounds = array<i64: 1>, scalar_prefetch = 0 : i64, scratch_operands = 0 : i64, tpu.core_type = #tpu.core_type<tc>, window_params = [{pipeline_mode = #tpu.pipeline_mode<synchronous>, transform_indices = @transform_0, window_bounds = array<i64: 32, 32>}, {transform_indices = @transform_1, window_bounds = array<i64: 64, 32>}, {transform_indices = @transform_2, window_bounds = array<i64: 64, 32>}, {transform_indices = @transform_3, window_bounds = array<i64: 64, 32>}, {transform_indices = @transform_4, window_bounds = array<i64: 64, 32>}, {transform_indices = @transform_5, window_bounds = array<i64: 64, 1>}, {transform_indices = @transform_6, window_bounds = array<i64: 64, 32>}, {transform_indices = @transform_7, window_bounds = array<i64: 64, 32>}, {transform_indices = @transform_8, window_bounds = array<i64: 64, 1>}, {transform_indices = @transform_9, window_bounds = array<i64: 64, 32>}, {transform_indices = @transform_10, window_bounds = array<i64: 64, 32>}]} {
    %c0 = arith.constant 0 : index
    %c0_0 = arith.constant 0 : index
    %0 = vector.load %arg2[%c0, %c0_0] : memref<64x32xf32, #tpu.memory_space<vmem>>, vector<64x32xf32>
    %cst = arith.constant 0.000000e+00 : f32
    %1 = vector.broadcast %cst : f32 to vector<64x32xf32>
    %2 = arith.maximumf %0, %1 : vector<64x32xf32>
    %c0_1 = arith.constant 0 : index
    %c0_2 = arith.constant 0 : index
    %3 = vector.load %arg3[%c0_1, %c0_2] : memref<64x32xf32, #tpu.memory_space<vmem>>, vector<64x32xf32>
    %cst_3 = arith.constant 0.000000e+00 : f32
    %4 = vector.broadcast %cst_3 : f32 to vector<64x32xf32>
    %5 = arith.maximumf %3, %4 : vector<64x32xf32>
    %c0_4 = arith.constant 0 : index
    %c0_5 = arith.constant 0 : index
    %6 = vector.load %arg4[%c0_4, %c0_5] : memref<64x32xf32, #tpu.memory_space<vmem>>, vector<64x32xf32>
    %cst_6 = arith.constant 0.000000e+00 : f32
    %7 = vector.broadcast %cst_6 : f32 to vector<64x32xf32>
    %8 = arith.subf %7, %5 : vector<64x32xf32>
    %9 = arith.mulf %8, %6 : vector<64x32xf32>
    %10 = math.exp %9 : vector<64x32xf32>
    %cst_7 = arith.constant 1.000000e+00 : f32
    %11 = vector.broadcast %cst_7 : f32 to vector<64x32xf32>
    %12 = arith.subf %11, %10 : vector<64x32xf32>
    %cst_8 = arith.constant 1.000000e-10 : f32
    %13 = vector.broadcast %cst_8 : f32 to vector<64x32xf32>
    %14 = arith.addf %10, %13 : vector<64x32xf32>
    %15 = math.log %14 : vector<64x32xf32>
    %c0_9 = arith.constant 0 : index
    %c0_10 = arith.constant 0 : index
    %16 = vector.load %arg1[%c0_9, %c0_10] : memref<32x32xf32, #tpu.memory_space<vmem>>, vector<32x32xf32>
    %cst_11 = arith.constant dense<0.000000e+00> : vector<64x32xf32>
    %17 = tpu.matmul %15, %16, %cst_11 {dimension_numbers = #tpu.dot_dimension_numbers<[1], [0], [0], [1], [0, 0, 1, 1], [], []>} : vector<64x32xf32>, vector<32x32xf32>, vector<64x32xf32> -> vector<64x32xf32>
    %18 = math.exp %17 : vector<64x32xf32>
    %19 = arith.mulf %12, %18 : vector<64x32xf32>
    %c0_12 = arith.constant 0 : index
    %c0_13 = arith.constant 0 : index
    %20 = vector.load %arg5[%c0_12, %c0_13] : memref<64x32xf32, #tpu.memory_space<vmem>>, vector<64x32xf32>
    %c0_14 = arith.constant 0 : index
    %c0_15 = arith.constant 0 : index
    %21 = vector.load %arg7[%c0_14, %c0_15] : memref<64x32xf32, #tpu.memory_space<vmem>>, vector<64x32xf32>
    tpu.vector_store %arg7[%c0_14, %c0_15], %19 {strides = array<i32>} : memref<64x32xf32, #tpu.memory_space<vmem>>, vector<64x32xf32>,
    %c0_16 = arith.constant 0 : index
    %c0_17 = arith.constant 0 : index
    %22 = vector.load %arg8[%c0_16, %c0_17] : memref<64x32xf32, #tpu.memory_space<vmem>>, vector<64x32xf32>
    tpu.vector_store %arg8[%c0_16, %c0_17], %10 {strides = array<i32>} : memref<64x32xf32, #tpu.memory_space<vmem>>, vector<64x32xf32>,
    %23 = arith.mulf %19, %2 : vector<64x32xf32>
    %cst_18 = arith.constant dense<0.000000e+00> : vector<64xf32>
    %24 = vector.multi_reduction <add>, %23, %cst_18 [1] : vector<64x32xf32> to vector<64xf32>
    %25 = vector.shape_cast %24 : vector<64xf32> to vector<64x1xf32>
    %c0_19 = arith.constant 0 : index
    %c0_20 = arith.constant 0 : index
    %26 = vector.load %arg6[%c0_19, %c0_20] : memref<64x1xf32, #tpu.memory_space<vmem>>, vector<64x1xf32>
    tpu.vector_store %arg6[%c0_19, %c0_20], %25 {strides = array<i32>} : memref<64x1xf32, #tpu.memory_space<vmem>>, vector<64x1xf32>,
    %27 = arith.mulf %19, %20 : vector<64x32xf32>
    %cst_21 = arith.constant dense<0.000000e+00> : vector<64xf32>
    %28 = vector.multi_reduction <add>, %27, %cst_21 [1] : vector<64x32xf32> to vector<64xf32>
    %29 = vector.shape_cast %28 : vector<64xf32> to vector<64x1xf32>
    %c0_22 = arith.constant 0 : index
    %c0_23 = arith.constant 0 : index
    %30 = vector.load %arg9[%c0_22, %c0_23] : memref<64x1xf32, #tpu.memory_space<vmem>>, vector<64x1xf32>
    tpu.vector_store %arg9[%c0_22, %c0_23], %29 {strides = array<i32>} : memref<64x1xf32, #tpu.memory_space<vmem>>, vector<64x1xf32>,
    %c0_24 = arith.constant 0 : index
    %c0_25 = arith.constant 0 : index
    %31 = vector.load %arg10[%c0_24, %c0_25] : memref<64x32xf32, #tpu.memory_space<vmem>>, vector<64x32xf32>
    tpu.vector_store %arg10[%c0_24, %c0_25], %12 {strides = array<i32>} : memref<64x32xf32, #tpu.memory_space<vmem>>, vector<64x32xf32>,
    %cst_26 = arith.constant 1.200000e+00 : f32
    %32 = vector.broadcast %cst_26 : f32 to vector<64x32xf32>
    %33 = arith.subf %20, %32 : vector<64x32xf32>
    %cst_27 = arith.constant 0.000000e+00 : f32
    %34 = vector.broadcast %cst_27 : f32 to vector<64x32xf32>
    %35 = arith.maximumf %33, %34 : vector<64x32xf32>
    %36 = arith.mulf %35, %12 : vector<64x32xf32>
    %c0_28 = arith.constant 0 : index
    %c0_29 = arith.constant 0 : index
    %37 = vector.load %arg11[%c0_28, %c0_29] : memref<64x32xf32, #tpu.memory_space<vmem>>, vector<64x32xf32>
    tpu.vector_store %arg11[%c0_28, %c0_29], %36 {strides = array<i32>} : memref<64x32xf32, #tpu.memory_space<vmem>>, vector<64x32xf32>,
    return
  }
  func.func @transform_0(%arg0: i32) -> (i32, i32) {
    %c0_i32 = arith.constant 0 : i32
    %c0_i32_0 = arith.constant 0 : i32
    %c0_i32_1 = arith.constant 0 : i32
    return %c0_i32, %c0_i32_0 : i32, i32
  }
  func.func @transform_1(%arg0: i32) -> (i32, i32) {
    %c0_i32 = arith.constant 0 : i32
    %c0_i32_0 = arith.constant 0 : i32
    return %arg0, %c0_i32 : i32, i32
  }
  func.func @transform_2(%arg0: i32) -> (i32, i32) {
    %c0_i32 = arith.constant 0 : i32
    %c0_i32_0 = arith.constant 0 : i32
    return %arg0, %c0_i32 : i32, i32
  }
  func.func @transform_3(%arg0: i32) -> (i32, i32) {
    %c0_i32 = arith.constant 0 : i32
    %c0_i32_0 = arith.constant 0 : i32
    return %arg0, %c0_i32 : i32, i32
  }
  func.func @transform_4(%arg0: i32) -> (i32, i32) {
    %c0_i32 = arith.constant 0 : i32
    %c0_i32_0 = arith.constant 0 : i32
    return %arg0, %c0_i32 : i32, i32
  }
  func.func @transform_5(%arg0: i32) -> (i32, i32) {
    %c0_i32 = arith.constant 0 : i32
    %c0_i32_0 = arith.constant 0 : i32
    return %arg0, %c0_i32 : i32, i32
  }
  func.func @transform_6(%arg0: i32) -> (i32, i32) {
    %c0_i32 = arith.constant 0 : i32
    %c0_i32_0 = arith.constant 0 : i32
    return %arg0, %c0_i32 : i32, i32
  }
  func.func @transform_7(%arg0: i32) -> (i32, i32) {
    %c0_i32 = arith.constant 0 : i32
    %c0_i32_0 = arith.constant 0 : i32
    return %arg0, %c0_i32 : i32, i32
  }
  func.func @transform_8(%arg0: i32) -> (i32, i32) {
    %c0_i32 = arith.constant 0 : i32
    %c0_i32_0 = arith.constant 0 : i32
    return %arg0, %c0_i32 : i32, i32
  }
  func.func @transform_9(%arg0: i32) -> (i32, i32) {
    %c0_i32 = arith.constant 0 : i32
    %c0_i32_0 = arith.constant 0 : i32
    return %arg0, %c0_i32 : i32, i32
  }
  func.func @transform_10(%arg0: i32) -> (i32, i32) {
    %c0_i32 = arith.constant 0 : i32
    %c0_i32_0 = arith.constant 0 : i32
    return %arg0, %c0_i32 : i32, i32
  }
}

module attributes {stable_mosaic.version = 11 : i64} {
  func.func @_mlp_kernel(%arg0: i32, %arg1: memref<1024x4xf32, #tpu.memory_space<vmem>>, %arg2: memref<4x64xbf16, #tpu.memory_space<vmem>>, %arg3: memref<1x64xf32, #tpu.memory_space<vmem>>, %arg4: memref<64x64xbf16, #tpu.memory_space<vmem>>, %arg5: memref<1x64xf32, #tpu.memory_space<vmem>>, %arg6: memref<64x128xbf16, #tpu.memory_space<vmem>>, %arg7: memref<1x128xf32, #tpu.memory_space<vmem>>, %arg8: memref<1024x128xf32, #tpu.memory_space<vmem>>) attributes {dimension_semantics = [#tpu.dimension_semantics<parallel>], iteration_bounds = array<i64: 4>, scalar_prefetch = 0 : i64, scratch_operands = 0 : i64, tpu.core_type = #tpu.core_type<tc>, window_params = [{transform_indices = @transform_0, window_bounds = array<i64: 1024, 4>}, {pipeline_mode = #tpu.pipeline_mode<synchronous>, transform_indices = @transform_1, window_bounds = array<i64: 4, 64>}, {pipeline_mode = #tpu.pipeline_mode<synchronous>, transform_indices = @transform_2, window_bounds = array<i64: 1, 64>}, {pipeline_mode = #tpu.pipeline_mode<synchronous>, transform_indices = @transform_3, window_bounds = array<i64: 64, 64>}, {pipeline_mode = #tpu.pipeline_mode<synchronous>, transform_indices = @transform_4, window_bounds = array<i64: 1, 64>}, {pipeline_mode = #tpu.pipeline_mode<synchronous>, transform_indices = @transform_5, window_bounds = array<i64: 64, 128>}, {pipeline_mode = #tpu.pipeline_mode<synchronous>, transform_indices = @transform_6, window_bounds = array<i64: 1, 128>}, {transform_indices = @transform_7, window_bounds = array<i64: 1024, 128>}]} {
    %c0 = arith.constant 0 : index
    %c0_0 = arith.constant 0 : index
    %0 = vector.load %arg1[%c0, %c0_0] : memref<1024x4xf32, #tpu.memory_space<vmem>>, vector<1024x4xf32>
    %1 = arith.truncf %0 : vector<1024x4xf32> to vector<1024x4xbf16>
    %c0_1 = arith.constant 0 : index
    %c0_2 = arith.constant 0 : index
    %2 = vector.load %arg2[%c0_1, %c0_2] : memref<4x64xbf16, #tpu.memory_space<vmem>>, vector<4x64xbf16>
    %cst = arith.constant dense<0.000000e+00> : vector<1024x64xf32>
    %3 = tpu.matmul %1, %2, %cst {dimension_numbers = #tpu.dot_dimension_numbers<[1], [0], [0], [1], [0, 0, 1, 1], [], []>} : vector<1024x4xbf16>, vector<4x64xbf16>, vector<1024x64xf32> -> vector<1024x64xf32>
    %c0_3 = arith.constant 0 : index
    %c0_4 = arith.constant 0 : index
    %4 = vector.load %arg3[%c0_3, %c0_4] : memref<1x64xf32, #tpu.memory_space<vmem>>, vector<1x64xf32>
    %5 = vector.broadcast %4 : vector<1x64xf32> to vector<1024x64xf32>
    %6 = arith.addf %3, %5 : vector<1024x64xf32>
    %cst_5 = arith.constant 0.000000e+00 : f32
    %7 = vector.broadcast %cst_5 : f32 to vector<1024x64xf32>
    %8 = arith.maximumf %6, %7 : vector<1024x64xf32>
    %9 = arith.truncf %8 : vector<1024x64xf32> to vector<1024x64xbf16>
    %c0_6 = arith.constant 0 : index
    %c0_7 = arith.constant 0 : index
    %10 = vector.load %arg4[%c0_6, %c0_7] : memref<64x64xbf16, #tpu.memory_space<vmem>>, vector<64x64xbf16>
    %cst_8 = arith.constant dense<0.000000e+00> : vector<1024x64xf32>
    %11 = tpu.matmul %9, %10, %cst_8 {dimension_numbers = #tpu.dot_dimension_numbers<[1], [0], [0], [1], [0, 0, 1, 1], [], []>} : vector<1024x64xbf16>, vector<64x64xbf16>, vector<1024x64xf32> -> vector<1024x64xf32>
    %c0_9 = arith.constant 0 : index
    %c0_10 = arith.constant 0 : index
    %12 = vector.load %arg5[%c0_9, %c0_10] : memref<1x64xf32, #tpu.memory_space<vmem>>, vector<1x64xf32>
    %13 = vector.broadcast %12 : vector<1x64xf32> to vector<1024x64xf32>
    %14 = arith.addf %11, %13 : vector<1024x64xf32>
    %cst_11 = arith.constant 0.000000e+00 : f32
    %15 = vector.broadcast %cst_11 : f32 to vector<1024x64xf32>
    %16 = arith.maximumf %14, %15 : vector<1024x64xf32>
    %17 = arith.truncf %16 : vector<1024x64xf32> to vector<1024x64xbf16>
    %c0_12 = arith.constant 0 : index
    %c0_13 = arith.constant 0 : index
    %18 = vector.load %arg6[%c0_12, %c0_13] : memref<64x128xbf16, #tpu.memory_space<vmem>>, vector<64x128xbf16>
    %cst_14 = arith.constant dense<0.000000e+00> : vector<1024x128xf32>
    %19 = tpu.matmul %17, %18, %cst_14 {dimension_numbers = #tpu.dot_dimension_numbers<[1], [0], [0], [1], [0, 0, 1, 1], [], []>} : vector<1024x64xbf16>, vector<64x128xbf16>, vector<1024x128xf32> -> vector<1024x128xf32>
    %c0_15 = arith.constant 0 : index
    %c0_16 = arith.constant 0 : index
    %20 = vector.load %arg7[%c0_15, %c0_16] : memref<1x128xf32, #tpu.memory_space<vmem>>, vector<1x128xf32>
    %21 = vector.broadcast %20 : vector<1x128xf32> to vector<1024x128xf32>
    %22 = arith.addf %19, %21 : vector<1024x128xf32>
    %c0_17 = arith.constant 0 : index
    %c0_18 = arith.constant 0 : index
    %23 = vector.load %arg8[%c0_17, %c0_18] : memref<1024x128xf32, #tpu.memory_space<vmem>>, vector<1024x128xf32>
    tpu.vector_store %arg8[%c0_17, %c0_18], %22 {strides = array<i32>} : memref<1024x128xf32, #tpu.memory_space<vmem>>, vector<1024x128xf32>,
    return
  }
  func.func @transform_0(%arg0: i32) -> (i32, i32) {
    %c0_i32 = arith.constant 0 : i32
    %c0_i32_0 = arith.constant 0 : i32
    return %arg0, %c0_i32 : i32, i32
  }
  func.func @transform_1(%arg0: i32) -> (i32, i32) {
    %c0_i32 = arith.constant 0 : i32
    %c0_i32_0 = arith.constant 0 : i32
    %c0_i32_1 = arith.constant 0 : i32
    return %c0_i32, %c0_i32_0 : i32, i32
  }
  func.func @transform_2(%arg0: i32) -> (i32, i32) {
    %c0_i32 = arith.constant 0 : i32
    %c0_i32_0 = arith.constant 0 : i32
    %c0_i32_1 = arith.constant 0 : i32
    return %c0_i32, %c0_i32_0 : i32, i32
  }
  func.func @transform_3(%arg0: i32) -> (i32, i32) {
    %c0_i32 = arith.constant 0 : i32
    %c0_i32_0 = arith.constant 0 : i32
    %c0_i32_1 = arith.constant 0 : i32
    return %c0_i32, %c0_i32_0 : i32, i32
  }
  func.func @transform_4(%arg0: i32) -> (i32, i32) {
    %c0_i32 = arith.constant 0 : i32
    %c0_i32_0 = arith.constant 0 : i32
    %c0_i32_1 = arith.constant 0 : i32
    return %c0_i32, %c0_i32_0 : i32, i32
  }
  func.func @transform_5(%arg0: i32) -> (i32, i32) {
    %c0_i32 = arith.constant 0 : i32
    %c0_i32_0 = arith.constant 0 : i32
    %c0_i32_1 = arith.constant 0 : i32
    return %c0_i32, %c0_i32_0 : i32, i32
  }
  func.func @transform_6(%arg0: i32) -> (i32, i32) {
    %c0_i32 = arith.constant 0 : i32
    %c0_i32_0 = arith.constant 0 : i32
    %c0_i32_1 = arith.constant 0 : i32
    return %c0_i32, %c0_i32_0 : i32, i32
  }
  func.func @transform_7(%arg0: i32) -> (i32, i32) {
    %c0_i32 = arith.constant 0 : i32
    %c0_i32_0 = arith.constant 0 : i32
    return %arg0, %c0_i32 : i32, i32
  }
}

module attributes {stable_mosaic.version = 11 : i64} {
  func.func @_raw2outputs_kernel(%arg0: i32, %arg1: memref<64x64xf32, #tpu.memory_space<vmem>>, %arg2: memref<64x64xf32, #tpu.memory_space<vmem>>, %arg3: memref<64x64xf32, #tpu.memory_space<vmem>>, %arg4: memref<64x64xf32, #tpu.memory_space<vmem>>, %arg5: memref<64x64xf32, #tpu.memory_space<vmem>>, %arg6: memref<64x1xf32, #tpu.memory_space<vmem>>, %arg7: memref<64x64xf32, #tpu.memory_space<vmem>>, %arg8: memref<64x64xf32, #tpu.memory_space<vmem>>, %arg9: memref<64x1xf32, #tpu.memory_space<vmem>>, %arg10: memref<64x64xf32, #tpu.memory_space<vmem>>, %arg11: memref<64x64xf32, #tpu.memory_space<vmem>>) attributes {dimension_semantics = [#tpu.dimension_semantics<parallel>], iteration_bounds = array<i64: 1>, scalar_prefetch = 0 : i64, scratch_operands = 0 : i64, tpu.core_type = #tpu.core_type<tc>, window_params = [{pipeline_mode = #tpu.pipeline_mode<synchronous>, transform_indices = @transform_0, window_bounds = array<i64: 64, 64>}, {transform_indices = @transform_1, window_bounds = array<i64: 64, 64>}, {transform_indices = @transform_2, window_bounds = array<i64: 64, 64>}, {transform_indices = @transform_3, window_bounds = array<i64: 64, 64>}, {transform_indices = @transform_4, window_bounds = array<i64: 64, 64>}, {transform_indices = @transform_5, window_bounds = array<i64: 64, 1>}, {transform_indices = @transform_6, window_bounds = array<i64: 64, 64>}, {transform_indices = @transform_7, window_bounds = array<i64: 64, 64>}, {transform_indices = @transform_8, window_bounds = array<i64: 64, 1>}, {transform_indices = @transform_9, window_bounds = array<i64: 64, 64>}, {transform_indices = @transform_10, window_bounds = array<i64: 64, 64>}]} {
    %c0 = arith.constant 0 : index
    %c0_0 = arith.constant 0 : index
    %0 = vector.load %arg2[%c0, %c0_0] : memref<64x64xf32, #tpu.memory_space<vmem>>, vector<64x64xf32>
    %cst = arith.constant 0.000000e+00 : f32
    %1 = vector.broadcast %cst : f32 to vector<64x64xf32>
    %2 = arith.maximumf %0, %1 : vector<64x64xf32>
    %c0_1 = arith.constant 0 : index
    %c0_2 = arith.constant 0 : index
    %3 = vector.load %arg3[%c0_1, %c0_2] : memref<64x64xf32, #tpu.memory_space<vmem>>, vector<64x64xf32>
    %cst_3 = arith.constant 0.000000e+00 : f32
    %4 = vector.broadcast %cst_3 : f32 to vector<64x64xf32>
    %5 = arith.maximumf %3, %4 : vector<64x64xf32>
    %c0_4 = arith.constant 0 : index
    %c0_5 = arith.constant 0 : index
    %6 = vector.load %arg4[%c0_4, %c0_5] : memref<64x64xf32, #tpu.memory_space<vmem>>, vector<64x64xf32>
    %cst_6 = arith.constant 0.000000e+00 : f32
    %7 = vector.broadcast %cst_6 : f32 to vector<64x64xf32>
    %8 = arith.subf %7, %5 : vector<64x64xf32>
    %9 = arith.mulf %8, %6 : vector<64x64xf32>
    %10 = math.exp %9 : vector<64x64xf32>
    %cst_7 = arith.constant 1.000000e+00 : f32
    %11 = vector.broadcast %cst_7 : f32 to vector<64x64xf32>
    %12 = arith.subf %11, %10 : vector<64x64xf32>
    %cst_8 = arith.constant 1.000000e-10 : f32
    %13 = vector.broadcast %cst_8 : f32 to vector<64x64xf32>
    %14 = arith.addf %10, %13 : vector<64x64xf32>
    %15 = math.log %14 : vector<64x64xf32>
    %c0_9 = arith.constant 0 : index
    %c0_10 = arith.constant 0 : index
    %16 = vector.load %arg1[%c0_9, %c0_10] : memref<64x64xf32, #tpu.memory_space<vmem>>, vector<64x64xf32>
    %cst_11 = arith.constant dense<0.000000e+00> : vector<64x64xf32>
    %17 = tpu.matmul %15, %16, %cst_11 {dimension_numbers = #tpu.dot_dimension_numbers<[1], [0], [0], [1], [0, 0, 1, 1], [], []>} : vector<64x64xf32>, vector<64x64xf32>, vector<64x64xf32> -> vector<64x64xf32>
    %18 = math.exp %17 : vector<64x64xf32>
    %19 = arith.mulf %12, %18 : vector<64x64xf32>
    %c0_12 = arith.constant 0 : index
    %c0_13 = arith.constant 0 : index
    %20 = vector.load %arg5[%c0_12, %c0_13] : memref<64x64xf32, #tpu.memory_space<vmem>>, vector<64x64xf32>
    %c0_14 = arith.constant 0 : index
    %c0_15 = arith.constant 0 : index
    %21 = vector.load %arg7[%c0_14, %c0_15] : memref<64x64xf32, #tpu.memory_space<vmem>>, vector<64x64xf32>
    tpu.vector_store %arg7[%c0_14, %c0_15], %19 {strides = array<i32>} : memref<64x64xf32, #tpu.memory_space<vmem>>, vector<64x64xf32>,
    %c0_16 = arith.constant 0 : index
    %c0_17 = arith.constant 0 : index
    %22 = vector.load %arg8[%c0_16, %c0_17] : memref<64x64xf32, #tpu.memory_space<vmem>>, vector<64x64xf32>
    tpu.vector_store %arg8[%c0_16, %c0_17], %10 {strides = array<i32>} : memref<64x64xf32, #tpu.memory_space<vmem>>, vector<64x64xf32>,
    %23 = arith.mulf %19, %2 : vector<64x64xf32>
    %cst_18 = arith.constant dense<0.000000e+00> : vector<64xf32>
    %24 = vector.multi_reduction <add>, %23, %cst_18 [1] : vector<64x64xf32> to vector<64xf32>
    %25 = vector.shape_cast %24 : vector<64xf32> to vector<64x1xf32>
    %c0_19 = arith.constant 0 : index
    %c0_20 = arith.constant 0 : index
    %26 = vector.load %arg6[%c0_19, %c0_20] : memref<64x1xf32, #tpu.memory_space<vmem>>, vector<64x1xf32>
    tpu.vector_store %arg6[%c0_19, %c0_20], %25 {strides = array<i32>} : memref<64x1xf32, #tpu.memory_space<vmem>>, vector<64x1xf32>,
    %27 = arith.mulf %19, %20 : vector<64x64xf32>
    %cst_21 = arith.constant dense<0.000000e+00> : vector<64xf32>
    %28 = vector.multi_reduction <add>, %27, %cst_21 [1] : vector<64x64xf32> to vector<64xf32>
    %29 = vector.shape_cast %28 : vector<64xf32> to vector<64x1xf32>
    %c0_22 = arith.constant 0 : index
    %c0_23 = arith.constant 0 : index
    %30 = vector.load %arg9[%c0_22, %c0_23] : memref<64x1xf32, #tpu.memory_space<vmem>>, vector<64x1xf32>
    tpu.vector_store %arg9[%c0_22, %c0_23], %29 {strides = array<i32>} : memref<64x1xf32, #tpu.memory_space<vmem>>, vector<64x1xf32>,
    %c0_24 = arith.constant 0 : index
    %c0_25 = arith.constant 0 : index
    %31 = vector.load %arg10[%c0_24, %c0_25] : memref<64x64xf32, #tpu.memory_space<vmem>>, vector<64x64xf32>
    tpu.vector_store %arg10[%c0_24, %c0_25], %12 {strides = array<i32>} : memref<64x64xf32, #tpu.memory_space<vmem>>, vector<64x64xf32>,
    %cst_26 = arith.constant 1.200000e+00 : f32
    %32 = vector.broadcast %cst_26 : f32 to vector<64x64xf32>
    %33 = arith.subf %20, %32 : vector<64x64xf32>
    %cst_27 = arith.constant 0.000000e+00 : f32
    %34 = vector.broadcast %cst_27 : f32 to vector<64x64xf32>
    %35 = arith.maximumf %33, %34 : vector<64x64xf32>
    %36 = arith.mulf %35, %12 : vector<64x64xf32>
    %c0_28 = arith.constant 0 : index
    %c0_29 = arith.constant 0 : index
    %37 = vector.load %arg11[%c0_28, %c0_29] : memref<64x64xf32, #tpu.memory_space<vmem>>, vector<64x64xf32>
    tpu.vector_store %arg11[%c0_28, %c0_29], %36 {strides = array<i32>} : memref<64x64xf32, #tpu.memory_space<vmem>>, vector<64x64xf32>,
    return
  }
  func.func @transform_0(%arg0: i32) -> (i32, i32) {
    %c0_i32 = arith.constant 0 : i32
    %c0_i32_0 = arith.constant 0 : i32
    %c0_i32_1 = arith.constant 0 : i32
    return %c0_i32, %c0_i32_0 : i32, i32
  }
  func.func @transform_1(%arg0: i32) -> (i32, i32) {
    %c0_i32 = arith.constant 0 : i32
    %c0_i32_0 = arith.constant 0 : i32
    return %arg0, %c0_i32 : i32, i32
  }
  func.func @transform_2(%arg0: i32) -> (i32, i32) {
    %c0_i32 = arith.constant 0 : i32
    %c0_i32_0 = arith.constant 0 : i32
    return %arg0, %c0_i32 : i32, i32
  }
  func.func @transform_3(%arg0: i32) -> (i32, i32) {
    %c0_i32 = arith.constant 0 : i32
    %c0_i32_0 = arith.constant 0 : i32
    return %arg0, %c0_i32 : i32, i32
  }
  func.func @transform_4(%arg0: i32) -> (i32, i32) {
    %c0_i32 = arith.constant 0 : i32
    %c0_i32_0 = arith.constant 0 : i32
    return %arg0, %c0_i32 : i32, i32
  }
  func.func @transform_5(%arg0: i32) -> (i32, i32) {
    %c0_i32 = arith.constant 0 : i32
    %c0_i32_0 = arith.constant 0 : i32
    return %arg0, %c0_i32 : i32, i32
  }
  func.func @transform_6(%arg0: i32) -> (i32, i32) {
    %c0_i32 = arith.constant 0 : i32
    %c0_i32_0 = arith.constant 0 : i32
    return %arg0, %c0_i32 : i32, i32
  }
  func.func @transform_7(%arg0: i32) -> (i32, i32) {
    %c0_i32 = arith.constant 0 : i32
    %c0_i32_0 = arith.constant 0 : i32
    return %arg0, %c0_i32 : i32, i32
  }
  func.func @transform_8(%arg0: i32) -> (i32, i32) {
    %c0_i32 = arith.constant 0 : i32
    %c0_i32_0 = arith.constant 0 : i32
    return %arg0, %c0_i32 : i32, i32
  }
  func.func @transform_9(%arg0: i32) -> (i32, i32) {
    %c0_i32 = arith.constant 0 : i32
    %c0_i32_0 = arith.constant 0 : i32
    return %arg0, %c0_i32 : i32, i32
  }
  func.func @transform_10(%arg0: i32) -> (i32, i32) {
    %c0_i32 = arith.constant 0 : i32
    %c0_i32_0 = arith.constant 0 : i32
    return %arg0, %c0_i32 : i32, i32
  }
}

</mosaic_0001>

<llo_original>
// kernel: custom-call.11
$region0: #{custom-call.11}
  %s0 = inlined_call_operand.vmem [shape: u32[64,32], index: 0, kind: output, shape index: {}]

// kernel: squeeze.16
$region0: #{squeeze.16}
  %s0 = inlined_call_operand.hbm [shape: f32[2048], index: 0, kind: input, shape index: {}]
  %s1 = inlined_call_operand.vmem [shape: f32[64,32], index: 1, kind: output, shape index: {}]
  $region1: #{squeeze.16} parent=0
    #allocation0 [shape = 'u8[8192]{0}', space=vmem, size = 0x2000, scoped, tag = 'operand span for operand 0']
    #allocation1 [shape = 's32[1]{0}', space=sflag, size = 0x4, scoped, tag = 'scoped memory for squeeze.16']
    %2 = vsyncpa [#allocation1], 0
    %s4 = ssub.s32 256, 256
    %5 = vsyncadd [#allocation1], %s4
    %s7 = sshll.u32 [#allocation0], 4
    %s8 = int_to_ptr.vmem [resolvable:$true] %s7
    %10 = dma.hbm_to_vmem [thread:$0]  %s0, 256, %s8, [#allocation1]
    %11 = dma.done [#allocation1], 256
    %v12 = vld [vmem:[#allocation0] sm:$0xff]
    %vm13 = vcmask 261120
    %14 = vst.msk [vmem:[%s1] ss:$4 sm:$0xff] %vm13, %v12
    %s15 = scalar_lea.vmem [#allocation0], 8
    %v16 = vld [vmem:[%s15] sm:$0xff]
    %vm17 = vcmask 261120
    %s18 = scalar_lea.vmem %s1, 32
    %19 = vst.msk [vmem:[%s18] ss:$4 sm:$0xff] %vm17, %v16
    %v20 = vld [vmem:[#allocation0] sm:$0xff]
    %21 = vrot.lane.b32.xlu0 %v20, 96
    %v22 = vpop.permute.xlu0 %21
    %vm23 = vcmask 261120
    %s24 = scalar_lea.vmem %s1, 1
    %25 = vst.msk [vmem:[%s24] ss:$4 sm:$0xff] %vm23, %v22
    %s26 = scalar_lea.vmem [#allocation0], 8
    %v27 = vld [vmem:[%s26] sm:$0xff]
    %28 = vrot.lane.b32.xlu0 %v27, 96
    %v29 = vpop.permute.xlu0 %28
    %vm30 = vcmask 261120
    %s31 = scalar_lea.vmem %s1, 33
    %32 = vst.msk [vmem:[%s31] ss:$4 sm:$0xff] %vm30, %v29
    %v33 = vld [vmem:[#allocation0] sm:$0xff]
    %34 = vrot.lane.b32.xlu0 %v33, 64
    %v35 = vpop.permute.xlu0 %34
    %vm36 = vcmask 261120
    %s37 = scalar_lea.vmem %s1, 2
    %38 = vst.msk [vmem:[%s37] ss:$4 sm:$0xff] %vm36, %v35
    %s39 = scalar_lea.vmem [#allocation0], 8
    %v40 = vld [vmem:[%s39] sm:$0xff]
    %41 = vrot.lane.b32.xlu0 %v40, 64
    %v42 = vpop.permute.xlu0 %41
    %vm43 = vcmask 261120
    %s44 = scalar_lea.vmem %s1, 34
    %45 = vst.msk [vmem:[%s44] ss:$4 sm:$0xff] %vm43, %v42
    %v46 = vld [vmem:[#allocation0] sm:$0xff]
    %47 = vrot.lane.b32.xlu0 %v46, 32
    %v48 = vpop.permute.xlu0 %47
    %vm49 = vcmask 261120
    %s50 = scalar_lea.vmem %s1, 3
    %51 = vst.msk [vmem:[%s50] ss:$4 sm:$0xff] %vm49, %v48
    %s52 = scalar_lea.vmem [#allocation0], 8
    %v53 = vld [vmem:[%s52] sm:$0xff]
    %54 = vrot.lane.b32.xlu0 %v53, 32
    %v55 = vpop.permute.xlu0 %54
    %vm56 = vcmask 261120
    %s57 = scalar_lea.vmem %s1, 35
    %58 = vst.msk [vmem:[%s57] ss:$4 sm:$0xff] %vm56, %v55
    %59 = vsyncpa [#allocation1], 1

// kernel: sunerf_forward.7
$region0: #{sunerf_forward.7}
  #allocation0 [shape = 'u32[]', space=smem, size = 0x4, offset = 0x4, fixed_abs, tag = 'smem constant byte address 0x4 - core index']
  #allocation1 [shape = 'u32[144,128]{1,0:T(1,128)}', space=vmem, size = 0x12000, scoped, tag = 'internal scratch']
  %s0 = inlined_call_operand.vmem [shape: f32[32,32], index: 0, kind: input, shape index: {}]
  %s1 = inlined_call_operand.vmem [shape: f32[64,32], index: 1, kind: input, shape index: {}]
  %s2 = inlined_call_operand.vmem [shape: f32[64,32], index: 2, kind: input, shape index: {}]
  %s3 = inlined_call_operand.vmem [shape: f32[64,32], index: 3, kind: input, shape index: {}]
  %s4 = inlined_call_operand.vmem [shape: f32[64,32], index: 4, kind: input, shape index: {}]
  %s5 = inlined_call_operand.hbm [shape: f32[64,1], index: 5, kind: output, shape index: {0}]
  %s6 = inlined_call_operand.vmem [shape: f32[64,32], index: 6, kind: output, shape index: {1}]
  %s7 = inlined_call_operand.hbm [shape: f32[64,32], index: 7, kind: output, shape index: {2}]
  %s8 = inlined_call_operand.hbm [shape: f32[64,1], index: 8, kind: output, shape index: {3}]
  %s9 = inlined_call_operand.hbm [shape: f32[64,32], index: 9, kind: output, shape index: {4}]
  %s10 = inlined_call_operand.hbm [shape: f32[64,32], index: 10, kind: output, shape index: {5}]
  %11 = xla_tuple %s5, %s6, %s7, %s8, %s9, %s10
  %s12 = sld [smem:[#allocation0]]
  $region70: #{sunerf_forward.7} parent=0
    _
  %s14 = ssub.s32 1, %s12
  %s15 = scalar_select 0, %s14, %s12
  $region1: #{sunerf_forward.7} parent=0
    #allocation2 [shape = 'u8[32768]{0}', space=vmem, size = 0x8000, scoped, tag = 'output window, operand 0, single buffered']
    #allocation3 [shape = 's32[1]{0}', space=sflag, size = 0x4, scoped, tag = 'scoped memory for sunerf_forward.7']
    #allocation4 [shape = 'u8[32768]{0}', space=vmem, size = 0x8000, scoped, tag = 'output window, operand 2, single buffered']
    #allocation5 [shape = 's32[1]{0}', space=sflag, size = 0x4, scoped, tag = 'scoped memory for sunerf_forward.7']
    #allocation6 [shape = 'u8[32768]{0}', space=vmem, size = 0x8000, scoped, tag = 'output window, operand 3, single buffered']
    #allocation7 [shape = 'u8[32768]{0}', space=vmem, size = 0x8000, scoped, tag = 'output window, operand 4, single buffered']
    #allocation8 [shape = 's32[1]{0}', space=sflag, size = 0x4, scoped, tag = 'scoped memory for sunerf_forward.7']
    #allocation9 [shape = 'u8[32768]{0}', space=vmem, size = 0x8000, scoped, tag = 'output window, operand 5, single buffered']
    %16 = vsyncpa [#allocation3], 0
    %17 = vsyncpa [#allocation5], 0
    %18 = vsyncpa [#allocation8], 0
    // Predicated region
    $region2: #{sunerf_forward.7} parent=1 // pred_check
      _
    $region3: #{sunerf_forward.7} parent=1 // pred_check_branch
      %20 = sbr.rel (0) target = $region5
    $region4: #{sunerf_forward.7} parent=1 // pred_region
      _
    $region5: #{sunerf_forward.7} parent=1 // pred_fallthru
      _
    // Predicated region
    $region6: #{sunerf_forward.7} parent=1 // pred_check
      _
    $region7: #{sunerf_forward.7} parent=1 // pred_check_branch
      %22 = sbr.rel (0) target = $region9
    $region8: #{sunerf_forward.7} parent=1 // pred_region
      _
    $region9: #{sunerf_forward.7} parent=1 // pred_fallthru
      _
    // Predicated region
    $region10: #{sunerf_forward.7} parent=1 // pred_check
      _
    $region11: #{sunerf_forward.7} parent=1 // pred_check_branch
      %24 = sbr.rel (0) target = $region13
    $region12: #{sunerf_forward.7} parent=1 // pred_region
      _
    $region13: #{sunerf_forward.7} parent=1 // pred_fallthru
      _
    // Predicated region
    $region14: #{sunerf_forward.7} parent=1 // pred_check
      _
    $region15: #{sunerf_forward.7} parent=1 // pred_check_branch
      %26 = sbr.rel (0) target = $region17
    $region16: #{sunerf_forward.7} parent=1 // pred_region
      _
    $region17: #{sunerf_forward.7} parent=1 // pred_fallthru
      _
    // Predicated region
    $region18: #{sunerf_forward.7} parent=1 // pred_check
      _
    $region19: #{sunerf_forward.7} parent=1 // pred_check_branch
      %28 = sbr.rel (0) target = $region21
    $region20: #{sunerf_forward.7} parent=1 // pred_region
      _
    $region21: #{sunerf_forward.7} parent=1 // pred_fallthru
      _
    %v29 = vld [vmem:[%s1] sm:$0xff]
    %v30 = vld [vmem:[%s1 + $0x8] sm:$0xff]
    %v31 = vld [vmem:[%s1 + $0x10] sm:$0xff]
    %v32 = vld [vmem:[%s1 + $0x18] sm:$0xff]
    %v33 = vld [vmem:[%s1 + $0x20] sm:$0xff]
    %v34 = vld [vmem:[%s1 + $0x28] sm:$0xff]
    %v35 = vld [vmem:[%s1 + $0x30] sm:$0xff]
    %v36 = vld [vmem:[%s1 + $0x38] sm:$0xff]
    %v37 = vmax.f32 %v29, 0.0
    %v38 = vmax.f32 %v30, 0.0
    %v39 = vmax.f32 %v31, 0.0
    %v40 = vmax.f32 %v32, 0.0
    %v41 = vmax.f32 %v33, 0.0
    %v42 = vmax.f32 %v34, 0.0
    %v43 = vmax.f32 %v35, 0.0
    %v44 = vmax.f32 %v36, 0.0
    %v45 = vld [vmem:[%s2] sm:$0xff]
    %v46 = vld [vmem:[%s2 + $0x8] sm:$0xff]
    %v47 = vld [vmem:[%s2 + $0x10] sm:$0xff]
    %v48 = vld [vmem:[%s2 + $0x18] sm:$0xff]
    %v49 = vld [vmem:[%s2 + $0x20] sm:$0xff]
    %v50 = vld [vmem:[%s2 + $0x28] sm:$0xff]
    %v51 = vld [vmem:[%s2 + $0x30] sm:$0xff]
    %v52 = vld [vmem:[%s2 + $0x38] sm:$0xff]
    %v53 = vmax.f32 %v45, 0.0
    %v54 = vmax.f32 %v46, 0.0
    %v55 = vmax.f32 %v47, 0.0
    %v56 = vmax.f32 %v48, 0.0
    %v57 = vmax.f32 %v49, 0.0
    %v58 = vmax.f32 %v50, 0.0
    %v59 = vmax.f32 %v51, 0.0
    %v60 = vmax.f32 %v52, 0.0
    %v61 = vld [vmem:[%s3] sm:$0xff]
    %v62 = vld [vmem:[%s3 + $0x8] sm:$0xff]
    %v63 = vld [vmem:[%s3 + $0x10] sm:$0xff]
    %v64 = vld [vmem:[%s3 + $0x18] sm:$0xff]
    %v65 = vld [vmem:[%s3 + $0x20] sm:$0xff]
    %v66 = vld [vmem:[%s3 + $0x28] sm:$0xff]
    %v67 = vld [vmem:[%s3 + $0x30] sm:$0xff]
    %v68 = vld [vmem:[%s3 + $0x38] sm:$0xff]
    %v69 = vsub.f32 0.0, %v53
    %v70 = vsub.f32 0.0, %v54
    %v71 = vsub.f32 0.0, %v55
    %v72 = vsub.f32 0.0, %v56
    %v73 = vsub.f32 0.0, %v57
    %v74 = vsub.f32 0.0, %v58
    %v75 = vsub.f32 0.0, %v59
    %v76 = vsub.f32 0.0, %v60
    %v77 = vmul.f32 %v69, %v61
    %v78 = vmul.f32 %v70, %v62
    %v79 = vmul.f32 %v71, %v63
    %v80 = vmul.f32 %v72, %v64
    %v81 = vmul.f32 %v73, %v65
    %v82 = vmul.f32 %v74, %v66
    %v83 = vmul.f32 %v75, %v67
    %v84 = vmul.f32 %v76, %v68
    %v85 = vmul.f32 %v77, 1.442695
    %v86 = vpow.pop %v85
    %v87 = vmul.f32 %v78, 1.442695
    %v88 = vpow.pop %v87
    %v89 = vmul.f32 %v79, 1.442695
    %v90 = vpow.pop %v89
    %v91 = vmul.f32 %v80, 1.442695
    %v92 = vpow.pop %v91
    %v93 = vmul.f32 %v81, 1.442695
    %v94 = vpow.pop %v93
    %v95 = vmul.f32 %v82, 1.442695
    %v96 = vpow.pop %v95
    %v97 = vmul.f32 %v83, 1.442695
    %v98 = vpow.pop %v97
    %v99 = vmul.f32 %v84, 1.442695
    %v100 = vpow.pop %v99
    %v101 = vsub.f32 1.0, %v86
    %v102 = vsub.f32 1.0, %v88
    %v103 = vsub.f32 1.0, %v90
    %v104 = vsub.f32 1.0, %v92
    %v105 = vsub.f32 1.0, %v94
    %v106 = vsub.f32 1.0, %v96
    %v107 = vsub.f32 1.0, %v98
    %v108 = vsub.f32 1.0, %v100
    %v109 = vadd.f32 %v86, 1e-10
    %v110 = vadd.f32 %v88, 1e-10
    %v111 = vadd.f32 %v90, 1e-10
    %v112 = vadd.f32 %v92, 1e-10
    %v113 = vadd.f32 %v94, 1e-10
    %v114 = vadd.f32 %v96, 1e-10
    %v115 = vadd.f32 %v98, 1e-10
    %v116 = vadd.f32 %v100, 1e-10
    %v117 = vlog2.pop %v109
    %v118 = vmul.f32 %v117, 0.6931472
    %v119 = vlog2.pop %v110
    %v120 = vmul.f32 %v119, 0.6931472
    %v121 = vlog2.pop %v111
    %v122 = vmul.f32 %v121, 0.6931472
    %v123 = vlog2.pop %v112
    %v124 = vmul.f32 %v123, 0.6931472
    %v125 = vlog2.pop %v113
    %v126 = vmul.f32 %v125, 0.6931472
    %v127 = vlog2.pop %v114
    %v128 = vmul.f32 %v127, 0.6931472
    %v129 = vlog2.pop %v115
    %v130 = vmul.f32 %v129, 0.6931472
    %v131 = vlog2.pop %v116
    %v132 = vmul.f32 %v131, 0.6931472
    %v133 = vld [vmem:[%s0] sm:$0xff]
    %v134 = vld [vmem:[%s0 + $0x8] sm:$0xff]
    %v135 = vld [vmem:[%s0 + $0x10] sm:$0xff]
    %v136 = vld [vmem:[%s0 + $0x18] sm:$0xff]
    %vm137 = vcmask 261120
    %v139 = vsel %vm137, %v118, 0
    %v142 = vsel %vm137, %v120, 0
    %v145 = vsel %vm137, %v122, 0
    %v148 = vsel %vm137, %v124, 0
    %v151 = vsel %vm137, %v126, 0
    %v154 = vsel %vm137, %v128, 0
    %v157 = vsel %vm137, %v130, 0
    %v160 = vsel %vm137, %v132, 0
    %162 = vmatprep.subr.mxu0 0.0
    %163 = vmatpush1.msra.mxu0 %v133
    %164 = vmatprep.subr.mxu0 0.0
    %165 = vmatpush1.msra.mxu0 %v134
    %166 = vmatprep.subr.mxu0 0.0
    %167 = vmatpush1.msra.mxu0 %v135
    %168 = vmatprep.subr.mxu0 0.0
    %169 = vmatpush1.msra.mxu0 %v136
    %170 = vmatprep.subr.mxu0 0.0
    %171 = vmatpush1.msra.mxu0 0.0
    %172 = vmatprep.subr.mxu0 0.0
    %173 = vmatpush1.msra.mxu0 0.0
    %174 = vmatprep.subr.mxu0 0.0
    %175 = vmatpush1.msra.mxu0 0.0
    %176 = vmatprep.subr.mxu0 0.0
    %177 = vmatpush1.msra.mxu0 0.0
    %178 = vmatprep.subr.mxu0 0.0
    %179 = vmatpush1.msra.mxu0 0.0
    %180 = vmatprep.subr.mxu0 0.0
    %181 = vmatpush1.msra.mxu0 0.0
    %182 = vmatprep.subr.mxu0 0.0
    %183 = vmatpush1.msra.mxu0 0.0
    %184 = vmatprep.subr.mxu0 0.0
    %185 = vmatpush1.msra.mxu0 0.0
    %186 = vmatprep.subr.mxu0 0.0
    %187 = vmatpush1.msra.mxu0 0.0
    %188 = vmatprep.subr.mxu0 0.0
    %189 = vmatpush1.msra.mxu0 0.0
    %190 = vmatprep.subr.mxu0 0.0
    %191 = vmatpush1.msra.mxu0 0.0
    %192 = vmatprep.subr.mxu0 0.0
    %193 = vmatpush1.msra.mxu0 0.0
    %194 = vmatprep.subr.mxu0 0.0
    %195 = vmatpush1.msra.mxu0 0.0
    %196 = vmatprep.subr.mxu0 0.0
    %197 = vmatpush1.msra.mxu0 0.0
    %198 = vmatprep.subr.mxu0 0.0
    %199 = vmatpush1.msra.mxu0 0.0
    %200 = vmatprep.subr.mxu0 0.0
    %201 = vmatpush1.msra.mxu0 0.0
    %202 = vmatprep.subr.mxu0 0.0
    %203 = vmatpush1.msra.mxu0 0.0
    %204 = vmatprep.subr.mxu0 0.0
    %205 = vmatpush1.msra.mxu0 0.0
    %206 = vmatprep.subr.mxu0 0.0
    %207 = vmatpush1.msra.mxu0 0.0
    %208 = vmatprep.subr.mxu0 0.0
    %209 = vmatpush1.msra.mxu0 0.0
    %210 = vmatprep.subr.mxu0 0.0
    %211 = vmatpush1.msra.mxu0 0.0
    %212 = vmatprep.subr.mxu0 0.0
    %213 = vmatpush1.msra.mxu0 0.0
    %214 = vmatprep.subr.mxu0 0.0
    %215 = vmatpush1.msra.mxu0 0.0
    %216 = vmatprep.subr.mxu0 0.0
    %217 = vmatpush1.msra.mxu0 0.0
    %218 = vmatprep.subr.mxu0 0.0
    %219 = vmatpush1.msra.mxu0 0.0
    %220 = vmatprep.subr.mxu0 0.0
    %221 = vmatpush1.msra.mxu0 0.0
    %222 = vmatprep.subr.mxu0 0.0
    %223 = vmatpush1.msra.mxu0 0.0
    %224 = vmatprep.subr.mxu0 0.0
    %225 = vmatpush1.msra.mxu0 0.0
    %226 = vmatprep.mubr.f32.mxu0 0.0
    %227 = vmatmul.mubr.f32.gmra.mrb[0].mxu0 %v139
    %v228 = vpop.f32.mrb[0].mxu0
    %v229 = vadd.f32 0.0, %v228
    %v230 = vpop.f32.mrb[0].mxu0
    %231 = vmatprep.mubr.f32.mxu0 0.0
    %232 = vmatmul.mubr.f32.gmra.mrb[0].mxu0 %v142
    %v233 = vpop.f32.mrb[0].mxu0
    %v234 = vadd.f32 0.0, %v233
    %v235 = vpop.f32.mrb[0].mxu0
    %236 = vmatprep.mubr.f32.mxu0 0.0
    %237 = vmatmul.mubr.f32.gmra.mrb[0].mxu0 %v145
    %v238 = vpop.f32.mrb[0].mxu0
    %v239 = vadd.f32 0.0, %v238
    %v240 = vpop.f32.mrb[0].mxu0
    %241 = vmatprep.mubr.f32.mxu0 0.0
    %242 = vmatmul.mubr.f32.gmra.mrb[0].mxu0 %v148
    %v243 = vpop.f32.mrb[0].mxu0
    %v244 = vadd.f32 0.0, %v243
    %v245 = vpop.f32.mrb[0].mxu0
    %246 = vmatprep.mubr.f32.mxu0 0.0
    %247 = vmatmul.mubr.f32.gmra.mrb[0].mxu0 %v151
    %v248 = vpop.f32.mrb[0].mxu0
    %v249 = vadd.f32 0.0, %v248
    %v250 = vpop.f32.mrb[0].mxu0
    %251 = vmatprep.mubr.f32.mxu0 0.0
    %252 = vmatmul.mubr.f32.gmra.mrb[0].mxu0 %v154
    %v253 = vpop.f32.mrb[0].mxu0
    %v254 = vadd.f32 0.0, %v253
    %v255 = vpop.f32.mrb[0].mxu0
    %256 = vmatprep.mubr.f32.mxu0 0.0
    %257 = vmatmul.mubr.f32.gmra.mrb[0].mxu0 %v157
    %v258 = vpop.f32.mrb[0].mxu0
    %v259 = vadd.f32 0.0, %v258
    %v260 = vpop.f32.mrb[0].mxu0
    %261 = vmatprep.mubr.f32.mxu0 0.0
    %262 = vmatmul.mubr.f32.gmra.mrb[0].mxu0 %v160
    %v263 = vpop.f32.mrb[0].mxu0
    %v264 = vadd.f32 0.0, %v263
    %v265 = vpop.f32.mrb[0].mxu0
    %266 = vdwg.mxu0
    %v267 = vmul.f32 %v229, 1.442695
    %v268 = vpow.pop %v267
    %v269 = vmul.f32 %v234, 1.442695
    %v270 = vpow.pop %v269
    %v271 = vmul.f32 %v239, 1.442695
    %v272 = vpow.pop %v271
    %v273 = vmul.f32 %v244, 1.442695
    %v274 = vpow.pop %v273
    %v275 = vmul.f32 %v249, 1.442695
    %v276 = vpow.pop %v275
    %v277 = vmul.f32 %v254, 1.442695
    %v278 = vpow.pop %v277
    %v279 = vmul.f32 %v259, 1.442695
    %v280 = vpow.pop %v279
    %v281 = vmul.f32 %v264, 1.442695
    %v282 = vpow.pop %v281
    %v283 = vmul.f32 %v101, %v268
    %v284 = vmul.f32 %v102, %v270
    %v285 = vmul.f32 %v103, %v272
    %v286 = vmul.f32 %v104, %v274
    %v287 = vmul.f32 %v105, %v276
    %v288 = vmul.f32 %v106, %v278
    %v289 = vmul.f32 %v107, %v280
    %v290 = vmul.f32 %v108, %v282
    %v291 = vld [vmem:[%s4] sm:$0xff]
    %v292 = vld [vmem:[%s4 + $0x8] sm:$0xff]
    %v293 = vld [vmem:[%s4 + $0x10] sm:$0xff]
    %v294 = vld [vmem:[%s4 + $0x18] sm:$0xff]
    %v295 = vld [vmem:[%s4 + $0x20] sm:$0xff]
    %v296 = vld [vmem:[%s4 + $0x28] sm:$0xff]
    %v297 = vld [vmem:[%s4 + $0x30] sm:$0xff]
    %v298 = vld [vmem:[%s4 + $0x38] sm:$0xff]
    %299 = vst.msk [vmem:[%s6] sm:$0xff] %vm137, %v283
    %300 = vst.msk [vmem:[%s6 + $0x8] sm:$0xff] %vm137, %v284
    %301 = vst.msk [vmem:[%s6 + $0x10] sm:$0xff] %vm137, %v285
    %302 = vst.msk [vmem:[%s6 + $0x18] sm:$0xff] %vm137, %v286
    %303 = vst.msk [vmem:[%s6 + $0x20] sm:$0xff] %vm137, %v287
    %304 = vst.msk [vmem:[%s6 + $0x28] sm:$0xff] %vm137, %v288
    %305 = vst.msk [vmem:[%s6 + $0x30] sm:$0xff] %vm137, %v289
    %306 = vst.msk [vmem:[%s6 + $0x38] sm:$0xff] %vm137, %v290
    %307 = vst.msk [vmem:[#allocation4] sm:$0xff] %vm137, %v86
    %308 = vst.msk [vmem:[#allocation4 + $0x8] sm:$0xff] %vm137, %v88
    %309 = vst.msk [vmem:[#allocation4 + $0x10] sm:$0xff] %vm137, %v90
    %310 = vst.msk [vmem:[#allocation4 + $0x18] sm:$0xff] %vm137, %v92
    %311 = vst.msk [vmem:[#allocation4 + $0x20] sm:$0xff] %vm137, %v94
    %312 = vst.msk [vmem:[#allocation4 + $0x28] sm:$0xff] %vm137, %v96
    %313 = vst.msk [vmem:[#allocation4 + $0x30] sm:$0xff] %vm137, %v98
    %314 = vst.msk [vmem:[#allocation4 + $0x38] sm:$0xff] %vm137, %v100
    %v315 = vmul.f32 %v283, %v37
    %v316 = vmul.f32 %v284, %v38
    %v317 = vmul.f32 %v285, %v39
    %v318 = vmul.f32 %v286, %v40
    %v319 = vmul.f32 %v287, %v41
    %v320 = vmul.f32 %v288, %v42
    %v321 = vmul.f32 %v289, %v43
    %v322 = vmul.f32 %v290, %v44
    %v323 = vsel %vm137, %v315, 0.0
    %324 = vadd.xlane.f32.xlu0 %v323
    %v325 = vpop.xlane.xlu0 %324
    %v326 = vsel %vm137, %v316, 0.0
    %327 = vadd.xlane.f32.xlu0 %v326
    %v328 = vpop.xlane.xlu0 %327
    %v329 = vsel %vm137, %v317, 0.0
    %330 = vadd.xlane.f32.xlu0 %v329
    %v331 = vpop.xlane.xlu0 %330
    %v332 = vsel %vm137, %v318, 0.0
    %333 = vadd.xlane.f32.xlu0 %v332
    %v334 = vpop.xlane.xlu0 %333
    %v335 = vsel %vm137, %v319, 0.0
    %336 = vadd.xlane.f32.xlu0 %v335
    %v337 = vpop.xlane.xlu0 %336
    %v338 = vsel %vm137, %v320, 0.0
    %339 = vadd.xlane.f32.xlu0 %v338
    %v340 = vpop.xlane.xlu0 %339
    %v341 = vsel %vm137, %v321, 0.0
    %342 = vadd.xlane.f32.xlu0 %v341
    %v343 = vpop.xlane.xlu0 %342
    %v344 = vsel %vm137, %v322, 0.0
    %345 = vadd.xlane.f32.xlu0 %v344
    %v346 = vpop.xlane.xlu0 %345
    %vm347 = vcmask 7168
    %348 = vst.msk [vmem:[#allocation2] sm:$0xff] %vm347, %v325
    %349 = vst.msk [vmem:[#allocation2 + $0x8] sm:$0xff] %vm347, %v328
    %350 = vst.msk [vmem:[#allocation2 + $0x10] sm:$0xff] %vm347, %v331
    %351 = vst.msk [vmem:[#allocation2 + $0x18] sm:$0xff] %vm347, %v334
    %352 = vst.msk [vmem:[#allocation2 + $0x20] sm:$0xff] %vm347, %v337
    %353 = vst.msk [vmem:[#allocation2 + $0x28] sm:$0xff] %vm347, %v340
    %354 = vst.msk [vmem:[#allocation2 + $0x30] sm:$0xff] %vm347, %v343
    %355 = vst.msk [vmem:[#allocation2 + $0x38] sm:$0xff] %vm347, %v346
    %v356 = vmul.f32 %v283, %v291
    %v357 = vmul.f32 %v284, %v292
    %v358 = vmul.f32 %v285, %v293
    %v359 = vmul.f32 %v286, %v294
    %v360 = vmul.f32 %v287, %v295
    %v361 = vmul.f32 %v288, %v296
    %v362 = vmul.f32 %v289, %v297
    %v363 = vmul.f32 %v290, %v298
    %v364 = vsel %vm137, %v356, 0.0
    %365 = vadd.xlane.f32.xlu0 %v364
    %v366 = vpop.xlane.xlu0 %365
    %v367 = vsel %vm137, %v357, 0.0
    %368 = vadd.xlane.f32.xlu0 %v367
    %v369 = vpop.xlane.xlu0 %368
    %v370 = vsel %vm137, %v358, 0.0
    %371 = vadd.xlane.f32.xlu0 %v370
    %v372 = vpop.xlane.xlu0 %371
    %v373 = vsel %vm137, %v359, 0.0
    %374 = vadd.xlane.f32.xlu0 %v373
    %v375 = vpop.xlane.xlu0 %374
    %v376 = vsel %vm137, %v360, 0.0
    %377 = vadd.xlane.f32.xlu0 %v376
    %v378 = vpop.xlane.xlu0 %377
    %v379 = vsel %vm137, %v361, 0.0
    %380 = vadd.xlane.f32.xlu0 %v379
    %v381 = vpop.xlane.xlu0 %380
    %v382 = vsel %vm137, %v362, 0.0
    %383 = vadd.xlane.f32.xlu0 %v382
    %v384 = vpop.xlane.xlu0 %383
    %v385 = vsel %vm137, %v363, 0.0
    %386 = vadd.xlane.f32.xlu0 %v385
    %v387 = vpop.xlane.xlu0 %386
    %388 = vst.msk [vmem:[#allocation6] sm:$0xff] %vm347, %v366
    %389 = vst.msk [vmem:[#allocation6 + $0x8] sm:$0xff] %vm347, %v369
    %390 = vst.msk [vmem:[#allocation6 + $0x10] sm:$0xff] %vm347, %v372
    %391 = vst.msk [vmem:[#allocation6 + $0x18] sm:$0xff] %vm347, %v375
    %392 = vst.msk [vmem:[#allocation6 + $0x20] sm:$0xff] %vm347, %v378
    %393 = vst.msk [vmem:[#allocation6 + $0x28] sm:$0xff] %vm347, %v381
    %394 = vst.msk [vmem:[#allocation6 + $0x30] sm:$0xff] %vm347, %v384
    %395 = vst.msk [vmem:[#allocation6 + $0x38] sm:$0xff] %vm347, %v387
    %396 = vst.msk [vmem:[#allocation7] sm:$0xff] %vm137, %v101
    %397 = vst.msk [vmem:[#allocation7 + $0x8] sm:$0xff] %vm137, %v102
    %398 = vst.msk [vmem:[#allocation7 + $0x10] sm:$0xff] %vm137, %v103
    %399 = vst.msk [vmem:[#allocation7 + $0x18] sm:$0xff] %vm137, %v104
    %400 = vst.msk [vmem:[#allocation7 + $0x20] sm:$0xff] %vm137, %v105
    %401 = vst.msk [vmem:[#allocation7 + $0x28] sm:$0xff] %vm137, %v106
    %402 = vst.msk [vmem:[#allocation7 + $0x30] sm:$0xff] %vm137, %v107
    %403 = vst.msk [vmem:[#allocation7 + $0x38] sm:$0xff] %vm137, %v108
    %v404 = vsub.f32 %v291, 1.2
    %v405 = vsub.f32 %v292, 1.2
    %v406 = vsub.f32 %v293, 1.2
    %v407 = vsub.f32 %v294, 1.2
    %v408 = vsub.f32 %v295, 1.2
    %v409 = vsub.f32 %v296, 1.2
    %v410 = vsub.f32 %v297, 1.2
    %v411 = vsub.f32 %v298, 1.2
    %v412 = vmax.f32 %v404, 0.0
    %v413 = vmax.f32 %v405, 0.0
    %v414 = vmax.f32 %v406, 0.0
    %v415 = vmax.f32 %v407, 0.0
    %v416 = vmax.f32 %v408, 0.0
    %v417 = vmax.f32 %v409, 0.0
    %v418 = vmax.f32 %v410, 0.0
    %v419 = vmax.f32 %v411, 0.0
    %v420 = vmul.f32 %v412, %v101
    %v421 = vmul.f32 %v413, %v102
    %v422 = vmul.f32 %v414, %v103
    %v423 = vmul.f32 %v415, %v104
    %v424 = vmul.f32 %v416, %v105
    %v425 = vmul.f32 %v417, %v106
    %v426 = vmul.f32 %v418, %v107
    %v427 = vmul.f32 %v419, %v108
    %428 = vst.msk [vmem:[#allocation9] sm:$0xff] %vm137, %v420
    %429 = vst.msk [vmem:[#allocation9 + $0x8] sm:$0xff] %vm137, %v421
    %430 = vst.msk [vmem:[#allocation9 + $0x10] sm:$0xff] %vm137, %v422
    %431 = vst.msk [vmem:[#allocation9 + $0x18] sm:$0xff] %vm137, %v423
    %432 = vst.msk [vmem:[#allocation9 + $0x20] sm:$0xff] %vm137, %v424
    %433 = vst.msk [vmem:[#allocation9 + $0x28] sm:$0xff] %vm137, %v425
    %434 = vst.msk [vmem:[#allocation9 + $0x30] sm:$0xff] %vm137, %v426
    %435 = vst.msk [vmem:[#allocation9 + $0x38] sm:$0xff] %vm137, %v427
    // Predicated region
    $region22: #{sunerf_forward.7} parent=1 // pred_check
      _
    $region23: #{sunerf_forward.7} parent=1 // pred_check_branch
      %437 = sbr.rel (0) target = $region25
    $region24: #{sunerf_forward.7} parent=1 // pred_region
      %s439 = ssub.s32 1024, 1024
      %440 = vsyncadd [#allocation3], %s439
      %s441 = sshll.u32 [#allocation2], 4
      %s442 = int_to_ptr.vmem [resolvable:$true] %s441
      %447 = dma.vmem_to_hbm [thread:$0]  %s442, 1024, %s5, [#allocation3], 128, 128, 8
    $region25: #{sunerf_forward.7} parent=1 // pred_fallthru
      _
    // Predicated region
    $region26: #{sunerf_forward.7} parent=1 // pred_check
      _
    $region27: #{sunerf_forward.7} parent=1 // pred_check_branch
      %449 = sbr.rel (0) target = $region29
    $region28: #{sunerf_forward.7} parent=1 // pred_region
      _
    $region29: #{sunerf_forward.7} parent=1 // pred_fallthru
      _
    // Predicated region
    $region30: #{sunerf_forward.7} parent=1 // pred_check
      _
    $region31: #{sunerf_forward.7} parent=1 // pred_check_branch
      %451 = sbr.rel (0) target = $region33
    $region32: #{sunerf_forward.7} parent=1 // pred_region
      %s453 = ssub.s32 1024, 1024
      %454 = vsyncadd [#allocation5], %s453
      %s455 = sshll.u32 [#allocation4], 4
      %s456 = int_to_ptr.vmem [resolvable:$true] %s455
      %461 = dma.vmem_to_hbm [thread:$0]  %s456, 1024, %s7, [#allocation5], 128, 128, 8
    $region33: #{sunerf_forward.7} parent=1 // pred_fallthru
      _
    // Predicated region
    $region34: #{sunerf_forward.7} parent=1 // pred_check
      _
    $region35: #{sunerf_forward.7} parent=1 // pred_check_branch
      %463 = sbr.rel (0) target = $region37
    $region36: #{sunerf_forward.7} parent=1 // pred_region
      %s465 = ssub.s32 1024, 1024
      %466 = vsyncadd [#allocation5], %s465
      %s467 = sshll.u32 [#allocation6], 4
      %s468 = int_to_ptr.vmem [resolvable:$true] %s467
      %473 = dma.vmem_to_hbm [thread:$0]  %s468, 1024, %s8, [#allocation5], 128, 128, 8
    $region37: #{sunerf_forward.7} parent=1 // pred_fallthru
      _
    // Predicated region
    $region38: #{sunerf_forward.7} parent=1 // pred_check
      _
    $region39: #{sunerf_forward.7} parent=1 // pred_check_branch
      %475 = sbr.rel (0) target = $region41
    $region40: #{sunerf_forward.7} parent=1 // pred_region
      %s477 = ssub.s32 1024, 1024
      %478 = vsyncadd [#allocation8], %s477
      %s479 = sshll.u32 [#allocation7], 4
      %s480 = int_to_ptr.vmem [resolvable:$true] %s479
      %485 = dma.vmem_to_hbm [thread:$0]  %s480, 1024, %s9, [#allocation8], 128, 128, 8
    $region41: #{sunerf_forward.7} parent=1 // pred_fallthru
      _
    // Predicated region
    $region42: #{sunerf_forward.7} parent=1 // pred_check
      _
    $region43: #{sunerf_forward.7} parent=1 // pred_check_branch
      %487 = sbr.rel (0) target = $region45
    $region44: #{sunerf_forward.7} parent=1 // pred_region
      %s489 = ssub.s32 1024, 1024
      %490 = vsyncadd [#allocation8], %s489
      %s491 = sshll.u32 [#allocation9], 4
      %s492 = int_to_ptr.vmem [resolvable:$true] %s491
      %497 = dma.vmem_to_hbm [thread:$0]  %s492, 1024, %s10, [#allocation8], 128, 128, 8
    $region45: #{sunerf_forward.7} parent=1 // pred_fallthru
      _
    // Predicated region
    $region46: #{sunerf_forward.7} parent=1 // pred_check
      _
    $region47: #{sunerf_forward.7} parent=1 // pred_check_branch
      %499 = sbr.rel (0) target = $region49
    $region48: #{sunerf_forward.7} parent=1 // pred_region
      %500 = dma.done [#allocation3], 1024
    $region49: #{sunerf_forward.7} parent=1 // pred_fallthru
      _
    // Predicated region
    $region50: #{sunerf_forward.7} parent=1 // pred_check
      _
    $region51: #{sunerf_forward.7} parent=1 // pred_check_branch
      %502 = sbr.rel (0) target = $region53
    $region52: #{sunerf_forward.7} parent=1 // pred_region
      _
    $region53: #{sunerf_forward.7} parent=1 // pred_fallthru
      _
    // Predicated region
    $region54: #{sunerf_forward.7} parent=1 // pred_check
      _
    $region55: #{sunerf_forward.7} parent=1 // pred_check_branch
      %504 = sbr.rel (0) target = $region57
    $region56: #{sunerf_forward.7} parent=1 // pred_region
      %505 = dma.done [#allocation5], 1024
    $region57: #{sunerf_forward.7} parent=1 // pred_fallthru
      _
    // Predicated region
    $region58: #{sunerf_forward.7} parent=1 // pred_check
      _
    $region59: #{sunerf_forward.7} parent=1 // pred_check_branch
      %507 = sbr.rel (0) target = $region61
    $region60: #{sunerf_forward.7} parent=1 // pred_region
      %508 = dma.done [#allocation5], 1024
    $region61: #{sunerf_forward.7} parent=1 // pred_fallthru
      _
    // Predicated region
    $region62: #{sunerf_forward.7} parent=1 // pred_check
      _
    $region63: #{sunerf_forward.7} parent=1 // pred_check_branch
      %510 = sbr.rel (0) target = $region65
    $region64: #{sunerf_forward.7} parent=1 // pred_region
      %511 = dma.done [#allocation8], 1024
    $region65: #{sunerf_forward.7} parent=1 // pred_fallthru
      _
    // Predicated region
    $region66: #{sunerf_forward.7} parent=1 // pred_check
      _
    $region67: #{sunerf_forward.7} parent=1 // pred_check_branch
      %513 = sbr.rel (0) target = $region69
    $region68: #{sunerf_forward.7} parent=1 // pred_region
      %514 = dma.done [#allocation8], 1024
    $region69: #{sunerf_forward.7} parent=1 // pred_fallthru
      _
    %515 = vsyncpa [#allocation3], 1
    %516 = vsyncpa [#allocation5], 1
    %517 = vsyncpa [#allocation8], 1

// kernel: sunerf_forward.6
$region0: #{sunerf_forward.6}
  #allocation0 [shape = 'u32[]', space=smem, size = 0x4, offset = 0x4, fixed_abs, tag = 'smem constant byte address 0x4 - core index']
  #allocation1 [shape = 'u32[144,128]{1,0:T(1,128)}', space=vmem, size = 0x12000, scoped, tag = 'internal scratch']
  %s0 = inlined_call_operand.vmem [shape: f32[2048,4], index: 0, kind: input, shape index: {}]
  %s1 = inlined_call_operand.vmem [shape: bf16[4,64], index: 1, kind: input, shape index: {}]
  %s2 = inlined_call_operand.vmem [shape: f32[1,64], index: 2, kind: input, shape index: {}]
  %s3 = inlined_call_operand.vmem [shape: bf16[64,64], index: 3, kind: input, shape index: {}]
  %s4 = inlined_call_operand.vmem [shape: f32[1,64], index: 4, kind: input, shape index: {}]
  %s5 = inlined_call_operand.vmem [shape: bf16[64,128], index: 5, kind: input, shape index: {}]
  %s6 = inlined_call_operand.vmem [shape: f32[1,128], index: 6, kind: input, shape index: {}]
  %s7 = inlined_call_operand.vmem [shape: f32[2048,128], index: 7, kind: output, shape index: {}]
  %s8 = sld [smem:[#allocation0]]
  $region61: #{sunerf_forward.6} parent=0
    _
  %s10 = ssub.s32 1, %s8
  %s11 = scalar_select 0, %s10, %s8
  loop: start=0, step=1, limit=4
  $region2: #{sunerf_forward.6} parent=0 // loop_pre_header
    _
  $region3: #{sunerf_forward.6} parent=0 // loop_header
    %s13 = sphi 0, %s17
    %p14 = scmp.ge.s32.totalorder %s13, 4
    %s23 = sphi 0, %s25
    %s26 = sphi 0, %s23
    %s27 = sphi 0, %s26
    %s43 = sphi 0, %s27
    %s47 = sphi 0, %s47
    %s49 = sphi 0, %s47
    %s50 = sphi 0, %s49
    %s64 = sphi 0, %s50
    %s68 = sphi 0, %s68
    %s70 = sphi 0, %s68
    %s71 = sphi 0, %s70
    %s85 = sphi 0, %s71
    %s89 = sphi 0, %s89
    %s91 = sphi 0, %s89
    %s92 = sphi 0, %s91
    %s106 = sphi 0, %s92
    %s110 = sphi 0, %s110
    %s112 = sphi 0, %s110
    %s113 = sphi 0, %s112
    %s127 = sphi 0, %s113
    %s131 = sphi 0, %s131
    %s133 = sphi 0, %s131
    %s134 = sphi 0, %s133
    %s148 = sphi 0, %s134
    %s152 = sphi 0, %s152
    %s154 = sphi 0, %s152
    %s155 = sphi 0, %s154
    %s169 = sphi 0, %s155
    %s175 = sphi 0, %s177
    %s178 = sphi 0, %s175
    %s179 = sphi 0, %s178
    %s195 = sphi 0, %s179
  $region4: #{sunerf_forward.6} parent=0 // loop_header_branch
    %16 = sbr.rel (%p14) target = $region8
  $region5: #{sunerf_forward.6} parent=0 // loop_body
    %s18 = ssub.s32 %s13, 1
    %s19 = ssub.s32 %s13, 2
    %s20 = sadd.s32 %s13, 1
    %s21 = ssub.s32 %s13, %s20
    %p22 = scmp.eq.s32.totalorder %s21, 0
    %s24 = sadd.s32 %s23, 1
    %s25 = scalar_select %p22, %s23, %s24
    %p28 = pneg %p22
    %p29 = scmp.eq.s32.totalorder %s13, 1
    %p30 = por %p28, %p29
    %p31 = scmp.ne.s32.totalorder %s23, %s26
    %p32 = scmp.eq.s32.totalorder %s13, 0
    %p33 = por %p31, %p32
    %p34 = scmp.ne.s32.totalorder %s23, %s26
    %p35 = scmp.eq.s32.totalorder %s18, 1
    %p36 = por %p34, %p35
    %p37 = scmp.ne.s32.totalorder %s26, %s27
    %p38 = scmp.eq.s32.totalorder %s18, 0
    %p39 = por %p37, %p38
    %p40 = scmp.ne.s32.totalorder %s26, %s27
    %p41 = scmp.eq.s32.totalorder %s19, 1
    %p42 = por %p40, %p41
    %p44 = scmp.ne.s32.totalorder %s27, %s43
    %p45 = scmp.eq.s32.totalorder %s19, 0
    %p46 = por %p44, %p45
    %s48 = sadd.s32 %s47, 1
    %p51 = scmp.eq.s32.totalorder %s13, 1
    %p52 = scmp.ne.s32.totalorder %s47, %s49
    %p53 = scmp.eq.s32.totalorder %s13, 0
    %p54 = por %p52, %p53
    %p55 = scmp.ne.s32.totalorder %s47, %s49
    %p56 = scmp.eq.s32.totalorder %s18, 1
    %p57 = por %p55, %p56
    %p58 = scmp.ne.s32.totalorder %s49, %s50
    %p59 = scmp.eq.s32.totalorder %s18, 0
    %p60 = por %p58, %p59
    %p61 = scmp.ne.s32.totalorder %s49, %s50
    %p62 = scmp.eq.s32.totalorder %s19, 1
    %p63 = por %p61, %p62
    %p65 = scmp.ne.s32.totalorder %s50, %s64
    %p66 = scmp.eq.s32.totalorder %s19, 0
    %p67 = por %p65, %p66
    %s69 = sadd.s32 %s68, 1
    %p72 = scmp.eq.s32.totalorder %s13, 1
    %p73 = scmp.ne.s32.totalorder %s68, %s70
    %p74 = scmp.eq.s32.totalorder %s13, 0
    %p75 = por %p73, %p74
    %p76 = scmp.ne.s32.totalorder %s68, %s70
    %p77 = scmp.eq.s32.totalorder %s18, 1
    %p78 = por %p76, %p77
    %p79 = scmp.ne.s32.totalorder %s70, %s71
    %p80 = scmp.eq.s32.totalorder %s18, 0
    %p81 = por %p79, %p80
    %p82 = scmp.ne.s32.totalorder %s70, %s71
    %p83 = scmp.eq.s32.totalorder %s19, 1
    %p84 = por %p82, %p83
    %p86 = scmp.ne.s32.totalorder %s71, %s85
    %p87 = scmp.eq.s32.totalorder %s19, 0
    %p88 = por %p86, %p87
    %s90 = sadd.s32 %s89, 1
    %p93 = scmp.eq.s32.totalorder %s13, 1
    %p94 = scmp.ne.s32.totalorder %s89, %s91
    %p95 = scmp.eq.s32.totalorder %s13, 0
    %p96 = por %p94, %p95
    %p97 = scmp.ne.s32.totalorder %s89, %s91
    %p98 = scmp.eq.s32.totalorder %s18, 1
    %p99 = por %p97, %p98
    %p100 = scmp.ne.s32.totalorder %s91, %s92
    %p101 = scmp.eq.s32.totalorder %s18, 0
    %p102 = por %p100, %p101
    %p103 = scmp.ne.s32.totalorder %s91, %s92
    %p104 = scmp.eq.s32.totalorder %s19, 1
    %p105 = por %p103, %p104
    %p107 = scmp.ne.s32.totalorder %s92, %s106
    %p108 = scmp.eq.s32.totalorder %s19, 0
    %p109 = por %p107, %p108
    %s111 = sadd.s32 %s110, 1
    %p114 = scmp.eq.s32.totalorder %s13, 1
    %p115 = scmp.ne.s32.totalorder %s110, %s112
    %p116 = scmp.eq.s32.totalorder %s13, 0
    %p117 = por %p115, %p116
    %p118 = scmp.ne.s32.totalorder %s110, %s112
    %p119 = scmp.eq.s32.totalorder %s18, 1
    %p120 = por %p118, %p119
    %p121 = scmp.ne.s32.totalorder %s112, %s113
    %p122 = scmp.eq.s32.totalorder %s18, 0
    %p123 = por %p121, %p122
    %p124 = scmp.ne.s32.totalorder %s112, %s113
    %p125 = scmp.eq.s32.totalorder %s19, 1
    %p126 = por %p124, %p125
    %p128 = scmp.ne.s32.totalorder %s113, %s127
    %p129 = scmp.eq.s32.totalorder %s19, 0
    %p130 = por %p128, %p129
    %s132 = sadd.s32 %s131, 1
    %p135 = scmp.eq.s32.totalorder %s13, 1
    %p136 = scmp.ne.s32.totalorder %s131, %s133
    %p137 = scmp.eq.s32.totalorder %s13, 0
    %p138 = por %p136, %p137
    %p139 = scmp.ne.s32.totalorder %s131, %s133
    %p140 = scmp.eq.s32.totalorder %s18, 1
    %p141 = por %p139, %p140
    %p142 = scmp.ne.s32.totalorder %s133, %s134
    %p143 = scmp.eq.s32.totalorder %s18, 0
    %p144 = por %p142, %p143
    %p145 = scmp.ne.s32.totalorder %s133, %s134
    %p146 = scmp.eq.s32.totalorder %s19, 1
    %p147 = por %p145, %p146
    %p149 = scmp.ne.s32.totalorder %s134, %s148
    %p150 = scmp.eq.s32.totalorder %s19, 0
    %p151 = por %p149, %p150
    %s153 = sadd.s32 %s152, 1
    %p156 = scmp.eq.s32.totalorder %s13, 1
    %p157 = scmp.ne.s32.totalorder %s152, %s154
    %p158 = scmp.eq.s32.totalorder %s13, 0
    %p159 = por %p157, %p158
    %p160 = scmp.ne.s32.totalorder %s152, %s154
    %p161 = scmp.eq.s32.totalorder %s18, 1
    %p162 = por %p160, %p161
    %p163 = scmp.ne.s32.totalorder %s154, %s155
    %p164 = scmp.eq.s32.totalorder %s18, 0
    %p165 = por %p163, %p164
    %p166 = scmp.ne.s32.totalorder %s154, %s155
    %p167 = scmp.eq.s32.totalorder %s19, 1
    %p168 = por %p166, %p167
    %p170 = scmp.ne.s32.totalorder %s155, %s169
    %p171 = scmp.eq.s32.totalorder %s19, 0
    %p172 = por %p170, %p171
    %s173 = ssub.s32 %s13, %s20
    %p174 = scmp.eq.s32.totalorder %s173, 0
    %s176 = sadd.s32 %s175, 1
    %s177 = scalar_select %p174, %s175, %s176
    %p180 = pneg %p174
    %p181 = scmp.eq.s32.totalorder %s13, 1
    %p182 = por %p180, %p181
    %p183 = scmp.ne.s32.totalorder %s175, %s178
    %p184 = scmp.eq.s32.totalorder %s13, 0
    %p185 = por %p183, %p184
    %p186 = scmp.ne.s32.totalorder %s175, %s178
    %p187 = scmp.eq.s32.totalorder %s18, 1
    %p188 = por %p186, %p187
    %p189 = scmp.ne.s32.totalorder %s178, %s179
    %p190 = scmp.eq.s32.totalorder %s18, 0
    %p191 = por %p189, %p190
    %p192 = scmp.ne.s32.totalorder %s178, %s179
    %p193 = scmp.eq.s32.totalorder %s19, 1
    %p194 = por %p192, %p193
    %p196 = scmp.ne.s32.totalorder %s179, %s195
    %p197 = scmp.eq.s32.totalorder %s19, 0
    %p198 = por %p196, %p197
    %p199 = scmp.le.s32.totalorder 1, %s13
    %p200 = scmp.lt.s32.totalorder %s13, 3
    %p201 = pnand %p199, %p200
    %p202 = pneg %p201
    // Predicated region
    $region9: #{sunerf_forward.6} parent=5 // pred_check
      _
    $region10: #{sunerf_forward.6} parent=5 // pred_check_branch
      %204 = sbr.rel (%p201) target = $region12
    $region11: #{sunerf_forward.6} parent=5 // pred_region
      %s205 = ssub.s32 %s13, 1
      // Predicated region
      $region13: #{sunerf_forward.6} parent=11 // pred_check
        %p206 = pneg %p60
      $region14: #{sunerf_forward.6} parent=11 // pred_check_branch
        %208 = sbr.rel (%p206) target = $region16
      $region15: #{sunerf_forward.6} parent=11 // pred_region
        _
      $region16: #{sunerf_forward.6} parent=11 // pred_fallthru
        _
      // Predicated region
      $region17: #{sunerf_forward.6} parent=11 // pred_check
        %p209 = pneg %p81
      $region18: #{sunerf_forward.6} parent=11 // pred_check_branch
        %211 = sbr.rel (%p209) target = $region20
      $region19: #{sunerf_forward.6} parent=11 // pred_region
        _
      $region20: #{sunerf_forward.6} parent=11 // pred_fallthru
        _
      // Predicated region
      $region21: #{sunerf_forward.6} parent=11 // pred_check
        %p212 = pneg %p102
      $region22: #{sunerf_forward.6} parent=11 // pred_check_branch
        %214 = sbr.rel (%p212) target = $region24
      $region23: #{sunerf_forward.6} parent=11 // pred_region
        _
      $region24: #{sunerf_forward.6} parent=11 // pred_fallthru
        _
      // Predicated region
      $region25: #{sunerf_forward.6} parent=11 // pred_check
        %p215 = pneg %p123
      $region26: #{sunerf_forward.6} parent=11 // pred_check_branch
        %217 = sbr.rel (%p215) target = $region28
      $region27: #{sunerf_forward.6} parent=11 // pred_region
        _
      $region28: #{sunerf_forward.6} parent=11 // pred_fallthru
        _
      // Predicated region
      $region29: #{sunerf_forward.6} parent=11 // pred_check
        %p218 = pneg %p144
      $region30: #{sunerf_forward.6} parent=11 // pred_check_branch
        %220 = sbr.rel (%p218) target = $region32
      $region31: #{sunerf_forward.6} parent=11 // pred_region
        _
      $region32: #{sunerf_forward.6} parent=11 // pred_fallthru
        _
      // Predicated region
      $region33: #{sunerf_forward.6} parent=11 // pred_check
        %p221 = pneg %p165
      $region34: #{sunerf_forward.6} parent=11 // pred_check_branch
        %223 = sbr.rel (%p221) target = $region36
      $region35: #{sunerf_forward.6} parent=11 // pred_region
        _
      $region36: #{sunerf_forward.6} parent=11 // pred_fallthru
        _
    $region12: #{sunerf_forward.6} parent=5 // pred_fallthru
      _
    %p224 = scmp.lt.s32.totalorder %s13, 2
    // Predicated region
    $region37: #{sunerf_forward.6} parent=5 // pred_check
      %p225 = pneg %p224
    $region38: #{sunerf_forward.6} parent=5 // pred_check_branch
      %227 = sbr.rel (%p225) target = $region40
    $region39: #{sunerf_forward.6} parent=5 // pred_region
      // Predicated region
      $region41: #{sunerf_forward.6} parent=39 // pred_check
        %p228 = pneg %p33
      $region42: #{sunerf_forward.6} parent=39 // pred_check_branch
        %230 = sbr.rel (%p228) target = $region44
      $region43: #{sunerf_forward.6} parent=39 // pred_region
        %s231 = smul.u32 128, %s13
        %p232 = scmp.lt.s32.totalorder %s231, 255
        %s233 = scalar_select %p232, %s231, 255
        %s234 = smul.addr %s233, 8
        %s235 = scalar_lea.vmem %s0, %s234
        %s236 = smul.u32 128, %s13
      $region44: #{sunerf_forward.6} parent=39 // pred_fallthru
        _
    $region40: #{sunerf_forward.6} parent=5 // pred_fallthru
      _
    %p237 = scmp.le.s32.totalorder 1, %s13
    %p238 = scmp.lt.s32.totalorder %s13, 3
    %p239 = pnand %p237, %p238
    %p240 = pneg %p239
    // Predicated region
    $region45: #{sunerf_forward.6} parent=5 // pred_check
      _
    $region46: #{sunerf_forward.6} parent=5 // pred_check_branch
      %242 = sbr.rel (%p239) target = $region48
    $region47: #{sunerf_forward.6} parent=5 // pred_region
      %s243 = ssub.s32 %s13, 1
      %s244 = smul.u32 128, %s18
      %p245 = scmp.lt.s32.totalorder %s244, 255
      %s246 = scalar_select %p245, %s244, 255
      %s247 = smul.addr %s246, 8
      %s248 = scalar_lea.vmem %s0, %s247
      %p249 = pneg %p39
      %p250 = pneg %p36
      %p251 = pneg %p60
      %p252 = pneg %p57
      %p253 = pneg %p81
      %p254 = pneg %p78
      %p255 = pneg %p102
      %p256 = pneg %p99
      %p257 = pneg %p123
      %p258 = pneg %p120
      %p259 = pneg %p144
      %p260 = pneg %p141
      %p261 = pneg %p165
      %p262 = pneg %p162
      %p263 = pneg %p191
      %p264 = pneg %p188
      %s265 = smul.u32 128, %s18
      %p266 = scmp.lt.s32.totalorder %s265, 255
      %s267 = scalar_select %p266, %s265, 255
      %s268 = smul.addr %s267, 8
      %s269 = scalar_lea.vmem %s7, %s268
      %s270 = smul.u32 128, %s18
      %p271 = scmp.lt.s32.totalorder %s270, 255
      %s272 = scalar_select %p271, %s270, 255
      %s273 = smul.addr %s272, 8
      %s274 = scalar_lea.vmem %s0, %s273
      %s275 = smul.u32 128, %s18
      %s276 = smul.u32 128, %s18
      %p277 = scmp.lt.s32.totalorder %s276, 255
      %s278 = scalar_select %p277, %s276, 255
      %s279 = smul.addr %s278, 8
      %s280 = scalar_lea.vmem %s7, %s279
      %s281 = smul.u32 128, %s18
      %v283 = vld [vmem:[%s274] sm:$0xff]
      %v284 = vld [vmem:[%s274 + $0x8] sm:$0xff]
      %v285 = vld [vmem:[%s274 + $0x10] sm:$0xff]
      %v286 = vld [vmem:[%s274 + $0x18] sm:$0xff]
      %v287 = vld [vmem:[%s274 + $0x20] sm:$0xff]
      %v288 = vld [vmem:[%s274 + $0x28] sm:$0xff]
      %v289 = vld [vmem:[%s274 + $0x30] sm:$0xff]
      %v290 = vld [vmem:[%s274 + $0x38] sm:$0xff]
      %v291 = vld [vmem:[%s274 + $0x40] sm:$0xff]
      %v292 = vld [vmem:[%s274 + $0x48] sm:$0xff]
      %v293 = vld [vmem:[%s274 + $0x50] sm:$0xff]
      %v294 = vld [vmem:[%s274 + $0x58] sm:$0xff]
      %v295 = vld [vmem:[%s274 + $0x60] sm:$0xff]
      %v296 = vld [vmem:[%s274 + $0x68] sm:$0xff]
      %v297 = vld [vmem:[%s274 + $0x70] sm:$0xff]
      %v298 = vld [vmem:[%s274 + $0x78] sm:$0xff]
      %v299 = vld [vmem:[%s274 + $0x80] sm:$0xff]
      %v300 = vld [vmem:[%s274 + $0x88] sm:$0xff]
      %v301 = vld [vmem:[%s274 + $0x90] sm:$0xff]
      %v302 = vld [vmem:[%s274 + $0x98] sm:$0xff]
      %v303 = vld [vmem:[%s274 + $0xa0] sm:$0xff]
      %v304 = vld [vmem:[%s274 + $0xa8] sm:$0xff]
      %v305 = vld [vmem:[%s274 + $0xb0] sm:$0xff]
      %v306 = vld [vmem:[%s274 + $0xb8] sm:$0xff]
      %v307 = vld [vmem:[%s274 + $0xc0] sm:$0xff]
      %v308 = vld [vmem:[%s274 + $0xc8] sm:$0xff]
      %v309 = vld [vmem:[%s274 + $0xd0] sm:$0xff]
      %v310 = vld [vmem:[%s274 + $0xd8] sm:$0xff]
      %v311 = vld [vmem:[%s274 + $0xe0] sm:$0xff]
      %v312 = vld [vmem:[%s274 + $0xe8] sm:$0xff]
      %v313 = vld [vmem:[%s274 + $0xf0] sm:$0xff]
      %v314 = vld [vmem:[%s274 + $0xf8] sm:$0xff]
      %v315 = vld [vmem:[%s274 + $0x100] sm:$0xff]
      %v316 = vld [vmem:[%s274 + $0x108] sm:$0xff]
      %v317 = vld [vmem:[%s274 + $0x110] sm:$0xff]
      %v318 = vld [vmem:[%s274 + $0x118] sm:$0xff]
      %v319 = vld [vmem:[%s274 + $0x120] sm:$0xff]
      %v320 = vld [vmem:[%s274 + $0x128] sm:$0xff]
      %v321 = vld [vmem:[%s274 + $0x130] sm:$0xff]
      %v322 = vld [vmem:[%s274 + $0x138] sm:$0xff]
      %v323 = vld [vmem:[%s274 + $0x140] sm:$0xff]
      %v324 = vld [vmem:[%s274 + $0x148] sm:$0xff]
      %v325 = vld [vmem:[%s274 + $0x150] sm:$0xff]
      %v326 = vld [vmem:[%s274 + $0x158] sm:$0xff]
      %v327 = vld [vmem:[%s274 + $0x160] sm:$0xff]
      %v328 = vld [vmem:[%s274 + $0x168] sm:$0xff]
      %v329 = vld [vmem:[%s274 + $0x170] sm:$0xff]
      %v330 = vld [vmem:[%s274 + $0x178] sm:$0xff]
      %v331 = vld [vmem:[%s274 + $0x180] sm:$0xff]
      %v332 = vld [vmem:[%s274 + $0x188] sm:$0xff]
      %v333 = vld [vmem:[%s274 + $0x190] sm:$0xff]
      %v334 = vld [vmem:[%s274 + $0x198] sm:$0xff]
      %v335 = vld [vmem:[%s274 + $0x1a0] sm:$0xff]
      %v336 = vld [vmem:[%s274 + $0x1a8] sm:$0xff]
      %v337 = vld [vmem:[%s274 + $0x1b0] sm:$0xff]
      %v338 = vld [vmem:[%s274 + $0x1b8] sm:$0xff]
      %v339 = vld [vmem:[%s274 + $0x1c0] sm:$0xff]
      %v340 = vld [vmem:[%s274 + $0x1c8] sm:$0xff]
      %v341 = vld [vmem:[%s274 + $0x1d0] sm:$0xff]
      %v342 = vld [vmem:[%s274 + $0x1d8] sm:$0xff]
      %v343 = vld [vmem:[%s274 + $0x1e0] sm:$0xff]
      %v344 = vld [vmem:[%s274 + $0x1e8] sm:$0xff]
      %v345 = vld [vmem:[%s274 + $0x1f0] sm:$0xff]
      %v346 = vld [vmem:[%s274 + $0x1f8] sm:$0xff]
      %v347 = vld [vmem:[%s274 + $0x200] sm:$0xff]
      %v348 = vld [vmem:[%s274 + $0x208] sm:$0xff]
      %v349 = vld [vmem:[%s274 + $0x210] sm:$0xff]
      %v350 = vld [vmem:[%s274 + $0x218] sm:$0xff]
      %v351 = vld [vmem:[%s274 + $0x220] sm:$0xff]
      %v352 = vld [vmem:[%s274 + $0x228] sm:$0xff]
      %v353 = vld [vmem:[%s274 + $0x230] sm:$0xff]
      %v354 = vld [vmem:[%s274 + $0x238] sm:$0xff]
      %v355 = vld [vmem:[%s274 + $0x240] sm:$0xff]
      %v356 = vld [vmem:[%s274 + $0x248] sm:$0xff]
      %v357 = vld [vmem:[%s274 + $0x250] sm:$0xff]
      %v358 = vld [vmem:[%s274 + $0x258] sm:$0xff]
      %v359 = vld [vmem:[%s274 + $0x260] sm:$0xff]
      %v360 = vld [vmem:[%s274 + $0x268] sm:$0xff]
      %v361 = vld [vmem:[%s274 + $0x270] sm:$0xff]
      %v362 = vld [vmem:[%s274 + $0x278] sm:$0xff]
      %v363 = vld [vmem:[%s274 + $0x280] sm:$0xff]
      %v364 = vld [vmem:[%s274 + $0x288] sm:$0xff]
      %v365 = vld [vmem:[%s274 + $0x290] sm:$0xff]
      %v366 = vld [vmem:[%s274 + $0x298] sm:$0xff]
      %v367 = vld [vmem:[%s274 + $0x2a0] sm:$0xff]
      %v368 = vld [vmem:[%s274 + $0x2a8] sm:$0xff]
      %v369 = vld [vmem:[%s274 + $0x2b0] sm:$0xff]
      %v370 = vld [vmem:[%s274 + $0x2b8] sm:$0xff]
      %v371 = vld [vmem:[%s274 + $0x2c0] sm:$0xff]
      %v372 = vld [vmem:[%s274 + $0x2c8] sm:$0xff]
      %v373 = vld [vmem:[%s274 + $0x2d0] sm:$0xff]
      %v374 = vld [vmem:[%s274 + $0x2d8] sm:$0xff]
      %v375 = vld [vmem:[%s274 + $0x2e0] sm:$0xff]
      %v376 = vld [vmem:[%s274 + $0x2e8] sm:$0xff]
      %v377 = vld [vmem:[%s274 + $0x2f0] sm:$0xff]
      %v378 = vld [vmem:[%s274 + $0x2f8] sm:$0xff]
      %v379 = vld [vmem:[%s274 + $0x300] sm:$0xff]
      %v380 = vld [vmem:[%s274 + $0x308] sm:$0xff]
      %v381 = vld [vmem:[%s274 + $0x310] sm:$0xff]
      %v382 = vld [vmem:[%s274 + $0x318] sm:$0xff]
      %v383 = vld [vmem:[%s274 + $0x320] sm:$0xff]
      %v384 = vld [vmem:[%s274 + $0x328] sm:$0xff]
      %v385 = vld [vmem:[%s274 + $0x330] sm:$0xff]
      %v386 = vld [vmem:[%s274 + $0x338] sm:$0xff]
      %v387 = vld [vmem:[%s274 + $0x340] sm:$0xff]
      %v388 = vld [vmem:[%s274 + $0x348] sm:$0xff]
      %v389 = vld [vmem:[%s274 + $0x350] sm:$0xff]
      %v390 = vld [vmem:[%s274 + $0x358] sm:$0xff]
      %v391 = vld [vmem:[%s274 + $0x360] sm:$0xff]
      %v392 = vld [vmem:[%s274 + $0x368] sm:$0xff]
      %v393 = vld [vmem:[%s274 + $0x370] sm:$0xff]
      %v394 = vld [vmem:[%s274 + $0x378] sm:$0xff]
      %v395 = vld [vmem:[%s274 + $0x380] sm:$0xff]
      %v396 = vld [vmem:[%s274 + $0x388] sm:$0xff]
      %v397 = vld [vmem:[%s274 + $0x390] sm:$0xff]
      %v398 = vld [vmem:[%s274 + $0x398] sm:$0xff]
      %v399 = vld [vmem:[%s274 + $0x3a0] sm:$0xff]
      %v400 = vld [vmem:[%s274 + $0x3a8] sm:$0xff]
      %v401 = vld [vmem:[%s274 + $0x3b0] sm:$0xff]
      %v402 = vld [vmem:[%s274 + $0x3b8] sm:$0xff]
      %v403 = vld [vmem:[%s274 + $0x3c0] sm:$0xff]
      %v404 = vld [vmem:[%s274 + $0x3c8] sm:$0xff]
      %v405 = vld [vmem:[%s274 + $0x3d0] sm:$0xff]
      %v406 = vld [vmem:[%s274 + $0x3d8] sm:$0xff]
      %v407 = vld [vmem:[%s274 + $0x3e0] sm:$0xff]
      %v408 = vld [vmem:[%s274 + $0x3e8] sm:$0xff]
      %v409 = vld [vmem:[%s274 + $0x3f0] sm:$0xff]
      %v410 = vld [vmem:[%s274 + $0x3f8] sm:$0xff]
      %v411 = vpack.c.bf16 %v284, %v283
      %v412 = vpack.c.bf16 %v286, %v285
      %v413 = vpack.c.bf16 %v288, %v287
      %v414 = vpack.c.bf16 %v290, %v289
      %v415 = vpack.c.bf16 %v292, %v291
      %v416 = vpack.c.bf16 %v294, %v293
      %v417 = vpack.c.bf16 %v296, %v295
      %v418 = vpack.c.bf16 %v298, %v297
      %v419 = vpack.c.bf16 %v300, %v299
      %v420 = vpack.c.bf16 %v302, %v301
      %v421 = vpack.c.bf16 %v304, %v303
      %v422 = vpack.c.bf16 %v306, %v305
      %v423 = vpack.c.bf16 %v308, %v307
      %v424 = vpack.c.bf16 %v310, %v309
      %v425 = vpack.c.bf16 %v312, %v311
      %v426 = vpack.c.bf16 %v314, %v313
      %v427 = vpack.c.bf16 %v316, %v315
      %v428 = vpack.c.bf16 %v318, %v317
      %v429 = vpack.c.bf16 %v320, %v319
      %v430 = vpack.c.bf16 %v322, %v321
      %v431 = vpack.c.bf16 %v324, %v323
      %v432 = vpack.c.bf16 %v326, %v325
      %v433 = vpack.c.bf16 %v328, %v327
      %v434 = vpack.c.bf16 %v330, %v329
      %v435 = vpack.c.bf16 %v332, %v331
      %v436 = vpack.c.bf16 %v334, %v333
      %v437 = vpack.c.bf16 %v336, %v335
      %v438 = vpack.c.bf16 %v338, %v337
      %v439 = vpack.c.bf16 %v340, %v339
      %v440 = vpack.c.bf16 %v342, %v341
      %v441 = vpack.c.bf16 %v344, %v343
      %v442 = vpack.c.bf16 %v346, %v345
      %v443 = vpack.c.bf16 %v348, %v347
      %v444 = vpack.c.bf16 %v350, %v349
      %v445 = vpack.c.bf16 %v352, %v351
      %v446 = vpack.c.bf16 %v354, %v353
      %v447 = vpack.c.bf16 %v356, %v355
      %v448 = vpack.c.bf16 %v358, %v357
      %v449 = vpack.c.bf16 %v360, %v359
      %v450 = vpack.c.bf16 %v362, %v361
      %v451 = vpack.c.bf16 %v364, %v363
      %v452 = vpack.c.bf16 %v366, %v365
      %v453 = vpack.c.bf16 %v368, %v367
      %v454 = vpack.c.bf16 %v370, %v369
      %v455 = vpack.c.bf16 %v372, %v371
      %v456 = vpack.c.bf16 %v374, %v373
      %v457 = vpack.c.bf16 %v376, %v375
      %v458 = vpack.c.bf16 %v378, %v377
      %v459 = vpack.c.bf16 %v380, %v379
      %v460 = vpack.c.bf16 %v382, %v381
      %v461 = vpack.c.bf16 %v384, %v383
      %v462 = vpack.c.bf16 %v386, %v385
      %v463 = vpack.c.bf16 %v388, %v387
      %v464 = vpack.c.bf16 %v390, %v389
      %v465 = vpack.c.bf16 %v392, %v391
      %v466 = vpack.c.bf16 %v394, %v393
      %v467 = vpack.c.bf16 %v396, %v395
      %v468 = vpack.c.bf16 %v398, %v397
      %v469 = vpack.c.bf16 %v400, %v399
      %v470 = vpack.c.bf16 %v402, %v401
      %v471 = vpack.c.bf16 %v404, %v403
      %v472 = vpack.c.bf16 %v406, %v405
      %v473 = vpack.c.bf16 %v408, %v407
      %v474 = vpack.c.bf16 %v410, %v409
      %v475 = vld [vmem:[%s1] sm:$0x3]
      %v476 = vld [vmem:[%s2] sm:$0x1]
      %v478 = vlaneseq
      %v479 = vshrl.u32 %v478, 7
      %v480 = vsub.s32 0, %v479
      %v481 = vrot.slane %v476, %v480
      %vm483 = vcmask 31744
      %v485 = vsel %vm483, %v411, 0
      %v488 = vsel %vm483, %v412, 0
      %v491 = vsel %vm483, %v413, 0
      %v494 = vsel %vm483, %v414, 0
      %v497 = vsel %vm483, %v415, 0
      %v500 = vsel %vm483, %v416, 0
      %v503 = vsel %vm483, %v417, 0
      %v506 = vsel %vm483, %v418, 0
      %v509 = vsel %vm483, %v419, 0
      %v512 = vsel %vm483, %v420, 0
      %v515 = vsel %vm483, %v421, 0
      %v518 = vsel %vm483, %v422, 0
      %v521 = vsel %vm483, %v423, 0
      %v524 = vsel %vm483, %v424, 0
      %v527 = vsel %vm483, %v425, 0
      %v530 = vsel %vm483, %v426, 0
      %v533 = vsel %vm483, %v427, 0
      %v536 = vsel %vm483, %v428, 0
      %v539 = vsel %vm483, %v429, 0
      %v542 = vsel %vm483, %v430, 0
      %v545 = vsel %vm483, %v431, 0
      %v548 = vsel %vm483, %v432, 0
      %v551 = vsel %vm483, %v433, 0
      %v554 = vsel %vm483, %v434, 0
      %v557 = vsel %vm483, %v435, 0
      %v560 = vsel %vm483, %v436, 0
      %v563 = vsel %vm483, %v437, 0
      %v566 = vsel %vm483, %v438, 0
      %v569 = vsel %vm483, %v439, 0
      %v572 = vsel %vm483, %v440, 0
      %v575 = vsel %vm483, %v441, 0
      %v578 = vsel %vm483, %v442, 0
      %v581 = vsel %vm483, %v443, 0
      %v584 = vsel %vm483, %v444, 0
      %v587 = vsel %vm483, %v445, 0
      %v590 = vsel %vm483, %v446, 0
      %v593 = vsel %vm483, %v447, 0
      %v596 = vsel %vm483, %v448, 0
      %v599 = vsel %vm483, %v449, 0
      %v602 = vsel %vm483, %v450, 0
      %v605 = vsel %vm483, %v451, 0
      %v608 = vsel %vm483, %v452, 0
      %v611 = vsel %vm483, %v453, 0
      %v614 = vsel %vm483, %v454, 0
      %v617 = vsel %vm483, %v455, 0
      %v620 = vsel %vm483, %v456, 0
      %v623 = vsel %vm483, %v457, 0
      %v626 = vsel %vm483, %v458, 0
      %v629 = vsel %vm483, %v459, 0
      %v632 = vsel %vm483, %v460, 0
      %v635 = vsel %vm483, %v461, 0
      %v638 = vsel %vm483, %v462, 0
      %v641 = vsel %vm483, %v463, 0
      %v644 = vsel %vm483, %v464, 0
      %v647 = vsel %vm483, %v465, 0
      %v650 = vsel %vm483, %v466, 0
      %v653 = vsel %vm483, %v467, 0
      %v656 = vsel %vm483, %v468, 0
      %v659 = vsel %vm483, %v469, 0
      %v662 = vsel %vm483, %v470, 0
      %v665 = vsel %vm483, %v471, 0
      %v668 = vsel %vm483, %v472, 0
      %v671 = vsel %vm483, %v473, 0
      %v674 = vsel %vm483, %v474, 0
      %vm676 = vcmask 1041408
      %v678 = vsel %vm676, %v475, 0
      %680 = vmatprep.subr.bf16.mxu0 0
      %681 = vmatpush1.bf16.msra.mxu0 %v678
      %682 = vmatprep.subr.bf16.mxu0 0
      %683 = vmatpush1.bf16.msra.mxu0 0
      %684 = vmatprep.subr.bf16.mxu0 0
      %685 = vmatpush1.bf16.msra.mxu0 0
      %686 = vmatprep.subr.bf16.mxu0 0
      %687 = vmatpush1.bf16.msra.mxu0 0
      %688 = vmatprep.subr.bf16.mxu0 0
      %689 = vmatpush1.bf16.msra.mxu0 0
      %690 = vmatprep.subr.bf16.mxu0 0
      %691 = vmatpush1.bf16.msra.mxu0 0
      %692 = vmatprep.subr.bf16.mxu0 0
      %693 = vmatpush1.bf16.msra.mxu0 0
      %694 = vmatprep.subr.bf16.mxu0 0
      %695 = vmatpush1.bf16.msra.mxu0 0
      %696 = vmatprep.subr.bf16.mxu0 0
      %697 = vmatpush1.bf16.msra.mxu0 0
      %698 = vmatprep.subr.bf16.mxu0 0
      %699 = vmatpush1.bf16.msra.mxu0 0
      %700 = vmatprep.subr.bf16.mxu0 0
      %701 = vmatpush1.bf16.msra.mxu0 0
      %702 = vmatprep.subr.bf16.mxu0 0
      %703 = vmatpush1.bf16.msra.mxu0 0
      %704 = vmatprep.subr.bf16.mxu0 0
      %705 = vmatpush1.bf16.msra.mxu0 0
      %706 = vmatprep.subr.bf16.mxu0 0
      %707 = vmatpush1.bf16.msra.mxu0 0
      %708 = vmatprep.subr.bf16.mxu0 0
      %709 = vmatpush1.bf16.msra.mxu0 0
      %710 = vmatprep.subr.bf16.mxu0 0
      %711 = vmatpush1.bf16.msra.mxu0 0
      %712 = vmatprep.mubr.bf16.mxu0 0
      %713 = vmatmul.mubr.bf16.gmra.mrb[0].mxu0 %v485
      %v714 = vpop.f32.mrb[0].mxu0
      %v715 = vadd.f32 %v481, %v714
      %v716 = vpop.f32.mrb[0].mxu0
      %v717 = vpop.f32.mrb[0].mxu0
      %v718 = vadd.f32 %v481, %v717
      %v719 = vpop.f32.mrb[0].mxu0
      %720 = vmatprep.mubr.bf16.mxu0 0
      %721 = vmatmul.mubr.bf16.gmra.mrb[0].mxu0 %v488
      %v722 = vpop.f32.mrb[0].mxu0
      %v723 = vadd.f32 %v481, %v722
      %v724 = vpop.f32.mrb[0].mxu0
      %v725 = vpop.f32.mrb[0].mxu0
      %v726 = vadd.f32 %v481, %v725
      %v727 = vpop.f32.mrb[0].mxu0
      %728 = vmatprep.mubr.bf16.mxu0 0
      %729 = vmatmul.mubr.bf16.gmra.mrb[0].mxu0 %v491
      %v730 = vpop.f32.mrb[0].mxu0
      %v731 = vadd.f32 %v481, %v730
      %v732 = vpop.f32.mrb[0].mxu0
      %v733 = vpop.f32.mrb[0].mxu0
      %v734 = vadd.f32 %v481, %v733
      %v735 = vpop.f32.mrb[0].mxu0
      %736 = vmatprep.mubr.bf16.mxu0 0
      %737 = vmatmul.mubr.bf16.gmra.mrb[0].mxu0 %v494
      %v738 = vpop.f32.mrb[0].mxu0
      %v739 = vadd.f32 %v481, %v738
      %v740 = vpop.f32.mrb[0].mxu0
      %v741 = vpop.f32.mrb[0].mxu0
      %v742 = vadd.f32 %v481, %v741
      %v743 = vpop.f32.mrb[0].mxu0
      %744 = vmatprep.mubr.bf16.mxu0 0
      %745 = vmatmul.mubr.bf16.gmra.mrb[0].mxu0 %v497
      %v746 = vpop.f32.mrb[0].mxu0
      %v747 = vadd.f32 %v481, %v746
      %v748 = vpop.f32.mrb[0].mxu0
      %v749 = vpop.f32.mrb[0].mxu0
      %v750 = vadd.f32 %v481, %v749
      %v751 = vpop.f32.mrb[0].mxu0
      %752 = vmatprep.mubr.bf16.mxu0 0
      %753 = vmatmul.mubr.bf16.gmra.mrb[0].mxu0 %v500
      %v754 = vpop.f32.mrb[0].mxu0
      %v755 = vadd.f32 %v481, %v754
      %v756 = vpop.f32.mrb[0].mxu0
      %v757 = vpop.f32.mrb[0].mxu0
      %v758 = vadd.f32 %v481, %v757
      %v759 = vpop.f32.mrb[0].mxu0
      %760 = vmatprep.mubr.bf16.mxu0 0
      %761 = vmatmul.mubr.bf16.gmra.mrb[0].mxu0 %v503
      %v762 = vpop.f32.mrb[0].mxu0
      %v763 = vadd.f32 %v481, %v762
      %v764 = vpop.f32.mrb[0].mxu0
      %v765 = vpop.f32.mrb[0].mxu0
      %v766 = vadd.f32 %v481, %v765
      %v767 = vpop.f32.mrb[0].mxu0
      %768 = vmatprep.mubr.bf16.mxu0 0
      %769 = vmatmul.mubr.bf16.gmra.mrb[0].mxu0 %v506
      %v770 = vpop.f32.mrb[0].mxu0
      %v771 = vadd.f32 %v481, %v770
      %v772 = vpop.f32.mrb[0].mxu0
      %v773 = vpop.f32.mrb[0].mxu0
      %v774 = vadd.f32 %v481, %v773
      %v775 = vpop.f32.mrb[0].mxu0
      %776 = vmatprep.mubr.bf16.mxu0 0
      %777 = vmatmul.mubr.bf16.gmra.mrb[0].mxu0 %v509
      %v778 = vpop.f32.mrb[0].mxu0
      %v779 = vadd.f32 %v481, %v778
      %v780 = vpop.f32.mrb[0].mxu0
      %v781 = vpop.f32.mrb[0].mxu0
      %v782 = vadd.f32 %v481, %v781
      %v783 = vpop.f32.mrb[0].mxu0
      %784 = vmatprep.mubr.bf16.mxu0 0
      %785 = vmatmul.mubr.bf16.gmra.mrb[0].mxu0 %v512
      %v786 = vpop.f32.mrb[0].mxu0
      %v787 = vadd.f32 %v481, %v786
      %v788 = vpop.f32.mrb[0].mxu0
      %v789 = vpop.f32.mrb[0].mxu0
      %v790 = vadd.f32 %v481, %v789
      %v791 = vpop.f32.mrb[0].mxu0
      %792 = vmatprep.mubr.bf16.mxu0 0
      %793 = vmatmul.mubr.bf16.gmra.mrb[0].mxu0 %v515
      %v794 = vpop.f32.mrb[0].mxu0
      %v795 = vadd.f32 %v481, %v794
      %v796 = vpop.f32.mrb[0].mxu0
      %v797 = vpop.f32.mrb[0].mxu0
      %v798 = vadd.f32 %v481, %v797
      %v799 = vpop.f32.mrb[0].mxu0
      %800 = vmatprep.mubr.bf16.mxu0 0
      %801 = vmatmul.mubr.bf16.gmra.mrb[0].mxu0 %v518
      %v802 = vpop.f32.mrb[0].mxu0
      %v803 = vadd.f32 %v481, %v802
      %v804 = vpop.f32.mrb[0].mxu0
      %v805 = vpop.f32.mrb[0].mxu0
      %v806 = vadd.f32 %v481, %v805
      %v807 = vpop.f32.mrb[0].mxu0
      %808 = vmatprep.mubr.bf16.mxu0 0
      %809 = vmatmul.mubr.bf16.gmra.mrb[0].mxu0 %v521
      %v810 = vpop.f32.mrb[0].mxu0
      %v811 = vadd.f32 %v481, %v810
      %v812 = vpop.f32.mrb[0].mxu0
      %v813 = vpop.f32.mrb[0].mxu0
      %v814 = vadd.f32 %v481, %v813
      %v815 = vpop.f32.mrb[0].mxu0
      %816 = vmatprep.mubr.bf16.mxu0 0
      %817 = vmatmul.mubr.bf16.gmra.mrb[0].mxu0 %v524
      %v818 = vpop.f32.mrb[0].mxu0
      %v819 = vadd.f32 %v481, %v818
      %v820 = vpop.f32.mrb[0].mxu0
      %v821 = vpop.f32.mrb[0].mxu0
      %v822 = vadd.f32 %v481, %v821
      %v823 = vpop.f32.mrb[0].mxu0
      %824 = vmatprep.mubr.bf16.mxu0 0
      %825 = vmatmul.mubr.bf16.gmra.mrb[0].mxu0 %v527
      %v826 = vpop.f32.mrb[0].mxu0
      %v827 = vadd.f32 %v481, %v826
      %v828 = vpop.f32.mrb[0].mxu0
      %v829 = vpop.f32.mrb[0].mxu0
      %v830 = vadd.f32 %v481, %v829
      %v831 = vpop.f32.mrb[0].mxu0
      %832 = vmatprep.mubr.bf16.mxu0 0
      %833 = vmatmul.mubr.bf16.gmra.mrb[0].mxu0 %v530
      %v834 = vpop.f32.mrb[0].mxu0
      %v835 = vadd.f32 %v481, %v834
      %v836 = vpop.f32.mrb[0].mxu0
      %v837 = vpop.f32.mrb[0].mxu0
      %v838 = vadd.f32 %v481, %v837
      %v839 = vpop.f32.mrb[0].mxu0
      %840 = vmatprep.mubr.bf16.mxu0 0
      %841 = vmatmul.mubr.bf16.gmra.mrb[0].mxu0 %v533
      %v842 = vpop.f32.mrb[0].mxu0
      %v843 = vadd.f32 %v481, %v842
      %v844 = vpop.f32.mrb[0].mxu0
      %v845 = vpop.f32.mrb[0].mxu0
      %v846 = vadd.f32 %v481, %v845
      %v847 = vpop.f32.mrb[0].mxu0
      %848 = vmatprep.mubr.bf16.mxu0 0
      %849 = vmatmul.mubr.bf16.gmra.mrb[0].mxu0 %v536
      %v850 = vpop.f32.mrb[0].mxu0
      %v851 = vadd.f32 %v481, %v850
      %v852 = vpop.f32.mrb[0].mxu0
      %v853 = vpop.f32.mrb[0].mxu0
      %v854 = vadd.f32 %v481, %v853
      %v855 = vpop.f32.mrb[0].mxu0
      %856 = vmatprep.mubr.bf16.mxu0 0
      %857 = vmatmul.mubr.bf16.gmra.mrb[0].mxu0 %v539
      %v858 = vpop.f32.mrb[0].mxu0
      %v859 = vadd.f32 %v481, %v858
      %v860 = vpop.f32.mrb[0].mxu0
      %v861 = vpop.f32.mrb[0].mxu0
      %v862 = vadd.f32 %v481, %v861
      %v863 = vpop.f32.mrb[0].mxu0
      %864 = vmatprep.mubr.bf16.mxu0 0
      %865 = vmatmul.mubr.bf16.gmra.mrb[0].mxu0 %v542
      %v866 = vpop.f32.mrb[0].mxu0
      %v867 = vadd.f32 %v481, %v866
      %v868 = vpop.f32.mrb[0].mxu0
      %v869 = vpop.f32.mrb[0].mxu0
      %v870 = vadd.f32 %v481, %v869
      %v871 = vpop.f32.mrb[0].mxu0
      %872 = vmatprep.mubr.bf16.mxu0 0
      %873 = vmatmul.mubr.bf16.gmra.mrb[0].mxu0 %v545
      %v874 = vpop.f32.mrb[0].mxu0
      %v875 = vadd.f32 %v481, %v874
      %v876 = vpop.f32.mrb[0].mxu0
      %v877 = vpop.f32.mrb[0].mxu0
      %v878 = vadd.f32 %v481, %v877
      %v879 = vpop.f32.mrb[0].mxu0
      %880 = vmatprep.mubr.bf16.mxu0 0
      %881 = vmatmul.mubr.bf16.gmra.mrb[0].mxu0 %v548
      %v882 = vpop.f32.mrb[0].mxu0
      %v883 = vadd.f32 %v481, %v882
      %v884 = vpop.f32.mrb[0].mxu0
      %v885 = vpop.f32.mrb[0].mxu0
      %v886 = vadd.f32 %v481, %v885
      %v887 = vpop.f32.mrb[0].mxu0
      %888 = vmatprep.mubr.bf16.mxu0 0
      %889 = vmatmul.mubr.bf16.gmra.mrb[0].mxu0 %v551
      %v890 = vpop.f32.mrb[0].mxu0
      %v891 = vadd.f32 %v481, %v890
      %v892 = vpop.f32.mrb[0].mxu0
      %v893 = vpop.f32.mrb[0].mxu0
      %v894 = vadd.f32 %v481, %v893
      %v895 = vpop.f32.mrb[0].mxu0
      %896 = vmatprep.mubr.bf16.mxu0 0
      %897 = vmatmul.mubr.bf16.gmra.mrb[0].mxu0 %v554
      %v898 = vpop.f32.mrb[0].mxu0
      %v899 = vadd.f32 %v481, %v898
      %v900 = vpop.f32.mrb[0].mxu0
      %v901 = vpop.f32.mrb[0].mxu0
      %v902 = vadd.f32 %v481, %v901
      %v903 = vpop.f32.mrb[0].mxu0
      %904 = vmatprep.mubr.bf16.mxu0 0
      %905 = vmatmul.mubr.bf16.gmra.mrb[0].mxu0 %v557
      %v906 = vpop.f32.mrb[0].mxu0
      %v907 = vadd.f32 %v481, %v906
      %v908 = vpop.f32.mrb[0].mxu0
      %v909 = vpop.f32.mrb[0].mxu0
      %v910 = vadd.f32 %v481, %v909
      %v911 = vpop.f32.mrb[0].mxu0
      %912 = vmatprep.mubr.bf16.mxu0 0
      %913 = vmatmul.mubr.bf16.gmra.mrb[0].mxu0 %v560
      %v914 = vpop.f32.mrb[0].mxu0
      %v915 = vadd.f32 %v481, %v914
      %v916 = vpop.f32.mrb[0].mxu0
      %v917 = vpop.f32.mrb[0].mxu0
      %v918 = vadd.f32 %v481, %v917
      %v919 = vpop.f32.mrb[0].mxu0
      %920 = vmatprep.mubr.bf16.mxu0 0
      %921 = vmatmul.mubr.bf16.gmra.mrb[0].mxu0 %v563
      %v922 = vpop.f32.mrb[0].mxu0
      %v923 = vadd.f32 %v481, %v922
      %v924 = vpop.f32.mrb[0].mxu0
      %v925 = vpop.f32.mrb[0].mxu0
      %v926 = vadd.f32 %v481, %v925
      %v927 = vpop.f32.mrb[0].mxu0
      %928 = vmatprep.mubr.bf16.mxu0 0
      %929 = vmatmul.mubr.bf16.gmra.mrb[0].mxu0 %v566
      %v930 = vpop.f32.mrb[0].mxu0
      %v931 = vadd.f32 %v481, %v930
      %v932 = vpop.f32.mrb[0].mxu0
      %v933 = vpop.f32.mrb[0].mxu0
      %v934 = vadd.f32 %v481, %v933
      %v935 = vpop.f32.mrb[0].mxu0
      %936 = vmatprep.mubr.bf16.mxu0 0
      %937 = vmatmul.mubr.bf16.gmra.mrb[0].mxu0 %v569
      %v938 = vpop.f32.mrb[0].mxu0
      %v939 = vadd.f32 %v481, %v938
      %v940 = vpop.f32.mrb[0].mxu0
      %v941 = vpop.f32.mrb[0].mxu0
      %v942 = vadd.f32 %v481, %v941
      %v943 = vpop.f32.mrb[0].mxu0
      %944 = vmatprep.mubr.bf16.mxu0 0
      %945 = vmatmul.mubr.bf16.gmra.mrb[0].mxu0 %v572
      %v946 = vpop.f32.mrb[0].mxu0
      %v947 = vadd.f32 %v481, %v946
      %v948 = vpop.f32.mrb[0].mxu0
      %v949 = vpop.f32.mrb[0].mxu0
      %v950 = vadd.f32 %v481, %v949
      %v951 = vpop.f32.mrb[0].mxu0
      %952 = vmatprep.mubr.bf16.mxu0 0
      %953 = vmatmul.mubr.bf16.gmra.mrb[0].mxu0 %v575
      %v954 = vpop.f32.mrb[0].mxu0
      %v955 = vadd.f32 %v481, %v954
      %v956 = vpop.f32.mrb[0].mxu0
      %v957 = vpop.f32.mrb[0].mxu0
      %v958 = vadd.f32 %v481, %v957
      %v959 = vpop.f32.mrb[0].mxu0
      %960 = vmatprep.mubr.bf16.mxu0 0
      %961 = vmatmul.mubr.bf16.gmra.mrb[0].mxu0 %v578
      %v962 = vpop.f32.mrb[0].mxu0
      %v963 = vadd.f32 %v481, %v962
      %v964 = vpop.f32.mrb[0].mxu0
      %v965 = vpop.f32.mrb[0].mxu0
      %v966 = vadd.f32 %v481, %v965
      %v967 = vpop.f32.mrb[0].mxu0
      %968 = vmatprep.mubr.bf16.mxu0 0
      %969 = vmatmul.mubr.bf16.gmra.mrb[0].mxu0 %v581
      %v970 = vpop.f32.mrb[0].mxu0
      %v971 = vadd.f32 %v481, %v970
      %v972 = vpop.f32.mrb[0].mxu0
      %v973 = vpop.f32.mrb[0].mxu0
      %v974 = vadd.f32 %v481, %v973
      %v975 = vpop.f32.mrb[0].mxu0
      %976 = vmatprep.mubr.bf16.mxu0 0
      %977 = vmatmul.mubr.bf16.gmra.mrb[0].mxu0 %v584
      %v978 = vpop.f32.mrb[0].mxu0
      %v979 = vadd.f32 %v481, %v978
      %v980 = vpop.f32.mrb[0].mxu0
      %v981 = vpop.f32.mrb[0].mxu0
      %v982 = vadd.f32 %v481, %v981
      %v983 = vpop.f32.mrb[0].mxu0
      %984 = vmatprep.mubr.bf16.mxu0 0
      %985 = vmatmul.mubr.bf16.gmra.mrb[0].mxu0 %v587
      %v986 = vpop.f32.mrb[0].mxu0
      %v987 = vadd.f32 %v481, %v986
      %v988 = vpop.f32.mrb[0].mxu0
      %v989 = vpop.f32.mrb[0].mxu0
      %v990 = vadd.f32 %v481, %v989
      %v991 = vpop.f32.mrb[0].mxu0
      %992 = vmatprep.mubr.bf16.mxu0 0
      %993 = vmatmul.mubr.bf16.gmra.mrb[0].mxu0 %v590
      %v994 = vpop.f32.mrb[0].mxu0
      %v995 = vadd.f32 %v481, %v994
      %v996 = vpop.f32.mrb[0].mxu0
      %v997 = vpop.f32.mrb[0].mxu0
      %v998 = vadd.f32 %v481, %v997
      %v999 = vpop.f32.mrb[0].mxu0
      %1000 = vmatprep.mubr.bf16.mxu0 0
      %1001 = vmatmul.mubr.bf16.gmra.mrb[0].mxu0 %v593
      %v1002 = vpop.f32.mrb[0].mxu0
      %v1003 = vadd.f32 %v481, %v1002
      %v1004 = vpop.f32.mrb[0].mxu0
      %v1005 = vpop.f32.mrb[0].mxu0
      %v1006 = vadd.f32 %v481, %v1005
      %v1007 = vpop.f32.mrb[0].mxu0
      %1008 = vmatprep.mubr.bf16.mxu0 0
      %1009 = vmatmul.mubr.bf16.gmra.mrb[0].mxu0 %v596
      %v1010 = vpop.f32.mrb[0].mxu0
      %v1011 = vadd.f32 %v481, %v1010
      %v1012 = vpop.f32.mrb[0].mxu0
      %v1013 = vpop.f32.mrb[0].mxu0
      %v1014 = vadd.f32 %v481, %v1013
      %v1015 = vpop.f32.mrb[0].mxu0
      %1016 = vmatprep.mubr.bf16.mxu0 0
      %1017 = vmatmul.mubr.bf16.gmra.mrb[0].mxu0 %v599
      %v1018 = vpop.f32.mrb[0].mxu0
      %v1019 = vadd.f32 %v481, %v1018
      %v1020 = vpop.f32.mrb[0].mxu0
      %v1021 = vpop.f32.mrb[0].mxu0
      %v1022 = vadd.f32 %v481, %v1021
      %v1023 = vpop.f32.mrb[0].mxu0
      %1024 = vmatprep.mubr.bf16.mxu0 0
      %1025 = vmatmul.mubr.bf16.gmra.mrb[0].mxu0 %v602
      %v1026 = vpop.f32.mrb[0].mxu0
      %v1027 = vadd.f32 %v481, %v1026
      %v1028 = vpop.f32.mrb[0].mxu0
      %v1029 = vpop.f32.mrb[0].mxu0
      %v1030 = vadd.f32 %v481, %v1029
      %v1031 = vpop.f32.mrb[0].mxu0
      %1032 = vmatprep.mubr.bf16.mxu0 0
      %1033 = vmatmul.mubr.bf16.gmra.mrb[0].mxu0 %v605
      %v1034 = vpop.f32.mrb[0].mxu0
      %v1035 = vadd.f32 %v481, %v1034
      %v1036 = vpop.f32.mrb[0].mxu0
      %v1037 = vpop.f32.mrb[0].mxu0
      %v1038 = vadd.f32 %v481, %v1037
      %v1039 = vpop.f32.mrb[0].mxu0
      %1040 = vmatprep.mubr.bf16.mxu0 0
      %1041 = vmatmul.mubr.bf16.gmra.mrb[0].mxu0 %v608
      %v1042 = vpop.f32.mrb[0].mxu0
      %v1043 = vadd.f32 %v481, %v1042
      %v1044 = vpop.f32.mrb[0].mxu0
      %v1045 = vpop.f32.mrb[0].mxu0
      %v1046 = vadd.f32 %v481, %v1045
      %v1047 = vpop.f32.mrb[0].mxu0
      %1048 = vmatprep.mubr.bf16.mxu0 0
      %1049 = vmatmul.mubr.bf16.gmra.mrb[0].mxu0 %v611
      %v1050 = vpop.f32.mrb[0].mxu0
      %v1051 = vadd.f32 %v481, %v1050
      %v1052 = vpop.f32.mrb[0].mxu0
      %v1053 = vpop.f32.mrb[0].mxu0
      %v1054 = vadd.f32 %v481, %v1053
      %v1055 = vpop.f32.mrb[0].mxu0
      %1056 = vmatprep.mubr.bf16.mxu0 0
      %1057 = vmatmul.mubr.bf16.gmra.mrb[0].mxu0 %v614
      %v1058 = vpop.f32.mrb[0].mxu0
      %v1059 = vadd.f32 %v481, %v1058
      %v1060 = vpop.f32.mrb[0].mxu0
      %v1061 = vpop.f32.mrb[0].mxu0
      %v1062 = vadd.f32 %v481, %v1061
      %v1063 = vpop.f32.mrb[0].mxu0
      %1064 = vmatprep.mubr.bf16.mxu0 0
      %1065 = vmatmul.mubr.bf16.gmra.mrb[0].mxu0 %v617
      %v1066 = vpop.f32.mrb[0].mxu0
      %v1067 = vadd.f32 %v481, %v1066
      %v1068 = vpop.f32.mrb[0].mxu0
      %v1069 = vpop.f32.mrb[0].mxu0
      %v1070 = vadd.f32 %v481, %v1069
      %v1071 = vpop.f32.mrb[0].mxu0
      %1072 = vmatprep.mubr.bf16.mxu0 0
      %1073 = vmatmul.mubr.bf16.gmra.mrb[0].mxu0 %v620
      %v1074 = vpop.f32.mrb[0].mxu0
      %v1075 = vadd.f32 %v481, %v1074
      %v1076 = vpop.f32.mrb[0].mxu0
      %v1077 = vpop.f32.mrb[0].mxu0
      %v1078 = vadd.f32 %v481, %v1077
      %v1079 = vpop.f32.mrb[0].mxu0
      %1080 = vmatprep.mubr.bf16.mxu0 0
      %1081 = vmatmul.mubr.bf16.gmra.mrb[0].mxu0 %v623
      %v1082 = vpop.f32.mrb[0].mxu0
      %v1083 = vadd.f32 %v481, %v1082
      %v1084 = vpop.f32.mrb[0].mxu0
      %v1085 = vpop.f32.mrb[0].mxu0
      %v1086 = vadd.f32 %v481, %v1085
      %v1087 = vpop.f32.mrb[0].mxu0
      %1088 = vmatprep.mubr.bf16.mxu0 0
      %1089 = vmatmul.mubr.bf16.gmra.mrb[0].mxu0 %v626
      %v1090 = vpop.f32.mrb[0].mxu0
      %v1091 = vadd.f32 %v481, %v1090
      %v1092 = vpop.f32.mrb[0].mxu0
      %v1093 = vpop.f32.mrb[0].mxu0
      %v1094 = vadd.f32 %v481, %v1093
      %v1095 = vpop.f32.mrb[0].mxu0
      %1096 = vmatprep.mubr.bf16.mxu0 0
      %1097 = vmatmul.mubr.bf16.gmra.mrb[0].mxu0 %v629
      %v1098 = vpop.f32.mrb[0].mxu0
      %v1099 = vadd.f32 %v481, %v1098
      %v1100 = vpop.f32.mrb[0].mxu0
      %v1101 = vpop.f32.mrb[0].mxu0
      %v1102 = vadd.f32 %v481, %v1101
      %v1103 = vpop.f32.mrb[0].mxu0
      %1104 = vmatprep.mubr.bf16.mxu0 0
      %1105 = vmatmul.mubr.bf16.gmra.mrb[0].mxu0 %v632
      %v1106 = vpop.f32.mrb[0].mxu0
      %v1107 = vadd.f32 %v481, %v1106
      %v1108 = vpop.f32.mrb[0].mxu0
      %v1109 = vpop.f32.mrb[0].mxu0
      %v1110 = vadd.f32 %v481, %v1109
      %v1111 = vpop.f32.mrb[0].mxu0
      %1112 = vmatprep.mubr.bf16.mxu0 0
      %1113 = vmatmul.mubr.bf16.gmra.mrb[0].mxu0 %v635
      %v1114 = vpop.f32.mrb[0].mxu0
      %v1115 = vadd.f32 %v481, %v1114
      %v1116 = vpop.f32.mrb[0].mxu0
      %v1117 = vpop.f32.mrb[0].mxu0
      %v1118 = vadd.f32 %v481, %v1117
      %v1119 = vpop.f32.mrb[0].mxu0
      %1120 = vmatprep.mubr.bf16.mxu0 0
      %1121 = vmatmul.mubr.bf16.gmra.mrb[0].mxu0 %v638
      %v1122 = vpop.f32.mrb[0].mxu0
      %v1123 = vadd.f32 %v481, %v1122
      %v1124 = vpop.f32.mrb[0].mxu0
      %v1125 = vpop.f32.mrb[0].mxu0
      %v1126 = vadd.f32 %v481, %v1125
      %v1127 = vpop.f32.mrb[0].mxu0
      %1128 = vmatprep.mubr.bf16.mxu0 0
      %1129 = vmatmul.mubr.bf16.gmra.mrb[0].mxu0 %v641
      %v1130 = vpop.f32.mrb[0].mxu0
      %v1131 = vadd.f32 %v481, %v1130
      %v1132 = vpop.f32.mrb[0].mxu0
      %v1133 = vpop.f32.mrb[0].mxu0
      %v1134 = vadd.f32 %v481, %v1133
      %v1135 = vpop.f32.mrb[0].mxu0
      %1136 = vmatprep.mubr.bf16.mxu0 0
      %1137 = vmatmul.mubr.bf16.gmra.mrb[0].mxu0 %v644
      %v1138 = vpop.f32.mrb[0].mxu0
      %v1139 = vadd.f32 %v481, %v1138
      %v1140 = vpop.f32.mrb[0].mxu0
      %v1141 = vpop.f32.mrb[0].mxu0
      %v1142 = vadd.f32 %v481, %v1141
      %v1143 = vpop.f32.mrb[0].mxu0
      %1144 = vmatprep.mubr.bf16.mxu0 0
      %1145 = vmatmul.mubr.bf16.gmra.mrb[0].mxu0 %v647
      %v1146 = vpop.f32.mrb[0].mxu0
      %v1147 = vadd.f32 %v481, %v1146
      %v1148 = vpop.f32.mrb[0].mxu0
      %v1149 = vpop.f32.mrb[0].mxu0
      %v1150 = vadd.f32 %v481, %v1149
      %v1151 = vpop.f32.mrb[0].mxu0
      %1152 = vmatprep.mubr.bf16.mxu0 0
      %1153 = vmatmul.mubr.bf16.gmra.mrb[0].mxu0 %v650
      %v1154 = vpop.f32.mrb[0].mxu0
      %v1155 = vadd.f32 %v481, %v1154
      %v1156 = vpop.f32.mrb[0].mxu0
      %v1157 = vpop.f32.mrb[0].mxu0
      %v1158 = vadd.f32 %v481, %v1157
      %v1159 = vpop.f32.mrb[0].mxu0
      %1160 = vmatprep.mubr.bf16.mxu0 0
      %1161 = vmatmul.mubr.bf16.gmra.mrb[0].mxu0 %v653
      %v1162 = vpop.f32.mrb[0].mxu0
      %v1163 = vadd.f32 %v481, %v1162
      %v1164 = vpop.f32.mrb[0].mxu0
      %v1165 = vpop.f32.mrb[0].mxu0
      %v1166 = vadd.f32 %v481, %v1165
      %v1167 = vpop.f32.mrb[0].mxu0
      %1168 = vmatprep.mubr.bf16.mxu0 0
      %1169 = vmatmul.mubr.bf16.gmra.mrb[0].mxu0 %v656
      %v1170 = vpop.f32.mrb[0].mxu0
      %v1171 = vadd.f32 %v481, %v1170
      %v1172 = vpop.f32.mrb[0].mxu0
      %v1173 = vpop.f32.mrb[0].mxu0
      %v1174 = vadd.f32 %v481, %v1173
      %v1175 = vpop.f32.mrb[0].mxu0
      %1176 = vmatprep.mubr.bf16.mxu0 0
      %1177 = vmatmul.mubr.bf16.gmra.mrb[0].mxu0 %v659
      %v1178 = vpop.f32.mrb[0].mxu0
      %v1179 = vadd.f32 %v481, %v1178
      %v1180 = vpop.f32.mrb[0].mxu0
      %v1181 = vpop.f32.mrb[0].mxu0
      %v1182 = vadd.f32 %v481, %v1181
      %v1183 = vpop.f32.mrb[0].mxu0
      %1184 = vmatprep.mubr.bf16.mxu0 0
      %1185 = vmatmul.mubr.bf16.gmra.mrb[0].mxu0 %v662
      %v1186 = vpop.f32.mrb[0].mxu0
      %v1187 = vadd.f32 %v481, %v1186
      %v1188 = vpop.f32.mrb[0].mxu0
      %v1189 = vpop.f32.mrb[0].mxu0
      %v1190 = vadd.f32 %v481, %v1189
      %v1191 = vpop.f32.mrb[0].mxu0
      %1192 = vmatprep.mubr.bf16.mxu0 0
      %1193 = vmatmul.mubr.bf16.gmra.mrb[0].mxu0 %v665
      %v1194 = vpop.f32.mrb[0].mxu0
      %v1195 = vadd.f32 %v481, %v1194
      %v1196 = vpop.f32.mrb[0].mxu0
      %v1197 = vpop.f32.mrb[0].mxu0
      %v1198 = vadd.f32 %v481, %v1197
      %v1199 = vpop.f32.mrb[0].mxu0
      %1200 = vmatprep.mubr.bf16.mxu0 0
      %1201 = vmatmul.mubr.bf16.gmra.mrb[0].mxu0 %v668
      %v1202 = vpop.f32.mrb[0].mxu0
      %v1203 = vadd.f32 %v481, %v1202
      %v1204 = vpop.f32.mrb[0].mxu0
      %v1205 = vpop.f32.mrb[0].mxu0
      %v1206 = vadd.f32 %v481, %v1205
      %v1207 = vpop.f32.mrb[0].mxu0
      %1208 = vmatprep.mubr.bf16.mxu0 0
      %1209 = vmatmul.mubr.bf16.gmra.mrb[0].mxu0 %v671
      %v1210 = vpop.f32.mrb[0].mxu0
      %v1211 = vadd.f32 %v481, %v1210
      %v1212 = vpop.f32.mrb[0].mxu0
      %v1213 = vpop.f32.mrb[0].mxu0
      %v1214 = vadd.f32 %v481, %v1213
      %v1215 = vpop.f32.mrb[0].mxu0
      %1216 = vmatprep.mubr.bf16.mxu0 0
      %1217 = vmatmul.mubr.bf16.gmra.mrb[0].mxu0 %v674
      %v1218 = vpop.f32.mrb[0].mxu0
      %v1219 = vadd.f32 %v481, %v1218
      %v1220 = vpop.f32.mrb[0].mxu0
      %v1221 = vpop.f32.mrb[0].mxu0
      %v1222 = vadd.f32 %v481, %v1221
      %v1223 = vpop.f32.mrb[0].mxu0
      %1224 = vdwg.mxu0
      %v1225 = vmax.f32 %v715, 0.0
      %v1226 = vmax.f32 %v718, 0.0
      %v1227 = vmax.f32 %v723, 0.0
      %v1228 = vmax.f32 %v726, 0.0
      %v1229 = vmax.f32 %v731, 0.0
      %v1230 = vmax.f32 %v734, 0.0
      %v1231 = vmax.f32 %v739, 0.0
      %v1232 = vmax.f32 %v742, 0.0
      %v1233 = vmax.f32 %v747, 0.0
      %v1234 = vmax.f32 %v750, 0.0
      %v1235 = vmax.f32 %v755, 0.0
      %v1236 = vmax.f32 %v758, 0.0
      %v1237 = vmax.f32 %v763, 0.0
      %v1238 = vmax.f32 %v766, 0.0
      %v1239 = vmax.f32 %v771, 0.0
      %v1240 = vmax.f32 %v774, 0.0
      %v1241 = vmax.f32 %v779, 0.0
      %v1242 = vmax.f32 %v782, 0.0
      %v1243 = vmax.f32 %v787, 0.0
      %v1244 = vmax.f32 %v790, 0.0
      %v1245 = vmax.f32 %v795, 0.0
      %v1246 = vmax.f32 %v798, 0.0
      %v1247 = vmax.f32 %v803, 0.0
      %v1248 = vmax.f32 %v806, 0.0
      %v1249 = vmax.f32 %v811, 0.0
      %v1250 = vmax.f32 %v814, 0.0
      %v1251 = vmax.f32 %v819, 0.0
      %v1252 = vmax.f32 %v822, 0.0
      %v1253 = vmax.f32 %v827, 0.0
      %v1254 = vmax.f32 %v830, 0.0
      %v1255 = vmax.f32 %v835, 0.0
      %v1256 = vmax.f32 %v838, 0.0
      %v1257 = vmax.f32 %v843, 0.0
      %v1258 = vmax.f32 %v846, 0.0
      %v1259 = vmax.f32 %v851, 0.0
      %v1260 = vmax.f32 %v854, 0.0
      %v1261 = vmax.f32 %v859, 0.0
      %v1262 = vmax.f32 %v862, 0.0
      %v1263 = vmax.f32 %v867, 0.0
      %v1264 = vmax.f32 %v870, 0.0
      %v1265 = vmax.f32 %v875, 0.0
      %v1266 = vmax.f32 %v878, 0.0
      %v1267 = vmax.f32 %v883, 0.0
      %v1268 = vmax.f32 %v886, 0.0
      %v1269 = vmax.f32 %v891, 0.0
      %v1270 = vmax.f32 %v894, 0.0
      %v1271 = vmax.f32 %v899, 0.0
      %v1272 = vmax.f32 %v902, 0.0
      %v1273 = vmax.f32 %v907, 0.0
      %v1274 = vmax.f32 %v910, 0.0
      %v1275 = vmax.f32 %v915, 0.0
      %v1276 = vmax.f32 %v918, 0.0
      %v1277 = vmax.f32 %v923, 0.0
      %v1278 = vmax.f32 %v926, 0.0
      %v1279 = vmax.f32 %v931, 0.0
      %v1280 = vmax.f32 %v934, 0.0
      %v1281 = vmax.f32 %v939, 0.0
      %v1282 = vmax.f32 %v942, 0.0
      %v1283 = vmax.f32 %v947, 0.0
      %v1284 = vmax.f32 %v950, 0.0
      %v1285 = vmax.f32 %v955, 0.0
      %v1286 = vmax.f32 %v958, 0.0
      %v1287 = vmax.f32 %v963, 0.0
      %v1288 = vmax.f32 %v966, 0.0
      %v1289 = vmax.f32 %v971, 0.0
      %v1290 = vmax.f32 %v974, 0.0
      %v1291 = vmax.f32 %v979, 0.0
      %v1292 = vmax.f32 %v982, 0.0
      %v1293 = vmax.f32 %v987, 0.0
      %v1294 = vmax.f32 %v990, 0.0
      %v1295 = vmax.f32 %v995, 0.0
      %v1296 = vmax.f32 %v998, 0.0
      %v1297 = vmax.f32 %v1003, 0.0
      %v1298 = vmax.f32 %v1006, 0.0
      %v1299 = vmax.f32 %v1011, 0.0
      %v1300 = vmax.f32 %v1014, 0.0
      %v1301 = vmax.f32 %v1019, 0.0
      %v1302 = vmax.f32 %v1022, 0.0
      %v1303 = vmax.f32 %v1027, 0.0
      %v1304 = vmax.f32 %v1030, 0.0
      %v1305 = vmax.f32 %v1035, 0.0
      %v1306 = vmax.f32 %v1038, 0.0
      %v1307 = vmax.f32 %v1043, 0.0
      %v1308 = vmax.f32 %v1046, 0.0
      %v1309 = vmax.f32 %v1051, 0.0
      %v1310 = vmax.f32 %v1054, 0.0
      %v1311 = vmax.f32 %v1059, 0.0
      %v1312 = vmax.f32 %v1062, 0.0
      %v1313 = vmax.f32 %v1067, 0.0
      %v1314 = vmax.f32 %v1070, 0.0
      %v1315 = vmax.f32 %v1075, 0.0
      %v1316 = vmax.f32 %v1078, 0.0
      %v1317 = vmax.f32 %v1083, 0.0
      %v1318 = vmax.f32 %v1086, 0.0
      %v1319 = vmax.f32 %v1091, 0.0
      %v1320 = vmax.f32 %v1094, 0.0
      %v1321 = vmax.f32 %v1099, 0.0
      %v1322 = vmax.f32 %v1102, 0.0
      %v1323 = vmax.f32 %v1107, 0.0
      %v1324 = vmax.f32 %v1110, 0.0
      %v1325 = vmax.f32 %v1115, 0.0
      %v1326 = vmax.f32 %v1118, 0.0
      %v1327 = vmax.f32 %v1123, 0.0
      %v1328 = vmax.f32 %v1126, 0.0
      %v1329 = vmax.f32 %v1131, 0.0
      %v1330 = vmax.f32 %v1134, 0.0
      %v1331 = vmax.f32 %v1139, 0.0
      %v1332 = vmax.f32 %v1142, 0.0
      %v1333 = vmax.f32 %v1147, 0.0
      %v1334 = vmax.f32 %v1150, 0.0
      %v1335 = vmax.f32 %v1155, 0.0
      %v1336 = vmax.f32 %v1158, 0.0
      %v1337 = vmax.f32 %v1163, 0.0
      %v1338 = vmax.f32 %v1166, 0.0
      %v1339 = vmax.f32 %v1171, 0.0
      %v1340 = vmax.f32 %v1174, 0.0
      %v1341 = vmax.f32 %v1179, 0.0
      %v1342 = vmax.f32 %v1182, 0.0
      %v1343 = vmax.f32 %v1187, 0.0
      %v1344 = vmax.f32 %v1190, 0.0
      %v1345 = vmax.f32 %v1195, 0.0
      %v1346 = vmax.f32 %v1198, 0.0
      %v1347 = vmax.f32 %v1203, 0.0
      %v1348 = vmax.f32 %v1206, 0.0
      %v1349 = vmax.f32 %v1211, 0.0
      %v1350 = vmax.f32 %v1214, 0.0
      %v1351 = vmax.f32 %v1219, 0.0
      %v1352 = vmax.f32 %v1222, 0.0
      %v1353 = vpack.c.bf16 %v1226, %v1225
      %v1354 = vpack.c.bf16 %v1228, %v1227
      %v1355 = vpack.c.bf16 %v1230, %v1229
      %v1356 = vpack.c.bf16 %v1232, %v1231
      %v1357 = vpack.c.bf16 %v1234, %v1233
      %v1358 = vpack.c.bf16 %v1236, %v1235
      %v1359 = vpack.c.bf16 %v1238, %v1237
      %v1360 = vpack.c.bf16 %v1240, %v1239
      %v1361 = vpack.c.bf16 %v1242, %v1241
      %v1362 = vpack.c.bf16 %v1244, %v1243
      %v1363 = vpack.c.bf16 %v1246, %v1245
      %v1364 = vpack.c.bf16 %v1248, %v1247
      %v1365 = vpack.c.bf16 %v1250, %v1249
      %v1366 = vpack.c.bf16 %v1252, %v1251
      %v1367 = vpack.c.bf16 %v1254, %v1253
      %v1368 = vpack.c.bf16 %v1256, %v1255
      %v1369 = vpack.c.bf16 %v1258, %v1257
      %v1370 = vpack.c.bf16 %v1260, %v1259
      %v1371 = vpack.c.bf16 %v1262, %v1261
      %v1372 = vpack.c.bf16 %v1264, %v1263
      %v1373 = vpack.c.bf16 %v1266, %v1265
      %v1374 = vpack.c.bf16 %v1268, %v1267
      %v1375 = vpack.c.bf16 %v1270, %v1269
      %v1376 = vpack.c.bf16 %v1272, %v1271
      %v1377 = vpack.c.bf16 %v1274, %v1273
      %v1378 = vpack.c.bf16 %v1276, %v1275
      %v1379 = vpack.c.bf16 %v1278, %v1277
      %v1380 = vpack.c.bf16 %v1280, %v1279
      %v1381 = vpack.c.bf16 %v1282, %v1281
      %v1382 = vpack.c.bf16 %v1284, %v1283
      %v1383 = vpack.c.bf16 %v1286, %v1285
      %v1384 = vpack.c.bf16 %v1288, %v1287
      %v1385 = vpack.c.bf16 %v1290, %v1289
      %v1386 = vpack.c.bf16 %v1292, %v1291
      %v1387 = vpack.c.bf16 %v1294, %v1293
      %v1388 = vpack.c.bf16 %v1296, %v1295
      %v1389 = vpack.c.bf16 %v1298, %v1297
      %v1390 = vpack.c.bf16 %v1300, %v1299
      %v1391 = vpack.c.bf16 %v1302, %v1301
      %v1392 = vpack.c.bf16 %v1304, %v1303
      %v1393 = vpack.c.bf16 %v1306, %v1305
      %v1394 = vpack.c.bf16 %v1308, %v1307
      %v1395 = vpack.c.bf16 %v1310, %v1309
      %v1396 = vpack.c.bf16 %v1312, %v1311
      %v1397 = vpack.c.bf16 %v1314, %v1313
      %v1398 = vpack.c.bf16 %v1316, %v1315
      %v1399 = vpack.c.bf16 %v1318, %v1317
      %v1400 = vpack.c.bf16 %v1320, %v1319
      %v1401 = vpack.c.bf16 %v1322, %v1321
      %v1402 = vpack.c.bf16 %v1324, %v1323
      %v1403 = vpack.c.bf16 %v1326, %v1325
      %v1404 = vpack.c.bf16 %v1328, %v1327
      %v1405 = vpack.c.bf16 %v1330, %v1329
      %v1406 = vpack.c.bf16 %v1332, %v1331
      %v1407 = vpack.c.bf16 %v1334, %v1333
      %v1408 = vpack.c.bf16 %v1336, %v1335
      %v1409 = vpack.c.bf16 %v1338, %v1337
      %v1410 = vpack.c.bf16 %v1340, %v1339
      %v1411 = vpack.c.bf16 %v1342, %v1341
      %v1412 = vpack.c.bf16 %v1344, %v1343
      %v1413 = vpack.c.bf16 %v1346, %v1345
      %v1414 = vpack.c.bf16 %v1348, %v1347
      %v1415 = vpack.c.bf16 %v1350, %v1349
      %v1416 = vpack.c.bf16 %v1352, %v1351
      %v1417 = vld [vmem:[%s3] sm:$0xf]
      %v1418 = vld [vmem:[%s3 + $0x4] sm:$0xf]
      %v1419 = vld [vmem:[%s3 + $0x8] sm:$0xf]
      %v1420 = vld [vmem:[%s3 + $0xc] sm:$0xf]
      %v1421 = vld [vmem:[%s3 + $0x10] sm:$0xf]
      %v1422 = vld [vmem:[%s3 + $0x14] sm:$0xf]
      %v1423 = vld [vmem:[%s3 + $0x18] sm:$0xf]
      %v1424 = vld [vmem:[%s3 + $0x1c] sm:$0xf]
      %v1425 = vld [vmem:[%s4] sm:$0x1]
      %v1427 = vlaneseq
      %v1428 = vshrl.u32 %v1427, 7
      %v1429 = vsub.s32 0, %v1428
      %v1430 = vrot.slane %v1425, %v1429
      %v1440 = vunpack.c.l.b16 %v1417
      %v1441 = vunpack.c.l.b16 %v1418
      %v1442 = vunpack.c.l.b16 %v1419
      %v1443 = vunpack.c.l.b16 %v1420
      %v1444 = vunpack.c.l.b16 %v1421
      %v1445 = vunpack.c.l.b16 %v1422
      %v1446 = vunpack.c.l.b16 %v1423
      %v1447 = vunpack.c.l.b16 %v1424
      %v1448 = vpack.c.b16 %v1441, %v1440
      %v1449 = vpack.c.b16 %v1443, %v1442
      %v1450 = vpack.c.b16 %v1445, %v1444
      %v1451 = vpack.c.b16 %v1447, %v1446
      %vm1456 = vcmask 523264
      %v1458 = vsel %vm1456, %v1353, 0
      %v1461 = vsel %vm1456, %v1354, 0
      %v1464 = vsel %vm1456, %v1355, 0
      %v1467 = vsel %vm1456, %v1356, 0
      %v1470 = vsel %vm1456, %v1357, 0
      %v1473 = vsel %vm1456, %v1358, 0
      %v1476 = vsel %vm1456, %v1359, 0
      %v1479 = vsel %vm1456, %v1360, 0
      %v1482 = vsel %vm1456, %v1361, 0
      %v1485 = vsel %vm1456, %v1362, 0
      %v1488 = vsel %vm1456, %v1363, 0
      %v1491 = vsel %vm1456, %v1364, 0
      %v1494 = vsel %vm1456, %v1365, 0
      %v1497 = vsel %vm1456, %v1366, 0
      %v1500 = vsel %vm1456, %v1367, 0
      %v1503 = vsel %vm1456, %v1368, 0
      %v1506 = vsel %vm1456, %v1369, 0
      %v1509 = vsel %vm1456, %v1370, 0
      %v1512 = vsel %vm1456, %v1371, 0
      %v1515 = vsel %vm1456, %v1372, 0
      %v1518 = vsel %vm1456, %v1373, 0
      %v1521 = vsel %vm1456, %v1374, 0
      %v1524 = vsel %vm1456, %v1375, 0
      %v1527 = vsel %vm1456, %v1376, 0
      %v1530 = vsel %vm1456, %v1377, 0
      %v1533 = vsel %vm1456, %v1378, 0
      %v1536 = vsel %vm1456, %v1379, 0
      %v1539 = vsel %vm1456, %v1380, 0
      %v1542 = vsel %vm1456, %v1381, 0
      %v1545 = vsel %vm1456, %v1382, 0
      %v1548 = vsel %vm1456, %v1383, 0
      %v1551 = vsel %vm1456, %v1384, 0
      %v1554 = vsel %vm1456, %v1385, 0
      %v1557 = vsel %vm1456, %v1386, 0
      %v1560 = vsel %vm1456, %v1387, 0
      %v1563 = vsel %vm1456, %v1388, 0
      %v1566 = vsel %vm1456, %v1389, 0
      %v1569 = vsel %vm1456, %v1390, 0
      %v1572 = vsel %vm1456, %v1391, 0
      %v1575 = vsel %vm1456, %v1392, 0
      %v1578 = vsel %vm1456, %v1393, 0
      %v1581 = vsel %vm1456, %v1394, 0
      %v1584 = vsel %vm1456, %v1395, 0
      %v1587 = vsel %vm1456, %v1396, 0
      %v1590 = vsel %vm1456, %v1397, 0
      %v1593 = vsel %vm1456, %v1398, 0
      %v1596 = vsel %vm1456, %v1399, 0
      %v1599 = vsel %vm1456, %v1400, 0
      %v1602 = vsel %vm1456, %v1401, 0
      %v1605 = vsel %vm1456, %v1402, 0
      %v1608 = vsel %vm1456, %v1403, 0
      %v1611 = vsel %vm1456, %v1404, 0
      %v1614 = vsel %vm1456, %v1405, 0
      %v1617 = vsel %vm1456, %v1406, 0
      %v1620 = vsel %vm1456, %v1407, 0
      %v1623 = vsel %vm1456, %v1408, 0
      %v1626 = vsel %vm1456, %v1409, 0
      %v1629 = vsel %vm1456, %v1410, 0
      %v1632 = vsel %vm1456, %v1411, 0
      %v1635 = vsel %vm1456, %v1412, 0
      %v1638 = vsel %vm1456, %v1413, 0
      %v1641 = vsel %vm1456, %v1414, 0
      %v1644 = vsel %vm1456, %v1415, 0
      %v1647 = vsel %vm1456, %v1416, 0
      %1649 = vmatprep.subr.bf16.mxu0 0
      %1650 = vmatpush1.bf16.msra.mxu0 %v1448
      %1651 = vmatprep.subr.bf16.mxu0 0
      %1652 = vmatpush1.bf16.msra.mxu0 %v1449
      %1653 = vmatprep.subr.bf16.mxu0 0
      %1654 = vmatpush1.bf16.msra.mxu0 %v1450
      %1655 = vmatprep.subr.bf16.mxu0 0
      %1656 = vmatpush1.bf16.msra.mxu0 %v1451
      %1657 = vmatprep.subr.bf16.mxu0 0
      %1658 = vmatpush1.bf16.msra.mxu0 0
      %1659 = vmatprep.subr.bf16.mxu0 0
      %1660 = vmatpush1.bf16.msra.mxu0 0
      %1661 = vmatprep.subr.bf16.mxu0 0
      %1662 = vmatpush1.bf16.msra.mxu0 0
      %1663 = vmatprep.subr.bf16.mxu0 0
      %1664 = vmatpush1.bf16.msra.mxu0 0
      %1665 = vmatprep.subr.bf16.mxu0 0
      %1666 = vmatpush1.bf16.msra.mxu0 0
      %1667 = vmatprep.subr.bf16.mxu0 0
      %1668 = vmatpush1.bf16.msra.mxu0 0
      %1669 = vmatprep.subr.bf16.mxu0 0
      %1670 = vmatpush1.bf16.msra.mxu0 0
      %1671 = vmatprep.subr.bf16.mxu0 0
      %1672 = vmatpush1.bf16.msra.mxu0 0
      %1673 = vmatprep.subr.bf16.mxu0 0
      %1674 = vmatpush1.bf16.msra.mxu0 0
      %1675 = vmatprep.subr.bf16.mxu0 0
      %1676 = vmatpush1.bf16.msra.mxu0 0
      %1677 = vmatprep.subr.bf16.mxu0 0
      %1678 = vmatpush1.bf16.msra.mxu0 0
      %1679 = vmatprep.subr.bf16.mxu0 0
      %1680 = vmatpush1.bf16.msra.mxu0 0
      %1681 = vmatprep.mubr.bf16.mxu0 0
      %1682 = vmatmul.mubr.bf16.gmra.mrb[0].mxu0 %v1458
      %v1683 = vpop.f32.mrb[0].mxu0
      %v1684 = vadd.f32 %v1430, %v1683
      %v1685 = vpop.f32.mrb[0].mxu0
      %v1686 = vpop.f32.mrb[0].mxu0
      %v1687 = vadd.f32 %v1430, %v1686
      %v1688 = vpop.f32.mrb[0].mxu0
      %1689 = vmatprep.mubr.bf16.mxu0 0
      %1690 = vmatmul.mubr.bf16.gmra.mrb[0].mxu0 %v1461
      %v1691 = vpop.f32.mrb[0].mxu0
      %v1692 = vadd.f32 %v1430, %v1691
      %v1693 = vpop.f32.mrb[0].mxu0
      %v1694 = vpop.f32.mrb[0].mxu0
      %v1695 = vadd.f32 %v1430, %v1694
      %v1696 = vpop.f32.mrb[0].mxu0
      %1697 = vmatprep.mubr.bf16.mxu0 0
      %1698 = vmatmul.mubr.bf16.gmra.mrb[0].mxu0 %v1464
      %v1699 = vpop.f32.mrb[0].mxu0
      %v1700 = vadd.f32 %v1430, %v1699
      %v1701 = vpop.f32.mrb[0].mxu0
      %v1702 = vpop.f32.mrb[0].mxu0
      %v1703 = vadd.f32 %v1430, %v1702
      %v1704 = vpop.f32.mrb[0].mxu0
      %1705 = vmatprep.mubr.bf16.mxu0 0
      %1706 = vmatmul.mubr.bf16.gmra.mrb[0].mxu0 %v1467
      %v1707 = vpop.f32.mrb[0].mxu0
      %v1708 = vadd.f32 %v1430, %v1707
      %v1709 = vpop.f32.mrb[0].mxu0
      %v1710 = vpop.f32.mrb[0].mxu0
      %v1711 = vadd.f32 %v1430, %v1710
      %v1712 = vpop.f32.mrb[0].mxu0
      %1713 = vmatprep.mubr.bf16.mxu0 0
      %1714 = vmatmul.mubr.bf16.gmra.mrb[0].mxu0 %v1470
      %v1715 = vpop.f32.mrb[0].mxu0
      %v1716 = vadd.f32 %v1430, %v1715
      %v1717 = vpop.f32.mrb[0].mxu0
      %v1718 = vpop.f32.mrb[0].mxu0
      %v1719 = vadd.f32 %v1430, %v1718
      %v1720 = vpop.f32.mrb[0].mxu0
      %1721 = vmatprep.mubr.bf16.mxu0 0
      %1722 = vmatmul.mubr.bf16.gmra.mrb[0].mxu0 %v1473
      %v1723 = vpop.f32.mrb[0].mxu0
      %v1724 = vadd.f32 %v1430, %v1723
      %v1725 = vpop.f32.mrb[0].mxu0
      %v1726 = vpop.f32.mrb[0].mxu0
      %v1727 = vadd.f32 %v1430, %v1726
      %v1728 = vpop.f32.mrb[0].mxu0
      %1729 = vmatprep.mubr.bf16.mxu0 0
      %1730 = vmatmul.mubr.bf16.gmra.mrb[0].mxu0 %v1476
      %v1731 = vpop.f32.mrb[0].mxu0
      %v1732 = vadd.f32 %v1430, %v1731
      %v1733 = vpop.f32.mrb[0].mxu0
      %v1734 = vpop.f32.mrb[0].mxu0
      %v1735 = vadd.f32 %v1430, %v1734
      %v1736 = vpop.f32.mrb[0].mxu0
      %1737 = vmatprep.mubr.bf16.mxu0 0
      %1738 = vmatmul.mubr.bf16.gmra.mrb[0].mxu0 %v1479
      %v1739 = vpop.f32.mrb[0].mxu0
      %v1740 = vadd.f32 %v1430, %v1739
      %v1741 = vpop.f32.mrb[0].mxu0
      %v1742 = vpop.f32.mrb[0].mxu0
      %v1743 = vadd.f32 %v1430, %v1742
      %v1744 = vpop.f32.mrb[0].mxu0
      %1745 = vmatprep.mubr.bf16.mxu0 0
      %1746 = vmatmul.mubr.bf16.gmra.mrb[0].mxu0 %v1482
      %v1747 = vpop.f32.mrb[0].mxu0
      %v1748 = vadd.f32 %v1430, %v1747
      %v1749 = vpop.f32.mrb[0].mxu0
      %v1750 = vpop.f32.mrb[0].mxu0
      %v1751 = vadd.f32 %v1430, %v1750
      %v1752 = vpop.f32.mrb[0].mxu0
      %1753 = vmatprep.mubr.bf16.mxu0 0
      %1754 = vmatmul.mubr.bf16.gmra.mrb[0].mxu0 %v1485
      %v1755 = vpop.f32.mrb[0].mxu0
      %v1756 = vadd.f32 %v1430, %v1755
      %v1757 = vpop.f32.mrb[0].mxu0
      %v1758 = vpop.f32.mrb[0].mxu0
      %v1759 = vadd.f32 %v1430, %v1758
      %v1760 = vpop.f32.mrb[0].mxu0
      %1761 = vmatprep.mubr.bf16.mxu0 0
      %1762 = vmatmul.mubr.bf16.gmra.mrb[0].mxu0 %v1488
      %v1763 = vpop.f32.mrb[0].mxu0
      %v1764 = vadd.f32 %v1430, %v1763
      %v1765 = vpop.f32.mrb[0].mxu0
      %v1766 = vpop.f32.mrb[0].mxu0
      %v1767 = vadd.f32 %v1430, %v1766
      %v1768 = vpop.f32.mrb[0].mxu0
      %1769 = vmatprep.mubr.bf16.mxu0 0
      %1770 = vmatmul.mubr.bf16.gmra.mrb[0].mxu0 %v1491
      %v1771 = vpop.f32.mrb[0].mxu0
      %v1772 = vadd.f32 %v1430, %v1771
      %v1773 = vpop.f32.mrb[0].mxu0
      %v1774 = vpop.f32.mrb[0].mxu0
      %v1775 = vadd.f32 %v1430, %v1774
      %v1776 = vpop.f32.mrb[0].mxu0
      %1777 = vmatprep.mubr.bf16.mxu0 0
      %1778 = vmatmul.mubr.bf16.gmra.mrb[0].mxu0 %v1494
      %v1779 = vpop.f32.mrb[0].mxu0
      %v1780 = vadd.f32 %v1430, %v1779
      %v1781 = vpop.f32.mrb[0].mxu0
      %v1782 = vpop.f32.mrb[0].mxu0
      %v1783 = vadd.f32 %v1430, %v1782
      %v1784 = vpop.f32.mrb[0].mxu0
      %1785 = vmatprep.mubr.bf16.mxu0 0
      %1786 = vmatmul.mubr.bf16.gmra.mrb[0].mxu0 %v1497
      %v1787 = vpop.f32.mrb[0].mxu0
      %v1788 = vadd.f32 %v1430, %v1787
      %v1789 = vpop.f32.mrb[0].mxu0
      %v1790 = vpop.f32.mrb[0].mxu0
      %v1791 = vadd.f32 %v1430, %v1790
      %v1792 = vpop.f32.mrb[0].mxu0
      %1793 = vmatprep.mubr.bf16.mxu0 0
      %1794 = vmatmul.mubr.bf16.gmra.mrb[0].mxu0 %v1500
      %v1795 = vpop.f32.mrb[0].mxu0
      %v1796 = vadd.f32 %v1430, %v1795
      %v1797 = vpop.f32.mrb[0].mxu0
      %v1798 = vpop.f32.mrb[0].mxu0
      %v1799 = vadd.f32 %v1430, %v1798
      %v1800 = vpop.f32.mrb[0].mxu0
      %1801 = vmatprep.mubr.bf16.mxu0 0
      %1802 = vmatmul.mubr.bf16.gmra.mrb[0].mxu0 %v1503
      %v1803 = vpop.f32.mrb[0].mxu0
      %v1804 = vadd.f32 %v1430, %v1803
      %v1805 = vpop.f32.mrb[0].mxu0
      %v1806 = vpop.f32.mrb[0].mxu0
      %v1807 = vadd.f32 %v1430, %v1806
      %v1808 = vpop.f32.mrb[0].mxu0
      %1809 = vmatprep.mubr.bf16.mxu0 0
      %1810 = vmatmul.mubr.bf16.gmra.mrb[0].mxu0 %v1506
      %v1811 = vpop.f32.mrb[0].mxu0
      %v1812 = vadd.f32 %v1430, %v1811
      %v1813 = vpop.f32.mrb[0].mxu0
      %v1814 = vpop.f32.mrb[0].mxu0
      %v1815 = vadd.f32 %v1430, %v1814
      %v1816 = vpop.f32.mrb[0].mxu0
      %1817 = vmatprep.mubr.bf16.mxu0 0
      %1818 = vmatmul.mubr.bf16.gmra.mrb[0].mxu0 %v1509
      %v1819 = vpop.f32.mrb[0].mxu0
      %v1820 = vadd.f32 %v1430, %v1819
      %v1821 = vpop.f32.mrb[0].mxu0
      %v1822 = vpop.f32.mrb[0].mxu0
      %v1823 = vadd.f32 %v1430, %v1822
      %v1824 = vpop.f32.mrb[0].mxu0
      %1825 = vmatprep.mubr.bf16.mxu0 0
      %1826 = vmatmul.mubr.bf16.gmra.mrb[0].mxu0 %v1512
      %v1827 = vpop.f32.mrb[0].mxu0
      %v1828 = vadd.f32 %v1430, %v1827
      %v1829 = vpop.f32.mrb[0].mxu0
      %v1830 = vpop.f32.mrb[0].mxu0
      %v1831 = vadd.f32 %v1430, %v1830
      %v1832 = vpop.f32.mrb[0].mxu0
      %1833 = vmatprep.mubr.bf16.mxu0 0
      %1834 = vmatmul.mubr.bf16.gmra.mrb[0].mxu0 %v1515
      %v1835 = vpop.f32.mrb[0].mxu0
      %v1836 = vadd.f32 %v1430, %v1835
      %v1837 = vpop.f32.mrb[0].mxu0
      %v1838 = vpop.f32.mrb[0].mxu0
      %v1839 = vadd.f32 %v1430, %v1838
      %v1840 = vpop.f32.mrb[0].mxu0
      %1841 = vmatprep.mubr.bf16.mxu0 0
      %1842 = vmatmul.mubr.bf16.gmra.mrb[0].mxu0 %v1518
      %v1843 = vpop.f32.mrb[0].mxu0
      %v1844 = vadd.f32 %v1430, %v1843
      %v1845 = vpop.f32.mrb[0].mxu0
      %v1846 = vpop.f32.mrb[0].mxu0
      %v1847 = vadd.f32 %v1430, %v1846
      %v1848 = vpop.f32.mrb[0].mxu0
      %1849 = vmatprep.mubr.bf16.mxu0 0
      %1850 = vmatmul.mubr.bf16.gmra.mrb[0].mxu0 %v1521
      %v1851 = vpop.f32.mrb[0].mxu0
      %v1852 = vadd.f32 %v1430, %v1851
      %v1853 = vpop.f32.mrb[0].mxu0
      %v1854 = vpop.f32.mrb[0].mxu0
      %v1855 = vadd.f32 %v1430, %v1854
      %v1856 = vpop.f32.mrb[0].mxu0
      %1857 = vmatprep.mubr.bf16.mxu0 0
      %1858 = vmatmul.mubr.bf16.gmra.mrb[0].mxu0 %v1524
      %v1859 = vpop.f32.mrb[0].mxu0
      %v1860 = vadd.f32 %v1430, %v1859
      %v1861 = vpop.f32.mrb[0].mxu0
      %v1862 = vpop.f32.mrb[0].mxu0
      %v1863 = vadd.f32 %v1430, %v1862
      %v1864 = vpop.f32.mrb[0].mxu0
      %1865 = vmatprep.mubr.bf16.mxu0 0
      %1866 = vmatmul.mubr.bf16.gmra.mrb[0].mxu0 %v1527
      %v1867 = vpop.f32.mrb[0].mxu0
      %v1868 = vadd.f32 %v1430, %v1867
      %v1869 = vpop.f32.mrb[0].mxu0
      %v1870 = vpop.f32.mrb[0].mxu0
      %v1871 = vadd.f32 %v1430, %v1870
      %v1872 = vpop.f32.mrb[0].mxu0
      %1873 = vmatprep.mubr.bf16.mxu0 0
      %1874 = vmatmul.mubr.bf16.gmra.mrb[0].mxu0 %v1530
      %v1875 = vpop.f32.mrb[0].mxu0
      %v1876 = vadd.f32 %v1430, %v1875
      %v1877 = vpop.f32.mrb[0].mxu0
      %v1878 = vpop.f32.mrb[0].mxu0
      %v1879 = vadd.f32 %v1430, %v1878
      %v1880 = vpop.f32.mrb[0].mxu0
      %1881 = vmatprep.mubr.bf16.mxu0 0
      %1882 = vmatmul.mubr.bf16.gmra.mrb[0].mxu0 %v1533
      %v1883 = vpop.f32.mrb[0].mxu0
      %v1884 = vadd.f32 %v1430, %v1883
      %v1885 = vpop.f32.mrb[0].mxu0
      %v1886 = vpop.f32.mrb[0].mxu0
      %v1887 = vadd.f32 %v1430, %v1886
      %v1888 = vpop.f32.mrb[0].mxu0
      %1889 = vmatprep.mubr.bf16.mxu0 0
      %1890 = vmatmul.mubr.bf16.gmra.mrb[0].mxu0 %v1536
      %v1891 = vpop.f32.mrb[0].mxu0
      %v1892 = vadd.f32 %v1430, %v1891
      %v1893 = vpop.f32.mrb[0].mxu0
      %v1894 = vpop.f32.mrb[0].mxu0
      %v1895 = vadd.f32 %v1430, %v1894
      %v1896 = vpop.f32.mrb[0].mxu0
      %1897 = vmatprep.mubr.bf16.mxu0 0
      %1898 = vmatmul.mubr.bf16.gmra.mrb[0].mxu0 %v1539
      %v1899 = vpop.f32.mrb[0].mxu0
      %v1900 = vadd.f32 %v1430, %v1899
      %v1901 = vpop.f32.mrb[0].mxu0
      %v1902 = vpop.f32.mrb[0].mxu0
      %v1903 = vadd.f32 %v1430, %v1902
      %v1904 = vpop.f32.mrb[0].mxu0
      %1905 = vmatprep.mubr.bf16.mxu0 0
      %1906 = vmatmul.mubr.bf16.gmra.mrb[0].mxu0 %v1542
      %v1907 = vpop.f32.mrb[0].mxu0
      %v1908 = vadd.f32 %v1430, %v1907
      %v1909 = vpop.f32.mrb[0].mxu0
      %v1910 = vpop.f32.mrb[0].mxu0
      %v1911 = vadd.f32 %v1430, %v1910
      %v1912 = vpop.f32.mrb[0].mxu0
      %1913 = vmatprep.mubr.bf16.mxu0 0
      %1914 = vmatmul.mubr.bf16.gmra.mrb[0].mxu0 %v1545
      %v1915 = vpop.f32.mrb[0].mxu0
      %v1916 = vadd.f32 %v1430, %v1915
      %v1917 = vpop.f32.mrb[0].mxu0
      %v1918 = vpop.f32.mrb[0].mxu0
      %v1919 = vadd.f32 %v1430, %v1918
      %v1920 = vpop.f32.mrb[0].mxu0
      %1921 = vmatprep.mubr.bf16.mxu0 0
      %1922 = vmatmul.mubr.bf16.gmra.mrb[0].mxu0 %v1548
      %v1923 = vpop.f32.mrb[0].mxu0
      %v1924 = vadd.f32 %v1430, %v1923
      %v1925 = vpop.f32.mrb[0].mxu0
      %v1926 = vpop.f32.mrb[0].mxu0
      %v1927 = vadd.f32 %v1430, %v1926
      %v1928 = vpop.f32.mrb[0].mxu0
      %1929 = vmatprep.mubr.bf16.mxu0 0
      %1930 = vmatmul.mubr.bf16.gmra.mrb[0].mxu0 %v1551
      %v1931 = vpop.f32.mrb[0].mxu0
      %v1932 = vadd.f32 %v1430, %v1931
      %v1933 = vpop.f32.mrb[0].mxu0
      %v1934 = vpop.f32.mrb[0].mxu0
      %v1935 = vadd.f32 %v1430, %v1934
      %v1936 = vpop.f32.mrb[0].mxu0
      %1937 = vmatprep.mubr.bf16.mxu0 0
      %1938 = vmatmul.mubr.bf16.gmra.mrb[0].mxu0 %v1554
      %v1939 = vpop.f32.mrb[0].mxu0
      %v1940 = vadd.f32 %v1430, %v1939
      %v1941 = vpop.f32.mrb[0].mxu0
      %v1942 = vpop.f32.mrb[0].mxu0
      %v1943 = vadd.f32 %v1430, %v1942
      %v1944 = vpop.f32.mrb[0].mxu0
      %1945 = vmatprep.mubr.bf16.mxu0 0
      %1946 = vmatmul.mubr.bf16.gmra.mrb[0].mxu0 %v1557
      %v1947 = vpop.f32.mrb[0].mxu0
      %v1948 = vadd.f32 %v1430, %v1947
      %v1949 = vpop.f32.mrb[0].mxu0
      %v1950 = vpop.f32.mrb[0].mxu0
      %v1951 = vadd.f32 %v1430, %v1950
      %v1952 = vpop.f32.mrb[0].mxu0
      %1953 = vmatprep.mubr.bf16.mxu0 0
      %1954 = vmatmul.mubr.bf16.gmra.mrb[0].mxu0 %v1560
      %v1955 = vpop.f32.mrb[0].mxu0
      %v1956 = vadd.f32 %v1430, %v1955
      %v1957 = vpop.f32.mrb[0].mxu0
      %v1958 = vpop.f32.mrb[0].mxu0
      %v1959 = vadd.f32 %v1430, %v1958
      %v1960 = vpop.f32.mrb[0].mxu0
      %1961 = vmatprep.mubr.bf16.mxu0 0
      %1962 = vmatmul.mubr.bf16.gmra.mrb[0].mxu0 %v1563
      %v1963 = vpop.f32.mrb[0].mxu0
      %v1964 = vadd.f32 %v1430, %v1963
      %v1965 = vpop.f32.mrb[0].mxu0
      %v1966 = vpop.f32.mrb[0].mxu0
      %v1967 = vadd.f32 %v1430, %v1966
      %v1968 = vpop.f32.mrb[0].mxu0
      %1969 = vmatprep.mubr.bf16.mxu0 0
      %1970 = vmatmul.mubr.bf16.gmra.mrb[0].mxu0 %v1566
      %v1971 = vpop.f32.mrb[0].mxu0
      %v1972 = vadd.f32 %v1430, %v1971
      %v1973 = vpop.f32.mrb[0].mxu0
      %v1974 = vpop.f32.mrb[0].mxu0
      %v1975 = vadd.f32 %v1430, %v1974
      %v1976 = vpop.f32.mrb[0].mxu0
      %1977 = vmatprep.mubr.bf16.mxu0 0
      %1978 = vmatmul.mubr.bf16.gmra.mrb[0].mxu0 %v1569
      %v1979 = vpop.f32.mrb[0].mxu0
      %v1980 = vadd.f32 %v1430, %v1979
      %v1981 = vpop.f32.mrb[0].mxu0
      %v1982 = vpop.f32.mrb[0].mxu0
      %v1983 = vadd.f32 %v1430, %v1982
      %v1984 = vpop.f32.mrb[0].mxu0
      %1985 = vmatprep.mubr.bf16.mxu0 0
      %1986 = vmatmul.mubr.bf16.gmra.mrb[0].mxu0 %v1572
      %v1987 = vpop.f32.mrb[0].mxu0
      %v1988 = vadd.f32 %v1430, %v1987
      %v1989 = vpop.f32.mrb[0].mxu0
      %v1990 = vpop.f32.mrb[0].mxu0
      %v1991 = vadd.f32 %v1430, %v1990
      %v1992 = vpop.f32.mrb[0].mxu0
      %1993 = vmatprep.mubr.bf16.mxu0 0
      %1994 = vmatmul.mubr.bf16.gmra.mrb[0].mxu0 %v1575
      %v1995 = vpop.f32.mrb[0].mxu0
      %v1996 = vadd.f32 %v1430, %v1995
      %v1997 = vpop.f32.mrb[0].mxu0
      %v1998 = vpop.f32.mrb[0].mxu0
      %v1999 = vadd.f32 %v1430, %v1998
      %v2000 = vpop.f32.mrb[0].mxu0
      %2001 = vmatprep.mubr.bf16.mxu0 0
      %2002 = vmatmul.mubr.bf16.gmra.mrb[0].mxu0 %v1578
      %v2003 = vpop.f32.mrb[0].mxu0
      %v2004 = vadd.f32 %v1430, %v2003
      %v2005 = vpop.f32.mrb[0].mxu0
      %v2006 = vpop.f32.mrb[0].mxu0
      %v2007 = vadd.f32 %v1430, %v2006
      %v2008 = vpop.f32.mrb[0].mxu0
      %2009 = vmatprep.mubr.bf16.mxu0 0
      %2010 = vmatmul.mubr.bf16.gmra.mrb[0].mxu0 %v1581
      %v2011 = vpop.f32.mrb[0].mxu0
      %v2012 = vadd.f32 %v1430, %v2011
      %v2013 = vpop.f32.mrb[0].mxu0
      %v2014 = vpop.f32.mrb[0].mxu0
      %v2015 = vadd.f32 %v1430, %v2014
      %v2016 = vpop.f32.mrb[0].mxu0
      %2017 = vmatprep.mubr.bf16.mxu0 0
      %2018 = vmatmul.mubr.bf16.gmra.mrb[0].mxu0 %v1584
      %v2019 = vpop.f32.mrb[0].mxu0
      %v2020 = vadd.f32 %v1430, %v2019
      %v2021 = vpop.f32.mrb[0].mxu0
      %v2022 = vpop.f32.mrb[0].mxu0
      %v2023 = vadd.f32 %v1430, %v2022
      %v2024 = vpop.f32.mrb[0].mxu0
      %2025 = vmatprep.mubr.bf16.mxu0 0
      %2026 = vmatmul.mubr.bf16.gmra.mrb[0].mxu0 %v1587
      %v2027 = vpop.f32.mrb[0].mxu0
      %v2028 = vadd.f32 %v1430, %v2027
      %v2029 = vpop.f32.mrb[0].mxu0
      %v2030 = vpop.f32.mrb[0].mxu0
      %v2031 = vadd.f32 %v1430, %v2030
      %v2032 = vpop.f32.mrb[0].mxu0
      %2033 = vmatprep.mubr.bf16.mxu0 0
      %2034 = vmatmul.mubr.bf16.gmra.mrb[0].mxu0 %v1590
      %v2035 = vpop.f32.mrb[0].mxu0
      %v2036 = vadd.f32 %v1430, %v2035
      %v2037 = vpop.f32.mrb[0].mxu0
      %v2038 = vpop.f32.mrb[0].mxu0
      %v2039 = vadd.f32 %v1430, %v2038
      %v2040 = vpop.f32.mrb[0].mxu0
      %2041 = vmatprep.mubr.bf16.mxu0 0
      %2042 = vmatmul.mubr.bf16.gmra.mrb[0].mxu0 %v1593
      %v2043 = vpop.f32.mrb[0].mxu0
      %v2044 = vadd.f32 %v1430, %v2043
      %v2045 = vpop.f32.mrb[0].mxu0
      %v2046 = vpop.f32.mrb[0].mxu0
      %v2047 = vadd.f32 %v1430, %v2046
      %v2048 = vpop.f32.mrb[0].mxu0
      %2049 = vmatprep.mubr.bf16.mxu0 0
      %2050 = vmatmul.mubr.bf16.gmra.mrb[0].mxu0 %v1596
      %v2051 = vpop.f32.mrb[0].mxu0
      %v2052 = vadd.f32 %v1430, %v2051
      %v2053 = vpop.f32.mrb[0].mxu0
      %v2054 = vpop.f32.mrb[0].mxu0
      %v2055 = vadd.f32 %v1430, %v2054
      %v2056 = vpop.f32.mrb[0].mxu0
      %2057 = vmatprep.mubr.bf16.mxu0 0
      %2058 = vmatmul.mubr.bf16.gmra.mrb[0].mxu0 %v1599
      %v2059 = vpop.f32.mrb[0].mxu0
      %v2060 = vadd.f32 %v1430, %v2059
      %v2061 = vpop.f32.mrb[0].mxu0
      %v2062 = vpop.f32.mrb[0].mxu0
      %v2063 = vadd.f32 %v1430, %v2062
      %v2064 = vpop.f32.mrb[0].mxu0
      %2065 = vmatprep.mubr.bf16.mxu0 0
      %2066 = vmatmul.mubr.bf16.gmra.mrb[0].mxu0 %v1602
      %v2067 = vpop.f32.mrb[0].mxu0
      %v2068 = vadd.f32 %v1430, %v2067
      %v2069 = vpop.f32.mrb[0].mxu0
      %v2070 = vpop.f32.mrb[0].mxu0
      %v2071 = vadd.f32 %v1430, %v2070
      %v2072 = vpop.f32.mrb[0].mxu0
      %2073 = vmatprep.mubr.bf16.mxu0 0
      %2074 = vmatmul.mubr.bf16.gmra.mrb[0].mxu0 %v1605
      %v2075 = vpop.f32.mrb[0].mxu0
      %v2076 = vadd.f32 %v1430, %v2075
      %v2077 = vpop.f32.mrb[0].mxu0
      %v2078 = vpop.f32.mrb[0].mxu0
      %v2079 = vadd.f32 %v1430, %v2078
      %v2080 = vpop.f32.mrb[0].mxu0
      %2081 = vmatprep.mubr.bf16.mxu0 0
      %2082 = vmatmul.mubr.bf16.gmra.mrb[0].mxu0 %v1608
      %v2083 = vpop.f32.mrb[0].mxu0
      %v2084 = vadd.f32 %v1430, %v2083
      %v2085 = vpop.f32.mrb[0].mxu0
      %v2086 = vpop.f32.mrb[0].mxu0
      %v2087 = vadd.f32 %v1430, %v2086
      %v2088 = vpop.f32.mrb[0].mxu0
      %2089 = vmatprep.mubr.bf16.mxu0 0
      %2090 = vmatmul.mubr.bf16.gmra.mrb[0].mxu0 %v1611
      %v2091 = vpop.f32.mrb[0].mxu0
      %v2092 = vadd.f32 %v1430, %v2091
      %v2093 = vpop.f32.mrb[0].mxu0
      %v2094 = vpop.f32.mrb[0].mxu0
      %v2095 = vadd.f32 %v1430, %v2094
      %v2096 = vpop.f32.mrb[0].mxu0
      %2097 = vmatprep.mubr.bf16.mxu0 0
      %2098 = vmatmul.mubr.bf16.gmra.mrb[0].mxu0 %v1614
      %v2099 = vpop.f32.mrb[0].mxu0
      %v2100 = vadd.f32 %v1430, %v2099
      %v2101 = vpop.f32.mrb[0].mxu0
      %v2102 = vpop.f32.mrb[0].mxu0
      %v2103 = vadd.f32 %v1430, %v2102
      %v2104 = vpop.f32.mrb[0].mxu0
      %2105 = vmatprep.mubr.bf16.mxu0 0
      %2106 = vmatmul.mubr.bf16.gmra.mrb[0].mxu0 %v1617
      %v2107 = vpop.f32.mrb[0].mxu0
      %v2108 = vadd.f32 %v1430, %v2107
      %v2109 = vpop.f32.mrb[0].mxu0
      %v2110 = vpop.f32.mrb[0].mxu0
      %v2111 = vadd.f32 %v1430, %v2110
      %v2112 = vpop.f32.mrb[0].mxu0
      %2113 = vmatprep.mubr.bf16.mxu0 0
      %2114 = vmatmul.mubr.bf16.gmra.mrb[0].mxu0 %v1620
      %v2115 = vpop.f32.mrb[0].mxu0
      %v2116 = vadd.f32 %v1430, %v2115
      %v2117 = vpop.f32.mrb[0].mxu0
      %v2118 = vpop.f32.mrb[0].mxu0
      %v2119 = vadd.f32 %v1430, %v2118
      %v2120 = vpop.f32.mrb[0].mxu0
      %2121 = vmatprep.mubr.bf16.mxu0 0
      %2122 = vmatmul.mubr.bf16.gmra.mrb[0].mxu0 %v1623
      %v2123 = vpop.f32.mrb[0].mxu0
      %v2124 = vadd.f32 %v1430, %v2123
      %v2125 = vpop.f32.mrb[0].mxu0
      %v2126 = vpop.f32.mrb[0].mxu0
      %v2127 = vadd.f32 %v1430, %v2126
      %v2128 = vpop.f32.mrb[0].mxu0
      %2129 = vmatprep.mubr.bf16.mxu0 0
      %2130 = vmatmul.mubr.bf16.gmra.mrb[0].mxu0 %v1626
      %v2131 = vpop.f32.mrb[0].mxu0
      %v2132 = vadd.f32 %v1430, %v2131
      %v2133 = vpop.f32.mrb[0].mxu0
      %v2134 = vpop.f32.mrb[0].mxu0
      %v2135 = vadd.f32 %v1430, %v2134
      %v2136 = vpop.f32.mrb[0].mxu0
      %2137 = vmatprep.mubr.bf16.mxu0 0
      %2138 = vmatmul.mubr.bf16.gmra.mrb[0].mxu0 %v1629
      %v2139 = vpop.f32.mrb[0].mxu0
      %v2140 = vadd.f32 %v1430, %v2139
      %v2141 = vpop.f32.mrb[0].mxu0
      %v2142 = vpop.f32.mrb[0].mxu0
      %v2143 = vadd.f32 %v1430, %v2142
      %v2144 = vpop.f32.mrb[0].mxu0
      %2145 = vmatprep.mubr.bf16.mxu0 0
      %2146 = vmatmul.mubr.bf16.gmra.mrb[0].mxu0 %v1632
      %v2147 = vpop.f32.mrb[0].mxu0
      %v2148 = vadd.f32 %v1430, %v2147
      %v2149 = vpop.f32.mrb[0].mxu0
      %v2150 = vpop.f32.mrb[0].mxu0
      %v2151 = vadd.f32 %v1430, %v2150
      %v2152 = vpop.f32.mrb[0].mxu0
      %2153 = vmatprep.mubr.bf16.mxu0 0
      %2154 = vmatmul.mubr.bf16.gmra.mrb[0].mxu0 %v1635
      %v2155 = vpop.f32.mrb[0].mxu0
      %v2156 = vadd.f32 %v1430, %v2155
      %v2157 = vpop.f32.mrb[0].mxu0
      %v2158 = vpop.f32.mrb[0].mxu0
      %v2159 = vadd.f32 %v1430, %v2158
      %v2160 = vpop.f32.mrb[0].mxu0
      %2161 = vmatprep.mubr.bf16.mxu0 0
      %2162 = vmatmul.mubr.bf16.gmra.mrb[0].mxu0 %v1638
      %v2163 = vpop.f32.mrb[0].mxu0
      %v2164 = vadd.f32 %v1430, %v2163
      %v2165 = vpop.f32.mrb[0].mxu0
      %v2166 = vpop.f32.mrb[0].mxu0
      %v2167 = vadd.f32 %v1430, %v2166
      %v2168 = vpop.f32.mrb[0].mxu0
      %2169 = vmatprep.mubr.bf16.mxu0 0
      %2170 = vmatmul.mubr.bf16.gmra.mrb[0].mxu0 %v1641
      %v2171 = vpop.f32.mrb[0].mxu0
      %v2172 = vadd.f32 %v1430, %v2171
      %v2173 = vpop.f32.mrb[0].mxu0
      %v2174 = vpop.f32.mrb[0].mxu0
      %v2175 = vadd.f32 %v1430, %v2174
      %v2176 = vpop.f32.mrb[0].mxu0
      %2177 = vmatprep.mubr.bf16.mxu0 0
      %2178 = vmatmul.mubr.bf16.gmra.mrb[0].mxu0 %v1644
      %v2179 = vpop.f32.mrb[0].mxu0
      %v2180 = vadd.f32 %v1430, %v2179
      %v2181 = vpop.f32.mrb[0].mxu0
      %v2182 = vpop.f32.mrb[0].mxu0
      %v2183 = vadd.f32 %v1430, %v2182
      %v2184 = vpop.f32.mrb[0].mxu0
      %2185 = vmatprep.mubr.bf16.mxu0 0
      %2186 = vmatmul.mubr.bf16.gmra.mrb[0].mxu0 %v1647
      %v2187 = vpop.f32.mrb[0].mxu0
      %v2188 = vadd.f32 %v1430, %v2187
      %v2189 = vpop.f32.mrb[0].mxu0
      %v2190 = vpop.f32.mrb[0].mxu0
      %v2191 = vadd.f32 %v1430, %v2190
      %v2192 = vpop.f32.mrb[0].mxu0
      %2193 = vdwg.mxu0
      %v2194 = vmax.f32 %v1684, 0.0
      %v2195 = vmax.f32 %v1687, 0.0
      %v2196 = vmax.f32 %v1692, 0.0
      %v2197 = vmax.f32 %v1695, 0.0
      %v2198 = vmax.f32 %v1700, 0.0
      %v2199 = vmax.f32 %v1703, 0.0
      %v2200 = vmax.f32 %v1708, 0.0
      %v2201 = vmax.f32 %v1711, 0.0
      %v2202 = vmax.f32 %v1716, 0.0
      %v2203 = vmax.f32 %v1719, 0.0
      %v2204 = vmax.f32 %v1724, 0.0
      %v2205 = vmax.f32 %v1727, 0.0
      %v2206 = vmax.f32 %v1732, 0.0
      %v2207 = vmax.f32 %v1735, 0.0
      %v2208 = vmax.f32 %v1740, 0.0
      %v2209 = vmax.f32 %v1743, 0.0
      %v2210 = vmax.f32 %v1748, 0.0
      %v2211 = vmax.f32 %v1751, 0.0
      %v2212 = vmax.f32 %v1756, 0.0
      %v2213 = vmax.f32 %v1759, 0.0
      %v2214 = vmax.f32 %v1764, 0.0
      %v2215 = vmax.f32 %v1767, 0.0
      %v2216 = vmax.f32 %v1772, 0.0
      %v2217 = vmax.f32 %v1775, 0.0
      %v2218 = vmax.f32 %v1780, 0.0
      %v2219 = vmax.f32 %v1783, 0.0
      %v2220 = vmax.f32 %v1788, 0.0
      %v2221 = vmax.f32 %v1791, 0.0
      %v2222 = vmax.f32 %v1796, 0.0
      %v2223 = vmax.f32 %v1799, 0.0
      %v2224 = vmax.f32 %v1804, 0.0
      %v2225 = vmax.f32 %v1807, 0.0
      %v2226 = vmax.f32 %v1812, 0.0
      %v2227 = vmax.f32 %v1815, 0.0
      %v2228 = vmax.f32 %v1820, 0.0
      %v2229 = vmax.f32 %v1823, 0.0
      %v2230 = vmax.f32 %v1828, 0.0
      %v2231 = vmax.f32 %v1831, 0.0
      %v2232 = vmax.f32 %v1836, 0.0
      %v2233 = vmax.f32 %v1839, 0.0
      %v2234 = vmax.f32 %v1844, 0.0
      %v2235 = vmax.f32 %v1847, 0.0
      %v2236 = vmax.f32 %v1852, 0.0
      %v2237 = vmax.f32 %v1855, 0.0
      %v2238 = vmax.f32 %v1860, 0.0
      %v2239 = vmax.f32 %v1863, 0.0
      %v2240 = vmax.f32 %v1868, 0.0
      %v2241 = vmax.f32 %v1871, 0.0
      %v2242 = vmax.f32 %v1876, 0.0
      %v2243 = vmax.f32 %v1879, 0.0
      %v2244 = vmax.f32 %v1884, 0.0
      %v2245 = vmax.f32 %v1887, 0.0
      %v2246 = vmax.f32 %v1892, 0.0
      %v2247 = vmax.f32 %v1895, 0.0
      %v2248 = vmax.f32 %v1900, 0.0
      %v2249 = vmax.f32 %v1903, 0.0
      %v2250 = vmax.f32 %v1908, 0.0
      %v2251 = vmax.f32 %v1911, 0.0
      %v2252 = vmax.f32 %v1916, 0.0
      %v2253 = vmax.f32 %v1919, 0.0
      %v2254 = vmax.f32 %v1924, 0.0
      %v2255 = vmax.f32 %v1927, 0.0
      %v2256 = vmax.f32 %v1932, 0.0
      %v2257 = vmax.f32 %v1935, 0.0
      %v2258 = vmax.f32 %v1940, 0.0
      %v2259 = vmax.f32 %v1943, 0.0
      %v2260 = vmax.f32 %v1948, 0.0
      %v2261 = vmax.f32 %v1951, 0.0
      %v2262 = vmax.f32 %v1956, 0.0
      %v2263 = vmax.f32 %v1959, 0.0
      %v2264 = vmax.f32 %v1964, 0.0
      %v2265 = vmax.f32 %v1967, 0.0
      %v2266 = vmax.f32 %v1972, 0.0
      %v2267 = vmax.f32 %v1975, 0.0
      %v2268 = vmax.f32 %v1980, 0.0
      %v2269 = vmax.f32 %v1983, 0.0
      %v2270 = vmax.f32 %v1988, 0.0
      %v2271 = vmax.f32 %v1991, 0.0
      %v2272 = vmax.f32 %v1996, 0.0
      %v2273 = vmax.f32 %v1999, 0.0
      %v2274 = vmax.f32 %v2004, 0.0
      %v2275 = vmax.f32 %v2007, 0.0
      %v2276 = vmax.f32 %v2012, 0.0
      %v2277 = vmax.f32 %v2015, 0.0
      %v2278 = vmax.f32 %v2020, 0.0
      %v2279 = vmax.f32 %v2023, 0.0
      %v2280 = vmax.f32 %v2028, 0.0
      %v2281 = vmax.f32 %v2031, 0.0
      %v2282 = vmax.f32 %v2036, 0.0
      %v2283 = vmax.f32 %v2039, 0.0
      %v2284 = vmax.f32 %v2044, 0.0
      %v2285 = vmax.f32 %v2047, 0.0
      %v2286 = vmax.f32 %v2052, 0.0
      %v2287 = vmax.f32 %v2055, 0.0
      %v2288 = vmax.f32 %v2060, 0.0
      %v2289 = vmax.f32 %v2063, 0.0
      %v2290 = vmax.f32 %v2068, 0.0
      %v2291 = vmax.f32 %v2071, 0.0
      %v2292 = vmax.f32 %v2076, 0.0
      %v2293 = vmax.f32 %v2079, 0.0
      %v2294 = vmax.f32 %v2084, 0.0
      %v2295 = vmax.f32 %v2087, 0.0
      %v2296 = vmax.f32 %v2092, 0.0
      %v2297 = vmax.f32 %v2095, 0.0
      %v2298 = vmax.f32 %v2100, 0.0
      %v2299 = vmax.f32 %v2103, 0.0
      %v2300 = vmax.f32 %v2108, 0.0
      %v2301 = vmax.f32 %v2111, 0.0
      %v2302 = vmax.f32 %v2116, 0.0
      %v2303 = vmax.f32 %v2119, 0.0
      %v2304 = vmax.f32 %v2124, 0.0
      %v2305 = vmax.f32 %v2127, 0.0
      %v2306 = vmax.f32 %v2132, 0.0
      %v2307 = vmax.f32 %v2135, 0.0
      %v2308 = vmax.f32 %v2140, 0.0
      %v2309 = vmax.f32 %v2143, 0.0
      %v2310 = vmax.f32 %v2148, 0.0
      %v2311 = vmax.f32 %v2151, 0.0
      %v2312 = vmax.f32 %v2156, 0.0
      %v2313 = vmax.f32 %v2159, 0.0
      %v2314 = vmax.f32 %v2164, 0.0
      %v2315 = vmax.f32 %v2167, 0.0
      %v2316 = vmax.f32 %v2172, 0.0
      %v2317 = vmax.f32 %v2175, 0.0
      %v2318 = vmax.f32 %v2180, 0.0
      %v2319 = vmax.f32 %v2183, 0.0
      %v2320 = vmax.f32 %v2188, 0.0
      %v2321 = vmax.f32 %v2191, 0.0
      %v2322 = vpack.c.bf16 %v2195, %v2194
      %v2323 = vpack.c.bf16 %v2197, %v2196
      %v2324 = vpack.c.bf16 %v2199, %v2198
      %v2325 = vpack.c.bf16 %v2201, %v2200
      %v2326 = vpack.c.bf16 %v2203, %v2202
      %v2327 = vpack.c.bf16 %v2205, %v2204
      %v2328 = vpack.c.bf16 %v2207, %v2206
      %v2329 = vpack.c.bf16 %v2209, %v2208
      %v2330 = vpack.c.bf16 %v2211, %v2210
      %v2331 = vpack.c.bf16 %v2213, %v2212
      %v2332 = vpack.c.bf16 %v2215, %v2214
      %v2333 = vpack.c.bf16 %v2217, %v2216
      %v2334 = vpack.c.bf16 %v2219, %v2218
      %v2335 = vpack.c.bf16 %v2221, %v2220
      %v2336 = vpack.c.bf16 %v2223, %v2222
      %v2337 = vpack.c.bf16 %v2225, %v2224
      %v2338 = vpack.c.bf16 %v2227, %v2226
      %v2339 = vpack.c.bf16 %v2229, %v2228
      %v2340 = vpack.c.bf16 %v2231, %v2230
      %v2341 = vpack.c.bf16 %v2233, %v2232
      %v2342 = vpack.c.bf16 %v2235, %v2234
      %v2343 = vpack.c.bf16 %v2237, %v2236
      %v2344 = vpack.c.bf16 %v2239, %v2238
      %v2345 = vpack.c.bf16 %v2241, %v2240
      %v2346 = vpack.c.bf16 %v2243, %v2242
      %v2347 = vpack.c.bf16 %v2245, %v2244
      %v2348 = vpack.c.bf16 %v2247, %v2246
      %v2349 = vpack.c.bf16 %v2249, %v2248
      %v2350 = vpack.c.bf16 %v2251, %v2250
      %v2351 = vpack.c.bf16 %v2253, %v2252
      %v2352 = vpack.c.bf16 %v2255, %v2254
      %v2353 = vpack.c.bf16 %v2257, %v2256
      %v2354 = vpack.c.bf16 %v2259, %v2258
      %v2355 = vpack.c.bf16 %v2261, %v2260
      %v2356 = vpack.c.bf16 %v2263, %v2262
      %v2357 = vpack.c.bf16 %v2265, %v2264
      %v2358 = vpack.c.bf16 %v2267, %v2266
      %v2359 = vpack.c.bf16 %v2269, %v2268
      %v2360 = vpack.c.bf16 %v2271, %v2270
      %v2361 = vpack.c.bf16 %v2273, %v2272
      %v2362 = vpack.c.bf16 %v2275, %v2274
      %v2363 = vpack.c.bf16 %v2277, %v2276
      %v2364 = vpack.c.bf16 %v2279, %v2278
      %v2365 = vpack.c.bf16 %v2281, %v2280
      %v2366 = vpack.c.bf16 %v2283, %v2282
      %v2367 = vpack.c.bf16 %v2285, %v2284
      %v2368 = vpack.c.bf16 %v2287, %v2286
      %v2369 = vpack.c.bf16 %v2289, %v2288
      %v2370 = vpack.c.bf16 %v2291, %v2290
      %v2371 = vpack.c.bf16 %v2293, %v2292
      %v2372 = vpack.c.bf16 %v2295, %v2294
      %v2373 = vpack.c.bf16 %v2297, %v2296
      %v2374 = vpack.c.bf16 %v2299, %v2298
      %v2375 = vpack.c.bf16 %v2301, %v2300
      %v2376 = vpack.c.bf16 %v2303, %v2302
      %v2377 = vpack.c.bf16 %v2305, %v2304
      %v2378 = vpack.c.bf16 %v2307, %v2306
      %v2379 = vpack.c.bf16 %v2309, %v2308
      %v2380 = vpack.c.bf16 %v2311, %v2310
      %v2381 = vpack.c.bf16 %v2313, %v2312
      %v2382 = vpack.c.bf16 %v2315, %v2314
      %v2383 = vpack.c.bf16 %v2317, %v2316
      %v2384 = vpack.c.bf16 %v2319, %v2318
      %v2385 = vpack.c.bf16 %v2321, %v2320
      %v2386 = vld [vmem:[%s5] sm:$0xf]
      %v2387 = vld [vmem:[%s5 + $0x4] sm:$0xf]
      %v2388 = vld [vmem:[%s5 + $0x8] sm:$0xf]
      %v2389 = vld [vmem:[%s5 + $0xc] sm:$0xf]
      %v2390 = vld [vmem:[%s5 + $0x10] sm:$0xf]
      %v2391 = vld [vmem:[%s5 + $0x14] sm:$0xf]
      %v2392 = vld [vmem:[%s5 + $0x18] sm:$0xf]
      %v2393 = vld [vmem:[%s5 + $0x1c] sm:$0xf]
      %v2394 = vld [vmem:[%s6] sm:$0x1]
      %v2396 = vlaneseq
      %v2397 = vshrl.u32 %v2396, 7
      %v2398 = vsub.s32 0, %v2397
      %v2399 = vrot.slane %v2394, %v2398
      %v2409 = vunpack.c.l.b16 %v2386
      %v2410 = vunpack.c.l.b16 %v2387
      %v2411 = vunpack.c.l.b16 %v2388
      %v2412 = vunpack.c.l.b16 %v2389
      %v2413 = vunpack.c.l.b16 %v2390
      %v2414 = vunpack.c.l.b16 %v2391
      %v2415 = vunpack.c.l.b16 %v2392
      %v2416 = vunpack.c.l.b16 %v2393
      %v2417 = vpack.c.b16 %v2410, %v2409
      %v2418 = vpack.c.b16 %v2412, %v2411
      %v2419 = vpack.c.b16 %v2414, %v2413
      %v2420 = vpack.c.b16 %v2416, %v2415
      %v2426 = vsel %vm1456, %v2322, 0
      %v2429 = vsel %vm1456, %v2323, 0
      %v2432 = vsel %vm1456, %v2324, 0
      %v2435 = vsel %vm1456, %v2325, 0
      %v2438 = vsel %vm1456, %v2326, 0
      %v2441 = vsel %vm1456, %v2327, 0
      %v2444 = vsel %vm1456, %v2328, 0
      %v2447 = vsel %vm1456, %v2329, 0
      %v2450 = vsel %vm1456, %v2330, 0
      %v2453 = vsel %vm1456, %v2331, 0
      %v2456 = vsel %vm1456, %v2332, 0
      %v2459 = vsel %vm1456, %v2333, 0
      %v2462 = vsel %vm1456, %v2334, 0
      %v2465 = vsel %vm1456, %v2335, 0
      %v2468 = vsel %vm1456, %v2336, 0
      %v2471 = vsel %vm1456, %v2337, 0
      %v2474 = vsel %vm1456, %v2338, 0
      %v2477 = vsel %vm1456, %v2339, 0
      %v2480 = vsel %vm1456, %v2340, 0
      %v2483 = vsel %vm1456, %v2341, 0
      %v2486 = vsel %vm1456, %v2342, 0
      %v2489 = vsel %vm1456, %v2343, 0
      %v2492 = vsel %vm1456, %v2344, 0
      %v2495 = vsel %vm1456, %v2345, 0
      %v2498 = vsel %vm1456, %v2346, 0
      %v2501 = vsel %vm1456, %v2347, 0
      %v2504 = vsel %vm1456, %v2348, 0
      %v2507 = vsel %vm1456, %v2349, 0
      %v2510 = vsel %vm1456, %v2350, 0
      %v2513 = vsel %vm1456, %v2351, 0
      %v2516 = vsel %vm1456, %v2352, 0
      %v2519 = vsel %vm1456, %v2353, 0
      %v2522 = vsel %vm1456, %v2354, 0
      %v2525 = vsel %vm1456, %v2355, 0
      %v2528 = vsel %vm1456, %v2356, 0
      %v2531 = vsel %vm1456, %v2357, 0
      %v2534 = vsel %vm1456, %v2358, 0
      %v2537 = vsel %vm1456, %v2359, 0
      %v2540 = vsel %vm1456, %v2360, 0
      %v2543 = vsel %vm1456, %v2361, 0
      %v2546 = vsel %vm1456, %v2362, 0
      %v2549 = vsel %vm1456, %v2363, 0
      %v2552 = vsel %vm1456, %v2364, 0
      %v2555 = vsel %vm1456, %v2365, 0
      %v2558 = vsel %vm1456, %v2366, 0
      %v2561 = vsel %vm1456, %v2367, 0
      %v2564 = vsel %vm1456, %v2368, 0
      %v2567 = vsel %vm1456, %v2369, 0
      %v2570 = vsel %vm1456, %v2370, 0
      %v2573 = vsel %vm1456, %v2371, 0
      %v2576 = vsel %vm1456, %v2372, 0
      %v2579 = vsel %vm1456, %v2373, 0
      %v2582 = vsel %vm1456, %v2374, 0
      %v2585 = vsel %vm1456, %v2375, 0
      %v2588 = vsel %vm1456, %v2376, 0
      %v2591 = vsel %vm1456, %v2377, 0
      %v2594 = vsel %vm1456, %v2378, 0
      %v2597 = vsel %vm1456, %v2379, 0
      %v2600 = vsel %vm1456, %v2380, 0
      %v2603 = vsel %vm1456, %v2381, 0
      %v2606 = vsel %vm1456, %v2382, 0
      %v2609 = vsel %vm1456, %v2383, 0
      %v2612 = vsel %vm1456, %v2384, 0
      %v2615 = vsel %vm1456, %v2385, 0
      %2617 = vmatprep.subr.bf16.mxu0 0
      %2618 = vmatpush1.bf16.msra.mxu0 %v2417
      %2619 = vmatprep.subr.bf16.mxu0 0
      %2620 = vmatpush1.bf16.msra.mxu0 %v2418
      %2621 = vmatprep.subr.bf16.mxu0 0
      %2622 = vmatpush1.bf16.msra.mxu0 %v2419
      %2623 = vmatprep.subr.bf16.mxu0 0
      %2624 = vmatpush1.bf16.msra.mxu0 %v2420
      %2625 = vmatprep.subr.bf16.mxu0 0
      %2626 = vmatpush1.bf16.msra.mxu0 0
      %2627 = vmatprep.subr.bf16.mxu0 0
      %2628 = vmatpush1.bf16.msra.mxu0 0
      %2629 = vmatprep.subr.bf16.mxu0 0
      %2630 = vmatpush1.bf16.msra.mxu0 0
      %2631 = vmatprep.subr.bf16.mxu0 0
      %2632 = vmatpush1.bf16.msra.mxu0 0
      %2633 = vmatprep.subr.bf16.mxu0 0
      %2634 = vmatpush1.bf16.msra.mxu0 0
      %2635 = vmatprep.subr.bf16.mxu0 0
      %2636 = vmatpush1.bf16.msra.mxu0 0
      %2637 = vmatprep.subr.bf16.mxu0 0
      %2638 = vmatpush1.bf16.msra.mxu0 0
      %2639 = vmatprep.subr.bf16.mxu0 0
      %2640 = vmatpush1.bf16.msra.mxu0 0
      %2641 = vmatprep.subr.bf16.mxu0 0
      %2642 = vmatpush1.bf16.msra.mxu0 0
      %2643 = vmatprep.subr.bf16.mxu0 0
      %2644 = vmatpush1.bf16.msra.mxu0 0
      %2645 = vmatprep.subr.bf16.mxu0 0
      %2646 = vmatpush1.bf16.msra.mxu0 0
      %2647 = vmatprep.subr.bf16.mxu0 0
      %2648 = vmatpush1.bf16.msra.mxu0 0
      %2649 = vmatprep.mubr.bf16.mxu0 0
      %2650 = vmatmul.mubr.bf16.gmra.mrb[0].mxu0 %v2426
      %v2651 = vpop.f32.mrb[0].mxu0
      %v2652 = vadd.f32 %v2399, %v2651
      %v2653 = vpop.f32.mrb[0].mxu0
      %v2654 = vpop.f32.mrb[0].mxu0
      %v2655 = vadd.f32 %v2399, %v2654
      %v2656 = vpop.f32.mrb[0].mxu0
      %2657 = vmatprep.mubr.bf16.mxu0 0
      %2658 = vmatmul.mubr.bf16.gmra.mrb[0].mxu0 %v2429
      %v2659 = vpop.f32.mrb[0].mxu0
      %v2660 = vadd.f32 %v2399, %v2659
      %v2661 = vpop.f32.mrb[0].mxu0
      %v2662 = vpop.f32.mrb[0].mxu0
      %v2663 = vadd.f32 %v2399, %v2662
      %v2664 = vpop.f32.mrb[0].mxu0
      %2665 = vmatprep.mubr.bf16.mxu0 0
      %2666 = vmatmul.mubr.bf16.gmra.mrb[0].mxu0 %v2432
      %v2667 = vpop.f32.mrb[0].mxu0
      %v2668 = vadd.f32 %v2399, %v2667
      %v2669 = vpop.f32.mrb[0].mxu0
      %v2670 = vpop.f32.mrb[0].mxu0
      %v2671 = vadd.f32 %v2399, %v2670
      %v2672 = vpop.f32.mrb[0].mxu0
      %2673 = vmatprep.mubr.bf16.mxu0 0
      %2674 = vmatmul.mubr.bf16.gmra.mrb[0].mxu0 %v2435
      %v2675 = vpop.f32.mrb[0].mxu0
      %v2676 = vadd.f32 %v2399, %v2675
      %v2677 = vpop.f32.mrb[0].mxu0
      %v2678 = vpop.f32.mrb[0].mxu0
      %v2679 = vadd.f32 %v2399, %v2678
      %v2680 = vpop.f32.mrb[0].mxu0
      %2681 = vmatprep.mubr.bf16.mxu0 0
      %2682 = vmatmul.mubr.bf16.gmra.mrb[0].mxu0 %v2438
      %v2683 = vpop.f32.mrb[0].mxu0
      %v2684 = vadd.f32 %v2399, %v2683
      %v2685 = vpop.f32.mrb[0].mxu0
      %v2686 = vpop.f32.mrb[0].mxu0
      %v2687 = vadd.f32 %v2399, %v2686
      %v2688 = vpop.f32.mrb[0].mxu0
      %2689 = vmatprep.mubr.bf16.mxu0 0
      %2690 = vmatmul.mubr.bf16.gmra.mrb[0].mxu0 %v2441
      %v2691 = vpop.f32.mrb[0].mxu0
      %v2692 = vadd.f32 %v2399, %v2691
      %v2693 = vpop.f32.mrb[0].mxu0
      %v2694 = vpop.f32.mrb[0].mxu0
      %v2695 = vadd.f32 %v2399, %v2694
      %v2696 = vpop.f32.mrb[0].mxu0
      %2697 = vmatprep.mubr.bf16.mxu0 0
      %2698 = vmatmul.mubr.bf16.gmra.mrb[0].mxu0 %v2444
      %v2699 = vpop.f32.mrb[0].mxu0
      %v2700 = vadd.f32 %v2399, %v2699
      %v2701 = vpop.f32.mrb[0].mxu0
      %v2702 = vpop.f32.mrb[0].mxu0
      %v2703 = vadd.f32 %v2399, %v2702
      %v2704 = vpop.f32.mrb[0].mxu0
      %2705 = vmatprep.mubr.bf16.mxu0 0
      %2706 = vmatmul.mubr.bf16.gmra.mrb[0].mxu0 %v2447
      %v2707 = vpop.f32.mrb[0].mxu0
      %v2708 = vadd.f32 %v2399, %v2707
      %v2709 = vpop.f32.mrb[0].mxu0
      %v2710 = vpop.f32.mrb[0].mxu0
      %v2711 = vadd.f32 %v2399, %v2710
      %v2712 = vpop.f32.mrb[0].mxu0
      %2713 = vmatprep.mubr.bf16.mxu0 0
      %2714 = vmatmul.mubr.bf16.gmra.mrb[0].mxu0 %v2450
      %v2715 = vpop.f32.mrb[0].mxu0
      %v2716 = vadd.f32 %v2399, %v2715
      %v2717 = vpop.f32.mrb[0].mxu0
      %v2718 = vpop.f32.mrb[0].mxu0
      %v2719 = vadd.f32 %v2399, %v2718
      %v2720 = vpop.f32.mrb[0].mxu0
      %2721 = vmatprep.mubr.bf16.mxu0 0
      %2722 = vmatmul.mubr.bf16.gmra.mrb[0].mxu0 %v2453
      %v2723 = vpop.f32.mrb[0].mxu0
      %v2724 = vadd.f32 %v2399, %v2723
      %v2725 = vpop.f32.mrb[0].mxu0
      %v2726 = vpop.f32.mrb[0].mxu0
      %v2727 = vadd.f32 %v2399, %v2726
      %v2728 = vpop.f32.mrb[0].mxu0
      %2729 = vmatprep.mubr.bf16.mxu0 0
      %2730 = vmatmul.mubr.bf16.gmra.mrb[0].mxu0 %v2456
      %v2731 = vpop.f32.mrb[0].mxu0
      %v2732 = vadd.f32 %v2399, %v2731
      %v2733 = vpop.f32.mrb[0].mxu0
      %v2734 = vpop.f32.mrb[0].mxu0
      %v2735 = vadd.f32 %v2399, %v2734
      %v2736 = vpop.f32.mrb[0].mxu0
      %2737 = vmatprep.mubr.bf16.mxu0 0
      %2738 = vmatmul.mubr.bf16.gmra.mrb[0].mxu0 %v2459
      %v2739 = vpop.f32.mrb[0].mxu0
      %v2740 = vadd.f32 %v2399, %v2739
      %v2741 = vpop.f32.mrb[0].mxu0
      %v2742 = vpop.f32.mrb[0].mxu0
      %v2743 = vadd.f32 %v2399, %v2742
      %v2744 = vpop.f32.mrb[0].mxu0
      %2745 = vmatprep.mubr.bf16.mxu0 0
      %2746 = vmatmul.mubr.bf16.gmra.mrb[0].mxu0 %v2462
      %v2747 = vpop.f32.mrb[0].mxu0
      %v2748 = vadd.f32 %v2399, %v2747
      %v2749 = vpop.f32.mrb[0].mxu0
      %v2750 = vpop.f32.mrb[0].mxu0
      %v2751 = vadd.f32 %v2399, %v2750
      %v2752 = vpop.f32.mrb[0].mxu0
      %2753 = vmatprep.mubr.bf16.mxu0 0
      %2754 = vmatmul.mubr.bf16.gmra.mrb[0].mxu0 %v2465
      %v2755 = vpop.f32.mrb[0].mxu0
      %v2756 = vadd.f32 %v2399, %v2755
      %v2757 = vpop.f32.mrb[0].mxu0
      %v2758 = vpop.f32.mrb[0].mxu0
      %v2759 = vadd.f32 %v2399, %v2758
      %v2760 = vpop.f32.mrb[0].mxu0
      %2761 = vmatprep.mubr.bf16.mxu0 0
      %2762 = vmatmul.mubr.bf16.gmra.mrb[0].mxu0 %v2468
      %v2763 = vpop.f32.mrb[0].mxu0
      %v2764 = vadd.f32 %v2399, %v2763
      %v2765 = vpop.f32.mrb[0].mxu0
      %v2766 = vpop.f32.mrb[0].mxu0
      %v2767 = vadd.f32 %v2399, %v2766
      %v2768 = vpop.f32.mrb[0].mxu0
      %2769 = vmatprep.mubr.bf16.mxu0 0
      %2770 = vmatmul.mubr.bf16.gmra.mrb[0].mxu0 %v2471
      %v2771 = vpop.f32.mrb[0].mxu0
      %v2772 = vadd.f32 %v2399, %v2771
      %v2773 = vpop.f32.mrb[0].mxu0
      %v2774 = vpop.f32.mrb[0].mxu0
      %v2775 = vadd.f32 %v2399, %v2774
      %v2776 = vpop.f32.mrb[0].mxu0
      %2777 = vmatprep.mubr.bf16.mxu0 0
      %2778 = vmatmul.mubr.bf16.gmra.mrb[0].mxu0 %v2474
      %v2779 = vpop.f32.mrb[0].mxu0
      %v2780 = vadd.f32 %v2399, %v2779
      %v2781 = vpop.f32.mrb[0].mxu0
      %v2782 = vpop.f32.mrb[0].mxu0
      %v2783 = vadd.f32 %v2399, %v2782
      %v2784 = vpop.f32.mrb[0].mxu0
      %2785 = vmatprep.mubr.bf16.mxu0 0
      %2786 = vmatmul.mubr.bf16.gmra.mrb[0].mxu0 %v2477
      %v2787 = vpop.f32.mrb[0].mxu0
      %v2788 = vadd.f32 %v2399, %v2787
      %v2789 = vpop.f32.mrb[0].mxu0
      %v2790 = vpop.f32.mrb[0].mxu0
      %v2791 = vadd.f32 %v2399, %v2790
      %v2792 = vpop.f32.mrb[0].mxu0
      %2793 = vmatprep.mubr.bf16.mxu0 0
      %2794 = vmatmul.mubr.bf16.gmra.mrb[0].mxu0 %v2480
      %v2795 = vpop.f32.mrb[0].mxu0
      %v2796 = vadd.f32 %v2399, %v2795
      %v2797 = vpop.f32.mrb[0].mxu0
      %v2798 = vpop.f32.mrb[0].mxu0
      %v2799 = vadd.f32 %v2399, %v2798
      %v2800 = vpop.f32.mrb[0].mxu0
      %2801 = vmatprep.mubr.bf16.mxu0 0
      %2802 = vmatmul.mubr.bf16.gmra.mrb[0].mxu0 %v2483
      %v2803 = vpop.f32.mrb[0].mxu0
      %v2804 = vadd.f32 %v2399, %v2803
      %v2805 = vpop.f32.mrb[0].mxu0
      %v2806 = vpop.f32.mrb[0].mxu0
      %v2807 = vadd.f32 %v2399, %v2806
      %v2808 = vpop.f32.mrb[0].mxu0
      %2809 = vmatprep.mubr.bf16.mxu0 0
      %2810 = vmatmul.mubr.bf16.gmra.mrb[0].mxu0 %v2486
      %v2811 = vpop.f32.mrb[0].mxu0
      %v2812 = vadd.f32 %v2399, %v2811
      %v2813 = vpop.f32.mrb[0].mxu0
      %v2814 = vpop.f32.mrb[0].mxu0
      %v2815 = vadd.f32 %v2399, %v2814
      %v2816 = vpop.f32.mrb[0].mxu0
      %2817 = vmatprep.mubr.bf16.mxu0 0
      %2818 = vmatmul.mubr.bf16.gmra.mrb[0].mxu0 %v2489
      %v2819 = vpop.f32.mrb[0].mxu0
      %v2820 = vadd.f32 %v2399, %v2819
      %v2821 = vpop.f32.mrb[0].mxu0
      %v2822 = vpop.f32.mrb[0].mxu0
      %v2823 = vadd.f32 %v2399, %v2822
      %v2824 = vpop.f32.mrb[0].mxu0
      %2825 = vmatprep.mubr.bf16.mxu0 0
      %2826 = vmatmul.mubr.bf16.gmra.mrb[0].mxu0 %v2492
      %v2827 = vpop.f32.mrb[0].mxu0
      %v2828 = vadd.f32 %v2399, %v2827
      %v2829 = vpop.f32.mrb[0].mxu0
      %v2830 = vpop.f32.mrb[0].mxu0
      %v2831 = vadd.f32 %v2399, %v2830
      %v2832 = vpop.f32.mrb[0].mxu0
      %2833 = vmatprep.mubr.bf16.mxu0 0
      %2834 = vmatmul.mubr.bf16.gmra.mrb[0].mxu0 %v2495
      %v2835 = vpop.f32.mrb[0].mxu0
      %v2836 = vadd.f32 %v2399, %v2835
      %v2837 = vpop.f32.mrb[0].mxu0
      %v2838 = vpop.f32.mrb[0].mxu0
      %v2839 = vadd.f32 %v2399, %v2838
      %v2840 = vpop.f32.mrb[0].mxu0
      %2841 = vmatprep.mubr.bf16.mxu0 0
      %2842 = vmatmul.mubr.bf16.gmra.mrb[0].mxu0 %v2498
      %v2843 = vpop.f32.mrb[0].mxu0
      %v2844 = vadd.f32 %v2399, %v2843
      %v2845 = vpop.f32.mrb[0].mxu0
      %v2846 = vpop.f32.mrb[0].mxu0
      %v2847 = vadd.f32 %v2399, %v2846
      %v2848 = vpop.f32.mrb[0].mxu0
      %2849 = vmatprep.mubr.bf16.mxu0 0
      %2850 = vmatmul.mubr.bf16.gmra.mrb[0].mxu0 %v2501
      %v2851 = vpop.f32.mrb[0].mxu0
      %v2852 = vadd.f32 %v2399, %v2851
      %v2853 = vpop.f32.mrb[0].mxu0
      %v2854 = vpop.f32.mrb[0].mxu0
      %v2855 = vadd.f32 %v2399, %v2854
      %v2856 = vpop.f32.mrb[0].mxu0
      %2857 = vmatprep.mubr.bf16.mxu0 0
      %2858 = vmatmul.mubr.bf16.gmra.mrb[0].mxu0 %v2504
      %v2859 = vpop.f32.mrb[0].mxu0
      %v2860 = vadd.f32 %v2399, %v2859
      %v2861 = vpop.f32.mrb[0].mxu0
      %v2862 = vpop.f32.mrb[0].mxu0
      %v2863 = vadd.f32 %v2399, %v2862
      %v2864 = vpop.f32.mrb[0].mxu0
      %2865 = vmatprep.mubr.bf16.mxu0 0
      %2866 = vmatmul.mubr.bf16.gmra.mrb[0].mxu0 %v2507
      %v2867 = vpop.f32.mrb[0].mxu0
      %v2868 = vadd.f32 %v2399, %v2867
      %v2869 = vpop.f32.mrb[0].mxu0
      %v2870 = vpop.f32.mrb[0].mxu0
      %v2871 = vadd.f32 %v2399, %v2870
      %v2872 = vpop.f32.mrb[0].mxu0
      %2873 = vmatprep.mubr.bf16.mxu0 0
      %2874 = vmatmul.mubr.bf16.gmra.mrb[0].mxu0 %v2510
      %v2875 = vpop.f32.mrb[0].mxu0
      %v2876 = vadd.f32 %v2399, %v2875
      %v2877 = vpop.f32.mrb[0].mxu0
      %v2878 = vpop.f32.mrb[0].mxu0
      %v2879 = vadd.f32 %v2399, %v2878
      %v2880 = vpop.f32.mrb[0].mxu0
      %2881 = vmatprep.mubr.bf16.mxu0 0
      %2882 = vmatmul.mubr.bf16.gmra.mrb[0].mxu0 %v2513
      %v2883 = vpop.f32.mrb[0].mxu0
      %v2884 = vadd.f32 %v2399, %v2883
      %v2885 = vpop.f32.mrb[0].mxu0
      %v2886 = vpop.f32.mrb[0].mxu0
      %v2887 = vadd.f32 %v2399, %v2886
      %v2888 = vpop.f32.mrb[0].mxu0
      %2889 = vmatprep.mubr.bf16.mxu0 0
      %2890 = vmatmul.mubr.bf16.gmra.mrb[0].mxu0 %v2516
      %v2891 = vpop.f32.mrb[0].mxu0
      %v2892 = vadd.f32 %v2399, %v2891
      %v2893 = vpop.f32.mrb[0].mxu0
      %v2894 = vpop.f32.mrb[0].mxu0
      %v2895 = vadd.f32 %v2399, %v2894
      %v2896 = vpop.f32.mrb[0].mxu0
      %2897 = vmatprep.mubr.bf16.mxu0 0
      %2898 = vmatmul.mubr.bf16.gmra.mrb[0].mxu0 %v2519
      %v2899 = vpop.f32.mrb[0].mxu0
      %v2900 = vadd.f32 %v2399, %v2899
      %v2901 = vpop.f32.mrb[0].mxu0
      %v2902 = vpop.f32.mrb[0].mxu0
      %v2903 = vadd.f32 %v2399, %v2902
      %v2904 = vpop.f32.mrb[0].mxu0
      %2905 = vmatprep.mubr.bf16.mxu0 0
      %2906 = vmatmul.mubr.bf16.gmra.mrb[0].mxu0 %v2522
      %v2907 = vpop.f32.mrb[0].mxu0
      %v2908 = vadd.f32 %v2399, %v2907
      %v2909 = vpop.f32.mrb[0].mxu0
      %v2910 = vpop.f32.mrb[0].mxu0
      %v2911 = vadd.f32 %v2399, %v2910
      %v2912 = vpop.f32.mrb[0].mxu0
      %2913 = vmatprep.mubr.bf16.mxu0 0
      %2914 = vmatmul.mubr.bf16.gmra.mrb[0].mxu0 %v2525
      %v2915 = vpop.f32.mrb[0].mxu0
      %v2916 = vadd.f32 %v2399, %v2915
      %v2917 = vpop.f32.mrb[0].mxu0
      %v2918 = vpop.f32.mrb[0].mxu0
      %v2919 = vadd.f32 %v2399, %v2918
      %v2920 = vpop.f32.mrb[0].mxu0
      %2921 = vmatprep.mubr.bf16.mxu0 0
      %2922 = vmatmul.mubr.bf16.gmra.mrb[0].mxu0 %v2528
      %v2923 = vpop.f32.mrb[0].mxu0
      %v2924 = vadd.f32 %v2399, %v2923
      %v2925 = vpop.f32.mrb[0].mxu0
      %v2926 = vpop.f32.mrb[0].mxu0
      %v2927 = vadd.f32 %v2399, %v2926
      %v2928 = vpop.f32.mrb[0].mxu0
      %2929 = vmatprep.mubr.bf16.mxu0 0
      %2930 = vmatmul.mubr.bf16.gmra.mrb[0].mxu0 %v2531
      %v2931 = vpop.f32.mrb[0].mxu0
      %v2932 = vadd.f32 %v2399, %v2931
      %v2933 = vpop.f32.mrb[0].mxu0
      %v2934 = vpop.f32.mrb[0].mxu0
      %v2935 = vadd.f32 %v2399, %v2934
      %v2936 = vpop.f32.mrb[0].mxu0
      %2937 = vmatprep.mubr.bf16.mxu0 0
      %2938 = vmatmul.mubr.bf16.gmra.mrb[0].mxu0 %v2534
      %v2939 = vpop.f32.mrb[0].mxu0
      %v2940 = vadd.f32 %v2399, %v2939
      %v2941 = vpop.f32.mrb[0].mxu0
      %v2942 = vpop.f32.mrb[0].mxu0
      %v2943 = vadd.f32 %v2399, %v2942
      %v2944 = vpop.f32.mrb[0].mxu0
      %2945 = vmatprep.mubr.bf16.mxu0 0
      %2946 = vmatmul.mubr.bf16.gmra.mrb[0].mxu0 %v2537
      %v2947 = vpop.f32.mrb[0].mxu0
      %v2948 = vadd.f32 %v2399, %v2947
      %v2949 = vpop.f32.mrb[0].mxu0
      %v2950 = vpop.f32.mrb[0].mxu0
      %v2951 = vadd.f32 %v2399, %v2950
      %v2952 = vpop.f32.mrb[0].mxu0
      %2953 = vmatprep.mubr.bf16.mxu0 0
      %2954 = vmatmul.mubr.bf16.gmra.mrb[0].mxu0 %v2540
      %v2955 = vpop.f32.mrb[0].mxu0
      %v2956 = vadd.f32 %v2399, %v2955
      %v2957 = vpop.f32.mrb[0].mxu0
      %v2958 = vpop.f32.mrb[0].mxu0
      %v2959 = vadd.f32 %v2399, %v2958
      %v2960 = vpop.f32.mrb[0].mxu0
      %2961 = vmatprep.mubr.bf16.mxu0 0
      %2962 = vmatmul.mubr.bf16.gmra.mrb[0].mxu0 %v2543
      %v2963 = vpop.f32.mrb[0].mxu0
      %v2964 = vadd.f32 %v2399, %v2963
      %v2965 = vpop.f32.mrb[0].mxu0
      %v2966 = vpop.f32.mrb[0].mxu0
      %v2967 = vadd.f32 %v2399, %v2966
      %v2968 = vpop.f32.mrb[0].mxu0
      %2969 = vmatprep.mubr.bf16.mxu0 0
      %2970 = vmatmul.mubr.bf16.gmra.mrb[0].mxu0 %v2546
      %v2971 = vpop.f32.mrb[0].mxu0
      %v2972 = vadd.f32 %v2399, %v2971
      %v2973 = vpop.f32.mrb[0].mxu0
      %v2974 = vpop.f32.mrb[0].mxu0
      %v2975 = vadd.f32 %v2399, %v2974
      %v2976 = vpop.f32.mrb[0].mxu0
      %2977 = vmatprep.mubr.bf16.mxu0 0
      %2978 = vmatmul.mubr.bf16.gmra.mrb[0].mxu0 %v2549
      %v2979 = vpop.f32.mrb[0].mxu0
      %v2980 = vadd.f32 %v2399, %v2979
      %v2981 = vpop.f32.mrb[0].mxu0
      %v2982 = vpop.f32.mrb[0].mxu0
      %v2983 = vadd.f32 %v2399, %v2982
      %v2984 = vpop.f32.mrb[0].mxu0
      %2985 = vmatprep.mubr.bf16.mxu0 0
      %2986 = vmatmul.mubr.bf16.gmra.mrb[0].mxu0 %v2552
      %v2987 = vpop.f32.mrb[0].mxu0
      %v2988 = vadd.f32 %v2399, %v2987
      %v2989 = vpop.f32.mrb[0].mxu0
      %v2990 = vpop.f32.mrb[0].mxu0
      %v2991 = vadd.f32 %v2399, %v2990
      %v2992 = vpop.f32.mrb[0].mxu0
      %2993 = vmatprep.mubr.bf16.mxu0 0
      %2994 = vmatmul.mubr.bf16.gmra.mrb[0].mxu0 %v2555
      %v2995 = vpop.f32.mrb[0].mxu0
      %v2996 = vadd.f32 %v2399, %v2995
      %v2997 = vpop.f32.mrb[0].mxu0
      %v2998 = vpop.f32.mrb[0].mxu0
      %v2999 = vadd.f32 %v2399, %v2998
      %v3000 = vpop.f32.mrb[0].mxu0
      %3001 = vmatprep.mubr.bf16.mxu0 0
      %3002 = vmatmul.mubr.bf16.gmra.mrb[0].mxu0 %v2558
      %v3003 = vpop.f32.mrb[0].mxu0
      %v3004 = vadd.f32 %v2399, %v3003
      %v3005 = vpop.f32.mrb[0].mxu0
      %v3006 = vpop.f32.mrb[0].mxu0
      %v3007 = vadd.f32 %v2399, %v3006
      %v3008 = vpop.f32.mrb[0].mxu0
      %3009 = vmatprep.mubr.bf16.mxu0 0
      %3010 = vmatmul.mubr.bf16.gmra.mrb[0].mxu0 %v2561
      %v3011 = vpop.f32.mrb[0].mxu0
      %v3012 = vadd.f32 %v2399, %v3011
      %v3013 = vpop.f32.mrb[0].mxu0
      %v3014 = vpop.f32.mrb[0].mxu0
      %v3015 = vadd.f32 %v2399, %v3014
      %v3016 = vpop.f32.mrb[0].mxu0
      %3017 = vmatprep.mubr.bf16.mxu0 0
      %3018 = vmatmul.mubr.bf16.gmra.mrb[0].mxu0 %v2564
      %v3019 = vpop.f32.mrb[0].mxu0
      %v3020 = vadd.f32 %v2399, %v3019
      %v3021 = vpop.f32.mrb[0].mxu0
      %v3022 = vpop.f32.mrb[0].mxu0
      %v3023 = vadd.f32 %v2399, %v3022
      %v3024 = vpop.f32.mrb[0].mxu0
      %3025 = vmatprep.mubr.bf16.mxu0 0
      %3026 = vmatmul.mubr.bf16.gmra.mrb[0].mxu0 %v2567
      %v3027 = vpop.f32.mrb[0].mxu0
      %v3028 = vadd.f32 %v2399, %v3027
      %v3029 = vpop.f32.mrb[0].mxu0
      %v3030 = vpop.f32.mrb[0].mxu0
      %v3031 = vadd.f32 %v2399, %v3030
      %v3032 = vpop.f32.mrb[0].mxu0
      %3033 = vmatprep.mubr.bf16.mxu0 0
      %3034 = vmatmul.mubr.bf16.gmra.mrb[0].mxu0 %v2570
      %v3035 = vpop.f32.mrb[0].mxu0
      %v3036 = vadd.f32 %v2399, %v3035
      %v3037 = vpop.f32.mrb[0].mxu0
      %v3038 = vpop.f32.mrb[0].mxu0
      %v3039 = vadd.f32 %v2399, %v3038
      %v3040 = vpop.f32.mrb[0].mxu0
      %3041 = vmatprep.mubr.bf16.mxu0 0
      %3042 = vmatmul.mubr.bf16.gmra.mrb[0].mxu0 %v2573
      %v3043 = vpop.f32.mrb[0].mxu0
      %v3044 = vadd.f32 %v2399, %v3043
      %v3045 = vpop.f32.mrb[0].mxu0
      %v3046 = vpop.f32.mrb[0].mxu0
      %v3047 = vadd.f32 %v2399, %v3046
      %v3048 = vpop.f32.mrb[0].mxu0
      %3049 = vmatprep.mubr.bf16.mxu0 0
      %3050 = vmatmul.mubr.bf16.gmra.mrb[0].mxu0 %v2576
      %v3051 = vpop.f32.mrb[0].mxu0
      %v3052 = vadd.f32 %v2399, %v3051
      %v3053 = vpop.f32.mrb[0].mxu0
      %v3054 = vpop.f32.mrb[0].mxu0
      %v3055 = vadd.f32 %v2399, %v3054
      %v3056 = vpop.f32.mrb[0].mxu0
      %3057 = vmatprep.mubr.bf16.mxu0 0
      %3058 = vmatmul.mubr.bf16.gmra.mrb[0].mxu0 %v2579
      %v3059 = vpop.f32.mrb[0].mxu0
      %v3060 = vadd.f32 %v2399, %v3059
      %v3061 = vpop.f32.mrb[0].mxu0
      %v3062 = vpop.f32.mrb[0].mxu0
      %v3063 = vadd.f32 %v2399, %v3062
      %v3064 = vpop.f32.mrb[0].mxu0
      %3065 = vmatprep.mubr.bf16.mxu0 0
      %3066 = vmatmul.mubr.bf16.gmra.mrb[0].mxu0 %v2582
      %v3067 = vpop.f32.mrb[0].mxu0
      %v3068 = vadd.f32 %v2399, %v3067
      %v3069 = vpop.f32.mrb[0].mxu0
      %v3070 = vpop.f32.mrb[0].mxu0
      %v3071 = vadd.f32 %v2399, %v3070
      %v3072 = vpop.f32.mrb[0].mxu0
      %3073 = vmatprep.mubr.bf16.mxu0 0
      %3074 = vmatmul.mubr.bf16.gmra.mrb[0].mxu0 %v2585
      %v3075 = vpop.f32.mrb[0].mxu0
      %v3076 = vadd.f32 %v2399, %v3075
      %v3077 = vpop.f32.mrb[0].mxu0
      %v3078 = vpop.f32.mrb[0].mxu0
      %v3079 = vadd.f32 %v2399, %v3078
      %v3080 = vpop.f32.mrb[0].mxu0
      %3081 = vmatprep.mubr.bf16.mxu0 0
      %3082 = vmatmul.mubr.bf16.gmra.mrb[0].mxu0 %v2588
      %v3083 = vpop.f32.mrb[0].mxu0
      %v3084 = vadd.f32 %v2399, %v3083
      %v3085 = vpop.f32.mrb[0].mxu0
      %v3086 = vpop.f32.mrb[0].mxu0
      %v3087 = vadd.f32 %v2399, %v3086
      %v3088 = vpop.f32.mrb[0].mxu0
      %3089 = vmatprep.mubr.bf16.mxu0 0
      %3090 = vmatmul.mubr.bf16.gmra.mrb[0].mxu0 %v2591
      %v3091 = vpop.f32.mrb[0].mxu0
      %v3092 = vadd.f32 %v2399, %v3091
      %v3093 = vpop.f32.mrb[0].mxu0
      %v3094 = vpop.f32.mrb[0].mxu0
      %v3095 = vadd.f32 %v2399, %v3094
      %v3096 = vpop.f32.mrb[0].mxu0
      %3097 = vmatprep.mubr.bf16.mxu0 0
      %3098 = vmatmul.mubr.bf16.gmra.mrb[0].mxu0 %v2594
      %v3099 = vpop.f32.mrb[0].mxu0
      %v3100 = vadd.f32 %v2399, %v3099
      %v3101 = vpop.f32.mrb[0].mxu0
      %v3102 = vpop.f32.mrb[0].mxu0
      %v3103 = vadd.f32 %v2399, %v3102
      %v3104 = vpop.f32.mrb[0].mxu0
      %3105 = vmatprep.mubr.bf16.mxu0 0
      %3106 = vmatmul.mubr.bf16.gmra.mrb[0].mxu0 %v2597
      %v3107 = vpop.f32.mrb[0].mxu0
      %v3108 = vadd.f32 %v2399, %v3107
      %v3109 = vpop.f32.mrb[0].mxu0
      %v3110 = vpop.f32.mrb[0].mxu0
      %v3111 = vadd.f32 %v2399, %v3110
      %v3112 = vpop.f32.mrb[0].mxu0
      %3113 = vmatprep.mubr.bf16.mxu0 0
      %3114 = vmatmul.mubr.bf16.gmra.mrb[0].mxu0 %v2600
      %v3115 = vpop.f32.mrb[0].mxu0
      %v3116 = vadd.f32 %v2399, %v3115
      %v3117 = vpop.f32.mrb[0].mxu0
      %v3118 = vpop.f32.mrb[0].mxu0
      %v3119 = vadd.f32 %v2399, %v3118
      %v3120 = vpop.f32.mrb[0].mxu0
      %3121 = vmatprep.mubr.bf16.mxu0 0
      %3122 = vmatmul.mubr.bf16.gmra.mrb[0].mxu0 %v2603
      %v3123 = vpop.f32.mrb[0].mxu0
      %v3124 = vadd.f32 %v2399, %v3123
      %v3125 = vpop.f32.mrb[0].mxu0
      %v3126 = vpop.f32.mrb[0].mxu0
      %v3127 = vadd.f32 %v2399, %v3126
      %v3128 = vpop.f32.mrb[0].mxu0
      %3129 = vmatprep.mubr.bf16.mxu0 0
      %3130 = vmatmul.mubr.bf16.gmra.mrb[0].mxu0 %v2606
      %v3131 = vpop.f32.mrb[0].mxu0
      %v3132 = vadd.f32 %v2399, %v3131
      %v3133 = vpop.f32.mrb[0].mxu0
      %v3134 = vpop.f32.mrb[0].mxu0
      %v3135 = vadd.f32 %v2399, %v3134
      %v3136 = vpop.f32.mrb[0].mxu0
      %3137 = vmatprep.mubr.bf16.mxu0 0
      %3138 = vmatmul.mubr.bf16.gmra.mrb[0].mxu0 %v2609
      %v3139 = vpop.f32.mrb[0].mxu0
      %v3140 = vadd.f32 %v2399, %v3139
      %v3141 = vpop.f32.mrb[0].mxu0
      %v3142 = vpop.f32.mrb[0].mxu0
      %v3143 = vadd.f32 %v2399, %v3142
      %v3144 = vpop.f32.mrb[0].mxu0
      %3145 = vmatprep.mubr.bf16.mxu0 0
      %3146 = vmatmul.mubr.bf16.gmra.mrb[0].mxu0 %v2612
      %v3147 = vpop.f32.mrb[0].mxu0
      %v3148 = vadd.f32 %v2399, %v3147
      %v3149 = vpop.f32.mrb[0].mxu0
      %v3150 = vpop.f32.mrb[0].mxu0
      %v3151 = vadd.f32 %v2399, %v3150
      %v3152 = vpop.f32.mrb[0].mxu0
      %3153 = vmatprep.mubr.bf16.mxu0 0
      %3154 = vmatmul.mubr.bf16.gmra.mrb[0].mxu0 %v2615
      %v3155 = vpop.f32.mrb[0].mxu0
      %v3156 = vadd.f32 %v2399, %v3155
      %v3157 = vpop.f32.mrb[0].mxu0
      %v3158 = vpop.f32.mrb[0].mxu0
      %v3159 = vadd.f32 %v2399, %v3158
      %v3160 = vpop.f32.mrb[0].mxu0
      %3161 = vdwg.mxu0
      %3162 = vst [vmem:[%s280] sm:$0xff] %v2652
      %3163 = vst [vmem:[%s280 + $0x8] sm:$0xff] %v2655
      %3164 = vst [vmem:[%s280 + $0x10] sm:$0xff] %v2660
      %3165 = vst [vmem:[%s280 + $0x18] sm:$0xff] %v2663
      %3166 = vst [vmem:[%s280 + $0x20] sm:$0xff] %v2668
      %3167 = vst [vmem:[%s280 + $0x28] sm:$0xff] %v2671
      %3168 = vst [vmem:[%s280 + $0x30] sm:$0xff] %v2676
      %3169 = vst [vmem:[%s280 + $0x38] sm:$0xff] %v2679
      %3170 = vst [vmem:[%s280 + $0x40] sm:$0xff] %v2684
      %3171 = vst [vmem:[%s280 + $0x48] sm:$0xff] %v2687
      %3172 = vst [vmem:[%s280 + $0x50] sm:$0xff] %v2692
      %3173 = vst [vmem:[%s280 + $0x58] sm:$0xff] %v2695
      %3174 = vst [vmem:[%s280 + $0x60] sm:$0xff] %v2700
      %3175 = vst [vmem:[%s280 + $0x68] sm:$0xff] %v2703
      %3176 = vst [vmem:[%s280 + $0x70] sm:$0xff] %v2708
      %3177 = vst [vmem:[%s280 + $0x78] sm:$0xff] %v2711
      %3178 = vst [vmem:[%s280 + $0x80] sm:$0xff] %v2716
      %3179 = vst [vmem:[%s280 + $0x88] sm:$0xff] %v2719
      %3180 = vst [vmem:[%s280 + $0x90] sm:$0xff] %v2724
      %3181 = vst [vmem:[%s280 + $0x98] sm:$0xff] %v2727
      %3182 = vst [vmem:[%s280 + $0xa0] sm:$0xff] %v2732
      %3183 = vst [vmem:[%s280 + $0xa8] sm:$0xff] %v2735
      %3184 = vst [vmem:[%s280 + $0xb0] sm:$0xff] %v2740
      %3185 = vst [vmem:[%s280 + $0xb8] sm:$0xff] %v2743
      %3186 = vst [vmem:[%s280 + $0xc0] sm:$0xff] %v2748
      %3187 = vst [vmem:[%s280 + $0xc8] sm:$0xff] %v2751
      %3188 = vst [vmem:[%s280 + $0xd0] sm:$0xff] %v2756
      %3189 = vst [vmem:[%s280 + $0xd8] sm:$0xff] %v2759
      %3190 = vst [vmem:[%s280 + $0xe0] sm:$0xff] %v2764
      %3191 = vst [vmem:[%s280 + $0xe8] sm:$0xff] %v2767
      %3192 = vst [vmem:[%s280 + $0xf0] sm:$0xff] %v2772
      %3193 = vst [vmem:[%s280 + $0xf8] sm:$0xff] %v2775
      %3194 = vst [vmem:[%s280 + $0x100] sm:$0xff] %v2780
      %3195 = vst [vmem:[%s280 + $0x108] sm:$0xff] %v2783
      %3196 = vst [vmem:[%s280 + $0x110] sm:$0xff] %v2788
      %3197 = vst [vmem:[%s280 + $0x118] sm:$0xff] %v2791
      %3198 = vst [vmem:[%s280 + $0x120] sm:$0xff] %v2796
      %3199 = vst [vmem:[%s280 + $0x128] sm:$0xff] %v2799
      %3200 = vst [vmem:[%s280 + $0x130] sm:$0xff] %v2804
      %3201 = vst [vmem:[%s280 + $0x138] sm:$0xff] %v2807
      %3202 = vst [vmem:[%s280 + $0x140] sm:$0xff] %v2812
      %3203 = vst [vmem:[%s280 + $0x148] sm:$0xff] %v2815
      %3204 = vst [vmem:[%s280 + $0x150] sm:$0xff] %v2820
      %3205 = vst [vmem:[%s280 + $0x158] sm:$0xff] %v2823
      %3206 = vst [vmem:[%s280 + $0x160] sm:$0xff] %v2828
      %3207 = vst [vmem:[%s280 + $0x168] sm:$0xff] %v2831
      %3208 = vst [vmem:[%s280 + $0x170] sm:$0xff] %v2836
      %3209 = vst [vmem:[%s280 + $0x178] sm:$0xff] %v2839
      %3210 = vst [vmem:[%s280 + $0x180] sm:$0xff] %v2844
      %3211 = vst [vmem:[%s280 + $0x188] sm:$0xff] %v2847
      %3212 = vst [vmem:[%s280 + $0x190] sm:$0xff] %v2852
      %3213 = vst [vmem:[%s280 + $0x198] sm:$0xff] %v2855
      %3214 = vst [vmem:[%s280 + $0x1a0] sm:$0xff] %v2860
      %3215 = vst [vmem:[%s280 + $0x1a8] sm:$0xff] %v2863
      %3216 = vst [vmem:[%s280 + $0x1b0] sm:$0xff] %v2868
      %3217 = vst [vmem:[%s280 + $0x1b8] sm:$0xff] %v2871
      %3218 = vst [vmem:[%s280 + $0x1c0] sm:$0xff] %v2876
      %3219 = vst [vmem:[%s280 + $0x1c8] sm:$0xff] %v2879
      %3220 = vst [vmem:[%s280 + $0x1d0] sm:$0xff] %v2884
      %3221 = vst [vmem:[%s280 + $0x1d8] sm:$0xff] %v2887
      %3222 = vst [vmem:[%s280 + $0x1e0] sm:$0xff] %v2892
      %3223 = vst [vmem:[%s280 + $0x1e8] sm:$0xff] %v2895
      %3224 = vst [vmem:[%s280 + $0x1f0] sm:$0xff] %v2900
      %3225 = vst [vmem:[%s280 + $0x1f8] sm:$0xff] %v2903
      %3226 = vst [vmem:[%s280 + $0x200] sm:$0xff] %v2908
      %3227 = vst [vmem:[%s280 + $0x208] sm:$0xff] %v2911
      %3228 = vst [vmem:[%s280 + $0x210] sm:$0xff] %v2916
      %3229 = vst [vmem:[%s280 + $0x218] sm:$0xff] %v2919
      %3230 = vst [vmem:[%s280 + $0x220] sm:$0xff] %v2924
      %3231 = vst [vmem:[%s280 + $0x228] sm:$0xff] %v2927
      %3232 = vst [vmem:[%s280 + $0x230] sm:$0xff] %v2932
      %3233 = vst [vmem:[%s280 + $0x238] sm:$0xff] %v2935
      %3234 = vst [vmem:[%s280 + $0x240] sm:$0xff] %v2940
      %3235 = vst [vmem:[%s280 + $0x248] sm:$0xff] %v2943
      %3236 = vst [vmem:[%s280 + $0x250] sm:$0xff] %v2948
      %3237 = vst [vmem:[%s280 + $0x258] sm:$0xff] %v2951
      %3238 = vst [vmem:[%s280 + $0x260] sm:$0xff] %v2956
      %3239 = vst [vmem:[%s280 + $0x268] sm:$0xff] %v2959
      %3240 = vst [vmem:[%s280 + $0x270] sm:$0xff] %v2964
      %3241 = vst [vmem:[%s280 + $0x278] sm:$0xff] %v2967
      %3242 = vst [vmem:[%s280 + $0x280] sm:$0xff] %v2972
      %3243 = vst [vmem:[%s280 + $0x288] sm:$0xff] %v2975
      %3244 = vst [vmem:[%s280 + $0x290] sm:$0xff] %v2980
      %3245 = vst [vmem:[%s280 + $0x298] sm:$0xff] %v2983
      %3246 = vst [vmem:[%s280 + $0x2a0] sm:$0xff] %v2988
      %3247 = vst [vmem:[%s280 + $0x2a8] sm:$0xff] %v2991
      %3248 = vst [vmem:[%s280 + $0x2b0] sm:$0xff] %v2996
      %3249 = vst [vmem:[%s280 + $0x2b8] sm:$0xff] %v2999
      %3250 = vst [vmem:[%s280 + $0x2c0] sm:$0xff] %v3004
      %3251 = vst [vmem:[%s280 + $0x2c8] sm:$0xff] %v3007
      %3252 = vst [vmem:[%s280 + $0x2d0] sm:$0xff] %v3012
      %3253 = vst [vmem:[%s280 + $0x2d8] sm:$0xff] %v3015
      %3254 = vst [vmem:[%s280 + $0x2e0] sm:$0xff] %v3020
      %3255 = vst [vmem:[%s280 + $0x2e8] sm:$0xff] %v3023
      %3256 = vst [vmem:[%s280 + $0x2f0] sm:$0xff] %v3028
      %3257 = vst [vmem:[%s280 + $0x2f8] sm:$0xff] %v3031
      %3258 = vst [vmem:[%s280 + $0x300] sm:$0xff] %v3036
      %3259 = vst [vmem:[%s280 + $0x308] sm:$0xff] %v3039
      %3260 = vst [vmem:[%s280 + $0x310] sm:$0xff] %v3044
      %3261 = vst [vmem:[%s280 + $0x318] sm:$0xff] %v3047
      %3262 = vst [vmem:[%s280 + $0x320] sm:$0xff] %v3052
      %3263 = vst [vmem:[%s280 + $0x328] sm:$0xff] %v3055
      %3264 = vst [vmem:[%s280 + $0x330] sm:$0xff] %v3060
      %3265 = vst [vmem:[%s280 + $0x338] sm:$0xff] %v3063
      %3266 = vst [vmem:[%s280 + $0x340] sm:$0xff] %v3068
      %3267 = vst [vmem:[%s280 + $0x348] sm:$0xff] %v3071
      %3268 = vst [vmem:[%s280 + $0x350] sm:$0xff] %v3076
      %3269 = vst [vmem:[%s280 + $0x358] sm:$0xff] %v3079
      %3270 = vst [vmem:[%s280 + $0x360] sm:$0xff] %v3084
      %3271 = vst [vmem:[%s280 + $0x368] sm:$0xff] %v3087
      %3272 = vst [vmem:[%s280 + $0x370] sm:$0xff] %v3092
      %3273 = vst [vmem:[%s280 + $0x378] sm:$0xff] %v3095
      %3274 = vst [vmem:[%s280 + $0x380] sm:$0xff] %v3100
      %3275 = vst [vmem:[%s280 + $0x388] sm:$0xff] %v3103
      %3276 = vst [vmem:[%s280 + $0x390] sm:$0xff] %v3108
      %3277 = vst [vmem:[%s280 + $0x398] sm:$0xff] %v3111
      %3278 = vst [vmem:[%s280 + $0x3a0] sm:$0xff] %v3116
      %3279 = vst [vmem:[%s280 + $0x3a8] sm:$0xff] %v3119
      %3280 = vst [vmem:[%s280 + $0x3b0] sm:$0xff] %v3124
      %3281 = vst [vmem:[%s280 + $0x3b8] sm:$0xff] %v3127
      %3282 = vst [vmem:[%s280 + $0x3c0] sm:$0xff] %v3132
      %3283 = vst [vmem:[%s280 + $0x3c8] sm:$0xff] %v3135
      %3284 = vst [vmem:[%s280 + $0x3d0] sm:$0xff] %v3140
      %3285 = vst [vmem:[%s280 + $0x3d8] sm:$0xff] %v3143
      %3286 = vst [vmem:[%s280 + $0x3e0] sm:$0xff] %v3148
      %3287 = vst [vmem:[%s280 + $0x3e8] sm:$0xff] %v3151
      %3288 = vst [vmem:[%s280 + $0x3f0] sm:$0xff] %v3156
      %3289 = vst [vmem:[%s280 + $0x3f8] sm:$0xff] %v3159
      %s3290 = smul.u32 128, %s18
      %p3291 = scmp.lt.s32.totalorder %s3290, 255
      %s3292 = scalar_select %p3291, %s3290, 255
      %s3293 = smul.addr %s3292, 8
      %s3294 = scalar_lea.vmem %s7, %s3293
      // Predicated region
      $region49: #{sunerf_forward.6} parent=47 // pred_check
        %p3295 = pneg %p188
      $region50: #{sunerf_forward.6} parent=47 // pred_check_branch
        %3297 = sbr.rel (%p3295) target = $region52
      $region51: #{sunerf_forward.6} parent=47 // pred_region
        %s3298 = smul.u32 128, %s18
      $region52: #{sunerf_forward.6} parent=47 // pred_fallthru
        _
    $region48: #{sunerf_forward.6} parent=5 // pred_fallthru
      _
    %p3299 = scmp.le.s32.totalorder 2, %s13
    // Predicated region
    $region53: #{sunerf_forward.6} parent=5 // pred_check
      %p3300 = pneg %p3299
    $region54: #{sunerf_forward.6} parent=5 // pred_check_branch
      %3302 = sbr.rel (%p3300) target = $region56
    $region55: #{sunerf_forward.6} parent=5 // pred_region
      %s3303 = ssub.s32 %s13, 2
      // Predicated region
      $region57: #{sunerf_forward.6} parent=55 // pred_check
        %p3304 = pneg %p194
      $region58: #{sunerf_forward.6} parent=55 // pred_check_branch
        %3306 = sbr.rel (%p3304) target = $region60
      $region59: #{sunerf_forward.6} parent=55 // pred_region
        %s3307 = smul.u32 128, %s19
        %p3308 = scmp.lt.s32.totalorder %s3307, 255
        %s3309 = scalar_select %p3308, %s3307, 255
        %s3310 = smul.addr %s3309, 8
        %s3311 = scalar_lea.vmem %s7, %s3310
      $region60: #{sunerf_forward.6} parent=55 // pred_fallthru
        _
    $region56: #{sunerf_forward.6} parent=5 // pred_fallthru
      _
  $region6: #{sunerf_forward.6} parent=0 // loop_footer
    %s17 = sadd.s32 1, %s13
  $region7: #{sunerf_forward.6} parent=0 // loop_footer_branch
    %12 = sbr.rel target = $region3
  $region8: #{sunerf_forward.6} parent=0 // loop_exit
    _

// kernel: sunerf_forward.8
$region0: #{sunerf_forward.8}
  #allocation0 [shape = 'u32[]', space=smem, size = 0x4, offset = 0x4, fixed_abs, tag = 'smem constant byte address 0x4 - core index']
  #allocation1 [shape = 'u32[144,128]{1,0:T(1,128)}', space=vmem, size = 0x12000, scoped, tag = 'internal scratch']
  %s0 = inlined_call_operand.vmem [shape: f32[4096,4], index: 0, kind: input, shape index: {}]
  %s1 = inlined_call_operand.vmem [shape: bf16[4,64], index: 1, kind: input, shape index: {}]
  %s2 = inlined_call_operand.vmem [shape: f32[1,64], index: 2, kind: input, shape index: {}]
  %s3 = inlined_call_operand.vmem [shape: bf16[64,64], index: 3, kind: input, shape index: {}]
  %s4 = inlined_call_operand.vmem [shape: f32[1,64], index: 4, kind: input, shape index: {}]
  %s5 = inlined_call_operand.vmem [shape: bf16[64,128], index: 5, kind: input, shape index: {}]
  %s6 = inlined_call_operand.vmem [shape: f32[1,128], index: 6, kind: input, shape index: {}]
  %s7 = inlined_call_operand.vmem [shape: f32[4096,128], index: 7, kind: output, shape index: {}]
  %s8 = sld [smem:[#allocation0]]
  $region61: #{sunerf_forward.8} parent=0
    _
  %s10 = ssub.s32 1, %s8
  %s11 = scalar_select 0, %s10, %s8
  loop: start=0, step=1, limit=6
  $region2: #{sunerf_forward.8} parent=0 // loop_pre_header
    _
  $region3: #{sunerf_forward.8} parent=0 // loop_header
    %s13 = sphi 0, %s17
    %p14 = scmp.ge.s32.totalorder %s13, 6
    %s23 = sphi 0, %s25
    %s26 = sphi 0, %s23
    %s27 = sphi 0, %s26
    %s43 = sphi 0, %s27
    %s47 = sphi 0, %s47
    %s49 = sphi 0, %s47
    %s50 = sphi 0, %s49
    %s64 = sphi 0, %s50
    %s68 = sphi 0, %s68
    %s70 = sphi 0, %s68
    %s71 = sphi 0, %s70
    %s85 = sphi 0, %s71
    %s89 = sphi 0, %s89
    %s91 = sphi 0, %s89
    %s92 = sphi 0, %s91
    %s106 = sphi 0, %s92
    %s110 = sphi 0, %s110
    %s112 = sphi 0, %s110
    %s113 = sphi 0, %s112
    %s127 = sphi 0, %s113
    %s131 = sphi 0, %s131
    %s133 = sphi 0, %s131
    %s134 = sphi 0, %s133
    %s148 = sphi 0, %s134
    %s152 = sphi 0, %s152
    %s154 = sphi 0, %s152
    %s155 = sphi 0, %s154
    %s169 = sphi 0, %s155
    %s175 = sphi 0, %s177
    %s178 = sphi 0, %s175
    %s179 = sphi 0, %s178
    %s195 = sphi 0, %s179
  $region4: #{sunerf_forward.8} parent=0 // loop_header_branch
    %16 = sbr.rel (%p14) target = $region8
  $region5: #{sunerf_forward.8} parent=0 // loop_body
    %s18 = ssub.s32 %s13, 1
    %s19 = ssub.s32 %s13, 2
    %s20 = sadd.s32 %s13, 1
    %s21 = ssub.s32 %s13, %s20
    %p22 = scmp.eq.s32.totalorder %s21, 0
    %s24 = sadd.s32 %s23, 1
    %s25 = scalar_select %p22, %s23, %s24
    %p28 = pneg %p22
    %p29 = scmp.eq.s32.totalorder %s13, 3
    %p30 = por %p28, %p29
    %p31 = scmp.ne.s32.totalorder %s23, %s26
    %p32 = scmp.eq.s32.totalorder %s13, 0
    %p33 = por %p31, %p32
    %p34 = scmp.ne.s32.totalorder %s23, %s26
    %p35 = scmp.eq.s32.totalorder %s18, 3
    %p36 = por %p34, %p35
    %p37 = scmp.ne.s32.totalorder %s26, %s27
    %p38 = scmp.eq.s32.totalorder %s18, 0
    %p39 = por %p37, %p38
    %p40 = scmp.ne.s32.totalorder %s26, %s27
    %p41 = scmp.eq.s32.totalorder %s19, 3
    %p42 = por %p40, %p41
    %p44 = scmp.ne.s32.totalorder %s27, %s43
    %p45 = scmp.eq.s32.totalorder %s19, 0
    %p46 = por %p44, %p45
    %s48 = sadd.s32 %s47, 1
    %p51 = scmp.eq.s32.totalorder %s13, 3
    %p52 = scmp.ne.s32.totalorder %s47, %s49
    %p53 = scmp.eq.s32.totalorder %s13, 0
    %p54 = por %p52, %p53
    %p55 = scmp.ne.s32.totalorder %s47, %s49
    %p56 = scmp.eq.s32.totalorder %s18, 3
    %p57 = por %p55, %p56
    %p58 = scmp.ne.s32.totalorder %s49, %s50
    %p59 = scmp.eq.s32.totalorder %s18, 0
    %p60 = por %p58, %p59
    %p61 = scmp.ne.s32.totalorder %s49, %s50
    %p62 = scmp.eq.s32.totalorder %s19, 3
    %p63 = por %p61, %p62
    %p65 = scmp.ne.s32.totalorder %s50, %s64
    %p66 = scmp.eq.s32.totalorder %s19, 0
    %p67 = por %p65, %p66
    %s69 = sadd.s32 %s68, 1
    %p72 = scmp.eq.s32.totalorder %s13, 3
    %p73 = scmp.ne.s32.totalorder %s68, %s70
    %p74 = scmp.eq.s32.totalorder %s13, 0
    %p75 = por %p73, %p74
    %p76 = scmp.ne.s32.totalorder %s68, %s70
    %p77 = scmp.eq.s32.totalorder %s18, 3
    %p78 = por %p76, %p77
    %p79 = scmp.ne.s32.totalorder %s70, %s71
    %p80 = scmp.eq.s32.totalorder %s18, 0
    %p81 = por %p79, %p80
    %p82 = scmp.ne.s32.totalorder %s70, %s71
    %p83 = scmp.eq.s32.totalorder %s19, 3
    %p84 = por %p82, %p83
    %p86 = scmp.ne.s32.totalorder %s71, %s85
    %p87 = scmp.eq.s32.totalorder %s19, 0
    %p88 = por %p86, %p87
    %s90 = sadd.s32 %s89, 1
    %p93 = scmp.eq.s32.totalorder %s13, 3
    %p94 = scmp.ne.s32.totalorder %s89, %s91
    %p95 = scmp.eq.s32.totalorder %s13, 0
    %p96 = por %p94, %p95
    %p97 = scmp.ne.s32.totalorder %s89, %s91
    %p98 = scmp.eq.s32.totalorder %s18, 3
    %p99 = por %p97, %p98
    %p100 = scmp.ne.s32.totalorder %s91, %s92
    %p101 = scmp.eq.s32.totalorder %s18, 0
    %p102 = por %p100, %p101
    %p103 = scmp.ne.s32.totalorder %s91, %s92
    %p104 = scmp.eq.s32.totalorder %s19, 3
    %p105 = por %p103, %p104
    %p107 = scmp.ne.s32.totalorder %s92, %s106
    %p108 = scmp.eq.s32.totalorder %s19, 0
    %p109 = por %p107, %p108
    %s111 = sadd.s32 %s110, 1
    %p114 = scmp.eq.s32.totalorder %s13, 3
    %p115 = scmp.ne.s32.totalorder %s110, %s112
    %p116 = scmp.eq.s32.totalorder %s13, 0
    %p117 = por %p115, %p116
    %p118 = scmp.ne.s32.totalorder %s110, %s112
    %p119 = scmp.eq.s32.totalorder %s18, 3
    %p120 = por %p118, %p119
    %p121 = scmp.ne.s32.totalorder %s112, %s113
    %p122 = scmp.eq.s32.totalorder %s18, 0
    %p123 = por %p121, %p122
    %p124 = scmp.ne.s32.totalorder %s112, %s113
    %p125 = scmp.eq.s32.totalorder %s19, 3
    %p126 = por %p124, %p125
    %p128 = scmp.ne.s32.totalorder %s113, %s127
    %p129 = scmp.eq.s32.totalorder %s19, 0
    %p130 = por %p128, %p129
    %s132 = sadd.s32 %s131, 1
    %p135 = scmp.eq.s32.totalorder %s13, 3
    %p136 = scmp.ne.s32.totalorder %s131, %s133
    %p137 = scmp.eq.s32.totalorder %s13, 0
    %p138 = por %p136, %p137
    %p139 = scmp.ne.s32.totalorder %s131, %s133
    %p140 = scmp.eq.s32.totalorder %s18, 3
    %p141 = por %p139, %p140
    %p142 = scmp.ne.s32.totalorder %s133, %s134
    %p143 = scmp.eq.s32.totalorder %s18, 0
    %p144 = por %p142, %p143
    %p145 = scmp.ne.s32.totalorder %s133, %s134
    %p146 = scmp.eq.s32.totalorder %s19, 3
    %p147 = por %p145, %p146
    %p149 = scmp.ne.s32.totalorder %s134, %s148
    %p150 = scmp.eq.s32.totalorder %s19, 0
    %p151 = por %p149, %p150
    %s153 = sadd.s32 %s152, 1
    %p156 = scmp.eq.s32.totalorder %s13, 3
    %p157 = scmp.ne.s32.totalorder %s152, %s154
    %p158 = scmp.eq.s32.totalorder %s13, 0
    %p159 = por %p157, %p158
    %p160 = scmp.ne.s32.totalorder %s152, %s154
    %p161 = scmp.eq.s32.totalorder %s18, 3
    %p162 = por %p160, %p161
    %p163 = scmp.ne.s32.totalorder %s154, %s155
    %p164 = scmp.eq.s32.totalorder %s18, 0
    %p165 = por %p163, %p164
    %p166 = scmp.ne.s32.totalorder %s154, %s155
    %p167 = scmp.eq.s32.totalorder %s19, 3
    %p168 = por %p166, %p167
    %p170 = scmp.ne.s32.totalorder %s155, %s169
    %p171 = scmp.eq.s32.totalorder %s19, 0
    %p172 = por %p170, %p171
    %s173 = ssub.s32 %s13, %s20
    %p174 = scmp.eq.s32.totalorder %s173, 0
    %s176 = sadd.s32 %s175, 1
    %s177 = scalar_select %p174, %s175, %s176
    %p180 = pneg %p174
    %p181 = scmp.eq.s32.totalorder %s13, 3
    %p182 = por %p180, %p181
    %p183 = scmp.ne.s32.totalorder %s175, %s178
    %p184 = scmp.eq.s32.totalorder %s13, 0
    %p185 = por %p183, %p184
    %p186 = scmp.ne.s32.totalorder %s175, %s178
    %p187 = scmp.eq.s32.totalorder %s18, 3
    %p188 = por %p186, %p187
    %p189 = scmp.ne.s32.totalorder %s178, %s179
    %p190 = scmp.eq.s32.totalorder %s18, 0
    %p191 = por %p189, %p190
    %p192 = scmp.ne.s32.totalorder %s178, %s179
    %p193 = scmp.eq.s32.totalorder %s19, 3
    %p194 = por %p192, %p193
    %p196 = scmp.ne.s32.totalorder %s179, %s195
    %p197 = scmp.eq.s32.totalorder %s19, 0
    %p198 = por %p196, %p197
    %p199 = scmp.le.s32.totalorder 1, %s13
    %p200 = scmp.lt.s32.totalorder %s13, 5
    %p201 = pnand %p199, %p200
    %p202 = pneg %p201
    // Predicated region
    $region9: #{sunerf_forward.8} parent=5 // pred_check
      _
    $region10: #{sunerf_forward.8} parent=5 // pred_check_branch
      %204 = sbr.rel (%p201) target = $region12
    $region11: #{sunerf_forward.8} parent=5 // pred_region
      %s205 = ssub.s32 %s13, 1
      // Predicated region
      $region13: #{sunerf_forward.8} parent=11 // pred_check
        %p206 = pneg %p60
      $region14: #{sunerf_forward.8} parent=11 // pred_check_branch
        %208 = sbr.rel (%p206) target = $region16
      $region15: #{sunerf_forward.8} parent=11 // pred_region
        _
      $region16: #{sunerf_forward.8} parent=11 // pred_fallthru
        _
      // Predicated region
      $region17: #{sunerf_forward.8} parent=11 // pred_check
        %p209 = pneg %p81
      $region18: #{sunerf_forward.8} parent=11 // pred_check_branch
        %211 = sbr.rel (%p209) target = $region20
      $region19: #{sunerf_forward.8} parent=11 // pred_region
        _
      $region20: #{sunerf_forward.8} parent=11 // pred_fallthru
        _
      // Predicated region
      $region21: #{sunerf_forward.8} parent=11 // pred_check
        %p212 = pneg %p102
      $region22: #{sunerf_forward.8} parent=11 // pred_check_branch
        %214 = sbr.rel (%p212) target = $region24
      $region23: #{sunerf_forward.8} parent=11 // pred_region
        _
      $region24: #{sunerf_forward.8} parent=11 // pred_fallthru
        _
      // Predicated region
      $region25: #{sunerf_forward.8} parent=11 // pred_check
        %p215 = pneg %p123
      $region26: #{sunerf_forward.8} parent=11 // pred_check_branch
        %217 = sbr.rel (%p215) target = $region28
      $region27: #{sunerf_forward.8} parent=11 // pred_region
        _
      $region28: #{sunerf_forward.8} parent=11 // pred_fallthru
        _
      // Predicated region
      $region29: #{sunerf_forward.8} parent=11 // pred_check
        %p218 = pneg %p144
      $region30: #{sunerf_forward.8} parent=11 // pred_check_branch
        %220 = sbr.rel (%p218) target = $region32
      $region31: #{sunerf_forward.8} parent=11 // pred_region
        _
      $region32: #{sunerf_forward.8} parent=11 // pred_fallthru
        _
      // Predicated region
      $region33: #{sunerf_forward.8} parent=11 // pred_check
        %p221 = pneg %p165
      $region34: #{sunerf_forward.8} parent=11 // pred_check_branch
        %223 = sbr.rel (%p221) target = $region36
      $region35: #{sunerf_forward.8} parent=11 // pred_region
        _
      $region36: #{sunerf_forward.8} parent=11 // pred_fallthru
        _
    $region12: #{sunerf_forward.8} parent=5 // pred_fallthru
      _
    %p224 = scmp.lt.s32.totalorder %s13, 4
    // Predicated region
    $region37: #{sunerf_forward.8} parent=5 // pred_check
      %p225 = pneg %p224
    $region38: #{sunerf_forward.8} parent=5 // pred_check_branch
      %227 = sbr.rel (%p225) target = $region40
    $region39: #{sunerf_forward.8} parent=5 // pred_region
      // Predicated region
      $region41: #{sunerf_forward.8} parent=39 // pred_check
        %p228 = pneg %p33
      $region42: #{sunerf_forward.8} parent=39 // pred_check_branch
        %230 = sbr.rel (%p228) target = $region44
      $region43: #{sunerf_forward.8} parent=39 // pred_region
        %s231 = smul.u32 128, %s13
        %p232 = scmp.lt.s32.totalorder %s231, 511
        %s233 = scalar_select %p232, %s231, 511
        %s234 = smul.addr %s233, 8
        %s235 = scalar_lea.vmem %s0, %s234
        %s236 = smul.u32 128, %s13
      $region44: #{sunerf_forward.8} parent=39 // pred_fallthru
        _
    $region40: #{sunerf_forward.8} parent=5 // pred_fallthru
      _
    %p237 = scmp.le.s32.totalorder 1, %s13
    %p238 = scmp.lt.s32.totalorder %s13, 5
    %p239 = pnand %p237, %p238
    %p240 = pneg %p239
    // Predicated region
    $region45: #{sunerf_forward.8} parent=5 // pred_check
      _
    $region46: #{sunerf_forward.8} parent=5 // pred_check_branch
      %242 = sbr.rel (%p239) target = $region48
    $region47: #{sunerf_forward.8} parent=5 // pred_region
      %s243 = ssub.s32 %s13, 1
      %s244 = smul.u32 128, %s18
      %p245 = scmp.lt.s32.totalorder %s244, 511
      %s246 = scalar_select %p245, %s244, 511
      %s247 = smul.addr %s246, 8
      %s248 = scalar_lea.vmem %s0, %s247
      %p249 = pneg %p39
      %p250 = pneg %p36
      %p251 = pneg %p60
      %p252 = pneg %p57
      %p253 = pneg %p81
      %p254 = pneg %p78
      %p255 = pneg %p102
      %p256 = pneg %p99
      %p257 = pneg %p123
      %p258 = pneg %p120
      %p259 = pneg %p144
      %p260 = pneg %p141
      %p261 = pneg %p165
      %p262 = pneg %p162
      %p263 = pneg %p191
      %p264 = pneg %p188
      %s265 = smul.u32 128, %s18
      %p266 = scmp.lt.s32.totalorder %s265, 511
      %s267 = scalar_select %p266, %s265, 511
      %s268 = smul.addr %s267, 8
      %s269 = scalar_lea.vmem %s7, %s268
      %s270 = smul.u32 128, %s18
      %p271 = scmp.lt.s32.totalorder %s270, 511
      %s272 = scalar_select %p271, %s270, 511
      %s273 = smul.addr %s272, 8
      %s274 = scalar_lea.vmem %s0, %s273
      %s275 = smul.u32 128, %s18
      %s276 = smul.u32 128, %s18
      %p277 = scmp.lt.s32.totalorder %s276, 511
      %s278 = scalar_select %p277, %s276, 511
      %s279 = smul.addr %s278, 8
      %s280 = scalar_lea.vmem %s7, %s279
      %s281 = smul.u32 128, %s18
      %v283 = vld [vmem:[%s274] sm:$0xff]
      %v284 = vld [vmem:[%s274 + $0x8] sm:$0xff]
      %v285 = vld [vmem:[%s274 + $0x10] sm:$0xff]
      %v286 = vld [vmem:[%s274 + $0x18] sm:$0xff]
      %v287 = vld [vmem:[%s274 + $0x20] sm:$0xff]
      %v288 = vld [vmem:[%s274 + $0x28] sm:$0xff]
      %v289 = vld [vmem:[%s274 + $0x30] sm:$0xff]
      %v290 = vld [vmem:[%s274 + $0x38] sm:$0xff]
      %v291 = vld [vmem:[%s274 + $0x40] sm:$0xff]
      %v292 = vld [vmem:[%s274 + $0x48] sm:$0xff]
      %v293 = vld [vmem:[%s274 + $0x50] sm:$0xff]
      %v294 = vld [vmem:[%s274 + $0x58] sm:$0xff]
      %v295 = vld [vmem:[%s274 + $0x60] sm:$0xff]
      %v296 = vld [vmem:[%s274 + $0x68] sm:$0xff]
      %v297 = vld [vmem:[%s274 + $0x70] sm:$0xff]
      %v298 = vld [vmem:[%s274 + $0x78] sm:$0xff]
      %v299 = vld [vmem:[%s274 + $0x80] sm:$0xff]
      %v300 = vld [vmem:[%s274 + $0x88] sm:$0xff]
      %v301 = vld [vmem:[%s274 + $0x90] sm:$0xff]
      %v302 = vld [vmem:[%s274 + $0x98] sm:$0xff]
      %v303 = vld [vmem:[%s274 + $0xa0] sm:$0xff]
      %v304 = vld [vmem:[%s274 + $0xa8] sm:$0xff]
      %v305 = vld [vmem:[%s274 + $0xb0] sm:$0xff]
      %v306 = vld [vmem:[%s274 + $0xb8] sm:$0xff]
      %v307 = vld [vmem:[%s274 + $0xc0] sm:$0xff]
      %v308 = vld [vmem:[%s274 + $0xc8] sm:$0xff]
      %v309 = vld [vmem:[%s274 + $0xd0] sm:$0xff]
      %v310 = vld [vmem:[%s274 + $0xd8] sm:$0xff]
      %v311 = vld [vmem:[%s274 + $0xe0] sm:$0xff]
      %v312 = vld [vmem:[%s274 + $0xe8] sm:$0xff]
      %v313 = vld [vmem:[%s274 + $0xf0] sm:$0xff]
      %v314 = vld [vmem:[%s274 + $0xf8] sm:$0xff]
      %v315 = vld [vmem:[%s274 + $0x100] sm:$0xff]
      %v316 = vld [vmem:[%s274 + $0x108] sm:$0xff]
      %v317 = vld [vmem:[%s274 + $0x110] sm:$0xff]
      %v318 = vld [vmem:[%s274 + $0x118] sm:$0xff]
      %v319 = vld [vmem:[%s274 + $0x120] sm:$0xff]
      %v320 = vld [vmem:[%s274 + $0x128] sm:$0xff]
      %v321 = vld [vmem:[%s274 + $0x130] sm:$0xff]
      %v322 = vld [vmem:[%s274 + $0x138] sm:$0xff]
      %v323 = vld [vmem:[%s274 + $0x140] sm:$0xff]
      %v324 = vld [vmem:[%s274 + $0x148] sm:$0xff]
      %v325 = vld [vmem:[%s274 + $0x150] sm:$0xff]
      %v326 = vld [vmem:[%s274 + $0x158] sm:$0xff]
      %v327 = vld [vmem:[%s274 + $0x160] sm:$0xff]
      %v328 = vld [vmem:[%s274 + $0x168] sm:$0xff]
      %v329 = vld [vmem:[%s274 + $0x170] sm:$0xff]
      %v330 = vld [vmem:[%s274 + $0x178] sm:$0xff]
      %v331 = vld [vmem:[%s274 + $0x180] sm:$0xff]
      %v332 = vld [vmem:[%s274 + $0x188] sm:$0xff]
      %v333 = vld [vmem:[%s274 + $0x190] sm:$0xff]
      %v334 = vld [vmem:[%s274 + $0x198] sm:$0xff]
      %v335 = vld [vmem:[%s274 + $0x1a0] sm:$0xff]
      %v336 = vld [vmem:[%s274 + $0x1a8] sm:$0xff]
      %v337 = vld [vmem:[%s274 + $0x1b0] sm:$0xff]
      %v338 = vld [vmem:[%s274 + $0x1b8] sm:$0xff]
      %v339 = vld [vmem:[%s274 + $0x1c0] sm:$0xff]
      %v340 = vld [vmem:[%s274 + $0x1c8] sm:$0xff]
      %v341 = vld [vmem:[%s274 + $0x1d0] sm:$0xff]
      %v342 = vld [vmem:[%s274 + $0x1d8] sm:$0xff]
      %v343 = vld [vmem:[%s274 + $0x1e0] sm:$0xff]
      %v344 = vld [vmem:[%s274 + $0x1e8] sm:$0xff]
      %v345 = vld [vmem:[%s274 + $0x1f0] sm:$0xff]
      %v346 = vld [vmem:[%s274 + $0x1f8] sm:$0xff]
      %v347 = vld [vmem:[%s274 + $0x200] sm:$0xff]
      %v348 = vld [vmem:[%s274 + $0x208] sm:$0xff]
      %v349 = vld [vmem:[%s274 + $0x210] sm:$0xff]
      %v350 = vld [vmem:[%s274 + $0x218] sm:$0xff]
      %v351 = vld [vmem:[%s274 + $0x220] sm:$0xff]
      %v352 = vld [vmem:[%s274 + $0x228] sm:$0xff]
      %v353 = vld [vmem:[%s274 + $0x230] sm:$0xff]
      %v354 = vld [vmem:[%s274 + $0x238] sm:$0xff]
      %v355 = vld [vmem:[%s274 + $0x240] sm:$0xff]
      %v356 = vld [vmem:[%s274 + $0x248] sm:$0xff]
      %v357 = vld [vmem:[%s274 + $0x250] sm:$0xff]
      %v358 = vld [vmem:[%s274 + $0x258] sm:$0xff]
      %v359 = vld [vmem:[%s274 + $0x260] sm:$0xff]
      %v360 = vld [vmem:[%s274 + $0x268] sm:$0xff]
      %v361 = vld [vmem:[%s274 + $0x270] sm:$0xff]
      %v362 = vld [vmem:[%s274 + $0x278] sm:$0xff]
      %v363 = vld [vmem:[%s274 + $0x280] sm:$0xff]
      %v364 = vld [vmem:[%s274 + $0x288] sm:$0xff]
      %v365 = vld [vmem:[%s274 + $0x290] sm:$0xff]
      %v366 = vld [vmem:[%s274 + $0x298] sm:$0xff]
      %v367 = vld [vmem:[%s274 + $0x2a0] sm:$0xff]
      %v368 = vld [vmem:[%s274 + $0x2a8] sm:$0xff]
      %v369 = vld [vmem:[%s274 + $0x2b0] sm:$0xff]
      %v370 = vld [vmem:[%s274 + $0x2b8] sm:$0xff]
      %v371 = vld [vmem:[%s274 + $0x2c0] sm:$0xff]
      %v372 = vld [vmem:[%s274 + $0x2c8] sm:$0xff]
      %v373 = vld [vmem:[%s274 + $0x2d0] sm:$0xff]
      %v374 = vld [vmem:[%s274 + $0x2d8] sm:$0xff]
      %v375 = vld [vmem:[%s274 + $0x2e0] sm:$0xff]
      %v376 = vld [vmem:[%s274 + $0x2e8] sm:$0xff]
      %v377 = vld [vmem:[%s274 + $0x2f0] sm:$0xff]
      %v378 = vld [vmem:[%s274 + $0x2f8] sm:$0xff]
      %v379 = vld [vmem:[%s274 + $0x300] sm:$0xff]
      %v380 = vld [vmem:[%s274 + $0x308] sm:$0xff]
      %v381 = vld [vmem:[%s274 + $0x310] sm:$0xff]
      %v382 = vld [vmem:[%s274 + $0x318] sm:$0xff]
      %v383 = vld [vmem:[%s274 + $0x320] sm:$0xff]
      %v384 = vld [vmem:[%s274 + $0x328] sm:$0xff]
      %v385 = vld [vmem:[%s274 + $0x330] sm:$0xff]
      %v386 = vld [vmem:[%s274 + $0x338] sm:$0xff]
      %v387 = vld [vmem:[%s274 + $0x340] sm:$0xff]
      %v388 = vld [vmem:[%s274 + $0x348] sm:$0xff]
      %v389 = vld [vmem:[%s274 + $0x350] sm:$0xff]
      %v390 = vld [vmem:[%s274 + $0x358] sm:$0xff]
      %v391 = vld [vmem:[%s274 + $0x360] sm:$0xff]
      %v392 = vld [vmem:[%s274 + $0x368] sm:$0xff]
      %v393 = vld [vmem:[%s274 + $0x370] sm:$0xff]
      %v394 = vld [vmem:[%s274 + $0x378] sm:$0xff]
      %v395 = vld [vmem:[%s274 + $0x380] sm:$0xff]
      %v396 = vld [vmem:[%s274 + $0x388] sm:$0xff]
      %v397 = vld [vmem:[%s274 + $0x390] sm:$0xff]
      %v398 = vld [vmem:[%s274 + $0x398] sm:$0xff]
      %v399 = vld [vmem:[%s274 + $0x3a0] sm:$0xff]
      %v400 = vld [vmem:[%s274 + $0x3a8] sm:$0xff]
      %v401 = vld [vmem:[%s274 + $0x3b0] sm:$0xff]
      %v402 = vld [vmem:[%s274 + $0x3b8] sm:$0xff]
      %v403 = vld [vmem:[%s274 + $0x3c0] sm:$0xff]
      %v404 = vld [vmem:[%s274 + $0x3c8] sm:$0xff]
      %v405 = vld [vmem:[%s274 + $0x3d0] sm:$0xff]
      %v406 = vld [vmem:[%s274 + $0x3d8] sm:$0xff]
      %v407 = vld [vmem:[%s274 + $0x3e0] sm:$0xff]
      %v408 = vld [vmem:[%s274 + $0x3e8] sm:$0xff]
      %v409 = vld [vmem:[%s274 + $0x3f0] sm:$0xff]
      %v410 = vld [vmem:[%s274 + $0x3f8] sm:$0xff]
      %v411 = vpack.c.bf16 %v284, %v283
      %v412 = vpack.c.bf16 %v286, %v285
      %v413 = vpack.c.bf16 %v288, %v287
      %v414 = vpack.c.bf16 %v290, %v289
      %v415 = vpack.c.bf16 %v292, %v291
      %v416 = vpack.c.bf16 %v294, %v293
      %v417 = vpack.c.bf16 %v296, %v295
      %v418 = vpack.c.bf16 %v298, %v297
      %v419 = vpack.c.bf16 %v300, %v299
      %v420 = vpack.c.bf16 %v302, %v301
      %v421 = vpack.c.bf16 %v304, %v303
      %v422 = vpack.c.bf16 %v306, %v305
      %v423 = vpack.c.bf16 %v308, %v307
      %v424 = vpack.c.bf16 %v310, %v309
      %v425 = vpack.c.bf16 %v312, %v311
      %v426 = vpack.c.bf16 %v314, %v313
      %v427 = vpack.c.bf16 %v316, %v315
      %v428 = vpack.c.bf16 %v318, %v317
      %v429 = vpack.c.bf16 %v320, %v319
      %v430 = vpack.c.bf16 %v322, %v321
      %v431 = vpack.c.bf16 %v324, %v323
      %v432 = vpack.c.bf16 %v326, %v325
      %v433 = vpack.c.bf16 %v328, %v327
      %v434 = vpack.c.bf16 %v330, %v329
      %v435 = vpack.c.bf16 %v332, %v331
      %v436 = vpack.c.bf16 %v334, %v333
      %v437 = vpack.c.bf16 %v336, %v335
      %v438 = vpack.c.bf16 %v338, %v337
      %v439 = vpack.c.bf16 %v340, %v339
      %v440 = vpack.c.bf16 %v342, %v341
      %v441 = vpack.c.bf16 %v344, %v343
      %v442 = vpack.c.bf16 %v346, %v345
      %v443 = vpack.c.bf16 %v348, %v347
      %v444 = vpack.c.bf16 %v350, %v349
      %v445 = vpack.c.bf16 %v352, %v351
      %v446 = vpack.c.bf16 %v354, %v353
      %v447 = vpack.c.bf16 %v356, %v355
      %v448 = vpack.c.bf16 %v358, %v357
      %v449 = vpack.c.bf16 %v360, %v359
      %v450 = vpack.c.bf16 %v362, %v361
      %v451 = vpack.c.bf16 %v364, %v363
      %v452 = vpack.c.bf16 %v366, %v365
      %v453 = vpack.c.bf16 %v368, %v367
      %v454 = vpack.c.bf16 %v370, %v369
      %v455 = vpack.c.bf16 %v372, %v371
      %v456 = vpack.c.bf16 %v374, %v373
      %v457 = vpack.c.bf16 %v376, %v375
      %v458 = vpack.c.bf16 %v378, %v377
      %v459 = vpack.c.bf16 %v380, %v379
      %v460 = vpack.c.bf16 %v382, %v381
      %v461 = vpack.c.bf16 %v384, %v383
      %v462 = vpack.c.bf16 %v386, %v385
      %v463 = vpack.c.bf16 %v388, %v387
      %v464 = vpack.c.bf16 %v390, %v389
      %v465 = vpack.c.bf16 %v392, %v391
      %v466 = vpack.c.bf16 %v394, %v393
      %v467 = vpack.c.bf16 %v396, %v395
      %v468 = vpack.c.bf16 %v398, %v397
      %v469 = vpack.c.bf16 %v400, %v399
      %v470 = vpack.c.bf16 %v402, %v401
      %v471 = vpack.c.bf16 %v404, %v403
      %v472 = vpack.c.bf16 %v406, %v405
      %v473 = vpack.c.bf16 %v408, %v407
      %v474 = vpack.c.bf16 %v410, %v409
      %v475 = vld [vmem:[%s1] sm:$0x3]
      %v476 = vld [vmem:[%s2] sm:$0x1]
      %v478 = vlaneseq
      %v479 = vshrl.u32 %v478, 7
      %v480 = vsub.s32 0, %v479
      %v481 = vrot.slane %v476, %v480
      %vm483 = vcmask 31744
      %v485 = vsel %vm483, %v411, 0
      %v488 = vsel %vm483, %v412, 0
      %v491 = vsel %vm483, %v413, 0
      %v494 = vsel %vm483, %v414, 0
      %v497 = vsel %vm483, %v415, 0
      %v500 = vsel %vm483, %v416, 0
      %v503 = vsel %vm483, %v417, 0
      %v506 = vsel %vm483, %v418, 0
      %v509 = vsel %vm483, %v419, 0
      %v512 = vsel %vm483, %v420, 0
      %v515 = vsel %vm483, %v421, 0
      %v518 = vsel %vm483, %v422, 0
      %v521 = vsel %vm483, %v423, 0
      %v524 = vsel %vm483, %v424, 0
      %v527 = vsel %vm483, %v425, 0
      %v530 = vsel %vm483, %v426, 0
      %v533 = vsel %vm483, %v427, 0
      %v536 = vsel %vm483, %v428, 0
      %v539 = vsel %vm483, %v429, 0
      %v542 = vsel %vm483, %v430, 0
      %v545 = vsel %vm483, %v431, 0
      %v548 = vsel %vm483, %v432, 0
      %v551 = vsel %vm483, %v433, 0
      %v554 = vsel %vm483, %v434, 0
      %v557 = vsel %vm483, %v435, 0
      %v560 = vsel %vm483, %v436, 0
      %v563 = vsel %vm483, %v437, 0
      %v566 = vsel %vm483, %v438, 0
      %v569 = vsel %vm483, %v439, 0
      %v572 = vsel %vm483, %v440, 0
      %v575 = vsel %vm483, %v441, 0
      %v578 = vsel %vm483, %v442, 0
      %v581 = vsel %vm483, %v443, 0
      %v584 = vsel %vm483, %v444, 0
      %v587 = vsel %vm483, %v445, 0
      %v590 = vsel %vm483, %v446, 0
      %v593 = vsel %vm483, %v447, 0
      %v596 = vsel %vm483, %v448, 0
      %v599 = vsel %vm483, %v449, 0
      %v602 = vsel %vm483, %v450, 0
      %v605 = vsel %vm483, %v451, 0
      %v608 = vsel %vm483, %v452, 0
      %v611 = vsel %vm483, %v453, 0
      %v614 = vsel %vm483, %v454, 0
      %v617 = vsel %vm483, %v455, 0
      %v620 = vsel %vm483, %v456, 0
      %v623 = vsel %vm483, %v457, 0
      %v626 = vsel %vm483, %v458, 0
      %v629 = vsel %vm483, %v459, 0
      %v632 = vsel %vm483, %v460, 0
      %v635 = vsel %vm483, %v461, 0
      %v638 = vsel %vm483, %v462, 0
      %v641 = vsel %vm483, %v463, 0
      %v644 = vsel %vm483, %v464, 0
      %v647 = vsel %vm483, %v465, 0
      %v650 = vsel %vm483, %v466, 0
      %v653 = vsel %vm483, %v467, 0
      %v656 = vsel %vm483, %v468, 0
      %v659 = vsel %vm483, %v469, 0
      %v662 = vsel %vm483, %v470, 0
      %v665 = vsel %vm483, %v471, 0
      %v668 = vsel %vm483, %v472, 0
      %v671 = vsel %vm483, %v473, 0
      %v674 = vsel %vm483, %v474, 0
      %vm676 = vcmask 1041408
      %v678 = vsel %vm676, %v475, 0
      %680 = vmatprep.subr.bf16.mxu0 0
      %681 = vmatpush1.bf16.msra.mxu0 %v678
      %682 = vmatprep.subr.bf16.mxu0 0
      %683 = vmatpush1.bf16.msra.mxu0 0
      %684 = vmatprep.subr.bf16.mxu0 0
      %685 = vmatpush1.bf16.msra.mxu0 0
      %686 = vmatprep.subr.bf16.mxu0 0
      %687 = vmatpush1.bf16.msra.mxu0 0
      %688 = vmatprep.subr.bf16.mxu0 0
      %689 = vmatpush1.bf16.msra.mxu0 0
      %690 = vmatprep.subr.bf16.mxu0 0
      %691 = vmatpush1.bf16.msra.mxu0 0
      %692 = vmatprep.subr.bf16.mxu0 0
      %693 = vmatpush1.bf16.msra.mxu0 0
      %694 = vmatprep.subr.bf16.mxu0 0
      %695 = vmatpush1.bf16.msra.mxu0 0
      %696 = vmatprep.subr.bf16.mxu0 0
      %697 = vmatpush1.bf16.msra.mxu0 0
      %698 = vmatprep.subr.bf16.mxu0 0
      %699 = vmatpush1.bf16.msra.mxu0 0
      %700 = vmatprep.subr.bf16.mxu0 0
      %701 = vmatpush1.bf16.msra.mxu0 0
      %702 = vmatprep.subr.bf16.mxu0 0
      %703 = vmatpush1.bf16.msra.mxu0 0
      %704 = vmatprep.subr.bf16.mxu0 0
      %705 = vmatpush1.bf16.msra.mxu0 0
      %706 = vmatprep.subr.bf16.mxu0 0
      %707 = vmatpush1.bf16.msra.mxu0 0
      %708 = vmatprep.subr.bf16.mxu0 0
      %709 = vmatpush1.bf16.msra.mxu0 0
      %710 = vmatprep.subr.bf16.mxu0 0
      %711 = vmatpush1.bf16.msra.mxu0 0
      %712 = vmatprep.mubr.bf16.mxu0 0
      %713 = vmatmul.mubr.bf16.gmra.mrb[0].mxu0 %v485
      %v714 = vpop.f32.mrb[0].mxu0
      %v715 = vadd.f32 %v481, %v714
      %v716 = vpop.f32.mrb[0].mxu0
      %v717 = vpop.f32.mrb[0].mxu0
      %v718 = vadd.f32 %v481, %v717
      %v719 = vpop.f32.mrb[0].mxu0
      %720 = vmatprep.mubr.bf16.mxu0 0
      %721 = vmatmul.mubr.bf16.gmra.mrb[0].mxu0 %v488
      %v722 = vpop.f32.mrb[0].mxu0
      %v723 = vadd.f32 %v481, %v722
      %v724 = vpop.f32.mrb[0].mxu0
      %v725 = vpop.f32.mrb[0].mxu0
      %v726 = vadd.f32 %v481, %v725
      %v727 = vpop.f32.mrb[0].mxu0
      %728 = vmatprep.mubr.bf16.mxu0 0
      %729 = vmatmul.mubr.bf16.gmra.mrb[0].mxu0 %v491
      %v730 = vpop.f32.mrb[0].mxu0
      %v731 = vadd.f32 %v481, %v730
      %v732 = vpop.f32.mrb[0].mxu0
      %v733 = vpop.f32.mrb[0].mxu0
      %v734 = vadd.f32 %v481, %v733
      %v735 = vpop.f32.mrb[0].mxu0
      %736 = vmatprep.mubr.bf16.mxu0 0
      %737 = vmatmul.mubr.bf16.gmra.mrb[0].mxu0 %v494
      %v738 = vpop.f32.mrb[0].mxu0
      %v739 = vadd.f32 %v481, %v738
      %v740 = vpop.f32.mrb[0].mxu0
      %v741 = vpop.f32.mrb[0].mxu0
      %v742 = vadd.f32 %v481, %v741
      %v743 = vpop.f32.mrb[0].mxu0
      %744 = vmatprep.mubr.bf16.mxu0 0
      %745 = vmatmul.mubr.bf16.gmra.mrb[0].mxu0 %v497
      %v746 = vpop.f32.mrb[0].mxu0
      %v747 = vadd.f32 %v481, %v746
      %v748 = vpop.f32.mrb[0].mxu0
      %v749 = vpop.f32.mrb[0].mxu0
      %v750 = vadd.f32 %v481, %v749
      %v751 = vpop.f32.mrb[0].mxu0
      %752 = vmatprep.mubr.bf16.mxu0 0
      %753 = vmatmul.mubr.bf16.gmra.mrb[0].mxu0 %v500
      %v754 = vpop.f32.mrb[0].mxu0
      %v755 = vadd.f32 %v481, %v754
      %v756 = vpop.f32.mrb[0].mxu0
      %v757 = vpop.f32.mrb[0].mxu0
      %v758 = vadd.f32 %v481, %v757
      %v759 = vpop.f32.mrb[0].mxu0
      %760 = vmatprep.mubr.bf16.mxu0 0
      %761 = vmatmul.mubr.bf16.gmra.mrb[0].mxu0 %v503
      %v762 = vpop.f32.mrb[0].mxu0
      %v763 = vadd.f32 %v481, %v762
      %v764 = vpop.f32.mrb[0].mxu0
      %v765 = vpop.f32.mrb[0].mxu0
      %v766 = vadd.f32 %v481, %v765
      %v767 = vpop.f32.mrb[0].mxu0
      %768 = vmatprep.mubr.bf16.mxu0 0
      %769 = vmatmul.mubr.bf16.gmra.mrb[0].mxu0 %v506
      %v770 = vpop.f32.mrb[0].mxu0
      %v771 = vadd.f32 %v481, %v770
      %v772 = vpop.f32.mrb[0].mxu0
      %v773 = vpop.f32.mrb[0].mxu0
      %v774 = vadd.f32 %v481, %v773
      %v775 = vpop.f32.mrb[0].mxu0
      %776 = vmatprep.mubr.bf16.mxu0 0
      %777 = vmatmul.mubr.bf16.gmra.mrb[0].mxu0 %v509
      %v778 = vpop.f32.mrb[0].mxu0
      %v779 = vadd.f32 %v481, %v778
      %v780 = vpop.f32.mrb[0].mxu0
      %v781 = vpop.f32.mrb[0].mxu0
      %v782 = vadd.f32 %v481, %v781
      %v783 = vpop.f32.mrb[0].mxu0
      %784 = vmatprep.mubr.bf16.mxu0 0
      %785 = vmatmul.mubr.bf16.gmra.mrb[0].mxu0 %v512
      %v786 = vpop.f32.mrb[0].mxu0
      %v787 = vadd.f32 %v481, %v786
      %v788 = vpop.f32.mrb[0].mxu0
      %v789 = vpop.f32.mrb[0].mxu0
      %v790 = vadd.f32 %v481, %v789
      %v791 = vpop.f32.mrb[0].mxu0
      %792 = vmatprep.mubr.bf16.mxu0 0
      %793 = vmatmul.mubr.bf16.gmra.mrb[0].mxu0 %v515
      %v794 = vpop.f32.mrb[0].mxu0
      %v795 = vadd.f32 %v481, %v794
      %v796 = vpop.f32.mrb[0].mxu0
      %v797 = vpop.f32.mrb[0].mxu0
      %v798 = vadd.f32 %v481, %v797
      %v799 = vpop.f32.mrb[0].mxu0
      %800 = vmatprep.mubr.bf16.mxu0 0
      %801 = vmatmul.mubr.bf16.gmra.mrb[0].mxu0 %v518
      %v802 = vpop.f32.mrb[0].mxu0
      %v803 = vadd.f32 %v481, %v802
      %v804 = vpop.f32.mrb[0].mxu0
      %v805 = vpop.f32.mrb[0].mxu0
      %v806 = vadd.f32 %v481, %v805
      %v807 = vpop.f32.mrb[0].mxu0
      %808 = vmatprep.mubr.bf16.mxu0 0
      %809 = vmatmul.mubr.bf16.gmra.mrb[0].mxu0 %v521
      %v810 = vpop.f32.mrb[0].mxu0
      %v811 = vadd.f32 %v481, %v810
      %v812 = vpop.f32.mrb[0].mxu0
      %v813 = vpop.f32.mrb[0].mxu0
      %v814 = vadd.f32 %v481, %v813
      %v815 = vpop.f32.mrb[0].mxu0
      %816 = vmatprep.mubr.bf16.mxu0 0
      %817 = vmatmul.mubr.bf16.gmra.mrb[0].mxu0 %v524
      %v818 = vpop.f32.mrb[0].mxu0
      %v819 = vadd.f32 %v481, %v818
      %v820 = vpop.f32.mrb[0].mxu0
      %v821 = vpop.f32.mrb[0].mxu0
      %v822 = vadd.f32 %v481, %v821
      %v823 = vpop.f32.mrb[0].mxu0
      %824 = vmatprep.mubr.bf16.mxu0 0
      %825 = vmatmul.mubr.bf16.gmra.mrb[0].mxu0 %v527
      %v826 = vpop.f32.mrb[0].mxu0
      %v827 = vadd.f32 %v481, %v826
      %v828 = vpop.f32.mrb[0].mxu0
      %v829 = vpop.f32.mrb[0].mxu0
      %v830 = vadd.f32 %v481, %v829
      %v831 = vpop.f32.mrb[0].mxu0
      %832 = vmatprep.mubr.bf16.mxu0 0
      %833 = vmatmul.mubr.bf16.gmra.mrb[0].mxu0 %v530
      %v834 = vpop.f32.mrb[0].mxu0
      %v835 = vadd.f32 %v481, %v834
      %v836 = vpop.f32.mrb[0].mxu0
      %v837 = vpop.f32.mrb[0].mxu0
      %v838 = vadd.f32 %v481, %v837
      %v839 = vpop.f32.mrb[0].mxu0
      %840 = vmatprep.mubr.bf16.mxu0 0
      %841 = vmatmul.mubr.bf16.gmra.mrb[0].mxu0 %v533
      %v842 = vpop.f32.mrb[0].mxu0
      %v843 = vadd.f32 %v481, %v842
      %v844 = vpop.f32.mrb[0].mxu0
      %v845 = vpop.f32.mrb[0].mxu0
      %v846 = vadd.f32 %v481, %v845
      %v847 = vpop.f32.mrb[0].mxu0
      %848 = vmatprep.mubr.bf16.mxu0 0
      %849 = vmatmul.mubr.bf16.gmra.mrb[0].mxu0 %v536
      %v850 = vpop.f32.mrb[0].mxu0
      %v851 = vadd.f32 %v481, %v850
      %v852 = vpop.f32.mrb[0].mxu0
      %v853 = vpop.f32.mrb[0].mxu0
      %v854 = vadd.f32 %v481, %v853
      %v855 = vpop.f32.mrb[0].mxu0
      %856 = vmatprep.mubr.bf16.mxu0 0
      %857 = vmatmul.mubr.bf16.gmra.mrb[0].mxu0 %v539
      %v858 = vpop.f32.mrb[0].mxu0
      %v859 = vadd.f32 %v481, %v858
      %v860 = vpop.f32.mrb[0].mxu0
      %v861 = vpop.f32.mrb[0].mxu0
      %v862 = vadd.f32 %v481, %v861
      %v863 = vpop.f32.mrb[0].mxu0
      %864 = vmatprep.mubr.bf16.mxu0 0
      %865 = vmatmul.mubr.bf16.gmra.mrb[0].mxu0 %v542
      %v866 = vpop.f32.mrb[0].mxu0
      %v867 = vadd.f32 %v481, %v866
      %v868 = vpop.f32.mrb[0].mxu0
      %v869 = vpop.f32.mrb[0].mxu0
      %v870 = vadd.f32 %v481, %v869
      %v871 = vpop.f32.mrb[0].mxu0
      %872 = vmatprep.mubr.bf16.mxu0 0
      %873 = vmatmul.mubr.bf16.gmra.mrb[0].mxu0 %v545
      %v874 = vpop.f32.mrb[0].mxu0
      %v875 = vadd.f32 %v481, %v874
      %v876 = vpop.f32.mrb[0].mxu0
      %v877 = vpop.f32.mrb[0].mxu0
      %v878 = vadd.f32 %v481, %v877
      %v879 = vpop.f32.mrb[0].mxu0
      %880 = vmatprep.mubr.bf16.mxu0 0
      %881 = vmatmul.mubr.bf16.gmra.mrb[0].mxu0 %v548
      %v882 = vpop.f32.mrb[0].mxu0
      %v883 = vadd.f32 %v481, %v882
      %v884 = vpop.f32.mrb[0].mxu0
      %v885 = vpop.f32.mrb[0].mxu0
      %v886 = vadd.f32 %v481, %v885
      %v887 = vpop.f32.mrb[0].mxu0
      %888 = vmatprep.mubr.bf16.mxu0 0
      %889 = vmatmul.mubr.bf16.gmra.mrb[0].mxu0 %v551
      %v890 = vpop.f32.mrb[0].mxu0
      %v891 = vadd.f32 %v481, %v890
      %v892 = vpop.f32.mrb[0].mxu0
      %v893 = vpop.f32.mrb[0].mxu0
      %v894 = vadd.f32 %v481, %v893
      %v895 = vpop.f32.mrb[0].mxu0
      %896 = vmatprep.mubr.bf16.mxu0 0
      %897 = vmatmul.mubr.bf16.gmra.mrb[0].mxu0 %v554
      %v898 = vpop.f32.mrb[0].mxu0
      %v899 = vadd.f32 %v481, %v898
      %v900 = vpop.f32.mrb[0].mxu0
      %v901 = vpop.f32.mrb[0].mxu0
      %v902 = vadd.f32 %v481, %v901
      %v903 = vpop.f32.mrb[0].mxu0
      %904 = vmatprep.mubr.bf16.mxu0 0
      %905 = vmatmul.mubr.bf16.gmra.mrb[0].mxu0 %v557
      %v906 = vpop.f32.mrb[0].mxu0
      %v907 = vadd.f32 %v481, %v906
      %v908 = vpop.f32.mrb[0].mxu0
      %v909 = vpop.f32.mrb[0].mxu0
      %v910 = vadd.f32 %v481, %v909
      %v911 = vpop.f32.mrb[0].mxu0
      %912 = vmatprep.mubr.bf16.mxu0 0
      %913 = vmatmul.mubr.bf16.gmra.mrb[0].mxu0 %v560
      %v914 = vpop.f32.mrb[0].mxu0
      %v915 = vadd.f32 %v481, %v914
      %v916 = vpop.f32.mrb[0].mxu0
      %v917 = vpop.f32.mrb[0].mxu0
      %v918 = vadd.f32 %v481, %v917
      %v919 = vpop.f32.mrb[0].mxu0
      %920 = vmatprep.mubr.bf16.mxu0 0
      %921 = vmatmul.mubr.bf16.gmra.mrb[0].mxu0 %v563
      %v922 = vpop.f32.mrb[0].mxu0
      %v923 = vadd.f32 %v481, %v922
      %v924 = vpop.f32.mrb[0].mxu0
      %v925 = vpop.f32.mrb[0].mxu0
      %v926 = vadd.f32 %v481, %v925
      %v927 = vpop.f32.mrb[0].mxu0
      %928 = vmatprep.mubr.bf16.mxu0 0
      %929 = vmatmul.mubr.bf16.gmra.mrb[0].mxu0 %v566
      %v930 = vpop.f32.mrb[0].mxu0
      %v931 = vadd.f32 %v481, %v930
      %v932 = vpop.f32.mrb[0].mxu0
      %v933 = vpop.f32.mrb[0].mxu0
      %v934 = vadd.f32 %v481, %v933
      %v935 = vpop.f32.mrb[0].mxu0
      %936 = vmatprep.mubr.bf16.mxu0 0
      %937 = vmatmul.mubr.bf16.gmra.mrb[0].mxu0 %v569
      %v938 = vpop.f32.mrb[0].mxu0
      %v939 = vadd.f32 %v481, %v938
      %v940 = vpop.f32.mrb[0].mxu0
      %v941 = vpop.f32.mrb[0].mxu0
      %v942 = vadd.f32 %v481, %v941
      %v943 = vpop.f32.mrb[0].mxu0
      %944 = vmatprep.mubr.bf16.mxu0 0
      %945 = vmatmul.mubr.bf16.gmra.mrb[0].mxu0 %v572
      %v946 = vpop.f32.mrb[0].mxu0
      %v947 = vadd.f32 %v481, %v946
      %v948 = vpop.f32.mrb[0].mxu0
      %v949 = vpop.f32.mrb[0].mxu0
      %v950 = vadd.f32 %v481, %v949
      %v951 = vpop.f32.mrb[0].mxu0
      %952 = vmatprep.mubr.bf16.mxu0 0
      %953 = vmatmul.mubr.bf16.gmra.mrb[0].mxu0 %v575
      %v954 = vpop.f32.mrb[0].mxu0
      %v955 = vadd.f32 %v481, %v954
      %v956 = vpop.f32.mrb[0].mxu0
      %v957 = vpop.f32.mrb[0].mxu0
      %v958 = vadd.f32 %v481, %v957
      %v959 = vpop.f32.mrb[0].mxu0
      %960 = vmatprep.mubr.bf16.mxu0 0
      %961 = vmatmul.mubr.bf16.gmra.mrb[0].mxu0 %v578
      %v962 = vpop.f32.mrb[0].mxu0
      %v963 = vadd.f32 %v481, %v962
      %v964 = vpop.f32.mrb[0].mxu0
      %v965 = vpop.f32.mrb[0].mxu0
      %v966 = vadd.f32 %v481, %v965
      %v967 = vpop.f32.mrb[0].mxu0
      %968 = vmatprep.mubr.bf16.mxu0 0
      %969 = vmatmul.mubr.bf16.gmra.mrb[0].mxu0 %v581
      %v970 = vpop.f32.mrb[0].mxu0
      %v971 = vadd.f32 %v481, %v970
      %v972 = vpop.f32.mrb[0].mxu0
      %v973 = vpop.f32.mrb[0].mxu0
      %v974 = vadd.f32 %v481, %v973
      %v975 = vpop.f32.mrb[0].mxu0
      %976 = vmatprep.mubr.bf16.mxu0 0
      %977 = vmatmul.mubr.bf16.gmra.mrb[0].mxu0 %v584
      %v978 = vpop.f32.mrb[0].mxu0
      %v979 = vadd.f32 %v481, %v978
      %v980 = vpop.f32.mrb[0].mxu0
      %v981 = vpop.f32.mrb[0].mxu0
      %v982 = vadd.f32 %v481, %v981
      %v983 = vpop.f32.mrb[0].mxu0
      %984 = vmatprep.mubr.bf16.mxu0 0
      %985 = vmatmul.mubr.bf16.gmra.mrb[0].mxu0 %v587
      %v986 = vpop.f32.mrb[0].mxu0
      %v987 = vadd.f32 %v481, %v986
      %v988 = vpop.f32.mrb[0].mxu0
      %v989 = vpop.f32.mrb[0].mxu0
      %v990 = vadd.f32 %v481, %v989
      %v991 = vpop.f32.mrb[0].mxu0
      %992 = vmatprep.mubr.bf16.mxu0 0
      %993 = vmatmul.mubr.bf16.gmra.mrb[0].mxu0 %v590
      %v994 = vpop.f32.mrb[0].mxu0
      %v995 = vadd.f32 %v481, %v994
      %v996 = vpop.f32.mrb[0].mxu0
      %v997 = vpop.f32.mrb[0].mxu0
      %v998 = vadd.f32 %v481, %v997
      %v999 = vpop.f32.mrb[0].mxu0
      %1000 = vmatprep.mubr.bf16.mxu0 0
      %1001 = vmatmul.mubr.bf16.gmra.mrb[0].mxu0 %v593
      %v1002 = vpop.f32.mrb[0].mxu0
      %v1003 = vadd.f32 %v481, %v1002
      %v1004 = vpop.f32.mrb[0].mxu0
      %v1005 = vpop.f32.mrb[0].mxu0
      %v1006 = vadd.f32 %v481, %v1005
      %v1007 = vpop.f32.mrb[0].mxu0
      %1008 = vmatprep.mubr.bf16.mxu0 0
      %1009 = vmatmul.mubr.bf16.gmra.mrb[0].mxu0 %v596
      %v1010 = vpop.f32.mrb[0].mxu0
      %v1011 = vadd.f32 %v481, %v1010
      %v1012 = vpop.f32.mrb[0].mxu0
      %v1013 = vpop.f32.mrb[0].mxu0
      %v1014 = vadd.f32 %v481, %v1013
      %v1015 = vpop.f32.mrb[0].mxu0
      %1016 = vmatprep.mubr.bf16.mxu0 0
      %1017 = vmatmul.mubr.bf16.gmra.mrb[0].mxu0 %v599
      %v1018 = vpop.f32.mrb[0].mxu0
      %v1019 = vadd.f32 %v481, %v1018
      %v1020 = vpop.f32.mrb[0].mxu0
      %v1021 = vpop.f32.mrb[0].mxu0
      %v1022 = vadd.f32 %v481, %v1021
      %v1023 = vpop.f32.mrb[0].mxu0
      %1024 = vmatprep.mubr.bf16.mxu0 0
      %1025 = vmatmul.mubr.bf16.gmra.mrb[0].mxu0 %v602
      %v1026 = vpop.f32.mrb[0].mxu0
      %v1027 = vadd.f32 %v481, %v1026
      %v1028 = vpop.f32.mrb[0].mxu0
      %v1029 = vpop.f32.mrb[0].mxu0
      %v1030 = vadd.f32 %v481, %v1029
      %v1031 = vpop.f32.mrb[0].mxu0
      %1032 = vmatprep.mubr.bf16.mxu0 0
      %1033 = vmatmul.mubr.bf16.gmra.mrb[0].mxu0 %v605
      %v1034 = vpop.f32.mrb[0].mxu0
      %v1035 = vadd.f32 %v481, %v1034
      %v1036 = vpop.f32.mrb[0].mxu0
      %v1037 = vpop.f32.mrb[0].mxu0
      %v1038 = vadd.f32 %v481, %v1037
      %v1039 = vpop.f32.mrb[0].mxu0
      %1040 = vmatprep.mubr.bf16.mxu0 0
      %1041 = vmatmul.mubr.bf16.gmra.mrb[0].mxu0 %v608
      %v1042 = vpop.f32.mrb[0].mxu0
      %v1043 = vadd.f32 %v481, %v1042
      %v1044 = vpop.f32.mrb[0].mxu0
      %v1045 = vpop.f32.mrb[0].mxu0
      %v1046 = vadd.f32 %v481, %v1045
      %v1047 = vpop.f32.mrb[0].mxu0
      %1048 = vmatprep.mubr.bf16.mxu0 0
      %1049 = vmatmul.mubr.bf16.gmra.mrb[0].mxu0 %v611
      %v1050 = vpop.f32.mrb[0].mxu0
      %v1051 = vadd.f32 %v481, %v1050
      %v1052 = vpop.f32.mrb[0].mxu0
      %v1053 = vpop.f32.mrb[0].mxu0
      %v1054 = vadd.f32 %v481, %v1053
      %v1055 = vpop.f32.mrb[0].mxu0
      %1056 = vmatprep.mubr.bf16.mxu0 0
      %1057 = vmatmul.mubr.bf16.gmra.mrb[0].mxu0 %v614
      %v1058 = vpop.f32.mrb[0].mxu0
      %v1059 = vadd.f32 %v481, %v1058
      %v1060 = vpop.f32.mrb[0].mxu0
      %v1061 = vpop.f32.mrb[0].mxu0
      %v1062 = vadd.f32 %v481, %v1061
      %v1063 = vpop.f32.mrb[0].mxu0
      %1064 = vmatprep.mubr.bf16.mxu0 0
      %1065 = vmatmul.mubr.bf16.gmra.mrb[0].mxu0 %v617
      %v1066 = vpop.f32.mrb[0].mxu0
      %v1067 = vadd.f32 %v481, %v1066
      %v1068 = vpop.f32.mrb[0].mxu0
      %v1069 = vpop.f32.mrb[0].mxu0
      %v1070 = vadd.f32 %v481, %v1069
      %v1071 = vpop.f32.mrb[0].mxu0
      %1072 = vmatprep.mubr.bf16.mxu0 0
      %1073 = vmatmul.mubr.bf16.gmra.mrb[0].mxu0 %v620
      %v1074 = vpop.f32.mrb[0].mxu0
      %v1075 = vadd.f32 %v481, %v1074
      %v1076 = vpop.f32.mrb[0].mxu0
      %v1077 = vpop.f32.mrb[0].mxu0
      %v1078 = vadd.f32 %v481, %v1077
      %v1079 = vpop.f32.mrb[0].mxu0
      %1080 = vmatprep.mubr.bf16.mxu0 0
      %1081 = vmatmul.mubr.bf16.gmra.mrb[0].mxu0 %v623
      %v1082 = vpop.f32.mrb[0].mxu0
      %v1083 = vadd.f32 %v481, %v1082
      %v1084 = vpop.f32.mrb[0].mxu0
      %v1085 = vpop.f32.mrb[0].mxu0
      %v1086 = vadd.f32 %v481, %v1085
      %v1087 = vpop.f32.mrb[0].mxu0
      %1088 = vmatprep.mubr.bf16.mxu0 0
      %1089 = vmatmul.mubr.bf16.gmra.mrb[0].mxu0 %v626
      %v1090 = vpop.f32.mrb[0].mxu0
      %v1091 = vadd.f32 %v481, %v1090
      %v1092 = vpop.f32.mrb[0].mxu0
      %v1093 = vpop.f32.mrb[0].mxu0
      %v1094 = vadd.f32 %v481, %v1093
      %v1095 = vpop.f32.mrb[0].mxu0
      %1096 = vmatprep.mubr.bf16.mxu0 0
      %1097 = vmatmul.mubr.bf16.gmra.mrb[0].mxu0 %v629
      %v1098 = vpop.f32.mrb[0].mxu0
      %v1099 = vadd.f32 %v481, %v1098
      %v1100 = vpop.f32.mrb[0].mxu0
      %v1101 = vpop.f32.mrb[0].mxu0
      %v1102 = vadd.f32 %v481, %v1101
      %v1103 = vpop.f32.mrb[0].mxu0
      %1104 = vmatprep.mubr.bf16.mxu0 0
      %1105 = vmatmul.mubr.bf16.gmra.mrb[0].mxu0 %v632
      %v1106 = vpop.f32.mrb[0].mxu0
      %v1107 = vadd.f32 %v481, %v1106
      %v1108 = vpop.f32.mrb[0].mxu0
      %v1109 = vpop.f32.mrb[0].mxu0
      %v1110 = vadd.f32 %v481, %v1109
      %v1111 = vpop.f32.mrb[0].mxu0
      %1112 = vmatprep.mubr.bf16.mxu0 0
      %1113 = vmatmul.mubr.bf16.gmra.mrb[0].mxu0 %v635
      %v1114 = vpop.f32.mrb[0].mxu0
      %v1115 = vadd.f32 %v481, %v1114
      %v1116 = vpop.f32.mrb[0].mxu0
      %v1117 = vpop.f32.mrb[0].mxu0
      %v1118 = vadd.f32 %v481, %v1117
      %v1119 = vpop.f32.mrb[0].mxu0
      %1120 = vmatprep.mubr.bf16.mxu0 0
      %1121 = vmatmul.mubr.bf16.gmra.mrb[0].mxu0 %v638
      %v1122 = vpop.f32.mrb[0].mxu0
      %v1123 = vadd.f32 %v481, %v1122
      %v1124 = vpop.f32.mrb[0].mxu0
      %v1125 = vpop.f32.mrb[0].mxu0
      %v1126 = vadd.f32 %v481, %v1125
      %v1127 = vpop.f32.mrb[0].mxu0
      %1128 = vmatprep.mubr.bf16.mxu0 0
      %1129 = vmatmul.mubr.bf16.gmra.mrb[0].mxu0 %v641
      %v1130 = vpop.f32.mrb[0].mxu0
      %v1131 = vadd.f32 %v481, %v1130
      %v1132 = vpop.f32.mrb[0].mxu0
      %v1133 = vpop.f32.mrb[0].mxu0
      %v1134 = vadd.f32 %v481, %v1133
      %v1135 = vpop.f32.mrb[0].mxu0
      %1136 = vmatprep.mubr.bf16.mxu0 0
      %1137 = vmatmul.mubr.bf16.gmra.mrb[0].mxu0 %v644
      %v1138 = vpop.f32.mrb[0].mxu0
      %v1139 = vadd.f32 %v481, %v1138
      %v1140 = vpop.f32.mrb[0].mxu0
      %v1141 = vpop.f32.mrb[0].mxu0
      %v1142 = vadd.f32 %v481, %v1141
      %v1143 = vpop.f32.mrb[0].mxu0
      %1144 = vmatprep.mubr.bf16.mxu0 0
      %1145 = vmatmul.mubr.bf16.gmra.mrb[0].mxu0 %v647
      %v1146 = vpop.f32.mrb[0].mxu0
      %v1147 = vadd.f32 %v481, %v1146
      %v1148 = vpop.f32.mrb[0].mxu0
      %v1149 = vpop.f32.mrb[0].mxu0
      %v1150 = vadd.f32 %v481, %v1149
      %v1151 = vpop.f32.mrb[0].mxu0
      %1152 = vmatprep.mubr.bf16.mxu0 0
      %1153 = vmatmul.mubr.bf16.gmra.mrb[0].mxu0 %v650
      %v1154 = vpop.f32.mrb[0].mxu0
      %v1155 = vadd.f32 %v481, %v1154
      %v1156 = vpop.f32.mrb[0].mxu0
      %v1157 = vpop.f32.mrb[0].mxu0
      %v1158 = vadd.f32 %v481, %v1157
      %v1159 = vpop.f32.mrb[0].mxu0
      %1160 = vmatprep.mubr.bf16.mxu0 0
      %1161 = vmatmul.mubr.bf16.gmra.mrb[0].mxu0 %v653
      %v1162 = vpop.f32.mrb[0].mxu0
      %v1163 = vadd.f32 %v481, %v1162
      %v1164 = vpop.f32.mrb[0].mxu0
      %v1165 = vpop.f32.mrb[0].mxu0
      %v1166 = vadd.f32 %v481, %v1165
      %v1167 = vpop.f32.mrb[0].mxu0
      %1168 = vmatprep.mubr.bf16.mxu0 0
      %1169 = vmatmul.mubr.bf16.gmra.mrb[0].mxu0 %v656
      %v1170 = vpop.f32.mrb[0].mxu0
      %v1171 = vadd.f32 %v481, %v1170
      %v1172 = vpop.f32.mrb[0].mxu0
      %v1173 = vpop.f32.mrb[0].mxu0
      %v1174 = vadd.f32 %v481, %v1173
      %v1175 = vpop.f32.mrb[0].mxu0
      %1176 = vmatprep.mubr.bf16.mxu0 0
      %1177 = vmatmul.mubr.bf16.gmra.mrb[0].mxu0 %v659
      %v1178 = vpop.f32.mrb[0].mxu0
      %v1179 = vadd.f32 %v481, %v1178
      %v1180 = vpop.f32.mrb[0].mxu0
      %v1181 = vpop.f32.mrb[0].mxu0
      %v1182 = vadd.f32 %v481, %v1181
      %v1183 = vpop.f32.mrb[0].mxu0
      %1184 = vmatprep.mubr.bf16.mxu0 0
      %1185 = vmatmul.mubr.bf16.gmra.mrb[0].mxu0 %v662
      %v1186 = vpop.f32.mrb[0].mxu0
      %v1187 = vadd.f32 %v481, %v1186
      %v1188 = vpop.f32.mrb[0].mxu0
      %v1189 = vpop.f32.mrb[0].mxu0
      %v1190 = vadd.f32 %v481, %v1189
      %v1191 = vpop.f32.mrb[0].mxu0
      %1192 = vmatprep.mubr.bf16.mxu0 0
      %1193 = vmatmul.mubr.bf16.gmra.mrb[0].mxu0 %v665
      %v1194 = vpop.f32.mrb[0].mxu0
      %v1195 = vadd.f32 %v481, %v1194
      %v1196 = vpop.f32.mrb[0].mxu0
      %v1197 = vpop.f32.mrb[0].mxu0
      %v1198 = vadd.f32 %v481, %v1197
      %v1199 = vpop.f32.mrb[0].mxu0
      %1200 = vmatprep.mubr.bf16.mxu0 0
      %1201 = vmatmul.mubr.bf16.gmra.mrb[0].mxu0 %v668
      %v1202 = vpop.f32.mrb[0].mxu0
      %v1203 = vadd.f32 %v481, %v1202
      %v1204 = vpop.f32.mrb[0].mxu0
      %v1205 = vpop.f32.mrb[0].mxu0
      %v1206 = vadd.f32 %v481, %v1205
      %v1207 = vpop.f32.mrb[0].mxu0
      %1208 = vmatprep.mubr.bf16.mxu0 0
      %1209 = vmatmul.mubr.bf16.gmra.mrb[0].mxu0 %v671
      %v1210 = vpop.f32.mrb[0].mxu0
      %v1211 = vadd.f32 %v481, %v1210
      %v1212 = vpop.f32.mrb[0].mxu0
      %v1213 = vpop.f32.mrb[0].mxu0
      %v1214 = vadd.f32 %v481, %v1213
      %v1215 = vpop.f32.mrb[0].mxu0
      %1216 = vmatprep.mubr.bf16.mxu0 0
      %1217 = vmatmul.mubr.bf16.gmra.mrb[0].mxu0 %v674
      %v1218 = vpop.f32.mrb[0].mxu0
      %v1219 = vadd.f32 %v481, %v1218
      %v1220 = vpop.f32.mrb[0].mxu0
      %v1221 = vpop.f32.mrb[0].mxu0
      %v1222 = vadd.f32 %v481, %v1221
      %v1223 = vpop.f32.mrb[0].mxu0
      %1224 = vdwg.mxu0
      %v1225 = vmax.f32 %v715, 0.0
      %v1226 = vmax.f32 %v718, 0.0
      %v1227 = vmax.f32 %v723, 0.0
      %v1228 = vmax.f32 %v726, 0.0
      %v1229 = vmax.f32 %v731, 0.0
      %v1230 = vmax.f32 %v734, 0.0
      %v1231 = vmax.f32 %v739, 0.0
      %v1232 = vmax.f32 %v742, 0.0
      %v1233 = vmax.f32 %v747, 0.0
      %v1234 = vmax.f32 %v750, 0.0
      %v1235 = vmax.f32 %v755, 0.0
      %v1236 = vmax.f32 %v758, 0.0
      %v1237 = vmax.f32 %v763, 0.0
      %v1238 = vmax.f32 %v766, 0.0
      %v1239 = vmax.f32 %v771, 0.0
      %v1240 = vmax.f32 %v774, 0.0
      %v1241 = vmax.f32 %v779, 0.0
      %v1242 = vmax.f32 %v782, 0.0
      %v1243 = vmax.f32 %v787, 0.0
      %v1244 = vmax.f32 %v790, 0.0
      %v1245 = vmax.f32 %v795, 0.0
      %v1246 = vmax.f32 %v798, 0.0
      %v1247 = vmax.f32 %v803, 0.0
      %v1248 = vmax.f32 %v806, 0.0
      %v1249 = vmax.f32 %v811, 0.0
      %v1250 = vmax.f32 %v814, 0.0
      %v1251 = vmax.f32 %v819, 0.0
      %v1252 = vmax.f32 %v822, 0.0
      %v1253 = vmax.f32 %v827, 0.0
      %v1254 = vmax.f32 %v830, 0.0
      %v1255 = vmax.f32 %v835, 0.0
      %v1256 = vmax.f32 %v838, 0.0
      %v1257 = vmax.f32 %v843, 0.0
      %v1258 = vmax.f32 %v846, 0.0
      %v1259 = vmax.f32 %v851, 0.0
      %v1260 = vmax.f32 %v854, 0.0
      %v1261 = vmax.f32 %v859, 0.0
      %v1262 = vmax.f32 %v862, 0.0
      %v1263 = vmax.f32 %v867, 0.0
      %v1264 = vmax.f32 %v870, 0.0
      %v1265 = vmax.f32 %v875, 0.0
      %v1266 = vmax.f32 %v878, 0.0
      %v1267 = vmax.f32 %v883, 0.0
      %v1268 = vmax.f32 %v886, 0.0
      %v1269 = vmax.f32 %v891, 0.0
      %v1270 = vmax.f32 %v894, 0.0
      %v1271 = vmax.f32 %v899, 0.0
      %v1272 = vmax.f32 %v902, 0.0
      %v1273 = vmax.f32 %v907, 0.0
      %v1274 = vmax.f32 %v910, 0.0
      %v1275 = vmax.f32 %v915, 0.0
      %v1276 = vmax.f32 %v918, 0.0
      %v1277 = vmax.f32 %v923, 0.0
      %v1278 = vmax.f32 %v926, 0.0
      %v1279 = vmax.f32 %v931, 0.0
      %v1280 = vmax.f32 %v934, 0.0
      %v1281 = vmax.f32 %v939, 0.0
      %v1282 = vmax.f32 %v942, 0.0
      %v1283 = vmax.f32 %v947, 0.0
      %v1284 = vmax.f32 %v950, 0.0
      %v1285 = vmax.f32 %v955, 0.0
      %v1286 = vmax.f32 %v958, 0.0
      %v1287 = vmax.f32 %v963, 0.0
      %v1288 = vmax.f32 %v966, 0.0
      %v1289 = vmax.f32 %v971, 0.0
      %v1290 = vmax.f32 %v974, 0.0
      %v1291 = vmax.f32 %v979, 0.0
      %v1292 = vmax.f32 %v982, 0.0
      %v1293 = vmax.f32 %v987, 0.0
      %v1294 = vmax.f32 %v990, 0.0
      %v1295 = vmax.f32 %v995, 0.0
      %v1296 = vmax.f32 %v998, 0.0
      %v1297 = vmax.f32 %v1003, 0.0
      %v1298 = vmax.f32 %v1006, 0.0
      %v1299 = vmax.f32 %v1011, 0.0
      %v1300 = vmax.f32 %v1014, 0.0
      %v1301 = vmax.f32 %v1019, 0.0
      %v1302 = vmax.f32 %v1022, 0.0
      %v1303 = vmax.f32 %v1027, 0.0
      %v1304 = vmax.f32 %v1030, 0.0
      %v1305 = vmax.f32 %v1035, 0.0
      %v1306 = vmax.f32 %v1038, 0.0
      %v1307 = vmax.f32 %v1043, 0.0
      %v1308 = vmax.f32 %v1046, 0.0
      %v1309 = vmax.f32 %v1051, 0.0
      %v1310 = vmax.f32 %v1054, 0.0
      %v1311 = vmax.f32 %v1059, 0.0
      %v1312 = vmax.f32 %v1062, 0.0
      %v1313 = vmax.f32 %v1067, 0.0
      %v1314 = vmax.f32 %v1070, 0.0
      %v1315 = vmax.f32 %v1075, 0.0
      %v1316 = vmax.f32 %v1078, 0.0
      %v1317 = vmax.f32 %v1083, 0.0
      %v1318 = vmax.f32 %v1086, 0.0
      %v1319 = vmax.f32 %v1091, 0.0
      %v1320 = vmax.f32 %v1094, 0.0
      %v1321 = vmax.f32 %v1099, 0.0
      %v1322 = vmax.f32 %v1102, 0.0
      %v1323 = vmax.f32 %v1107, 0.0
      %v1324 = vmax.f32 %v1110, 0.0
      %v1325 = vmax.f32 %v1115, 0.0
      %v1326 = vmax.f32 %v1118, 0.0
      %v1327 = vmax.f32 %v1123, 0.0
      %v1328 = vmax.f32 %v1126, 0.0
      %v1329 = vmax.f32 %v1131, 0.0
      %v1330 = vmax.f32 %v1134, 0.0
      %v1331 = vmax.f32 %v1139, 0.0
      %v1332 = vmax.f32 %v1142, 0.0
      %v1333 = vmax.f32 %v1147, 0.0
      %v1334 = vmax.f32 %v1150, 0.0
      %v1335 = vmax.f32 %v1155, 0.0
      %v1336 = vmax.f32 %v1158, 0.0
      %v1337 = vmax.f32 %v1163, 0.0
      %v1338 = vmax.f32 %v1166, 0.0
      %v1339 = vmax.f32 %v1171, 0.0
      %v1340 = vmax.f32 %v1174, 0.0
      %v1341 = vmax.f32 %v1179, 0.0
      %v1342 = vmax.f32 %v1182, 0.0
      %v1343 = vmax.f32 %v1187, 0.0
      %v1344 = vmax.f32 %v1190, 0.0
      %v1345 = vmax.f32 %v1195, 0.0
      %v1346 = vmax.f32 %v1198, 0.0
      %v1347 = vmax.f32 %v1203, 0.0
      %v1348 = vmax.f32 %v1206, 0.0
      %v1349 = vmax.f32 %v1211, 0.0
      %v1350 = vmax.f32 %v1214, 0.0
      %v1351 = vmax.f32 %v1219, 0.0
      %v1352 = vmax.f32 %v1222, 0.0
      %v1353 = vpack.c.bf16 %v1226, %v1225
      %v1354 = vpack.c.bf16 %v1228, %v1227
      %v1355 = vpack.c.bf16 %v1230, %v1229
      %v1356 = vpack.c.bf16 %v1232, %v1231
      %v1357 = vpack.c.bf16 %v1234, %v1233
      %v1358 = vpack.c.bf16 %v1236, %v1235
      %v1359 = vpack.c.bf16 %v1238, %v1237
      %v1360 = vpack.c.bf16 %v1240, %v1239
      %v1361 = vpack.c.bf16 %v1242, %v1241
      %v1362 = vpack.c.bf16 %v1244, %v1243
      %v1363 = vpack.c.bf16 %v1246, %v1245
      %v1364 = vpack.c.bf16 %v1248, %v1247
      %v1365 = vpack.c.bf16 %v1250, %v1249
      %v1366 = vpack.c.bf16 %v1252, %v1251
      %v1367 = vpack.c.bf16 %v1254, %v1253
      %v1368 = vpack.c.bf16 %v1256, %v1255
      %v1369 = vpack.c.bf16 %v1258, %v1257
      %v1370 = vpack.c.bf16 %v1260, %v1259
      %v1371 = vpack.c.bf16 %v1262, %v1261
      %v1372 = vpack.c.bf16 %v1264, %v1263
      %v1373 = vpack.c.bf16 %v1266, %v1265
      %v1374 = vpack.c.bf16 %v1268, %v1267
      %v1375 = vpack.c.bf16 %v1270, %v1269
      %v1376 = vpack.c.bf16 %v1272, %v1271
      %v1377 = vpack.c.bf16 %v1274, %v1273
      %v1378 = vpack.c.bf16 %v1276, %v1275
      %v1379 = vpack.c.bf16 %v1278, %v1277
      %v1380 = vpack.c.bf16 %v1280, %v1279
      %v1381 = vpack.c.bf16 %v1282, %v1281
      %v1382 = vpack.c.bf16 %v1284, %v1283
      %v1383 = vpack.c.bf16 %v1286, %v1285
      %v1384 = vpack.c.bf16 %v1288, %v1287
      %v1385 = vpack.c.bf16 %v1290, %v1289
      %v1386 = vpack.c.bf16 %v1292, %v1291
      %v1387 = vpack.c.bf16 %v1294, %v1293
      %v1388 = vpack.c.bf16 %v1296, %v1295
      %v1389 = vpack.c.bf16 %v1298, %v1297
      %v1390 = vpack.c.bf16 %v1300, %v1299
      %v1391 = vpack.c.bf16 %v1302, %v1301
      %v1392 = vpack.c.bf16 %v1304, %v1303
      %v1393 = vpack.c.bf16 %v1306, %v1305
      %v1394 = vpack.c.bf16 %v1308, %v1307
      %v1395 = vpack.c.bf16 %v1310, %v1309
      %v1396 = vpack.c.bf16 %v1312, %v1311
      %v1397 = vpack.c.bf16 %v1314, %v1313
      %v1398 = vpack.c.bf16 %v1316, %v1315
      %v1399 = vpack.c.bf16 %v1318, %v1317
      %v1400 = vpack.c.bf16 %v1320, %v1319
      %v1401 = vpack.c.bf16 %v1322, %v1321
      %v1402 = vpack.c.bf16 %v1324, %v1323
      %v1403 = vpack.c.bf16 %v1326, %v1325
      %v1404 = vpack.c.bf16 %v1328, %v1327
      %v1405 = vpack.c.bf16 %v1330, %v1329
      %v1406 = vpack.c.bf16 %v1332, %v1331
      %v1407 = vpack.c.bf16 %v1334, %v1333
      %v1408 = vpack.c.bf16 %v1336, %v1335
      %v1409 = vpack.c.bf16 %v1338, %v1337
      %v1410 = vpack.c.bf16 %v1340, %v1339
      %v1411 = vpack.c.bf16 %v1342, %v1341
      %v1412 = vpack.c.bf16 %v1344, %v1343
      %v1413 = vpack.c.bf16 %v1346, %v1345
      %v1414 = vpack.c.bf16 %v1348, %v1347
      %v1415 = vpack.c.bf16 %v1350, %v1349
      %v1416 = vpack.c.bf16 %v1352, %v1351
      %v1417 = vld [vmem:[%s3] sm:$0xf]
      %v1418 = vld [vmem:[%s3 + $0x4] sm:$0xf]
      %v1419 = vld [vmem:[%s3 + $0x8] sm:$0xf]
      %v1420 = vld [vmem:[%s3 + $0xc] sm:$0xf]
      %v1421 = vld [vmem:[%s3 + $0x10] sm:$0xf]
      %v1422 = vld [vmem:[%s3 + $0x14] sm:$0xf]
      %v1423 = vld [vmem:[%s3 + $0x18] sm:$0xf]
      %v1424 = vld [vmem:[%s3 + $0x1c] sm:$0xf]
      %v1425 = vld [vmem:[%s4] sm:$0x1]
      %v1427 = vlaneseq
      %v1428 = vshrl.u32 %v1427, 7
      %v1429 = vsub.s32 0, %v1428
      %v1430 = vrot.slane %v1425, %v1429
      %v1440 = vunpack.c.l.b16 %v1417
      %v1441 = vunpack.c.l.b16 %v1418
      %v1442 = vunpack.c.l.b16 %v1419
      %v1443 = vunpack.c.l.b16 %v1420
      %v1444 = vunpack.c.l.b16 %v1421
      %v1445 = vunpack.c.l.b16 %v1422
      %v1446 = vunpack.c.l.b16 %v1423
      %v1447 = vunpack.c.l.b16 %v1424
      %v1448 = vpack.c.b16 %v1441, %v1440
      %v1449 = vpack.c.b16 %v1443, %v1442
      %v1450 = vpack.c.b16 %v1445, %v1444
      %v1451 = vpack.c.b16 %v1447, %v1446
      %vm1456 = vcmask 523264
      %v1458 = vsel %vm1456, %v1353, 0
      %v1461 = vsel %vm1456, %v1354, 0
      %v1464 = vsel %vm1456, %v1355, 0
      %v1467 = vsel %vm1456, %v1356, 0
      %v1470 = vsel %vm1456, %v1357, 0
      %v1473 = vsel %vm1456, %v1358, 0
      %v1476 = vsel %vm1456, %v1359, 0
      %v1479 = vsel %vm1456, %v1360, 0
      %v1482 = vsel %vm1456, %v1361, 0
      %v1485 = vsel %vm1456, %v1362, 0
      %v1488 = vsel %vm1456, %v1363, 0
      %v1491 = vsel %vm1456, %v1364, 0
      %v1494 = vsel %vm1456, %v1365, 0
      %v1497 = vsel %vm1456, %v1366, 0
      %v1500 = vsel %vm1456, %v1367, 0
      %v1503 = vsel %vm1456, %v1368, 0
      %v1506 = vsel %vm1456, %v1369, 0
      %v1509 = vsel %vm1456, %v1370, 0
      %v1512 = vsel %vm1456, %v1371, 0
      %v1515 = vsel %vm1456, %v1372, 0
      %v1518 = vsel %vm1456, %v1373, 0
      %v1521 = vsel %vm1456, %v1374, 0
      %v1524 = vsel %vm1456, %v1375, 0
      %v1527 = vsel %vm1456, %v1376, 0
      %v1530 = vsel %vm1456, %v1377, 0
      %v1533 = vsel %vm1456, %v1378, 0
      %v1536 = vsel %vm1456, %v1379, 0
      %v1539 = vsel %vm1456, %v1380, 0
      %v1542 = vsel %vm1456, %v1381, 0
      %v1545 = vsel %vm1456, %v1382, 0
      %v1548 = vsel %vm1456, %v1383, 0
      %v1551 = vsel %vm1456, %v1384, 0
      %v1554 = vsel %vm1456, %v1385, 0
      %v1557 = vsel %vm1456, %v1386, 0
      %v1560 = vsel %vm1456, %v1387, 0
      %v1563 = vsel %vm1456, %v1388, 0
      %v1566 = vsel %vm1456, %v1389, 0
      %v1569 = vsel %vm1456, %v1390, 0
      %v1572 = vsel %vm1456, %v1391, 0
      %v1575 = vsel %vm1456, %v1392, 0
      %v1578 = vsel %vm1456, %v1393, 0
      %v1581 = vsel %vm1456, %v1394, 0
      %v1584 = vsel %vm1456, %v1395, 0
      %v1587 = vsel %vm1456, %v1396, 0
      %v1590 = vsel %vm1456, %v1397, 0
      %v1593 = vsel %vm1456, %v1398, 0
      %v1596 = vsel %vm1456, %v1399, 0
      %v1599 = vsel %vm1456, %v1400, 0
      %v1602 = vsel %vm1456, %v1401, 0
      %v1605 = vsel %vm1456, %v1402, 0
      %v1608 = vsel %vm1456, %v1403, 0
      %v1611 = vsel %vm1456, %v1404, 0
      %v1614 = vsel %vm1456, %v1405, 0
      %v1617 = vsel %vm1456, %v1406, 0
      %v1620 = vsel %vm1456, %v1407, 0
      %v1623 = vsel %vm1456, %v1408, 0
      %v1626 = vsel %vm1456, %v1409, 0
      %v1629 = vsel %vm1456, %v1410, 0
      %v1632 = vsel %vm1456, %v1411, 0
      %v1635 = vsel %vm1456, %v1412, 0
      %v1638 = vsel %vm1456, %v1413, 0
      %v1641 = vsel %vm1456, %v1414, 0
      %v1644 = vsel %vm1456, %v1415, 0
      %v1647 = vsel %vm1456, %v1416, 0
      %1649 = vmatprep.subr.bf16.mxu0 0
      %1650 = vmatpush1.bf16.msra.mxu0 %v1448
      %1651 = vmatprep.subr.bf16.mxu0 0
      %1652 = vmatpush1.bf16.msra.mxu0 %v1449
      %1653 = vmatprep.subr.bf16.mxu0 0
      %1654 = vmatpush1.bf16.msra.mxu0 %v1450
      %1655 = vmatprep.subr.bf16.mxu0 0
      %1656 = vmatpush1.bf16.msra.mxu0 %v1451
      %1657 = vmatprep.subr.bf16.mxu0 0
      %1658 = vmatpush1.bf16.msra.mxu0 0
      %1659 = vmatprep.subr.bf16.mxu0 0
      %1660 = vmatpush1.bf16.msra.mxu0 0
      %1661 = vmatprep.subr.bf16.mxu0 0
      %1662 = vmatpush1.bf16.msra.mxu0 0
      %1663 = vmatprep.subr.bf16.mxu0 0
      %1664 = vmatpush1.bf16.msra.mxu0 0
      %1665 = vmatprep.subr.bf16.mxu0 0
      %1666 = vmatpush1.bf16.msra.mxu0 0
      %1667 = vmatprep.subr.bf16.mxu0 0
      %1668 = vmatpush1.bf16.msra.mxu0 0
      %1669 = vmatprep.subr.bf16.mxu0 0
      %1670 = vmatpush1.bf16.msra.mxu0 0
      %1671 = vmatprep.subr.bf16.mxu0 0
      %1672 = vmatpush1.bf16.msra.mxu0 0
      %1673 = vmatprep.subr.bf16.mxu0 0
      %1674 = vmatpush1.bf16.msra.mxu0 0
      %1675 = vmatprep.subr.bf16.mxu0 0
      %1676 = vmatpush1.bf16.msra.mxu0 0
      %1677 = vmatprep.subr.bf16.mxu0 0
      %1678 = vmatpush1.bf16.msra.mxu0 0
      %1679 = vmatprep.subr.bf16.mxu0 0
      %1680 = vmatpush1.bf16.msra.mxu0 0
      %1681 = vmatprep.mubr.bf16.mxu0 0
      %1682 = vmatmul.mubr.bf16.gmra.mrb[0].mxu0 %v1458
      %v1683 = vpop.f32.mrb[0].mxu0
      %v1684 = vadd.f32 %v1430, %v1683
      %v1685 = vpop.f32.mrb[0].mxu0
      %v1686 = vpop.f32.mrb[0].mxu0
      %v1687 = vadd.f32 %v1430, %v1686
      %v1688 = vpop.f32.mrb[0].mxu0
      %1689 = vmatprep.mubr.bf16.mxu0 0
      %1690 = vmatmul.mubr.bf16.gmra.mrb[0].mxu0 %v1461
      %v1691 = vpop.f32.mrb[0].mxu0
      %v1692 = vadd.f32 %v1430, %v1691
      %v1693 = vpop.f32.mrb[0].mxu0
      %v1694 = vpop.f32.mrb[0].mxu0
      %v1695 = vadd.f32 %v1430, %v1694
      %v1696 = vpop.f32.mrb[0].mxu0
      %1697 = vmatprep.mubr.bf16.mxu0 0
      %1698 = vmatmul.mubr.bf16.gmra.mrb[0].mxu0 %v1464
      %v1699 = vpop.f32.mrb[0].mxu0
      %v1700 = vadd.f32 %v1430, %v1699
      %v1701 = vpop.f32.mrb[0].mxu0
      %v1702 = vpop.f32.mrb[0].mxu0
      %v1703 = vadd.f32 %v1430, %v1702
      %v1704 = vpop.f32.mrb[0].mxu0
      %1705 = vmatprep.mubr.bf16.mxu0 0
      %1706 = vmatmul.mubr.bf16.gmra.mrb[0].mxu0 %v1467
      %v1707 = vpop.f32.mrb[0].mxu0
      %v1708 = vadd.f32 %v1430, %v1707
      %v1709 = vpop.f32.mrb[0].mxu0
      %v1710 = vpop.f32.mrb[0].mxu0
      %v1711 = vadd.f32 %v1430, %v1710
      %v1712 = vpop.f32.mrb[0].mxu0
      %1713 = vmatprep.mubr.bf16.mxu0 0
      %1714 = vmatmul.mubr.bf16.gmra.mrb[0].mxu0 %v1470
      %v1715 = vpop.f32.mrb[0].mxu0
      %v1716 = vadd.f32 %v1430, %v1715
      %v1717 = vpop.f32.mrb[0].mxu0
      %v1718 = vpop.f32.mrb[0].mxu0
      %v1719 = vadd.f32 %v1430, %v1718
      %v1720 = vpop.f32.mrb[0].mxu0
      %1721 = vmatprep.mubr.bf16.mxu0 0
      %1722 = vmatmul.mubr.bf16.gmra.mrb[0].mxu0 %v1473
      %v1723 = vpop.f32.mrb[0].mxu0
      %v1724 = vadd.f32 %v1430, %v1723
      %v1725 = vpop.f32.mrb[0].mxu0
      %v1726 = vpop.f32.mrb[0].mxu0
      %v1727 = vadd.f32 %v1430, %v1726
      %v1728 = vpop.f32.mrb[0].mxu0
      %1729 = vmatprep.mubr.bf16.mxu0 0
      %1730 = vmatmul.mubr.bf16.gmra.mrb[0].mxu0 %v1476
      %v1731 = vpop.f32.mrb[0].mxu0
      %v1732 = vadd.f32 %v1430, %v1731
      %v1733 = vpop.f32.mrb[0].mxu0
      %v1734 = vpop.f32.mrb[0].mxu0
      %v1735 = vadd.f32 %v1430, %v1734
      %v1736 = vpop.f32.mrb[0].mxu0
      %1737 = vmatprep.mubr.bf16.mxu0 0
      %1738 = vmatmul.mubr.bf16.gmra.mrb[0].mxu0 %v1479
      %v1739 = vpop.f32.mrb[0].mxu0
      %v1740 = vadd.f32 %v1430, %v1739
      %v1741 = vpop.f32.mrb[0].mxu0
      %v1742 = vpop.f32.mrb[0].mxu0
      %v1743 = vadd.f32 %v1430, %v1742
      %v1744 = vpop.f32.mrb[0].mxu0
      %1745 = vmatprep.mubr.bf16.mxu0 0
      %1746 = vmatmul.mubr.bf16.gmra.mrb[0].mxu0 %v1482
      %v1747 = vpop.f32.mrb[0].mxu0
      %v1748 = vadd.f32 %v1430, %v1747
      %v1749 = vpop.f32.mrb[0].mxu0
      %v1750 = vpop.f32.mrb[0].mxu0
      %v1751 = vadd.f32 %v1430, %v1750
      %v1752 = vpop.f32.mrb[0].mxu0
      %1753 = vmatprep.mubr.bf16.mxu0 0
      %1754 = vmatmul.mubr.bf16.gmra.mrb[0].mxu0 %v1485
      %v1755 = vpop.f32.mrb[0].mxu0
      %v1756 = vadd.f32 %v1430, %v1755
      %v1757 = vpop.f32.mrb[0].mxu0
      %v1758 = vpop.f32.mrb[0].mxu0
      %v1759 = vadd.f32 %v1430, %v1758
      %v1760 = vpop.f32.mrb[0].mxu0
      %1761 = vmatprep.mubr.bf16.mxu0 0
      %1762 = vmatmul.mubr.bf16.gmra.mrb[0].mxu0 %v1488
      %v1763 = vpop.f32.mrb[0].mxu0
      %v1764 = vadd.f32 %v1430, %v1763
      %v1765 = vpop.f32.mrb[0].mxu0
      %v1766 = vpop.f32.mrb[0].mxu0
      %v1767 = vadd.f32 %v1430, %v1766
      %v1768 = vpop.f32.mrb[0].mxu0
      %1769 = vmatprep.mubr.bf16.mxu0 0
      %1770 = vmatmul.mubr.bf16.gmra.mrb[0].mxu0 %v1491
      %v1771 = vpop.f32.mrb[0].mxu0
      %v1772 = vadd.f32 %v1430, %v1771
      %v1773 = vpop.f32.mrb[0].mxu0
      %v1774 = vpop.f32.mrb[0].mxu0
      %v1775 = vadd.f32 %v1430, %v1774
      %v1776 = vpop.f32.mrb[0].mxu0
      %1777 = vmatprep.mubr.bf16.mxu0 0
      %1778 = vmatmul.mubr.bf16.gmra.mrb[0].mxu0 %v1494
      %v1779 = vpop.f32.mrb[0].mxu0
      %v1780 = vadd.f32 %v1430, %v1779
      %v1781 = vpop.f32.mrb[0].mxu0
      %v1782 = vpop.f32.mrb[0].mxu0
      %v1783 = vadd.f32 %v1430, %v1782
      %v1784 = vpop.f32.mrb[0].mxu0
      %1785 = vmatprep.mubr.bf16.mxu0 0
      %1786 = vmatmul.mubr.bf16.gmra.mrb[0].mxu0 %v1497
      %v1787 = vpop.f32.mrb[0].mxu0
      %v1788 = vadd.f32 %v1430, %v1787
      %v1789 = vpop.f32.mrb[0].mxu0
      %v1790 = vpop.f32.mrb[0].mxu0
      %v1791 = vadd.f32 %v1430, %v1790
      %v1792 = vpop.f32.mrb[0].mxu0
      %1793 = vmatprep.mubr.bf16.mxu0 0
      %1794 = vmatmul.mubr.bf16.gmra.mrb[0].mxu0 %v1500
      %v1795 = vpop.f32.mrb[0].mxu0
      %v1796 = vadd.f32 %v1430, %v1795
      %v1797 = vpop.f32.mrb[0].mxu0
      %v1798 = vpop.f32.mrb[0].mxu0
      %v1799 = vadd.f32 %v1430, %v1798
      %v1800 = vpop.f32.mrb[0].mxu0
      %1801 = vmatprep.mubr.bf16.mxu0 0
      %1802 = vmatmul.mubr.bf16.gmra.mrb[0].mxu0 %v1503
      %v1803 = vpop.f32.mrb[0].mxu0
      %v1804 = vadd.f32 %v1430, %v1803
      %v1805 = vpop.f32.mrb[0].mxu0
      %v1806 = vpop.f32.mrb[0].mxu0
      %v1807 = vadd.f32 %v1430, %v1806
      %v1808 = vpop.f32.mrb[0].mxu0
      %1809 = vmatprep.mubr.bf16.mxu0 0
      %1810 = vmatmul.mubr.bf16.gmra.mrb[0].mxu0 %v1506
      %v1811 = vpop.f32.mrb[0].mxu0
      %v1812 = vadd.f32 %v1430, %v1811
      %v1813 = vpop.f32.mrb[0].mxu0
      %v1814 = vpop.f32.mrb[0].mxu0
      %v1815 = vadd.f32 %v1430, %v1814
      %v1816 = vpop.f32.mrb[0].mxu0
      %1817 = vmatprep.mubr.bf16.mxu0 0
      %1818 = vmatmul.mubr.bf16.gmra.mrb[0].mxu0 %v1509
      %v1819 = vpop.f32.mrb[0].mxu0
      %v1820 = vadd.f32 %v1430, %v1819
      %v1821 = vpop.f32.mrb[0].mxu0
      %v1822 = vpop.f32.mrb[0].mxu0
      %v1823 = vadd.f32 %v1430, %v1822
      %v1824 = vpop.f32.mrb[0].mxu0
      %1825 = vmatprep.mubr.bf16.mxu0 0
      %1826 = vmatmul.mubr.bf16.gmra.mrb[0].mxu0 %v1512
      %v1827 = vpop.f32.mrb[0].mxu0
      %v1828 = vadd.f32 %v1430, %v1827
      %v1829 = vpop.f32.mrb[0].mxu0
      %v1830 = vpop.f32.mrb[0].mxu0
      %v1831 = vadd.f32 %v1430, %v1830
      %v1832 = vpop.f32.mrb[0].mxu0
      %1833 = vmatprep.mubr.bf16.mxu0 0
      %1834 = vmatmul.mubr.bf16.gmra.mrb[0].mxu0 %v1515
      %v1835 = vpop.f32.mrb[0].mxu0
      %v1836 = vadd.f32 %v1430, %v1835
      %v1837 = vpop.f32.mrb[0].mxu0
      %v1838 = vpop.f32.mrb[0].mxu0
      %v1839 = vadd.f32 %v1430, %v1838
      %v1840 = vpop.f32.mrb[0].mxu0
      %1841 = vmatprep.mubr.bf16.mxu0 0
      %1842 = vmatmul.mubr.bf16.gmra.mrb[0].mxu0 %v1518
      %v1843 = vpop.f32.mrb[0].mxu0
      %v1844 = vadd.f32 %v1430, %v1843
      %v1845 = vpop.f32.mrb[0].mxu0
      %v1846 = vpop.f32.mrb[0].mxu0
      %v1847 = vadd.f32 %v1430, %v1846
      %v1848 = vpop.f32.mrb[0].mxu0
      %1849 = vmatprep.mubr.bf16.mxu0 0
      %1850 = vmatmul.mubr.bf16.gmra.mrb[0].mxu0 %v1521
      %v1851 = vpop.f32.mrb[0].mxu0
      %v1852 = vadd.f32 %v1430, %v1851
      %v1853 = vpop.f32.mrb[0].mxu0
      %v1854 = vpop.f32.mrb[0].mxu0
      %v1855 = vadd.f32 %v1430, %v1854
      %v1856 = vpop.f32.mrb[0].mxu0
      %1857 = vmatprep.mubr.bf16.mxu0 0
      %1858 = vmatmul.mubr.bf16.gmra.mrb[0].mxu0 %v1524
      %v1859 = vpop.f32.mrb[0].mxu0
      %v1860 = vadd.f32 %v1430, %v1859
      %v1861 = vpop.f32.mrb[0].mxu0
      %v1862 = vpop.f32.mrb[0].mxu0
      %v1863 = vadd.f32 %v1430, %v1862
      %v1864 = vpop.f32.mrb[0].mxu0
      %1865 = vmatprep.mubr.bf16.mxu0 0
      %1866 = vmatmul.mubr.bf16.gmra.mrb[0].mxu0 %v1527
      %v1867 = vpop.f32.mrb[0].mxu0
      %v1868 = vadd.f32 %v1430, %v1867
      %v1869 = vpop.f32.mrb[0].mxu0
      %v1870 = vpop.f32.mrb[0].mxu0
      %v1871 = vadd.f32 %v1430, %v1870
      %v1872 = vpop.f32.mrb[0].mxu0
      %1873 = vmatprep.mubr.bf16.mxu0 0
      %1874 = vmatmul.mubr.bf16.gmra.mrb[0].mxu0 %v1530
      %v1875 = vpop.f32.mrb[0].mxu0
      %v1876 = vadd.f32 %v1430, %v1875
      %v1877 = vpop.f32.mrb[0].mxu0
      %v1878 = vpop.f32.mrb[0].mxu0
      %v1879 = vadd.f32 %v1430, %v1878
      %v1880 = vpop.f32.mrb[0].mxu0
      %1881 = vmatprep.mubr.bf16.mxu0 0
      %1882 = vmatmul.mubr.bf16.gmra.mrb[0].mxu0 %v1533
      %v1883 = vpop.f32.mrb[0].mxu0
      %v1884 = vadd.f32 %v1430, %v1883
      %v1885 = vpop.f32.mrb[0].mxu0
      %v1886 = vpop.f32.mrb[0].mxu0
      %v1887 = vadd.f32 %v1430, %v1886
      %v1888 = vpop.f32.mrb[0].mxu0
      %1889 = vmatprep.mubr.bf16.mxu0 0
      %1890 = vmatmul.mubr.bf16.gmra.mrb[0].mxu0 %v1536
      %v1891 = vpop.f32.mrb[0].mxu0
      %v1892 = vadd.f32 %v1430, %v1891
      %v1893 = vpop.f32.mrb[0].mxu0
      %v1894 = vpop.f32.mrb[0].mxu0
      %v1895 = vadd.f32 %v1430, %v1894
      %v1896 = vpop.f32.mrb[0].mxu0
      %1897 = vmatprep.mubr.bf16.mxu0 0
      %1898 = vmatmul.mubr.bf16.gmra.mrb[0].mxu0 %v1539
      %v1899 = vpop.f32.mrb[0].mxu0
      %v1900 = vadd.f32 %v1430, %v1899
      %v1901 = vpop.f32.mrb[0].mxu0
      %v1902 = vpop.f32.mrb[0].mxu0
      %v1903 = vadd.f32 %v1430, %v1902
      %v1904 = vpop.f32.mrb[0].mxu0
      %1905 = vmatprep.mubr.bf16.mxu0 0
      %1906 = vmatmul.mubr.bf16.gmra.mrb[0].mxu0 %v1542
      %v1907 = vpop.f32.mrb[0].mxu0
      %v1908 = vadd.f32 %v1430, %v1907
      %v1909 = vpop.f32.mrb[0].mxu0
      %v1910 = vpop.f32.mrb[0].mxu0
      %v1911 = vadd.f32 %v1430, %v1910
      %v1912 = vpop.f32.mrb[0].mxu0
      %1913 = vmatprep.mubr.bf16.mxu0 0
      %1914 = vmatmul.mubr.bf16.gmra.mrb[0].mxu0 %v1545
      %v1915 = vpop.f32.mrb[0].mxu0
      %v1916 = vadd.f32 %v1430, %v1915
      %v1917 = vpop.f32.mrb[0].mxu0
      %v1918 = vpop.f32.mrb[0].mxu0
      %v1919 = vadd.f32 %v1430, %v1918
      %v1920 = vpop.f32.mrb[0].mxu0
      %1921 = vmatprep.mubr.bf16.mxu0 0
      %1922 = vmatmul.mubr.bf16.gmra.mrb[0].mxu0 %v1548
      %v1923 = vpop.f32.mrb[0].mxu0
      %v1924 = vadd.f32 %v1430, %v1923
      %v1925 = vpop.f32.mrb[0].mxu0
      %v1926 = vpop.f32.mrb[0].mxu0
      %v1927 = vadd.f32 %v1430, %v1926
      %v1928 = vpop.f32.mrb[0].mxu0
      %1929 = vmatprep.mubr.bf16.mxu0 0
      %1930 = vmatmul.mubr.bf16.gmra.mrb[0].mxu0 %v1551
      %v1931 = vpop.f32.mrb[0].mxu0
      %v1932 = vadd.f32 %v1430, %v1931
      %v1933 = vpop.f32.mrb[0].mxu0
      %v1934 = vpop.f32.mrb[0].mxu0
      %v1935 = vadd.f32 %v1430, %v1934
      %v1936 = vpop.f32.mrb[0].mxu0
      %1937 = vmatprep.mubr.bf16.mxu0 0
      %1938 = vmatmul.mubr.bf16.gmra.mrb[0].mxu0 %v1554
      %v1939 = vpop.f32.mrb[0].mxu0
      %v1940 = vadd.f32 %v1430, %v1939
      %v1941 = vpop.f32.mrb[0].mxu0
      %v1942 = vpop.f32.mrb[0].mxu0
      %v1943 = vadd.f32 %v1430, %v1942
      %v1944 = vpop.f32.mrb[0].mxu0
      %1945 = vmatprep.mubr.bf16.mxu0 0
      %1946 = vmatmul.mubr.bf16.gmra.mrb[0].mxu0 %v1557
      %v1947 = vpop.f32.mrb[0].mxu0
      %v1948 = vadd.f32 %v1430, %v1947
      %v1949 = vpop.f32.mrb[0].mxu0
      %v1950 = vpop.f32.mrb[0].mxu0
      %v1951 = vadd.f32 %v1430, %v1950
      %v1952 = vpop.f32.mrb[0].mxu0
      %1953 = vmatprep.mubr.bf16.mxu0 0
      %1954 = vmatmul.mubr.bf16.gmra.mrb[0].mxu0 %v1560
      %v1955 = vpop.f32.mrb[0].mxu0
      %v1956 = vadd.f32 %v1430, %v1955
      %v1957 = vpop.f32.mrb[0].mxu0
      %v1958 = vpop.f32.mrb[0].mxu0
      %v1959 = vadd.f32 %v1430, %v1958
      %v1960 = vpop.f32.mrb[0].mxu0
      %1961 = vmatprep.mubr.bf16.mxu0 0
      %1962 = vmatmul.mubr.bf16.gmra.mrb[0].mxu0 %v1563
      %v1963 = vpop.f32.mrb[0].mxu0
      %v1964 = vadd.f32 %v1430, %v1963
      %v1965 = vpop.f32.mrb[0].mxu0
      %v1966 = vpop.f32.mrb[0].mxu0
      %v1967 = vadd.f32 %v1430, %v1966
      %v1968 = vpop.f32.mrb[0].mxu0
      %1969 = vmatprep.mubr.bf16.mxu0 0
      %1970 = vmatmul.mubr.bf16.gmra.mrb[0].mxu0 %v1566
      %v1971 = vpop.f32.mrb[0].mxu0
      %v1972 = vadd.f32 %v1430, %v1971
      %v1973 = vpop.f32.mrb[0].mxu0
      %v1974 = vpop.f32.mrb[0].mxu0
      %v1975 = vadd.f32 %v1430, %v1974
      %v1976 = vpop.f32.mrb[0].mxu0
      %1977 = vmatprep.mubr.bf16.mxu0 0
      %1978 = vmatmul.mubr.bf16.gmra.mrb[0].mxu0 %v1569
      %v1979 = vpop.f32.mrb[0].mxu0
      %v1980 = vadd.f32 %v1430, %v1979
      %v1981 = vpop.f32.mrb[0].mxu0
      %v1982 = vpop.f32.mrb[0].mxu0
      %v1983 = vadd.f32 %v1430, %v1982
      %v1984 = vpop.f32.mrb[0].mxu0
      %1985 = vmatprep.mubr.bf16.mxu0 0
      %1986 = vmatmul.mubr.bf16.gmra.mrb[0].mxu0 %v1572
      %v1987 = vpop.f32.mrb[0].mxu0
      %v1988 = vadd.f32 %v1430, %v1987
      %v1989 = vpop.f32.mrb[0].mxu0
      %v1990 = vpop.f32.mrb[0].mxu0
      %v1991 = vadd.f32 %v1430, %v1990
      %v1992 = vpop.f32.mrb[0].mxu0
      %1993 = vmatprep.mubr.bf16.mxu0 0
      %1994 = vmatmul.mubr.bf16.gmra.mrb[0].mxu0 %v1575
      %v1995 = vpop.f32.mrb[0].mxu0
      %v1996 = vadd.f32 %v1430, %v1995
      %v1997 = vpop.f32.mrb[0].mxu0
      %v1998 = vpop.f32.mrb[0].mxu0
      %v1999 = vadd.f32 %v1430, %v1998
      %v2000 = vpop.f32.mrb[0].mxu0
      %2001 = vmatprep.mubr.bf16.mxu0 0
      %2002 = vmatmul.mubr.bf16.gmra.mrb[0].mxu0 %v1578
      %v2003 = vpop.f32.mrb[0].mxu0
      %v2004 = vadd.f32 %v1430, %v2003
      %v2005 = vpop.f32.mrb[0].mxu0
      %v2006 = vpop.f32.mrb[0].mxu0
      %v2007 = vadd.f32 %v1430, %v2006
      %v2008 = vpop.f32.mrb[0].mxu0
      %2009 = vmatprep.mubr.bf16.mxu0 0
      %2010 = vmatmul.mubr.bf16.gmra.mrb[0].mxu0 %v1581
      %v2011 = vpop.f32.mrb[0].mxu0
      %v2012 = vadd.f32 %v1430, %v2011
      %v2013 = vpop.f32.mrb[0].mxu0
      %v2014 = vpop.f32.mrb[0].mxu0
      %v2015 = vadd.f32 %v1430, %v2014
      %v2016 = vpop.f32.mrb[0].mxu0
      %2017 = vmatprep.mubr.bf16.mxu0 0
      %2018 = vmatmul.mubr.bf16.gmra.mrb[0].mxu0 %v1584
      %v2019 = vpop.f32.mrb[0].mxu0
      %v2020 = vadd.f32 %v1430, %v2019
      %v2021 = vpop.f32.mrb[0].mxu0
      %v2022 = vpop.f32.mrb[0].mxu0
      %v2023 = vadd.f32 %v1430, %v2022
      %v2024 = vpop.f32.mrb[0].mxu0
      %2025 = vmatprep.mubr.bf16.mxu0 0
      %2026 = vmatmul.mubr.bf16.gmra.mrb[0].mxu0 %v1587
      %v2027 = vpop.f32.mrb[0].mxu0
      %v2028 = vadd.f32 %v1430, %v2027
      %v2029 = vpop.f32.mrb[0].mxu0
      %v2030 = vpop.f32.mrb[0].mxu0
      %v2031 = vadd.f32 %v1430, %v2030
      %v2032 = vpop.f32.mrb[0].mxu0
      %2033 = vmatprep.mubr.bf16.mxu0 0
      %2034 = vmatmul.mubr.bf16.gmra.mrb[0].mxu0 %v1590
      %v2035 = vpop.f32.mrb[0].mxu0
      %v2036 = vadd.f32 %v1430, %v2035
      %v2037 = vpop.f32.mrb[0].mxu0
      %v2038 = vpop.f32.mrb[0].mxu0
      %v2039 = vadd.f32 %v1430, %v2038
      %v2040 = vpop.f32.mrb[0].mxu0
      %2041 = vmatprep.mubr.bf16.mxu0 0
      %2042 = vmatmul.mubr.bf16.gmra.mrb[0].mxu0 %v1593
      %v2043 = vpop.f32.mrb[0].mxu0
      %v2044 = vadd.f32 %v1430, %v2043
      %v2045 = vpop.f32.mrb[0].mxu0
      %v2046 = vpop.f32.mrb[0].mxu0
      %v2047 = vadd.f32 %v1430, %v2046
      %v2048 = vpop.f32.mrb[0].mxu0
      %2049 = vmatprep.mubr.bf16.mxu0 0
      %2050 = vmatmul.mubr.bf16.gmra.mrb[0].mxu0 %v1596
      %v2051 = vpop.f32.mrb[0].mxu0
      %v2052 = vadd.f32 %v1430, %v2051
      %v2053 = vpop.f32.mrb[0].mxu0
      %v2054 = vpop.f32.mrb[0].mxu0
      %v2055 = vadd.f32 %v1430, %v2054
      %v2056 = vpop.f32.mrb[0].mxu0
      %2057 = vmatprep.mubr.bf16.mxu0 0
      %2058 = vmatmul.mubr.bf16.gmra.mrb[0].mxu0 %v1599
      %v2059 = vpop.f32.mrb[0].mxu0
      %v2060 = vadd.f32 %v1430, %v2059
      %v2061 = vpop.f32.mrb[0].mxu0
      %v2062 = vpop.f32.mrb[0].mxu0
      %v2063 = vadd.f32 %v1430, %v2062
      %v2064 = vpop.f32.mrb[0].mxu0
      %2065 = vmatprep.mubr.bf16.mxu0 0
      %2066 = vmatmul.mubr.bf16.gmra.mrb[0].mxu0 %v1602
      %v2067 = vpop.f32.mrb[0].mxu0
      %v2068 = vadd.f32 %v1430, %v2067
      %v2069 = vpop.f32.mrb[0].mxu0
      %v2070 = vpop.f32.mrb[0].mxu0
      %v2071 = vadd.f32 %v1430, %v2070
      %v2072 = vpop.f32.mrb[0].mxu0
      %2073 = vmatprep.mubr.bf16.mxu0 0
      %2074 = vmatmul.mubr.bf16.gmra.mrb[0].mxu0 %v1605
      %v2075 = vpop.f32.mrb[0].mxu0
      %v2076 = vadd.f32 %v1430, %v2075
      %v2077 = vpop.f32.mrb[0].mxu0
      %v2078 = vpop.f32.mrb[0].mxu0
      %v2079 = vadd.f32 %v1430, %v2078
      %v2080 = vpop.f32.mrb[0].mxu0
      %2081 = vmatprep.mubr.bf16.mxu0 0
      %2082 = vmatmul.mubr.bf16.gmra.mrb[0].mxu0 %v1608
      %v2083 = vpop.f32.mrb[0].mxu0
      %v2084 = vadd.f32 %v1430, %v2083
      %v2085 = vpop.f32.mrb[0].mxu0
      %v2086 = vpop.f32.mrb[0].mxu0
      %v2087 = vadd.f32 %v1430, %v2086
      %v2088 = vpop.f32.mrb[0].mxu0
      %2089 = vmatprep.mubr.bf16.mxu0 0
      %2090 = vmatmul.mubr.bf16.gmra.mrb[0].mxu0 %v1611
      %v2091 = vpop.f32.mrb[0].mxu0
      %v2092 = vadd.f32 %v1430, %v2091
      %v2093 = vpop.f32.mrb[0].mxu0
      %v2094 = vpop.f32.mrb[0].mxu0
      %v2095 = vadd.f32 %v1430, %v2094
      %v2096 = vpop.f32.mrb[0].mxu0
      %2097 = vmatprep.mubr.bf16.mxu0 0
      %2098 = vmatmul.mubr.bf16.gmra.mrb[0].mxu0 %v1614
      %v2099 = vpop.f32.mrb[0].mxu0
      %v2100 = vadd.f32 %v1430, %v2099
      %v2101 = vpop.f32.mrb[0].mxu0
      %v2102 = vpop.f32.mrb[0].mxu0
      %v2103 = vadd.f32 %v1430, %v2102
      %v2104 = vpop.f32.mrb[0].mxu0
      %2105 = vmatprep.mubr.bf16.mxu0 0
      %2106 = vmatmul.mubr.bf16.gmra.mrb[0].mxu0 %v1617
      %v2107 = vpop.f32.mrb[0].mxu0
      %v2108 = vadd.f32 %v1430, %v2107
      %v2109 = vpop.f32.mrb[0].mxu0
      %v2110 = vpop.f32.mrb[0].mxu0
      %v2111 = vadd.f32 %v1430, %v2110
      %v2112 = vpop.f32.mrb[0].mxu0
      %2113 = vmatprep.mubr.bf16.mxu0 0
      %2114 = vmatmul.mubr.bf16.gmra.mrb[0].mxu0 %v1620
      %v2115 = vpop.f32.mrb[0].mxu0
      %v2116 = vadd.f32 %v1430, %v2115
      %v2117 = vpop.f32.mrb[0].mxu0
      %v2118 = vpop.f32.mrb[0].mxu0
      %v2119 = vadd.f32 %v1430, %v2118
      %v2120 = vpop.f32.mrb[0].mxu0
      %2121 = vmatprep.mubr.bf16.mxu0 0
      %2122 = vmatmul.mubr.bf16.gmra.mrb[0].mxu0 %v1623
      %v2123 = vpop.f32.mrb[0].mxu0
      %v2124 = vadd.f32 %v1430, %v2123
      %v2125 = vpop.f32.mrb[0].mxu0
      %v2126 = vpop.f32.mrb[0].mxu0
      %v2127 = vadd.f32 %v1430, %v2126
      %v2128 = vpop.f32.mrb[0].mxu0
      %2129 = vmatprep.mubr.bf16.mxu0 0
      %2130 = vmatmul.mubr.bf16.gmra.mrb[0].mxu0 %v1626
      %v2131 = vpop.f32.mrb[0].mxu0
      %v2132 = vadd.f32 %v1430, %v2131
      %v2133 = vpop.f32.mrb[0].mxu0
      %v2134 = vpop.f32.mrb[0].mxu0
      %v2135 = vadd.f32 %v1430, %v2134
      %v2136 = vpop.f32.mrb[0].mxu0
      %2137 = vmatprep.mubr.bf16.mxu0 0
      %2138 = vmatmul.mubr.bf16.gmra.mrb[0].mxu0 %v1629
      %v2139 = vpop.f32.mrb[0].mxu0
      %v2140 = vadd.f32 %v1430, %v2139
      %v2141 = vpop.f32.mrb[0].mxu0
      %v2142 = vpop.f32.mrb[0].mxu0
      %v2143 = vadd.f32 %v1430, %v2142
      %v2144 = vpop.f32.mrb[0].mxu0
      %2145 = vmatprep.mubr.bf16.mxu0 0
      %2146 = vmatmul.mubr.bf16.gmra.mrb[0].mxu0 %v1632
      %v2147 = vpop.f32.mrb[0].mxu0
      %v2148 = vadd.f32 %v1430, %v2147
      %v2149 = vpop.f32.mrb[0].mxu0
      %v2150 = vpop.f32.mrb[0].mxu0
      %v2151 = vadd.f32 %v1430, %v2150
      %v2152 = vpop.f32.mrb[0].mxu0
      %2153 = vmatprep.mubr.bf16.mxu0 0
      %2154 = vmatmul.mubr.bf16.gmra.mrb[0].mxu0 %v1635
      %v2155 = vpop.f32.mrb[0].mxu0
      %v2156 = vadd.f32 %v1430, %v2155
      %v2157 = vpop.f32.mrb[0].mxu0
      %v2158 = vpop.f32.mrb[0].mxu0
      %v2159 = vadd.f32 %v1430, %v2158
      %v2160 = vpop.f32.mrb[0].mxu0
      %2161 = vmatprep.mubr.bf16.mxu0 0
      %2162 = vmatmul.mubr.bf16.gmra.mrb[0].mxu0 %v1638
      %v2163 = vpop.f32.mrb[0].mxu0
      %v2164 = vadd.f32 %v1430, %v2163
      %v2165 = vpop.f32.mrb[0].mxu0
      %v2166 = vpop.f32.mrb[0].mxu0
      %v2167 = vadd.f32 %v1430, %v2166
      %v2168 = vpop.f32.mrb[0].mxu0
      %2169 = vmatprep.mubr.bf16.mxu0 0
      %2170 = vmatmul.mubr.bf16.gmra.mrb[0].mxu0 %v1641
      %v2171 = vpop.f32.mrb[0].mxu0
      %v2172 = vadd.f32 %v1430, %v2171
      %v2173 = vpop.f32.mrb[0].mxu0
      %v2174 = vpop.f32.mrb[0].mxu0
      %v2175 = vadd.f32 %v1430, %v2174
      %v2176 = vpop.f32.mrb[0].mxu0
      %2177 = vmatprep.mubr.bf16.mxu0 0
      %2178 = vmatmul.mubr.bf16.gmra.mrb[0].mxu0 %v1644
      %v2179 = vpop.f32.mrb[0].mxu0
      %v2180 = vadd.f32 %v1430, %v2179
      %v2181 = vpop.f32.mrb[0].mxu0
      %v2182 = vpop.f32.mrb[0].mxu0
      %v2183 = vadd.f32 %v1430, %v2182
      %v2184 = vpop.f32.mrb[0].mxu0
      %2185 = vmatprep.mubr.bf16.mxu0 0
      %2186 = vmatmul.mubr.bf16.gmra.mrb[0].mxu0 %v1647
      %v2187 = vpop.f32.mrb[0].mxu0
      %v2188 = vadd.f32 %v1430, %v2187
      %v2189 = vpop.f32.mrb[0].mxu0
      %v2190 = vpop.f32.mrb[0].mxu0
      %v2191 = vadd.f32 %v1430, %v2190
      %v2192 = vpop.f32.mrb[0].mxu0
      %2193 = vdwg.mxu0
      %v2194 = vmax.f32 %v1684, 0.0
      %v2195 = vmax.f32 %v1687, 0.0
      %v2196 = vmax.f32 %v1692, 0.0
      %v2197 = vmax.f32 %v1695, 0.0
      %v2198 = vmax.f32 %v1700, 0.0
      %v2199 = vmax.f32 %v1703, 0.0
      %v2200 = vmax.f32 %v1708, 0.0
      %v2201 = vmax.f32 %v1711, 0.0
      %v2202 = vmax.f32 %v1716, 0.0
      %v2203 = vmax.f32 %v1719, 0.0
      %v2204 = vmax.f32 %v1724, 0.0
      %v2205 = vmax.f32 %v1727, 0.0
      %v2206 = vmax.f32 %v1732, 0.0
      %v2207 = vmax.f32 %v1735, 0.0
      %v2208 = vmax.f32 %v1740, 0.0
      %v2209 = vmax.f32 %v1743, 0.0
      %v2210 = vmax.f32 %v1748, 0.0
      %v2211 = vmax.f32 %v1751, 0.0
      %v2212 = vmax.f32 %v1756, 0.0
      %v2213 = vmax.f32 %v1759, 0.0
      %v2214 = vmax.f32 %v1764, 0.0
      %v2215 = vmax.f32 %v1767, 0.0
      %v2216 = vmax.f32 %v1772, 0.0
      %v2217 = vmax.f32 %v1775, 0.0
      %v2218 = vmax.f32 %v1780, 0.0
      %v2219 = vmax.f32 %v1783, 0.0
      %v2220 = vmax.f32 %v1788, 0.0
      %v2221 = vmax.f32 %v1791, 0.0
      %v2222 = vmax.f32 %v1796, 0.0
      %v2223 = vmax.f32 %v1799, 0.0
      %v2224 = vmax.f32 %v1804, 0.0
      %v2225 = vmax.f32 %v1807, 0.0
      %v2226 = vmax.f32 %v1812, 0.0
      %v2227 = vmax.f32 %v1815, 0.0
      %v2228 = vmax.f32 %v1820, 0.0
      %v2229 = vmax.f32 %v1823, 0.0
      %v2230 = vmax.f32 %v1828, 0.0
      %v2231 = vmax.f32 %v1831, 0.0
      %v2232 = vmax.f32 %v1836, 0.0
      %v2233 = vmax.f32 %v1839, 0.0
      %v2234 = vmax.f32 %v1844, 0.0
      %v2235 = vmax.f32 %v1847, 0.0
      %v2236 = vmax.f32 %v1852, 0.0
      %v2237 = vmax.f32 %v1855, 0.0
      %v2238 = vmax.f32 %v1860, 0.0
      %v2239 = vmax.f32 %v1863, 0.0
      %v2240 = vmax.f32 %v1868, 0.0
      %v2241 = vmax.f32 %v1871, 0.0
      %v2242 = vmax.f32 %v1876, 0.0
      %v2243 = vmax.f32 %v1879, 0.0
      %v2244 = vmax.f32 %v1884, 0.0
      %v2245 = vmax.f32 %v1887, 0.0
      %v2246 = vmax.f32 %v1892, 0.0
      %v2247 = vmax.f32 %v1895, 0.0
      %v2248 = vmax.f32 %v1900, 0.0
      %v2249 = vmax.f32 %v1903, 0.0
      %v2250 = vmax.f32 %v1908, 0.0
      %v2251 = vmax.f32 %v1911, 0.0
      %v2252 = vmax.f32 %v1916, 0.0
      %v2253 = vmax.f32 %v1919, 0.0
      %v2254 = vmax.f32 %v1924, 0.0
      %v2255 = vmax.f32 %v1927, 0.0
      %v2256 = vmax.f32 %v1932, 0.0
      %v2257 = vmax.f32 %v1935, 0.0
      %v2258 = vmax.f32 %v1940, 0.0
      %v2259 = vmax.f32 %v1943, 0.0
      %v2260 = vmax.f32 %v1948, 0.0
      %v2261 = vmax.f32 %v1951, 0.0
      %v2262 = vmax.f32 %v1956, 0.0
      %v2263 = vmax.f32 %v1959, 0.0
      %v2264 = vmax.f32 %v1964, 0.0
      %v2265 = vmax.f32 %v1967, 0.0
      %v2266 = vmax.f32 %v1972, 0.0
      %v2267 = vmax.f32 %v1975, 0.0
      %v2268 = vmax.f32 %v1980, 0.0
      %v2269 = vmax.f32 %v1983, 0.0
      %v2270 = vmax.f32 %v1988, 0.0
      %v2271 = vmax.f32 %v1991, 0.0
      %v2272 = vmax.f32 %v1996, 0.0
      %v2273 = vmax.f32 %v1999, 0.0
      %v2274 = vmax.f32 %v2004, 0.0
      %v2275 = vmax.f32 %v2007, 0.0
      %v2276 = vmax.f32 %v2012, 0.0
      %v2277 = vmax.f32 %v2015, 0.0
      %v2278 = vmax.f32 %v2020, 0.0
      %v2279 = vmax.f32 %v2023, 0.0
      %v2280 = vmax.f32 %v2028, 0.0
      %v2281 = vmax.f32 %v2031, 0.0
      %v2282 = vmax.f32 %v2036, 0.0
      %v2283 = vmax.f32 %v2039, 0.0
      %v2284 = vmax.f32 %v2044, 0.0
      %v2285 = vmax.f32 %v2047, 0.0
      %v2286 = vmax.f32 %v2052, 0.0
      %v2287 = vmax.f32 %v2055, 0.0
      %v2288 = vmax.f32 %v2060, 0.0
      %v2289 = vmax.f32 %v2063, 0.0
      %v2290 = vmax.f32 %v2068, 0.0
      %v2291 = vmax.f32 %v2071, 0.0
      %v2292 = vmax.f32 %v2076, 0.0
      %v2293 = vmax.f32 %v2079, 0.0
      %v2294 = vmax.f32 %v2084, 0.0
      %v2295 = vmax.f32 %v2087, 0.0
      %v2296 = vmax.f32 %v2092, 0.0
      %v2297 = vmax.f32 %v2095, 0.0
      %v2298 = vmax.f32 %v2100, 0.0
      %v2299 = vmax.f32 %v2103, 0.0
      %v2300 = vmax.f32 %v2108, 0.0
      %v2301 = vmax.f32 %v2111, 0.0
      %v2302 = vmax.f32 %v2116, 0.0
      %v2303 = vmax.f32 %v2119, 0.0
      %v2304 = vmax.f32 %v2124, 0.0
      %v2305 = vmax.f32 %v2127, 0.0
      %v2306 = vmax.f32 %v2132, 0.0
      %v2307 = vmax.f32 %v2135, 0.0
      %v2308 = vmax.f32 %v2140, 0.0
      %v2309 = vmax.f32 %v2143, 0.0
      %v2310 = vmax.f32 %v2148, 0.0
      %v2311 = vmax.f32 %v2151, 0.0
      %v2312 = vmax.f32 %v2156, 0.0
      %v2313 = vmax.f32 %v2159, 0.0
      %v2314 = vmax.f32 %v2164, 0.0
      %v2315 = vmax.f32 %v2167, 0.0
      %v2316 = vmax.f32 %v2172, 0.0
      %v2317 = vmax.f32 %v2175, 0.0
      %v2318 = vmax.f32 %v2180, 0.0
      %v2319 = vmax.f32 %v2183, 0.0
      %v2320 = vmax.f32 %v2188, 0.0
      %v2321 = vmax.f32 %v2191, 0.0
      %v2322 = vpack.c.bf16 %v2195, %v2194
      %v2323 = vpack.c.bf16 %v2197, %v2196
      %v2324 = vpack.c.bf16 %v2199, %v2198
      %v2325 = vpack.c.bf16 %v2201, %v2200
      %v2326 = vpack.c.bf16 %v2203, %v2202
      %v2327 = vpack.c.bf16 %v2205, %v2204
      %v2328 = vpack.c.bf16 %v2207, %v2206
      %v2329 = vpack.c.bf16 %v2209, %v2208
      %v2330 = vpack.c.bf16 %v2211, %v2210
      %v2331 = vpack.c.bf16 %v2213, %v2212
      %v2332 = vpack.c.bf16 %v2215, %v2214
      %v2333 = vpack.c.bf16 %v2217, %v2216
      %v2334 = vpack.c.bf16 %v2219, %v2218
      %v2335 = vpack.c.bf16 %v2221, %v2220
      %v2336 = vpack.c.bf16 %v2223, %v2222
      %v2337 = vpack.c.bf16 %v2225, %v2224
      %v2338 = vpack.c.bf16 %v2227, %v2226
      %v2339 = vpack.c.bf16 %v2229, %v2228
      %v2340 = vpack.c.bf16 %v2231, %v2230
      %v2341 = vpack.c.bf16 %v2233, %v2232
      %v2342 = vpack.c.bf16 %v2235, %v2234
      %v2343 = vpack.c.bf16 %v2237, %v2236
      %v2344 = vpack.c.bf16 %v2239, %v2238
      %v2345 = vpack.c.bf16 %v2241, %v2240
      %v2346 = vpack.c.bf16 %v2243, %v2242
      %v2347 = vpack.c.bf16 %v2245, %v2244
      %v2348 = vpack.c.bf16 %v2247, %v2246
      %v2349 = vpack.c.bf16 %v2249, %v2248
      %v2350 = vpack.c.bf16 %v2251, %v2250
      %v2351 = vpack.c.bf16 %v2253, %v2252
      %v2352 = vpack.c.bf16 %v2255, %v2254
      %v2353 = vpack.c.bf16 %v2257, %v2256
      %v2354 = vpack.c.bf16 %v2259, %v2258
      %v2355 = vpack.c.bf16 %v2261, %v2260
      %v2356 = vpack.c.bf16 %v2263, %v2262
      %v2357 = vpack.c.bf16 %v2265, %v2264
      %v2358 = vpack.c.bf16 %v2267, %v2266
      %v2359 = vpack.c.bf16 %v2269, %v2268
      %v2360 = vpack.c.bf16 %v2271, %v2270
      %v2361 = vpack.c.bf16 %v2273, %v2272
      %v2362 = vpack.c.bf16 %v2275, %v2274
      %v2363 = vpack.c.bf16 %v2277, %v2276
      %v2364 = vpack.c.bf16 %v2279, %v2278
      %v2365 = vpack.c.bf16 %v2281, %v2280
      %v2366 = vpack.c.bf16 %v2283, %v2282
      %v2367 = vpack.c.bf16 %v2285, %v2284
      %v2368 = vpack.c.bf16 %v2287, %v2286
      %v2369 = vpack.c.bf16 %v2289, %v2288
      %v2370 = vpack.c.bf16 %v2291, %v2290
      %v2371 = vpack.c.bf16 %v2293, %v2292
      %v2372 = vpack.c.bf16 %v2295, %v2294
      %v2373 = vpack.c.bf16 %v2297, %v2296
      %v2374 = vpack.c.bf16 %v2299, %v2298
      %v2375 = vpack.c.bf16 %v2301, %v2300
      %v2376 = vpack.c.bf16 %v2303, %v2302
      %v2377 = vpack.c.bf16 %v2305, %v2304
      %v2378 = vpack.c.bf16 %v2307, %v2306
      %v2379 = vpack.c.bf16 %v2309, %v2308
      %v2380 = vpack.c.bf16 %v2311, %v2310
      %v2381 = vpack.c.bf16 %v2313, %v2312
      %v2382 = vpack.c.bf16 %v2315, %v2314
      %v2383 = vpack.c.bf16 %v2317, %v2316
      %v2384 = vpack.c.bf16 %v2319, %v2318
      %v2385 = vpack.c.bf16 %v2321, %v2320
      %v2386 = vld [vmem:[%s5] sm:$0xf]
      %v2387 = vld [vmem:[%s5 + $0x4] sm:$0xf]
      %v2388 = vld [vmem:[%s5 + $0x8] sm:$0xf]
      %v2389 = vld [vmem:[%s5 + $0xc] sm:$0xf]
      %v2390 = vld [vmem:[%s5 + $0x10] sm:$0xf]
      %v2391 = vld [vmem:[%s5 + $0x14] sm:$0xf]
      %v2392 = vld [vmem:[%s5 + $0x18] sm:$0xf]
      %v2393 = vld [vmem:[%s5 + $0x1c] sm:$0xf]
      %v2394 = vld [vmem:[%s6] sm:$0x1]
      %v2396 = vlaneseq
      %v2397 = vshrl.u32 %v2396, 7
      %v2398 = vsub.s32 0, %v2397
      %v2399 = vrot.slane %v2394, %v2398
      %v2409 = vunpack.c.l.b16 %v2386
      %v2410 = vunpack.c.l.b16 %v2387
      %v2411 = vunpack.c.l.b16 %v2388
      %v2412 = vunpack.c.l.b16 %v2389
      %v2413 = vunpack.c.l.b16 %v2390
      %v2414 = vunpack.c.l.b16 %v2391
      %v2415 = vunpack.c.l.b16 %v2392
      %v2416 = vunpack.c.l.b16 %v2393
      %v2417 = vpack.c.b16 %v2410, %v2409
      %v2418 = vpack.c.b16 %v2412, %v2411
      %v2419 = vpack.c.b16 %v2414, %v2413
      %v2420 = vpack.c.b16 %v2416, %v2415
      %v2426 = vsel %vm1456, %v2322, 0
      %v2429 = vsel %vm1456, %v2323, 0
      %v2432 = vsel %vm1456, %v2324, 0
      %v2435 = vsel %vm1456, %v2325, 0
      %v2438 = vsel %vm1456, %v2326, 0
      %v2441 = vsel %vm1456, %v2327, 0
      %v2444 = vsel %vm1456, %v2328, 0
      %v2447 = vsel %vm1456, %v2329, 0
      %v2450 = vsel %vm1456, %v2330, 0
      %v2453 = vsel %vm1456, %v2331, 0
      %v2456 = vsel %vm1456, %v2332, 0
      %v2459 = vsel %vm1456, %v2333, 0
      %v2462 = vsel %vm1456, %v2334, 0
      %v2465 = vsel %vm1456, %v2335, 0
      %v2468 = vsel %vm1456, %v2336, 0
      %v2471 = vsel %vm1456, %v2337, 0
      %v2474 = vsel %vm1456, %v2338, 0
      %v2477 = vsel %vm1456, %v2339, 0
      %v2480 = vsel %vm1456, %v2340, 0
      %v2483 = vsel %vm1456, %v2341, 0
      %v2486 = vsel %vm1456, %v2342, 0
      %v2489 = vsel %vm1456, %v2343, 0
      %v2492 = vsel %vm1456, %v2344, 0
      %v2495 = vsel %vm1456, %v2345, 0
      %v2498 = vsel %vm1456, %v2346, 0
      %v2501 = vsel %vm1456, %v2347, 0
      %v2504 = vsel %vm1456, %v2348, 0
      %v2507 = vsel %vm1456, %v2349, 0
      %v2510 = vsel %vm1456, %v2350, 0
      %v2513 = vsel %vm1456, %v2351, 0
      %v2516 = vsel %vm1456, %v2352, 0
      %v2519 = vsel %vm1456, %v2353, 0
      %v2522 = vsel %vm1456, %v2354, 0
      %v2525 = vsel %vm1456, %v2355, 0
      %v2528 = vsel %vm1456, %v2356, 0
      %v2531 = vsel %vm1456, %v2357, 0
      %v2534 = vsel %vm1456, %v2358, 0
      %v2537 = vsel %vm1456, %v2359, 0
      %v2540 = vsel %vm1456, %v2360, 0
      %v2543 = vsel %vm1456, %v2361, 0
      %v2546 = vsel %vm1456, %v2362, 0
      %v2549 = vsel %vm1456, %v2363, 0
      %v2552 = vsel %vm1456, %v2364, 0
      %v2555 = vsel %vm1456, %v2365, 0
      %v2558 = vsel %vm1456, %v2366, 0
      %v2561 = vsel %vm1456, %v2367, 0
      %v2564 = vsel %vm1456, %v2368, 0
      %v2567 = vsel %vm1456, %v2369, 0
      %v2570 = vsel %vm1456, %v2370, 0
      %v2573 = vsel %vm1456, %v2371, 0
      %v2576 = vsel %vm1456, %v2372, 0
      %v2579 = vsel %vm1456, %v2373, 0
      %v2582 = vsel %vm1456, %v2374, 0
      %v2585 = vsel %vm1456, %v2375, 0
      %v2588 = vsel %vm1456, %v2376, 0
      %v2591 = vsel %vm1456, %v2377, 0
      %v2594 = vsel %vm1456, %v2378, 0
      %v2597 = vsel %vm1456, %v2379, 0
      %v2600 = vsel %vm1456, %v2380, 0
      %v2603 = vsel %vm1456, %v2381, 0
      %v2606 = vsel %vm1456, %v2382, 0
      %v2609 = vsel %vm1456, %v2383, 0
      %v2612 = vsel %vm1456, %v2384, 0
      %v2615 = vsel %vm1456, %v2385, 0
      %2617 = vmatprep.subr.bf16.mxu0 0
      %2618 = vmatpush1.bf16.msra.mxu0 %v2417
      %2619 = vmatprep.subr.bf16.mxu0 0
      %2620 = vmatpush1.bf16.msra.mxu0 %v2418
      %2621 = vmatprep.subr.bf16.mxu0 0
      %2622 = vmatpush1.bf16.msra.mxu0 %v2419
      %2623 = vmatprep.subr.bf16.mxu0 0
      %2624 = vmatpush1.bf16.msra.mxu0 %v2420
      %2625 = vmatprep.subr.bf16.mxu0 0
      %2626 = vmatpush1.bf16.msra.mxu0 0
      %2627 = vmatprep.subr.bf16.mxu0 0
      %2628 = vmatpush1.bf16.msra.mxu0 0
      %2629 = vmatprep.subr.bf16.mxu0 0
      %2630 = vmatpush1.bf16.msra.mxu0 0
      %2631 = vmatprep.subr.bf16.mxu0 0
      %2632 = vmatpush1.bf16.msra.mxu0 0
      %2633 = vmatprep.subr.bf16.mxu0 0
      %2634 = vmatpush1.bf16.msra.mxu0 0
      %2635 = vmatprep.subr.bf16.mxu0 0
      %2636 = vmatpush1.bf16.msra.mxu0 0
      %2637 = vmatprep.subr.bf16.mxu0 0
      %2638 = vmatpush1.bf16.msra.mxu0 0
      %2639 = vmatprep.subr.bf16.mxu0 0
      %2640 = vmatpush1.bf16.msra.mxu0 0
      %2641 = vmatprep.subr.bf16.mxu0 0
      %2642 = vmatpush1.bf16.msra.mxu0 0
      %2643 = vmatprep.subr.bf16.mxu0 0
      %2644 = vmatpush1.bf16.msra.mxu0 0
      %2645 = vmatprep.subr.bf16.mxu0 0
      %2646 = vmatpush1.bf16.msra.mxu0 0
      %2647 = vmatprep.subr.bf16.mxu0 0
      %2648 = vmatpush1.bf16.msra.mxu0 0
      %2649 = vmatprep.mubr.bf16.mxu0 0
      %2650 = vmatmul.mubr.bf16.gmra.mrb[0].mxu0 %v2426
      %v2651 = vpop.f32.mrb[0].mxu0
      %v2652 = vadd.f32 %v2399, %v2651
      %v2653 = vpop.f32.mrb[0].mxu0
      %v2654 = vpop.f32.mrb[0].mxu0
      %v2655 = vadd.f32 %v2399, %v2654
      %v2656 = vpop.f32.mrb[0].mxu0
      %2657 = vmatprep.mubr.bf16.mxu0 0
      %2658 = vmatmul.mubr.bf16.gmra.mrb[0].mxu0 %v2429
      %v2659 = vpop.f32.mrb[0].mxu0
      %v2660 = vadd.f32 %v2399, %v2659
      %v2661 = vpop.f32.mrb[0].mxu0
      %v2662 = vpop.f32.mrb[0].mxu0
      %v2663 = vadd.f32 %v2399, %v2662
      %v2664 = vpop.f32.mrb[0].mxu0
      %2665 = vmatprep.mubr.bf16.mxu0 0
      %2666 = vmatmul.mubr.bf16.gmra.mrb[0].mxu0 %v2432
      %v2667 = vpop.f32.mrb[0].mxu0
      %v2668 = vadd.f32 %v2399, %v2667
      %v2669 = vpop.f32.mrb[0].mxu0
      %v2670 = vpop.f32.mrb[0].mxu0
      %v2671 = vadd.f32 %v2399, %v2670
      %v2672 = vpop.f32.mrb[0].mxu0
      %2673 = vmatprep.mubr.bf16.mxu0 0
      %2674 = vmatmul.mubr.bf16.gmra.mrb[0].mxu0 %v2435
      %v2675 = vpop.f32.mrb[0].mxu0
      %v2676 = vadd.f32 %v2399, %v2675
      %v2677 = vpop.f32.mrb[0].mxu0
      %v2678 = vpop.f32.mrb[0].mxu0
      %v2679 = vadd.f32 %v2399, %v2678
      %v2680 = vpop.f32.mrb[0].mxu0
      %2681 = vmatprep.mubr.bf16.mxu0 0
      %2682 = vmatmul.mubr.bf16.gmra.mrb[0].mxu0 %v2438
      %v2683 = vpop.f32.mrb[0].mxu0
      %v2684 = vadd.f32 %v2399, %v2683
      %v2685 = vpop.f32.mrb[0].mxu0
      %v2686 = vpop.f32.mrb[0].mxu0
      %v2687 = vadd.f32 %v2399, %v2686
      %v2688 = vpop.f32.mrb[0].mxu0
      %2689 = vmatprep.mubr.bf16.mxu0 0
      %2690 = vmatmul.mubr.bf16.gmra.mrb[0].mxu0 %v2441
      %v2691 = vpop.f32.mrb[0].mxu0
      %v2692 = vadd.f32 %v2399, %v2691
      %v2693 = vpop.f32.mrb[0].mxu0
      %v2694 = vpop.f32.mrb[0].mxu0
      %v2695 = vadd.f32 %v2399, %v2694
      %v2696 = vpop.f32.mrb[0].mxu0
      %2697 = vmatprep.mubr.bf16.mxu0 0
      %2698 = vmatmul.mubr.bf16.gmra.mrb[0].mxu0 %v2444
      %v2699 = vpop.f32.mrb[0].mxu0
      %v2700 = vadd.f32 %v2399, %v2699
      %v2701 = vpop.f32.mrb[0].mxu0
      %v2702 = vpop.f32.mrb[0].mxu0
      %v2703 = vadd.f32 %v2399, %v2702
      %v2704 = vpop.f32.mrb[0].mxu0
      %2705 = vmatprep.mubr.bf16.mxu0 0
      %2706 = vmatmul.mubr.bf16.gmra.mrb[0].mxu0 %v2447
      %v2707 = vpop.f32.mrb[0].mxu0
      %v2708 = vadd.f32 %v2399, %v2707
      %v2709 = vpop.f32.mrb[0].mxu0
      %v2710 = vpop.f32.mrb[0].mxu0
      %v2711 = vadd.f32 %v2399, %v2710
      %v2712 = vpop.f32.mrb[0].mxu0
      %2713 = vmatprep.mubr.bf16.mxu0 0
      %2714 = vmatmul.mubr.bf16.gmra.mrb[0].mxu0 %v2450
      %v2715 = vpop.f32.mrb[0].mxu0
      %v2716 = vadd.f32 %v2399, %v2715
      %v2717 = vpop.f32.mrb[0].mxu0
      %v2718 = vpop.f32.mrb[0].mxu0
      %v2719 = vadd.f32 %v2399, %v2718
      %v2720 = vpop.f32.mrb[0].mxu0
      %2721 = vmatprep.mubr.bf16.mxu0 0
      %2722 = vmatmul.mubr.bf16.gmra.mrb[0].mxu0 %v2453
      %v2723 = vpop.f32.mrb[0].mxu0
      %v2724 = vadd.f32 %v2399, %v2723
      %v2725 = vpop.f32.mrb[0].mxu0
      %v2726 = vpop.f32.mrb[0].mxu0
      %v2727 = vadd.f32 %v2399, %v2726
      %v2728 = vpop.f32.mrb[0].mxu0
      %2729 = vmatprep.mubr.bf16.mxu0 0
      %2730 = vmatmul.mubr.bf16.gmra.mrb[0].mxu0 %v2456
      %v2731 = vpop.f32.mrb[0].mxu0
      %v2732 = vadd.f32 %v2399, %v2731
      %v2733 = vpop.f32.mrb[0].mxu0
      %v2734 = vpop.f32.mrb[0].mxu0
      %v2735 = vadd.f32 %v2399, %v2734
      %v2736 = vpop.f32.mrb[0].mxu0
      %2737 = vmatprep.mubr.bf16.mxu0 0
      %2738 = vmatmul.mubr.bf16.gmra.mrb[0].mxu0 %v2459
      %v2739 = vpop.f32.mrb[0].mxu0
      %v2740 = vadd.f32 %v2399, %v2739
      %v2741 = vpop.f32.mrb[0].mxu0
      %v2742 = vpop.f32.mrb[0].mxu0
      %v2743 = vadd.f32 %v2399, %v2742
      %v2744 = vpop.f32.mrb[0].mxu0
      %2745 = vmatprep.mubr.bf16.mxu0 0
      %2746 = vmatmul.mubr.bf16.gmra.mrb[0].mxu0 %v2462
      %v2747 = vpop.f32.mrb[0].mxu0
      %v2748 = vadd.f32 %v2399, %v2747
      %v2749 = vpop.f32.mrb[0].mxu0
      %v2750 = vpop.f32.mrb[0].mxu0
      %v2751 = vadd.f32 %v2399, %v2750
      %v2752 = vpop.f32.mrb[0].mxu0
      %2753 = vmatprep.mubr.bf16.mxu0 0
      %2754 = vmatmul.mubr.bf16.gmra.mrb[0].mxu0 %v2465
      %v2755 = vpop.f32.mrb[0].mxu0
      %v2756 = vadd.f32 %v2399, %v2755
      %v2757 = vpop.f32.mrb[0].mxu0
      %v2758 = vpop.f32.mrb[0].mxu0
      %v2759 = vadd.f32 %v2399, %v2758
      %v2760 = vpop.f32.mrb[0].mxu0
      %2761 = vmatprep.mubr.bf16.mxu0 0
      %2762 = vmatmul.mubr.bf16.gmra.mrb[0].mxu0 %v2468
      %v2763 = vpop.f32.mrb[0].mxu0
      %v2764 = vadd.f32 %v2399, %v2763
      %v2765 = vpop.f32.mrb[0].mxu0
      %v2766 = vpop.f32.mrb[0].mxu0
      %v2767 = vadd.f32 %v2399, %v2766
      %v2768 = vpop.f32.mrb[0].mxu0
      %2769 = vmatprep.mubr.bf16.mxu0 0
      %2770 = vmatmul.mubr.bf16.gmra.mrb[0].mxu0 %v2471
      %v2771 = vpop.f32.mrb[0].mxu0
      %v2772 = vadd.f32 %v2399, %v2771
      %v2773 = vpop.f32.mrb[0].mxu0
      %v2774 = vpop.f32.mrb[0].mxu0
      %v2775 = vadd.f32 %v2399, %v2774
      %v2776 = vpop.f32.mrb[0].mxu0
      %2777 = vmatprep.mubr.bf16.mxu0 0
      %2778 = vmatmul.mubr.bf16.gmra.mrb[0].mxu0 %v2474
      %v2779 = vpop.f32.mrb[0].mxu0
      %v2780 = vadd.f32 %v2399, %v2779
      %v2781 = vpop.f32.mrb[0].mxu0
      %v2782 = vpop.f32.mrb[0].mxu0
      %v2783 = vadd.f32 %v2399, %v2782
      %v2784 = vpop.f32.mrb[0].mxu0
      %2785 = vmatprep.mubr.bf16.mxu0 0
      %2786 = vmatmul.mubr.bf16.gmra.mrb[0].mxu0 %v2477
      %v2787 = vpop.f32.mrb[0].mxu0
      %v2788 = vadd.f32 %v2399, %v2787
      %v2789 = vpop.f32.mrb[0].mxu0
      %v2790 = vpop.f32.mrb[0].mxu0
      %v2791 = vadd.f32 %v2399, %v2790
      %v2792 = vpop.f32.mrb[0].mxu0
      %2793 = vmatprep.mubr.bf16.mxu0 0
      %2794 = vmatmul.mubr.bf16.gmra.mrb[0].mxu0 %v2480
      %v2795 = vpop.f32.mrb[0].mxu0
      %v2796 = vadd.f32 %v2399, %v2795
      %v2797 = vpop.f32.mrb[0].mxu0
      %v2798 = vpop.f32.mrb[0].mxu0
      %v2799 = vadd.f32 %v2399, %v2798
      %v2800 = vpop.f32.mrb[0].mxu0
      %2801 = vmatprep.mubr.bf16.mxu0 0
      %2802 = vmatmul.mubr.bf16.gmra.mrb[0].mxu0 %v2483
      %v2803 = vpop.f32.mrb[0].mxu0
      %v2804 = vadd.f32 %v2399, %v2803
      %v2805 = vpop.f32.mrb[0].mxu0
      %v2806 = vpop.f32.mrb[0].mxu0
      %v2807 = vadd.f32 %v2399, %v2806
      %v2808 = vpop.f32.mrb[0].mxu0
      %2809 = vmatprep.mubr.bf16.mxu0 0
      %2810 = vmatmul.mubr.bf16.gmra.mrb[0].mxu0 %v2486
      %v2811 = vpop.f32.mrb[0].mxu0
      %v2812 = vadd.f32 %v2399, %v2811
      %v2813 = vpop.f32.mrb[0].mxu0
      %v2814 = vpop.f32.mrb[0].mxu0
      %v2815 = vadd.f32 %v2399, %v2814
      %v2816 = vpop.f32.mrb[0].mxu0
      %2817 = vmatprep.mubr.bf16.mxu0 0
      %2818 = vmatmul.mubr.bf16.gmra.mrb[0].mxu0 %v2489
      %v2819 = vpop.f32.mrb[0].mxu0
      %v2820 = vadd.f32 %v2399, %v2819
      %v2821 = vpop.f32.mrb[0].mxu0
      %v2822 = vpop.f32.mrb[0].mxu0
      %v2823 = vadd.f32 %v2399, %v2822
      %v2824 = vpop.f32.mrb[0].mxu0
      %2825 = vmatprep.mubr.bf16.mxu0 0
      %2826 = vmatmul.mubr.bf16.gmra.mrb[0].mxu0 %v2492
      %v2827 = vpop.f32.mrb[0].mxu0
      %v2828 = vadd.f32 %v2399, %v2827
      %v2829 = vpop.f32.mrb[0].mxu0
      %v2830 = vpop.f32.mrb[0].mxu0
      %v2831 = vadd.f32 %v2399, %v2830
      %v2832 = vpop.f32.mrb[0].mxu0
      %2833 = vmatprep.mubr.bf16.mxu0 0
      %2834 = vmatmul.mubr.bf16.gmra.mrb[0].mxu0 %v2495
      %v2835 = vpop.f32.mrb[0].mxu0
      %v2836 = vadd.f32 %v2399, %v2835
      %v2837 = vpop.f32.mrb[0].mxu0
      %v2838 = vpop.f32.mrb[0].mxu0
      %v2839 = vadd.f32 %v2399, %v2838
      %v2840 = vpop.f32.mrb[0].mxu0
      %2841 = vmatprep.mubr.bf16.mxu0 0
      %2842 = vmatmul.mubr.bf16.gmra.mrb[0].mxu0 %v2498
      %v2843 = vpop.f32.mrb[0].mxu0
      %v2844 = vadd.f32 %v2399, %v2843
      %v2845 = vpop.f32.mrb[0].mxu0
      %v2846 = vpop.f32.mrb[0].mxu0
      %v2847 = vadd.f32 %v2399, %v2846
      %v2848 = vpop.f32.mrb[0].mxu0
      %2849 = vmatprep.mubr.bf16.mxu0 0
      %2850 = vmatmul.mubr.bf16.gmra.mrb[0].mxu0 %v2501
      %v2851 = vpop.f32.mrb[0].mxu0
      %v2852 = vadd.f32 %v2399, %v2851
      %v2853 = vpop.f32.mrb[0].mxu0
      %v2854 = vpop.f32.mrb[0].mxu0
      %v2855 = vadd.f32 %v2399, %v2854
      %v2856 = vpop.f32.mrb[0].mxu0
      %2857 = vmatprep.mubr.bf16.mxu0 0
      %2858 = vmatmul.mubr.bf16.gmra.mrb[0].mxu0 %v2504
      %v2859 = vpop.f32.mrb[0].mxu0
      %v2860 = vadd.f32 %v2399, %v2859
      %v2861 = vpop.f32.mrb[0].mxu0
      %v2862 = vpop.f32.mrb[0].mxu0
      %v2863 = vadd.f32 %v2399, %v2862
      %v2864 = vpop.f32.mrb[0].mxu0
      %2865 = vmatprep.mubr.bf16.mxu0 0
      %2866 = vmatmul.mubr.bf16.gmra.mrb[0].mxu0 %v2507
      %v2867 = vpop.f32.mrb[0].mxu0
      %v2868 = vadd.f32 %v2399, %v2867
      %v2869 = vpop.f32.mrb[0].mxu0
      %v2870 = vpop.f32.mrb[0].mxu0
      %v2871 = vadd.f32 %v2399, %v2870
      %v2872 = vpop.f32.mrb[0].mxu0
      %2873 = vmatprep.mubr.bf16.mxu0 0
      %2874 = vmatmul.mubr.bf16.gmra.mrb[0].mxu0 %v2510
      %v2875 = vpop.f32.mrb[0].mxu0
      %v2876 = vadd.f32 %v2399, %v2875
      %v2877 = vpop.f32.mrb[0].mxu0
      %v2878 = vpop.f32.mrb[0].mxu0
      %v2879 = vadd.f32 %v2399, %v2878
      %v2880 = vpop.f32.mrb[0].mxu0
      %2881 = vmatprep.mubr.bf16.mxu0 0
      %2882 = vmatmul.mubr.bf16.gmra.mrb[0].mxu0 %v2513
      %v2883 = vpop.f32.mrb[0].mxu0
      %v2884 = vadd.f32 %v2399, %v2883
      %v2885 = vpop.f32.mrb[0].mxu0
      %v2886 = vpop.f32.mrb[0].mxu0
      %v2887 = vadd.f32 %v2399, %v2886
      %v2888 = vpop.f32.mrb[0].mxu0
      %2889 = vmatprep.mubr.bf16.mxu0 0
      %2890 = vmatmul.mubr.bf16.gmra.mrb[0].mxu0 %v2516
      %v2891 = vpop.f32.mrb[0].mxu0
      %v2892 = vadd.f32 %v2399, %v2891
      %v2893 = vpop.f32.mrb[0].mxu0
      %v2894 = vpop.f32.mrb[0].mxu0
      %v2895 = vadd.f32 %v2399, %v2894
      %v2896 = vpop.f32.mrb[0].mxu0
      %2897 = vmatprep.mubr.bf16.mxu0 0
      %2898 = vmatmul.mubr.bf16.gmra.mrb[0].mxu0 %v2519
      %v2899 = vpop.f32.mrb[0].mxu0
      %v2900 = vadd.f32 %v2399, %v2899
      %v2901 = vpop.f32.mrb[0].mxu0
      %v2902 = vpop.f32.mrb[0].mxu0
      %v2903 = vadd.f32 %v2399, %v2902
      %v2904 = vpop.f32.mrb[0].mxu0
      %2905 = vmatprep.mubr.bf16.mxu0 0
      %2906 = vmatmul.mubr.bf16.gmra.mrb[0].mxu0 %v2522
      %v2907 = vpop.f32.mrb[0].mxu0
      %v2908 = vadd.f32 %v2399, %v2907
      %v2909 = vpop.f32.mrb[0].mxu0
      %v2910 = vpop.f32.mrb[0].mxu0
      %v2911 = vadd.f32 %v2399, %v2910
      %v2912 = vpop.f32.mrb[0].mxu0
      %2913 = vmatprep.mubr.bf16.mxu0 0
      %2914 = vmatmul.mubr.bf16.gmra.mrb[0].mxu0 %v2525
      %v2915 = vpop.f32.mrb[0].mxu0
      %v2916 = vadd.f32 %v2399, %v2915
      %v2917 = vpop.f32.mrb[0].mxu0
      %v2918 = vpop.f32.mrb[0].mxu0
      %v2919 = vadd.f32 %v2399, %v2918
      %v2920 = vpop.f32.mrb[0].mxu0
      %2921 = vmatprep.mubr.bf16.mxu0 0
      %2922 = vmatmul.mubr.bf16.gmra.mrb[0].mxu0 %v2528
      %v2923 = vpop.f32.mrb[0].mxu0
      %v2924 = vadd.f32 %v2399, %v2923
      %v2925 = vpop.f32.mrb[0].mxu0
      %v2926 = vpop.f32.mrb[0].mxu0
      %v2927 = vadd.f32 %v2399, %v2926
      %v2928 = vpop.f32.mrb[0].mxu0
      %2929 = vmatprep.mubr.bf16.mxu0 0
      %2930 = vmatmul.mubr.bf16.gmra.mrb[0].mxu0 %v2531
      %v2931 = vpop.f32.mrb[0].mxu0
      %v2932 = vadd.f32 %v2399, %v2931
      %v2933 = vpop.f32.mrb[0].mxu0
      %v2934 = vpop.f32.mrb[0].mxu0
      %v2935 = vadd.f32 %v2399, %v2934
      %v2936 = vpop.f32.mrb[0].mxu0
      %2937 = vmatprep.mubr.bf16.mxu0 0
      %2938 = vmatmul.mubr.bf16.gmra.mrb[0].mxu0 %v2534
      %v2939 = vpop.f32.mrb[0].mxu0
      %v2940 = vadd.f32 %v2399, %v2939
      %v2941 = vpop.f32.mrb[0].mxu0
      %v2942 = vpop.f32.mrb[0].mxu0
      %v2943 = vadd.f32 %v2399, %v2942
      %v2944 = vpop.f32.mrb[0].mxu0
      %2945 = vmatprep.mubr.bf16.mxu0 0
      %2946 = vmatmul.mubr.bf16.gmra.mrb[0].mxu0 %v2537
      %v2947 = vpop.f32.mrb[0].mxu0
      %v2948 = vadd.f32 %v2399, %v2947
      %v2949 = vpop.f32.mrb[0].mxu0
      %v2950 = vpop.f32.mrb[0].mxu0
      %v2951 = vadd.f32 %v2399, %v2950
      %v2952 = vpop.f32.mrb[0].mxu0
      %2953 = vmatprep.mubr.bf16.mxu0 0
      %2954 = vmatmul.mubr.bf16.gmra.mrb[0].mxu0 %v2540
      %v2955 = vpop.f32.mrb[0].mxu0
      %v2956 = vadd.f32 %v2399, %v2955
      %v2957 = vpop.f32.mrb[0].mxu0
      %v2958 = vpop.f32.mrb[0].mxu0
      %v2959 = vadd.f32 %v2399, %v2958
      %v2960 = vpop.f32.mrb[0].mxu0
      %2961 = vmatprep.mubr.bf16.mxu0 0
      %2962 = vmatmul.mubr.bf16.gmra.mrb[0].mxu0 %v2543
      %v2963 = vpop.f32.mrb[0].mxu0
      %v2964 = vadd.f32 %v2399, %v2963
      %v2965 = vpop.f32.mrb[0].mxu0
      %v2966 = vpop.f32.mrb[0].mxu0
      %v2967 = vadd.f32 %v2399, %v2966
      %v2968 = vpop.f32.mrb[0].mxu0
      %2969 = vmatprep.mubr.bf16.mxu0 0
      %2970 = vmatmul.mubr.bf16.gmra.mrb[0].mxu0 %v2546
      %v2971 = vpop.f32.mrb[0].mxu0
      %v2972 = vadd.f32 %v2399, %v2971
      %v2973 = vpop.f32.mrb[0].mxu0
      %v2974 = vpop.f32.mrb[0].mxu0
      %v2975 = vadd.f32 %v2399, %v2974
      %v2976 = vpop.f32.mrb[0].mxu0
      %2977 = vmatprep.mubr.bf16.mxu0 0
      %2978 = vmatmul.mubr.bf16.gmra.mrb[0].mxu0 %v2549
      %v2979 = vpop.f32.mrb[0].mxu0
      %v2980 = vadd.f32 %v2399, %v2979
      %v2981 = vpop.f32.mrb[0].mxu0
      %v2982 = vpop.f32.mrb[0].mxu0
      %v2983 = vadd.f32 %v2399, %v2982
      %v2984 = vpop.f32.mrb[0].mxu0
      %2985 = vmatprep.mubr.bf16.mxu0 0
      %2986 = vmatmul.mubr.bf16.gmra.mrb[0].mxu0 %v2552
      %v2987 = vpop.f32.mrb[0].mxu0
      %v2988 = vadd.f32 %v2399, %v2987
      %v2989 = vpop.f32.mrb[0].mxu0
      %v2990 = vpop.f32.mrb[0].mxu0
      %v2991 = vadd.f32 %v2399, %v2990
      %v2992 = vpop.f32.mrb[0].mxu0
      %2993 = vmatprep.mubr.bf16.mxu0 0
      %2994 = vmatmul.mubr.bf16.gmra.mrb[0].mxu0 %v2555
      %v2995 = vpop.f32.mrb[0].mxu0
      %v2996 = vadd.f32 %v2399, %v2995
      %v2997 = vpop.f32.mrb[0].mxu0
      %v2998 = vpop.f32.mrb[0].mxu0
      %v2999 = vadd.f32 %v2399, %v2998
      %v3000 = vpop.f32.mrb[0].mxu0
      %3001 = vmatprep.mubr.bf16.mxu0 0
      %3002 = vmatmul.mubr.bf16.gmra.mrb[0].mxu0 %v2558
      %v3003 = vpop.f32.mrb[0].mxu0
      %v3004 = vadd.f32 %v2399, %v3003
      %v3005 = vpop.f32.mrb[0].mxu0
      %v3006 = vpop.f32.mrb[0].mxu0
      %v3007 = vadd.f32 %v2399, %v3006
      %v3008 = vpop.f32.mrb[0].mxu0
      %3009 = vmatprep.mubr.bf16.mxu0 0
      %3010 = vmatmul.mubr.bf16.gmra.mrb[0].mxu0 %v2561
      %v3011 = vpop.f32.mrb[0].mxu0
      %v3012 = vadd.f32 %v2399, %v3011
      %v3013 = vpop.f32.mrb[0].mxu0
      %v3014 = vpop.f32.mrb[0].mxu0
      %v3015 = vadd.f32 %v2399, %v3014
      %v3016 = vpop.f32.mrb[0].mxu0
      %3017 = vmatprep.mubr.bf16.mxu0 0
      %3018 = vmatmul.mubr.bf16.gmra.mrb[0].mxu0 %v2564
      %v3019 = vpop.f32.mrb[0].mxu0
      %v3020 = vadd.f32 %v2399, %v3019
      %v3021 = vpop.f32.mrb[0].mxu0
      %v3022 = vpop.f32.mrb[0].mxu0
      %v3023 = vadd.f32 %v2399, %v3022
      %v3024 = vpop.f32.mrb[0].mxu0
      %3025 = vmatprep.mubr.bf16.mxu0 0
      %3026 = vmatmul.mubr.bf16.gmra.mrb[0].mxu0 %v2567
      %v3027 = vpop.f32.mrb[0].mxu0
      %v3028 = vadd.f32 %v2399, %v3027
      %v3029 = vpop.f32.mrb[0].mxu0
      %v3030 = vpop.f32.mrb[0].mxu0
      %v3031 = vadd.f32 %v2399, %v3030
      %v3032 = vpop.f32.mrb[0].mxu0
      %3033 = vmatprep.mubr.bf16.mxu0 0
      %3034 = vmatmul.mubr.bf16.gmra.mrb[0].mxu0 %v2570
      %v3035 = vpop.f32.mrb[0].mxu0
      %v3036 = vadd.f32 %v2399, %v3035
      %v3037 = vpop.f32.mrb[0].mxu0
      %v3038 = vpop.f32.mrb[0].mxu0
      %v3039 = vadd.f32 %v2399, %v3038
      %v3040 = vpop.f32.mrb[0].mxu0
      %3041 = vmatprep.mubr.bf16.mxu0 0
      %3042 = vmatmul.mubr.bf16.gmra.mrb[0].mxu0 %v2573
      %v3043 = vpop.f32.mrb[0].mxu0
      %v3044 = vadd.f32 %v2399, %v3043
      %v3045 = vpop.f32.mrb[0].mxu0
      %v3046 = vpop.f32.mrb[0].mxu0
      %v3047 = vadd.f32 %v2399, %v3046
      %v3048 = vpop.f32.mrb[0].mxu0
      %3049 = vmatprep.mubr.bf16.mxu0 0
      %3050 = vmatmul.mubr.bf16.gmra.mrb[0].mxu0 %v2576
      %v3051 = vpop.f32.mrb[0].mxu0
      %v3052 = vadd.f32 %v2399, %v3051
      %v3053 = vpop.f32.mrb[0].mxu0
      %v3054 = vpop.f32.mrb[0].mxu0
      %v3055 = vadd.f32 %v2399, %v3054
      %v3056 = vpop.f32.mrb[0].mxu0
      %3057 = vmatprep.mubr.bf16.mxu0 0
      %3058 = vmatmul.mubr.bf16.gmra.mrb[0].mxu0 %v2579
      %v3059 = vpop.f32.mrb[0].mxu0
      %v3060 = vadd.f32 %v2399, %v3059
      %v3061 = vpop.f32.mrb[0].mxu0
      %v3062 = vpop.f32.mrb[0].mxu0
      %v3063 = vadd.f32 %v2399, %v3062
      %v3064 = vpop.f32.mrb[0].mxu0
      %3065 = vmatprep.mubr.bf16.mxu0 0
      %3066 = vmatmul.mubr.bf16.gmra.mrb[0].mxu0 %v2582
      %v3067 = vpop.f32.mrb[0].mxu0
      %v3068 = vadd.f32 %v2399, %v3067
      %v3069 = vpop.f32.mrb[0].mxu0
      %v3070 = vpop.f32.mrb[0].mxu0
      %v3071 = vadd.f32 %v2399, %v3070
      %v3072 = vpop.f32.mrb[0].mxu0
      %3073 = vmatprep.mubr.bf16.mxu0 0
      %3074 = vmatmul.mubr.bf16.gmra.mrb[0].mxu0 %v2585
      %v3075 = vpop.f32.mrb[0].mxu0
      %v3076 = vadd.f32 %v2399, %v3075
      %v3077 = vpop.f32.mrb[0].mxu0
      %v3078 = vpop.f32.mrb[0].mxu0
      %v3079 = vadd.f32 %v2399, %v3078
      %v3080 = vpop.f32.mrb[0].mxu0
      %3081 = vmatprep.mubr.bf16.mxu0 0
      %3082 = vmatmul.mubr.bf16.gmra.mrb[0].mxu0 %v2588
      %v3083 = vpop.f32.mrb[0].mxu0
      %v3084 = vadd.f32 %v2399, %v3083
      %v3085 = vpop.f32.mrb[0].mxu0
      %v3086 = vpop.f32.mrb[0].mxu0
      %v3087 = vadd.f32 %v2399, %v3086
      %v3088 = vpop.f32.mrb[0].mxu0
      %3089 = vmatprep.mubr.bf16.mxu0 0
      %3090 = vmatmul.mubr.bf16.gmra.mrb[0].mxu0 %v2591
      %v3091 = vpop.f32.mrb[0].mxu0
      %v3092 = vadd.f32 %v2399, %v3091
      %v3093 = vpop.f32.mrb[0].mxu0
      %v3094 = vpop.f32.mrb[0].mxu0
      %v3095 = vadd.f32 %v2399, %v3094
      %v3096 = vpop.f32.mrb[0].mxu0
      %3097 = vmatprep.mubr.bf16.mxu0 0
      %3098 = vmatmul.mubr.bf16.gmra.mrb[0].mxu0 %v2594
      %v3099 = vpop.f32.mrb[0].mxu0
      %v3100 = vadd.f32 %v2399, %v3099
      %v3101 = vpop.f32.mrb[0].mxu0
      %v3102 = vpop.f32.mrb[0].mxu0
      %v3103 = vadd.f32 %v2399, %v3102
      %v3104 = vpop.f32.mrb[0].mxu0
      %3105 = vmatprep.mubr.bf16.mxu0 0
      %3106 = vmatmul.mubr.bf16.gmra.mrb[0].mxu0 %v2597
      %v3107 = vpop.f32.mrb[0].mxu0
      %v3108 = vadd.f32 %v2399, %v3107
      %v3109 = vpop.f32.mrb[0].mxu0
      %v3110 = vpop.f32.mrb[0].mxu0
      %v3111 = vadd.f32 %v2399, %v3110
      %v3112 = vpop.f32.mrb[0].mxu0
      %3113 = vmatprep.mubr.bf16.mxu0 0
      %3114 = vmatmul.mubr.bf16.gmra.mrb[0].mxu0 %v2600
      %v3115 = vpop.f32.mrb[0].mxu0
      %v3116 = vadd.f32 %v2399, %v3115
      %v3117 = vpop.f32.mrb[0].mxu0
      %v3118 = vpop.f32.mrb[0].mxu0
      %v3119 = vadd.f32 %v2399, %v3118
      %v3120 = vpop.f32.mrb[0].mxu0
      %3121 = vmatprep.mubr.bf16.mxu0 0
      %3122 = vmatmul.mubr.bf16.gmra.mrb[0].mxu0 %v2603
      %v3123 = vpop.f32.mrb[0].mxu0
      %v3124 = vadd.f32 %v2399, %v3123
      %v3125 = vpop.f32.mrb[0].mxu0
      %v3126 = vpop.f32.mrb[0].mxu0
      %v3127 = vadd.f32 %v2399, %v3126
      %v3128 = vpop.f32.mrb[0].mxu0
      %3129 = vmatprep.mubr.bf16.mxu0 0
      %3130 = vmatmul.mubr.bf16.gmra.mrb[0].mxu0 %v2606
      %v3131 = vpop.f32.mrb[0].mxu0
      %v3132 = vadd.f32 %v2399, %v3131
      %v3133 = vpop.f32.mrb[0].mxu0
      %v3134 = vpop.f32.mrb[0].mxu0
      %v3135 = vadd.f32 %v2399, %v3134
      %v3136 = vpop.f32.mrb[0].mxu0
      %3137 = vmatprep.mubr.bf16.mxu0 0
      %3138 = vmatmul.mubr.bf16.gmra.mrb[0].mxu0 %v2609
      %v3139 = vpop.f32.mrb[0].mxu0
      %v3140 = vadd.f32 %v2399, %v3139
      %v3141 = vpop.f32.mrb[0].mxu0
      %v3142 = vpop.f32.mrb[0].mxu0
      %v3143 = vadd.f32 %v2399, %v3142
      %v3144 = vpop.f32.mrb[0].mxu0
      %3145 = vmatprep.mubr.bf16.mxu0 0
      %3146 = vmatmul.mubr.bf16.gmra.mrb[0].mxu0 %v2612
      %v3147 = vpop.f32.mrb[0].mxu0
      %v3148 = vadd.f32 %v2399, %v3147
      %v3149 = vpop.f32.mrb[0].mxu0
      %v3150 = vpop.f32.mrb[0].mxu0
      %v3151 = vadd.f32 %v2399, %v3150
      %v3152 = vpop.f32.mrb[0].mxu0
      %3153 = vmatprep.mubr.bf16.mxu0 0
      %3154 = vmatmul.mubr.bf16.gmra.mrb[0].mxu0 %v2615
      %v3155 = vpop.f32.mrb[0].mxu0
      %v3156 = vadd.f32 %v2399, %v3155
      %v3157 = vpop.f32.mrb[0].mxu0
      %v3158 = vpop.f32.mrb[0].mxu0
      %v3159 = vadd.f32 %v2399, %v3158
      %v3160 = vpop.f32.mrb[0].mxu0
      %3161 = vdwg.mxu0
      %3162 = vst [vmem:[%s280] sm:$0xff] %v2652
      %3163 = vst [vmem:[%s280 + $0x8] sm:$0xff] %v2655
      %3164 = vst [vmem:[%s280 + $0x10] sm:$0xff] %v2660
      %3165 = vst [vmem:[%s280 + $0x18] sm:$0xff] %v2663
      %3166 = vst [vmem:[%s280 + $0x20] sm:$0xff] %v2668
      %3167 = vst [vmem:[%s280 + $0x28] sm:$0xff] %v2671
      %3168 = vst [vmem:[%s280 + $0x30] sm:$0xff] %v2676
      %3169 = vst [vmem:[%s280 + $0x38] sm:$0xff] %v2679
      %3170 = vst [vmem:[%s280 + $0x40] sm:$0xff] %v2684
      %3171 = vst [vmem:[%s280 + $0x48] sm:$0xff] %v2687
      %3172 = vst [vmem:[%s280 + $0x50] sm:$0xff] %v2692
      %3173 = vst [vmem:[%s280 + $0x58] sm:$0xff] %v2695
      %3174 = vst [vmem:[%s280 + $0x60] sm:$0xff] %v2700
      %3175 = vst [vmem:[%s280 + $0x68] sm:$0xff] %v2703
      %3176 = vst [vmem:[%s280 + $0x70] sm:$0xff] %v2708
      %3177 = vst [vmem:[%s280 + $0x78] sm:$0xff] %v2711
      %3178 = vst [vmem:[%s280 + $0x80] sm:$0xff] %v2716
      %3179 = vst [vmem:[%s280 + $0x88] sm:$0xff] %v2719
      %3180 = vst [vmem:[%s280 + $0x90] sm:$0xff] %v2724
      %3181 = vst [vmem:[%s280 + $0x98] sm:$0xff] %v2727
      %3182 = vst [vmem:[%s280 + $0xa0] sm:$0xff] %v2732
      %3183 = vst [vmem:[%s280 + $0xa8] sm:$0xff] %v2735
      %3184 = vst [vmem:[%s280 + $0xb0] sm:$0xff] %v2740
      %3185 = vst [vmem:[%s280 + $0xb8] sm:$0xff] %v2743
      %3186 = vst [vmem:[%s280 + $0xc0] sm:$0xff] %v2748
      %3187 = vst [vmem:[%s280 + $0xc8] sm:$0xff] %v2751
      %3188 = vst [vmem:[%s280 + $0xd0] sm:$0xff] %v2756
      %3189 = vst [vmem:[%s280 + $0xd8] sm:$0xff] %v2759
      %3190 = vst [vmem:[%s280 + $0xe0] sm:$0xff] %v2764
      %3191 = vst [vmem:[%s280 + $0xe8] sm:$0xff] %v2767
      %3192 = vst [vmem:[%s280 + $0xf0] sm:$0xff] %v2772
      %3193 = vst [vmem:[%s280 + $0xf8] sm:$0xff] %v2775
      %3194 = vst [vmem:[%s280 + $0x100] sm:$0xff] %v2780
      %3195 = vst [vmem:[%s280 + $0x108] sm:$0xff] %v2783
      %3196 = vst [vmem:[%s280 + $0x110] sm:$0xff] %v2788
      %3197 = vst [vmem:[%s280 + $0x118] sm:$0xff] %v2791
      %3198 = vst [vmem:[%s280 + $0x120] sm:$0xff] %v2796
      %3199 = vst [vmem:[%s280 + $0x128] sm:$0xff] %v2799
      %3200 = vst [vmem:[%s280 + $0x130] sm:$0xff] %v2804
      %3201 = vst [vmem:[%s280 + $0x138] sm:$0xff] %v2807
      %3202 = vst [vmem:[%s280 + $0x140] sm:$0xff] %v2812
      %3203 = vst [vmem:[%s280 + $0x148] sm:$0xff] %v2815
      %3204 = vst [vmem:[%s280 + $0x150] sm:$0xff] %v2820
      %3205 = vst [vmem:[%s280 + $0x158] sm:$0xff] %v2823
      %3206 = vst [vmem:[%s280 + $0x160] sm:$0xff] %v2828
      %3207 = vst [vmem:[%s280 + $0x168] sm:$0xff] %v2831
      %3208 = vst [vmem:[%s280 + $0x170] sm:$0xff] %v2836
      %3209 = vst [vmem:[%s280 + $0x178] sm:$0xff] %v2839
      %3210 = vst [vmem:[%s280 + $0x180] sm:$0xff] %v2844
      %3211 = vst [vmem:[%s280 + $0x188] sm:$0xff] %v2847
      %3212 = vst [vmem:[%s280 + $0x190] sm:$0xff] %v2852
      %3213 = vst [vmem:[%s280 + $0x198] sm:$0xff] %v2855
      %3214 = vst [vmem:[%s280 + $0x1a0] sm:$0xff] %v2860
      %3215 = vst [vmem:[%s280 + $0x1a8] sm:$0xff] %v2863
      %3216 = vst [vmem:[%s280 + $0x1b0] sm:$0xff] %v2868
      %3217 = vst [vmem:[%s280 + $0x1b8] sm:$0xff] %v2871
      %3218 = vst [vmem:[%s280 + $0x1c0] sm:$0xff] %v2876
      %3219 = vst [vmem:[%s280 + $0x1c8] sm:$0xff] %v2879
      %3220 = vst [vmem:[%s280 + $0x1d0] sm:$0xff] %v2884
      %3221 = vst [vmem:[%s280 + $0x1d8] sm:$0xff] %v2887
      %3222 = vst [vmem:[%s280 + $0x1e0] sm:$0xff] %v2892
      %3223 = vst [vmem:[%s280 + $0x1e8] sm:$0xff] %v2895
      %3224 = vst [vmem:[%s280 + $0x1f0] sm:$0xff] %v2900
      %3225 = vst [vmem:[%s280 + $0x1f8] sm:$0xff] %v2903
      %3226 = vst [vmem:[%s280 + $0x200] sm:$0xff] %v2908
      %3227 = vst [vmem:[%s280 + $0x208] sm:$0xff] %v2911
      %3228 = vst [vmem:[%s280 + $0x210] sm:$0xff] %v2916
      %3229 = vst [vmem:[%s280 + $0x218] sm:$0xff] %v2919
      %3230 = vst [vmem:[%s280 + $0x220] sm:$0xff] %v2924
      %3231 = vst [vmem:[%s280 + $0x228] sm:$0xff] %v2927
      %3232 = vst [vmem:[%s280 + $0x230] sm:$0xff] %v2932
      %3233 = vst [vmem:[%s280 + $0x238] sm:$0xff] %v2935
      %3234 = vst [vmem:[%s280 + $0x240] sm:$0xff] %v2940
      %3235 = vst [vmem:[%s280 + $0x248] sm:$0xff] %v2943
      %3236 = vst [vmem:[%s280 + $0x250] sm:$0xff] %v2948
      %3237 = vst [vmem:[%s280 + $0x258] sm:$0xff] %v2951
      %3238 = vst [vmem:[%s280 + $0x260] sm:$0xff] %v2956
      %3239 = vst [vmem:[%s280 + $0x268] sm:$0xff] %v2959
      %3240 = vst [vmem:[%s280 + $0x270] sm:$0xff] %v2964
      %3241 = vst [vmem:[%s280 + $0x278] sm:$0xff] %v2967
      %3242 = vst [vmem:[%s280 + $0x280] sm:$0xff] %v2972
      %3243 = vst [vmem:[%s280 + $0x288] sm:$0xff] %v2975
      %3244 = vst [vmem:[%s280 + $0x290] sm:$0xff] %v2980
      %3245 = vst [vmem:[%s280 + $0x298] sm:$0xff] %v2983
      %3246 = vst [vmem:[%s280 + $0x2a0] sm:$0xff] %v2988
      %3247 = vst [vmem:[%s280 + $0x2a8] sm:$0xff] %v2991
      %3248 = vst [vmem:[%s280 + $0x2b0] sm:$0xff] %v2996
      %3249 = vst [vmem:[%s280 + $0x2b8] sm:$0xff] %v2999
      %3250 = vst [vmem:[%s280 + $0x2c0] sm:$0xff] %v3004
      %3251 = vst [vmem:[%s280 + $0x2c8] sm:$0xff] %v3007
      %3252 = vst [vmem:[%s280 + $0x2d0] sm:$0xff] %v3012
      %3253 = vst [vmem:[%s280 + $0x2d8] sm:$0xff] %v3015
      %3254 = vst [vmem:[%s280 + $0x2e0] sm:$0xff] %v3020
      %3255 = vst [vmem:[%s280 + $0x2e8] sm:$0xff] %v3023
      %3256 = vst [vmem:[%s280 + $0x2f0] sm:$0xff] %v3028
      %3257 = vst [vmem:[%s280 + $0x2f8] sm:$0xff] %v3031
      %3258 = vst [vmem:[%s280 + $0x300] sm:$0xff] %v3036
      %3259 = vst [vmem:[%s280 + $0x308] sm:$0xff] %v3039
      %3260 = vst [vmem:[%s280 + $0x310] sm:$0xff] %v3044
      %3261 = vst [vmem:[%s280 + $0x318] sm:$0xff] %v3047
      %3262 = vst [vmem:[%s280 + $0x320] sm:$0xff] %v3052
      %3263 = vst [vmem:[%s280 + $0x328] sm:$0xff] %v3055
      %3264 = vst [vmem:[%s280 + $0x330] sm:$0xff] %v3060
      %3265 = vst [vmem:[%s280 + $0x338] sm:$0xff] %v3063
      %3266 = vst [vmem:[%s280 + $0x340] sm:$0xff] %v3068
      %3267 = vst [vmem:[%s280 + $0x348] sm:$0xff] %v3071
      %3268 = vst [vmem:[%s280 + $0x350] sm:$0xff] %v3076
      %3269 = vst [vmem:[%s280 + $0x358] sm:$0xff] %v3079
      %3270 = vst [vmem:[%s280 + $0x360] sm:$0xff] %v3084
      %3271 = vst [vmem:[%s280 + $0x368] sm:$0xff] %v3087
      %3272 = vst [vmem:[%s280 + $0x370] sm:$0xff] %v3092
      %3273 = vst [vmem:[%s280 + $0x378] sm:$0xff] %v3095
      %3274 = vst [vmem:[%s280 + $0x380] sm:$0xff] %v3100
      %3275 = vst [vmem:[%s280 + $0x388] sm:$0xff] %v3103
      %3276 = vst [vmem:[%s280 + $0x390] sm:$0xff] %v3108
      %3277 = vst [vmem:[%s280 + $0x398] sm:$0xff] %v3111
      %3278 = vst [vmem:[%s280 + $0x3a0] sm:$0xff] %v3116
      %3279 = vst [vmem:[%s280 + $0x3a8] sm:$0xff] %v3119
      %3280 = vst [vmem:[%s280 + $0x3b0] sm:$0xff] %v3124
      %3281 = vst [vmem:[%s280 + $0x3b8] sm:$0xff] %v3127
      %3282 = vst [vmem:[%s280 + $0x3c0] sm:$0xff] %v3132
      %3283 = vst [vmem:[%s280 + $0x3c8] sm:$0xff] %v3135
      %3284 = vst [vmem:[%s280 + $0x3d0] sm:$0xff] %v3140
      %3285 = vst [vmem:[%s280 + $0x3d8] sm:$0xff] %v3143
      %3286 = vst [vmem:[%s280 + $0x3e0] sm:$0xff] %v3148
      %3287 = vst [vmem:[%s280 + $0x3e8] sm:$0xff] %v3151
      %3288 = vst [vmem:[%s280 + $0x3f0] sm:$0xff] %v3156
      %3289 = vst [vmem:[%s280 + $0x3f8] sm:$0xff] %v3159
      %s3290 = smul.u32 128, %s18
      %p3291 = scmp.lt.s32.totalorder %s3290, 511
      %s3292 = scalar_select %p3291, %s3290, 511
      %s3293 = smul.addr %s3292, 8
      %s3294 = scalar_lea.vmem %s7, %s3293
      // Predicated region
      $region49: #{sunerf_forward.8} parent=47 // pred_check
        %p3295 = pneg %p188
      $region50: #{sunerf_forward.8} parent=47 // pred_check_branch
        %3297 = sbr.rel (%p3295) target = $region52
      $region51: #{sunerf_forward.8} parent=47 // pred_region
        %s3298 = smul.u32 128, %s18
      $region52: #{sunerf_forward.8} parent=47 // pred_fallthru
        _
    $region48: #{sunerf_forward.8} parent=5 // pred_fallthru
      _
    %p3299 = scmp.le.s32.totalorder 2, %s13
    // Predicated region
    $region53: #{sunerf_forward.8} parent=5 // pred_check
      %p3300 = pneg %p3299
    $region54: #{sunerf_forward.8} parent=5 // pred_check_branch
      %3302 = sbr.rel (%p3300) target = $region56
    $region55: #{sunerf_forward.8} parent=5 // pred_region
      %s3303 = ssub.s32 %s13, 2
      // Predicated region
      $region57: #{sunerf_forward.8} parent=55 // pred_check
        %p3304 = pneg %p194
      $region58: #{sunerf_forward.8} parent=55 // pred_check_branch
        %3306 = sbr.rel (%p3304) target = $region60
      $region59: #{sunerf_forward.8} parent=55 // pred_region
        %s3307 = smul.u32 128, %s19
        %p3308 = scmp.lt.s32.totalorder %s3307, 511
        %s3309 = scalar_select %p3308, %s3307, 511
        %s3310 = smul.addr %s3309, 8
        %s3311 = scalar_lea.vmem %s7, %s3310
      $region60: #{sunerf_forward.8} parent=55 // pred_fallthru
        _
    $region56: #{sunerf_forward.8} parent=5 // pred_fallthru
      _
  $region6: #{sunerf_forward.8} parent=0 // loop_footer
    %s17 = sadd.s32 1, %s13
  $region7: #{sunerf_forward.8} parent=0 // loop_footer_branch
    %12 = sbr.rel target = $region3
  $region8: #{sunerf_forward.8} parent=0 // loop_exit
    _

// kernel: sunerf_forward.9
$region0: #{sunerf_forward.9}
  #allocation0 [shape = 'u32[]', space=smem, size = 0x4, offset = 0x4, fixed_abs, tag = 'smem constant byte address 0x4 - core index']
  #allocation1 [shape = 'u32[144,128]{1,0:T(1,128)}', space=vmem, size = 0x12000, scoped, tag = 'internal scratch']
  %s0 = inlined_call_operand.vmem [shape: f32[64,64], index: 0, kind: input, shape index: {}]
  %s1 = inlined_call_operand.vmem [shape: f32[64,64], index: 1, kind: input, shape index: {}]
  %s2 = inlined_call_operand.vmem [shape: f32[64,64], index: 2, kind: input, shape index: {}]
  %s3 = inlined_call_operand.vmem [shape: f32[64,64], index: 3, kind: input, shape index: {}]
  %s4 = inlined_call_operand.vmem [shape: f32[64,64], index: 4, kind: input, shape index: {}]
  %s5 = inlined_call_operand.vmem [shape: f32[64,1], index: 5, kind: output, shape index: {0}]
  %s6 = inlined_call_operand.hbm [shape: f32[64,64], index: 6, kind: output, shape index: {1}]
  %s7 = inlined_call_operand.hbm [shape: f32[64,64], index: 7, kind: output, shape index: {2}]
  %s8 = inlined_call_operand.vmem [shape: f32[64,1], index: 8, kind: output, shape index: {3}]
  %s9 = inlined_call_operand.hbm [shape: f32[64,64], index: 9, kind: output, shape index: {4}]
  %s10 = inlined_call_operand.hbm [shape: f32[64,64], index: 10, kind: output, shape index: {5}]
  %11 = xla_tuple %s5, %s6, %s7, %s8, %s9, %s10
  %s12 = sld [smem:[#allocation0]]
  $region70: #{sunerf_forward.9} parent=0
    _
  %s14 = ssub.s32 1, %s12
  %s15 = scalar_select 0, %s14, %s12
  $region1: #{sunerf_forward.9} parent=0
    #allocation2 [shape = 'u8[32768]{0}', space=vmem, size = 0x8000, scoped, tag = 'output window, operand 1, single buffered']
    #allocation3 [shape = 's32[1]{0}', space=sflag, size = 0x4, scoped, tag = 'scoped memory for sunerf_forward.9']
    #allocation4 [shape = 'u8[32768]{0}', space=vmem, size = 0x8000, scoped, tag = 'output window, operand 2, single buffered']
    #allocation5 [shape = 's32[1]{0}', space=sflag, size = 0x4, scoped, tag = 'scoped memory for sunerf_forward.9']
    #allocation6 [shape = 'u8[32768]{0}', space=vmem, size = 0x8000, scoped, tag = 'output window, operand 4, single buffered']
    #allocation7 [shape = 'u8[32768]{0}', space=vmem, size = 0x8000, scoped, tag = 'output window, operand 5, single buffered']
    #allocation8 [shape = 's32[1]{0}', space=sflag, size = 0x4, scoped, tag = 'scoped memory for sunerf_forward.9']
    %16 = vsyncpa [#allocation3], 0
    %17 = vsyncpa [#allocation5], 0
    %18 = vsyncpa [#allocation8], 0
    // Predicated region
    $region2: #{sunerf_forward.9} parent=1 // pred_check
      _
    $region3: #{sunerf_forward.9} parent=1 // pred_check_branch
      %20 = sbr.rel (0) target = $region5
    $region4: #{sunerf_forward.9} parent=1 // pred_region
      _
    $region5: #{sunerf_forward.9} parent=1 // pred_fallthru
      _
    // Predicated region
    $region6: #{sunerf_forward.9} parent=1 // pred_check
      _
    $region7: #{sunerf_forward.9} parent=1 // pred_check_branch
      %22 = sbr.rel (0) target = $region9
    $region8: #{sunerf_forward.9} parent=1 // pred_region
      _
    $region9: #{sunerf_forward.9} parent=1 // pred_fallthru
      _
    // Predicated region
    $region10: #{sunerf_forward.9} parent=1 // pred_check
      _
    $region11: #{sunerf_forward.9} parent=1 // pred_check_branch
      %24 = sbr.rel (0) target = $region13
    $region12: #{sunerf_forward.9} parent=1 // pred_region
      _
    $region13: #{sunerf_forward.9} parent=1 // pred_fallthru
      _
    // Predicated region
    $region14: #{sunerf_forward.9} parent=1 // pred_check
      _
    $region15: #{sunerf_forward.9} parent=1 // pred_check_branch
      %26 = sbr.rel (0) target = $region17
    $region16: #{sunerf_forward.9} parent=1 // pred_region
      _
    $region17: #{sunerf_forward.9} parent=1 // pred_fallthru
      _
    // Predicated region
    $region18: #{sunerf_forward.9} parent=1 // pred_check
      _
    $region19: #{sunerf_forward.9} parent=1 // pred_check_branch
      %28 = sbr.rel (0) target = $region21
    $region20: #{sunerf_forward.9} parent=1 // pred_region
      _
    $region21: #{sunerf_forward.9} parent=1 // pred_fallthru
      _
    %v29 = vld [vmem:[%s1] sm:$0xff]
    %v30 = vld [vmem:[%s1 + $0x8] sm:$0xff]
    %v31 = vld [vmem:[%s1 + $0x10] sm:$0xff]
    %v32 = vld [vmem:[%s1 + $0x18] sm:$0xff]
    %v33 = vld [vmem:[%s1 + $0x20] sm:$0xff]
    %v34 = vld [vmem:[%s1 + $0x28] sm:$0xff]
    %v35 = vld [vmem:[%s1 + $0x30] sm:$0xff]
    %v36 = vld [vmem:[%s1 + $0x38] sm:$0xff]
    %v37 = vmax.f32 %v29, 0.0
    %v38 = vmax.f32 %v30, 0.0
    %v39 = vmax.f32 %v31, 0.0
    %v40 = vmax.f32 %v32, 0.0
    %v41 = vmax.f32 %v33, 0.0
    %v42 = vmax.f32 %v34, 0.0
    %v43 = vmax.f32 %v35, 0.0
    %v44 = vmax.f32 %v36, 0.0
    %v45 = vld [vmem:[%s2] sm:$0xff]
    %v46 = vld [vmem:[%s2 + $0x8] sm:$0xff]
    %v47 = vld [vmem:[%s2 + $0x10] sm:$0xff]
    %v48 = vld [vmem:[%s2 + $0x18] sm:$0xff]
    %v49 = vld [vmem:[%s2 + $0x20] sm:$0xff]
    %v50 = vld [vmem:[%s2 + $0x28] sm:$0xff]
    %v51 = vld [vmem:[%s2 + $0x30] sm:$0xff]
    %v52 = vld [vmem:[%s2 + $0x38] sm:$0xff]
    %v53 = vmax.f32 %v45, 0.0
    %v54 = vmax.f32 %v46, 0.0
    %v55 = vmax.f32 %v47, 0.0
    %v56 = vmax.f32 %v48, 0.0
    %v57 = vmax.f32 %v49, 0.0
    %v58 = vmax.f32 %v50, 0.0
    %v59 = vmax.f32 %v51, 0.0
    %v60 = vmax.f32 %v52, 0.0
    %v61 = vld [vmem:[%s3] sm:$0xff]
    %v62 = vld [vmem:[%s3 + $0x8] sm:$0xff]
    %v63 = vld [vmem:[%s3 + $0x10] sm:$0xff]
    %v64 = vld [vmem:[%s3 + $0x18] sm:$0xff]
    %v65 = vld [vmem:[%s3 + $0x20] sm:$0xff]
    %v66 = vld [vmem:[%s3 + $0x28] sm:$0xff]
    %v67 = vld [vmem:[%s3 + $0x30] sm:$0xff]
    %v68 = vld [vmem:[%s3 + $0x38] sm:$0xff]
    %v69 = vsub.f32 0.0, %v53
    %v70 = vsub.f32 0.0, %v54
    %v71 = vsub.f32 0.0, %v55
    %v72 = vsub.f32 0.0, %v56
    %v73 = vsub.f32 0.0, %v57
    %v74 = vsub.f32 0.0, %v58
    %v75 = vsub.f32 0.0, %v59
    %v76 = vsub.f32 0.0, %v60
    %v77 = vmul.f32 %v69, %v61
    %v78 = vmul.f32 %v70, %v62
    %v79 = vmul.f32 %v71, %v63
    %v80 = vmul.f32 %v72, %v64
    %v81 = vmul.f32 %v73, %v65
    %v82 = vmul.f32 %v74, %v66
    %v83 = vmul.f32 %v75, %v67
    %v84 = vmul.f32 %v76, %v68
    %v85 = vmul.f32 %v77, 1.442695
    %v86 = vpow.pop %v85
    %v87 = vmul.f32 %v78, 1.442695
    %v88 = vpow.pop %v87
    %v89 = vmul.f32 %v79, 1.442695
    %v90 = vpow.pop %v89
    %v91 = vmul.f32 %v80, 1.442695
    %v92 = vpow.pop %v91
    %v93 = vmul.f32 %v81, 1.442695
    %v94 = vpow.pop %v93
    %v95 = vmul.f32 %v82, 1.442695
    %v96 = vpow.pop %v95
    %v97 = vmul.f32 %v83, 1.442695
    %v98 = vpow.pop %v97
    %v99 = vmul.f32 %v84, 1.442695
    %v100 = vpow.pop %v99
    %v101 = vsub.f32 1.0, %v86
    %v102 = vsub.f32 1.0, %v88
    %v103 = vsub.f32 1.0, %v90
    %v104 = vsub.f32 1.0, %v92
    %v105 = vsub.f32 1.0, %v94
    %v106 = vsub.f32 1.0, %v96
    %v107 = vsub.f32 1.0, %v98
    %v108 = vsub.f32 1.0, %v100
    %v109 = vadd.f32 %v86, 1e-10
    %v110 = vadd.f32 %v88, 1e-10
    %v111 = vadd.f32 %v90, 1e-10
    %v112 = vadd.f32 %v92, 1e-10
    %v113 = vadd.f32 %v94, 1e-10
    %v114 = vadd.f32 %v96, 1e-10
    %v115 = vadd.f32 %v98, 1e-10
    %v116 = vadd.f32 %v100, 1e-10
    %v117 = vlog2.pop %v109
    %v118 = vmul.f32 %v117, 0.6931472
    %v119 = vlog2.pop %v110
    %v120 = vmul.f32 %v119, 0.6931472
    %v121 = vlog2.pop %v111
    %v122 = vmul.f32 %v121, 0.6931472
    %v123 = vlog2.pop %v112
    %v124 = vmul.f32 %v123, 0.6931472
    %v125 = vlog2.pop %v113
    %v126 = vmul.f32 %v125, 0.6931472
    %v127 = vlog2.pop %v114
    %v128 = vmul.f32 %v127, 0.6931472
    %v129 = vlog2.pop %v115
    %v130 = vmul.f32 %v129, 0.6931472
    %v131 = vlog2.pop %v116
    %v132 = vmul.f32 %v131, 0.6931472
    %v133 = vld [vmem:[%s0] sm:$0xff]
    %v134 = vld [vmem:[%s0 + $0x8] sm:$0xff]
    %v135 = vld [vmem:[%s0 + $0x10] sm:$0xff]
    %v136 = vld [vmem:[%s0 + $0x18] sm:$0xff]
    %v137 = vld [vmem:[%s0 + $0x20] sm:$0xff]
    %v138 = vld [vmem:[%s0 + $0x28] sm:$0xff]
    %v139 = vld [vmem:[%s0 + $0x30] sm:$0xff]
    %v140 = vld [vmem:[%s0 + $0x38] sm:$0xff]
    %vm141 = vcmask 523264
    %v143 = vsel %vm141, %v118, 0
    %v146 = vsel %vm141, %v120, 0
    %v149 = vsel %vm141, %v122, 0
    %v152 = vsel %vm141, %v124, 0
    %v155 = vsel %vm141, %v126, 0
    %v158 = vsel %vm141, %v128, 0
    %v161 = vsel %vm141, %v130, 0
    %v164 = vsel %vm141, %v132, 0
    %166 = vmatprep.subr.mxu0 0.0
    %167 = vmatpush1.msra.mxu0 %v133
    %168 = vmatprep.subr.mxu0 0.0
    %169 = vmatpush1.msra.mxu0 %v134
    %170 = vmatprep.subr.mxu0 0.0
    %171 = vmatpush1.msra.mxu0 %v135
    %172 = vmatprep.subr.mxu0 0.0
    %173 = vmatpush1.msra.mxu0 %v136
    %174 = vmatprep.subr.mxu0 0.0
    %175 = vmatpush1.msra.mxu0 %v137
    %176 = vmatprep.subr.mxu0 0.0
    %177 = vmatpush1.msra.mxu0 %v138
    %178 = vmatprep.subr.mxu0 0.0
    %179 = vmatpush1.msra.mxu0 %v139
    %180 = vmatprep.subr.mxu0 0.0
    %181 = vmatpush1.msra.mxu0 %v140
    %182 = vmatprep.subr.mxu0 0.0
    %183 = vmatpush1.msra.mxu0 0.0
    %184 = vmatprep.subr.mxu0 0.0
    %185 = vmatpush1.msra.mxu0 0.0
    %186 = vmatprep.subr.mxu0 0.0
    %187 = vmatpush1.msra.mxu0 0.0
    %188 = vmatprep.subr.mxu0 0.0
    %189 = vmatpush1.msra.mxu0 0.0
    %190 = vmatprep.subr.mxu0 0.0
    %191 = vmatpush1.msra.mxu0 0.0
    %192 = vmatprep.subr.mxu0 0.0
    %193 = vmatpush1.msra.mxu0 0.0
    %194 = vmatprep.subr.mxu0 0.0
    %195 = vmatpush1.msra.mxu0 0.0
    %196 = vmatprep.subr.mxu0 0.0
    %197 = vmatpush1.msra.mxu0 0.0
    %198 = vmatprep.subr.mxu0 0.0
    %199 = vmatpush1.msra.mxu0 0.0
    %200 = vmatprep.subr.mxu0 0.0
    %201 = vmatpush1.msra.mxu0 0.0
    %202 = vmatprep.subr.mxu0 0.0
    %203 = vmatpush1.msra.mxu0 0.0
    %204 = vmatprep.subr.mxu0 0.0
    %205 = vmatpush1.msra.mxu0 0.0
    %206 = vmatprep.subr.mxu0 0.0
    %207 = vmatpush1.msra.mxu0 0.0
    %208 = vmatprep.subr.mxu0 0.0
    %209 = vmatpush1.msra.mxu0 0.0
    %210 = vmatprep.subr.mxu0 0.0
    %211 = vmatpush1.msra.mxu0 0.0
    %212 = vmatprep.subr.mxu0 0.0
    %213 = vmatpush1.msra.mxu0 0.0
    %214 = vmatprep.subr.mxu0 0.0
    %215 = vmatpush1.msra.mxu0 0.0
    %216 = vmatprep.subr.mxu0 0.0
    %217 = vmatpush1.msra.mxu0 0.0
    %218 = vmatprep.subr.mxu0 0.0
    %219 = vmatpush1.msra.mxu0 0.0
    %220 = vmatprep.subr.mxu0 0.0
    %221 = vmatpush1.msra.mxu0 0.0
    %222 = vmatprep.subr.mxu0 0.0
    %223 = vmatpush1.msra.mxu0 0.0
    %224 = vmatprep.subr.mxu0 0.0
    %225 = vmatpush1.msra.mxu0 0.0
    %226 = vmatprep.subr.mxu0 0.0
    %227 = vmatpush1.msra.mxu0 0.0
    %228 = vmatprep.subr.mxu0 0.0
    %229 = vmatpush1.msra.mxu0 0.0
    %230 = vmatprep.mubr.f32.mxu0 0.0
    %231 = vmatmul.mubr.f32.gmra.mrb[0].mxu0 %v143
    %v232 = vpop.f32.mrb[0].mxu0
    %v233 = vadd.f32 0.0, %v232
    %v234 = vpop.f32.mrb[0].mxu0
    %235 = vmatprep.mubr.f32.mxu0 0.0
    %236 = vmatmul.mubr.f32.gmra.mrb[0].mxu0 %v146
    %v237 = vpop.f32.mrb[0].mxu0
    %v238 = vadd.f32 0.0, %v237
    %v239 = vpop.f32.mrb[0].mxu0
    %240 = vmatprep.mubr.f32.mxu0 0.0
    %241 = vmatmul.mubr.f32.gmra.mrb[0].mxu0 %v149
    %v242 = vpop.f32.mrb[0].mxu0
    %v243 = vadd.f32 0.0, %v242
    %v244 = vpop.f32.mrb[0].mxu0
    %245 = vmatprep.mubr.f32.mxu0 0.0
    %246 = vmatmul.mubr.f32.gmra.mrb[0].mxu0 %v152
    %v247 = vpop.f32.mrb[0].mxu0
    %v248 = vadd.f32 0.0, %v247
    %v249 = vpop.f32.mrb[0].mxu0
    %250 = vmatprep.mubr.f32.mxu0 0.0
    %251 = vmatmul.mubr.f32.gmra.mrb[0].mxu0 %v155
    %v252 = vpop.f32.mrb[0].mxu0
    %v253 = vadd.f32 0.0, %v252
    %v254 = vpop.f32.mrb[0].mxu0
    %255 = vmatprep.mubr.f32.mxu0 0.0
    %256 = vmatmul.mubr.f32.gmra.mrb[0].mxu0 %v158
    %v257 = vpop.f32.mrb[0].mxu0
    %v258 = vadd.f32 0.0, %v257
    %v259 = vpop.f32.mrb[0].mxu0
    %260 = vmatprep.mubr.f32.mxu0 0.0
    %261 = vmatmul.mubr.f32.gmra.mrb[0].mxu0 %v161
    %v262 = vpop.f32.mrb[0].mxu0
    %v263 = vadd.f32 0.0, %v262
    %v264 = vpop.f32.mrb[0].mxu0
    %265 = vmatprep.mubr.f32.mxu0 0.0
    %266 = vmatmul.mubr.f32.gmra.mrb[0].mxu0 %v164
    %v267 = vpop.f32.mrb[0].mxu0
    %v268 = vadd.f32 0.0, %v267
    %v269 = vpop.f32.mrb[0].mxu0
    %270 = vdwg.mxu0
    %v271 = vmul.f32 %v233, 1.442695
    %v272 = vpow.pop %v271
    %v273 = vmul.f32 %v238, 1.442695
    %v274 = vpow.pop %v273
    %v275 = vmul.f32 %v243, 1.442695
    %v276 = vpow.pop %v275
    %v277 = vmul.f32 %v248, 1.442695
    %v278 = vpow.pop %v277
    %v279 = vmul.f32 %v253, 1.442695
    %v280 = vpow.pop %v279
    %v281 = vmul.f32 %v258, 1.442695
    %v282 = vpow.pop %v281
    %v283 = vmul.f32 %v263, 1.442695
    %v284 = vpow.pop %v283
    %v285 = vmul.f32 %v268, 1.442695
    %v286 = vpow.pop %v285
    %v287 = vmul.f32 %v101, %v272
    %v288 = vmul.f32 %v102, %v274
    %v289 = vmul.f32 %v103, %v276
    %v290 = vmul.f32 %v104, %v278
    %v291 = vmul.f32 %v105, %v280
    %v292 = vmul.f32 %v106, %v282
    %v293 = vmul.f32 %v107, %v284
    %v294 = vmul.f32 %v108, %v286
    %v295 = vld [vmem:[%s4] sm:$0xff]
    %v296 = vld [vmem:[%s4 + $0x8] sm:$0xff]
    %v297 = vld [vmem:[%s4 + $0x10] sm:$0xff]
    %v298 = vld [vmem:[%s4 + $0x18] sm:$0xff]
    %v299 = vld [vmem:[%s4 + $0x20] sm:$0xff]
    %v300 = vld [vmem:[%s4 + $0x28] sm:$0xff]
    %v301 = vld [vmem:[%s4 + $0x30] sm:$0xff]
    %v302 = vld [vmem:[%s4 + $0x38] sm:$0xff]
    %303 = vst.msk [vmem:[#allocation2] sm:$0xff] %vm141, %v287
    %304 = vst.msk [vmem:[#allocation2 + $0x8] sm:$0xff] %vm141, %v288
    %305 = vst.msk [vmem:[#allocation2 + $0x10] sm:$0xff] %vm141, %v289
    %306 = vst.msk [vmem:[#allocation2 + $0x18] sm:$0xff] %vm141, %v290
    %307 = vst.msk [vmem:[#allocation2 + $0x20] sm:$0xff] %vm141, %v291
    %308 = vst.msk [vmem:[#allocation2 + $0x28] sm:$0xff] %vm141, %v292
    %309 = vst.msk [vmem:[#allocation2 + $0x30] sm:$0xff] %vm141, %v293
    %310 = vst.msk [vmem:[#allocation2 + $0x38] sm:$0xff] %vm141, %v294
    %311 = vst.msk [vmem:[#allocation4] sm:$0xff] %vm141, %v86
    %312 = vst.msk [vmem:[#allocation4 + $0x8] sm:$0xff] %vm141, %v88
    %313 = vst.msk [vmem:[#allocation4 + $0x10] sm:$0xff] %vm141, %v90
    %314 = vst.msk [vmem:[#allocation4 + $0x18] sm:$0xff] %vm141, %v92
    %315 = vst.msk [vmem:[#allocation4 + $0x20] sm:$0xff] %vm141, %v94
    %316 = vst.msk [vmem:[#allocation4 + $0x28] sm:$0xff] %vm141, %v96
    %317 = vst.msk [vmem:[#allocation4 + $0x30] sm:$0xff] %vm141, %v98
    %318 = vst.msk [vmem:[#allocation4 + $0x38] sm:$0xff] %vm141, %v100
    %v319 = vmul.f32 %v287, %v37
    %v320 = vmul.f32 %v288, %v38
    %v321 = vmul.f32 %v289, %v39
    %v322 = vmul.f32 %v290, %v40
    %v323 = vmul.f32 %v291, %v41
    %v324 = vmul.f32 %v292, %v42
    %v325 = vmul.f32 %v293, %v43
    %v326 = vmul.f32 %v294, %v44
    %v327 = vsel %vm141, %v319, 0.0
    %328 = vadd.xlane.f32.xlu0 %v327
    %v329 = vpop.xlane.xlu0 %328
    %v330 = vsel %vm141, %v320, 0.0
    %331 = vadd.xlane.f32.xlu0 %v330
    %v332 = vpop.xlane.xlu0 %331
    %v333 = vsel %vm141, %v321, 0.0
    %334 = vadd.xlane.f32.xlu0 %v333
    %v335 = vpop.xlane.xlu0 %334
    %v336 = vsel %vm141, %v322, 0.0
    %337 = vadd.xlane.f32.xlu0 %v336
    %v338 = vpop.xlane.xlu0 %337
    %v339 = vsel %vm141, %v323, 0.0
    %340 = vadd.xlane.f32.xlu0 %v339
    %v341 = vpop.xlane.xlu0 %340
    %v342 = vsel %vm141, %v324, 0.0
    %343 = vadd.xlane.f32.xlu0 %v342
    %v344 = vpop.xlane.xlu0 %343
    %v345 = vsel %vm141, %v325, 0.0
    %346 = vadd.xlane.f32.xlu0 %v345
    %v347 = vpop.xlane.xlu0 %346
    %v348 = vsel %vm141, %v326, 0.0
    %349 = vadd.xlane.f32.xlu0 %v348
    %v350 = vpop.xlane.xlu0 %349
    %vm351 = vcmask 7168
    %352 = vst.msk [vmem:[%s5] sm:$0xff] %vm351, %v329
    %353 = vst.msk [vmem:[%s5 + $0x8] sm:$0xff] %vm351, %v332
    %354 = vst.msk [vmem:[%s5 + $0x10] sm:$0xff] %vm351, %v335
    %355 = vst.msk [vmem:[%s5 + $0x18] sm:$0xff] %vm351, %v338
    %356 = vst.msk [vmem:[%s5 + $0x20] sm:$0xff] %vm351, %v341
    %357 = vst.msk [vmem:[%s5 + $0x28] sm:$0xff] %vm351, %v344
    %358 = vst.msk [vmem:[%s5 + $0x30] sm:$0xff] %vm351, %v347
    %359 = vst.msk [vmem:[%s5 + $0x38] sm:$0xff] %vm351, %v350
    %v360 = vmul.f32 %v287, %v295
    %v361 = vmul.f32 %v288, %v296
    %v362 = vmul.f32 %v289, %v297
    %v363 = vmul.f32 %v290, %v298
    %v364 = vmul.f32 %v291, %v299
    %v365 = vmul.f32 %v292, %v300
    %v366 = vmul.f32 %v293, %v301
    %v367 = vmul.f32 %v294, %v302
    %v368 = vsel %vm141, %v360, 0.0
    %369 = vadd.xlane.f32.xlu0 %v368
    %v370 = vpop.xlane.xlu0 %369
    %v371 = vsel %vm141, %v361, 0.0
    %372 = vadd.xlane.f32.xlu0 %v371
    %v373 = vpop.xlane.xlu0 %372
    %v374 = vsel %vm141, %v362, 0.0
    %375 = vadd.xlane.f32.xlu0 %v374
    %v376 = vpop.xlane.xlu0 %375
    %v377 = vsel %vm141, %v363, 0.0
    %378 = vadd.xlane.f32.xlu0 %v377
    %v379 = vpop.xlane.xlu0 %378
    %v380 = vsel %vm141, %v364, 0.0
    %381 = vadd.xlane.f32.xlu0 %v380
    %v382 = vpop.xlane.xlu0 %381
    %v383 = vsel %vm141, %v365, 0.0
    %384 = vadd.xlane.f32.xlu0 %v383
    %v385 = vpop.xlane.xlu0 %384
    %v386 = vsel %vm141, %v366, 0.0
    %387 = vadd.xlane.f32.xlu0 %v386
    %v388 = vpop.xlane.xlu0 %387
    %v389 = vsel %vm141, %v367, 0.0
    %390 = vadd.xlane.f32.xlu0 %v389
    %v391 = vpop.xlane.xlu0 %390
    %392 = vst.msk [vmem:[%s8] sm:$0xff] %vm351, %v370
    %393 = vst.msk [vmem:[%s8 + $0x8] sm:$0xff] %vm351, %v373
    %394 = vst.msk [vmem:[%s8 + $0x10] sm:$0xff] %vm351, %v376
    %395 = vst.msk [vmem:[%s8 + $0x18] sm:$0xff] %vm351, %v379
    %396 = vst.msk [vmem:[%s8 + $0x20] sm:$0xff] %vm351, %v382
    %397 = vst.msk [vmem:[%s8 + $0x28] sm:$0xff] %vm351, %v385
    %398 = vst.msk [vmem:[%s8 + $0x30] sm:$0xff] %vm351, %v388
    %399 = vst.msk [vmem:[%s8 + $0x38] sm:$0xff] %vm351, %v391
    %400 = vst.msk [vmem:[#allocation6] sm:$0xff] %vm141, %v101
    %401 = vst.msk [vmem:[#allocation6 + $0x8] sm:$0xff] %vm141, %v102
    %402 = vst.msk [vmem:[#allocation6 + $0x10] sm:$0xff] %vm141, %v103
    %403 = vst.msk [vmem:[#allocation6 + $0x18] sm:$0xff] %vm141, %v104
    %404 = vst.msk [vmem:[#allocation6 + $0x20] sm:$0xff] %vm141, %v105
    %405 = vst.msk [vmem:[#allocation6 + $0x28] sm:$0xff] %vm141, %v106
    %406 = vst.msk [vmem:[#allocation6 + $0x30] sm:$0xff] %vm141, %v107
    %407 = vst.msk [vmem:[#allocation6 + $0x38] sm:$0xff] %vm141, %v108
    %v408 = vsub.f32 %v295, 1.2
    %v409 = vsub.f32 %v296, 1.2
    %v410 = vsub.f32 %v297, 1.2
    %v411 = vsub.f32 %v298, 1.2
    %v412 = vsub.f32 %v299, 1.2
    %v413 = vsub.f32 %v300, 1.2
    %v414 = vsub.f32 %v301, 1.2
    %v415 = vsub.f32 %v302, 1.2
    %v416 = vmax.f32 %v408, 0.0
    %v417 = vmax.f32 %v409, 0.0
    %v418 = vmax.f32 %v410, 0.0
    %v419 = vmax.f32 %v411, 0.0
    %v420 = vmax.f32 %v412, 0.0
    %v421 = vmax.f32 %v413, 0.0
    %v422 = vmax.f32 %v414, 0.0
    %v423 = vmax.f32 %v415, 0.0
    %v424 = vmul.f32 %v416, %v101
    %v425 = vmul.f32 %v417, %v102
    %v426 = vmul.f32 %v418, %v103
    %v427 = vmul.f32 %v419, %v104
    %v428 = vmul.f32 %v420, %v105
    %v429 = vmul.f32 %v421, %v106
    %v430 = vmul.f32 %v422, %v107
    %v431 = vmul.f32 %v423, %v108
    %432 = vst.msk [vmem:[#allocation7] sm:$0xff] %vm141, %v424
    %433 = vst.msk [vmem:[#allocation7 + $0x8] sm:$0xff] %vm141, %v425
    %434 = vst.msk [vmem:[#allocation7 + $0x10] sm:$0xff] %vm141, %v426
    %435 = vst.msk [vmem:[#allocation7 + $0x18] sm:$0xff] %vm141, %v427
    %436 = vst.msk [vmem:[#allocation7 + $0x20] sm:$0xff] %vm141, %v428
    %437 = vst.msk [vmem:[#allocation7 + $0x28] sm:$0xff] %vm141, %v429
    %438 = vst.msk [vmem:[#allocation7 + $0x30] sm:$0xff] %vm141, %v430
    %439 = vst.msk [vmem:[#allocation7 + $0x38] sm:$0xff] %vm141, %v431
    // Predicated region
    $region22: #{sunerf_forward.9} parent=1 // pred_check
      _
    $region23: #{sunerf_forward.9} parent=1 // pred_check_branch
      %441 = sbr.rel (0) target = $region25
    $region24: #{sunerf_forward.9} parent=1 // pred_region
      _
    $region25: #{sunerf_forward.9} parent=1 // pred_fallthru
      _
    // Predicated region
    $region26: #{sunerf_forward.9} parent=1 // pred_check
      _
    $region27: #{sunerf_forward.9} parent=1 // pred_check_branch
      %443 = sbr.rel (0) target = $region29
    $region28: #{sunerf_forward.9} parent=1 // pred_region
      %s445 = ssub.s32 1024, 1024
      %446 = vsyncadd [#allocation3], %s445
      %s447 = sshll.u32 [#allocation2], 4
      %s448 = int_to_ptr.vmem [resolvable:$true] %s447
      %453 = dma.vmem_to_hbm [thread:$0]  %s448, 1024, %s6, [#allocation3], 128, 128, 8
    $region29: #{sunerf_forward.9} parent=1 // pred_fallthru
      _
    // Predicated region
    $region30: #{sunerf_forward.9} parent=1 // pred_check
      _
    $region31: #{sunerf_forward.9} parent=1 // pred_check_branch
      %455 = sbr.rel (0) target = $region33
    $region32: #{sunerf_forward.9} parent=1 // pred_region
      %s457 = ssub.s32 1024, 1024
      %458 = vsyncadd [#allocation5], %s457
      %s459 = sshll.u32 [#allocation4], 4
      %s460 = int_to_ptr.vmem [resolvable:$true] %s459
      %465 = dma.vmem_to_hbm [thread:$0]  %s460, 1024, %s7, [#allocation5], 128, 128, 8
    $region33: #{sunerf_forward.9} parent=1 // pred_fallthru
      _
    // Predicated region
    $region34: #{sunerf_forward.9} parent=1 // pred_check
      _
    $region35: #{sunerf_forward.9} parent=1 // pred_check_branch
      %467 = sbr.rel (0) target = $region37
    $region36: #{sunerf_forward.9} parent=1 // pred_region
      _
    $region37: #{sunerf_forward.9} parent=1 // pred_fallthru
      _
    // Predicated region
    $region38: #{sunerf_forward.9} parent=1 // pred_check
      _
    $region39: #{sunerf_forward.9} parent=1 // pred_check_branch
      %469 = sbr.rel (0) target = $region41
    $region40: #{sunerf_forward.9} parent=1 // pred_region
      %s471 = ssub.s32 1024, 1024
      %472 = vsyncadd [#allocation5], %s471
      %s473 = sshll.u32 [#allocation6], 4
      %s474 = int_to_ptr.vmem [resolvable:$true] %s473
      %479 = dma.vmem_to_hbm [thread:$0]  %s474, 1024, %s9, [#allocation5], 128, 128, 8
    $region41: #{sunerf_forward.9} parent=1 // pred_fallthru
      _
    // Predicated region
    $region42: #{sunerf_forward.9} parent=1 // pred_check
      _
    $region43: #{sunerf_forward.9} parent=1 // pred_check_branch
      %481 = sbr.rel (0) target = $region45
    $region44: #{sunerf_forward.9} parent=1 // pred_region
      %s483 = ssub.s32 1024, 1024
      %484 = vsyncadd [#allocation8], %s483
      %s485 = sshll.u32 [#allocation7], 4
      %s486 = int_to_ptr.vmem [resolvable:$true] %s485
      %491 = dma.vmem_to_hbm [thread:$0]  %s486, 1024, %s10, [#allocation8], 128, 128, 8
    $region45: #{sunerf_forward.9} parent=1 // pred_fallthru
      _
    // Predicated region
    $region46: #{sunerf_forward.9} parent=1 // pred_check
      _
    $region47: #{sunerf_forward.9} parent=1 // pred_check_branch
      %493 = sbr.rel (0) target = $region49
    $region48: #{sunerf_forward.9} parent=1 // pred_region
      _
    $region49: #{sunerf_forward.9} parent=1 // pred_fallthru
      _
    // Predicated region
    $region50: #{sunerf_forward.9} parent=1 // pred_check
      _
    $region51: #{sunerf_forward.9} parent=1 // pred_check_branch
      %495 = sbr.rel (0) target = $region53
    $region52: #{sunerf_forward.9} parent=1 // pred_region
      %496 = dma.done [#allocation3], 1024
    $region53: #{sunerf_forward.9} parent=1 // pred_fallthru
      _
    // Predicated region
    $region54: #{sunerf_forward.9} parent=1 // pred_check
      _
    $region55: #{sunerf_forward.9} parent=1 // pred_check_branch
      %498 = sbr.rel (0) target = $region57
    $region56: #{sunerf_forward.9} parent=1 // pred_region
      %499 = dma.done [#allocation5], 1024
    $region57: #{sunerf_forward.9} parent=1 // pred_fallthru
      _
    // Predicated region
    $region58: #{sunerf_forward.9} parent=1 // pred_check
      _
    $region59: #{sunerf_forward.9} parent=1 // pred_check_branch
      %501 = sbr.rel (0) target = $region61
    $region60: #{sunerf_forward.9} parent=1 // pred_region
      _
    $region61: #{sunerf_forward.9} parent=1 // pred_fallthru
      _
    // Predicated region
    $region62: #{sunerf_forward.9} parent=1 // pred_check
      _
    $region63: #{sunerf_forward.9} parent=1 // pred_check_branch
      %503 = sbr.rel (0) target = $region65
    $region64: #{sunerf_forward.9} parent=1 // pred_region
      %504 = dma.done [#allocation5], 1024
    $region65: #{sunerf_forward.9} parent=1 // pred_fallthru
      _
    // Predicated region
    $region66: #{sunerf_forward.9} parent=1 // pred_check
      _
    $region67: #{sunerf_forward.9} parent=1 // pred_check_branch
      %506 = sbr.rel (0) target = $region69
    $region68: #{sunerf_forward.9} parent=1 // pred_region
      %507 = dma.done [#allocation8], 1024
    $region69: #{sunerf_forward.9} parent=1 // pred_fallthru
      _
    %508 = vsyncpa [#allocation3], 1
    %509 = vsyncpa [#allocation5], 1
    %510 = vsyncpa [#allocation8], 1

</llo_original>
